<compile_context>
chip_gen: v7x
topology: tpu7x:2x2x1
jax: 0.10.0
libtpu: 0.0.40
codegen_flags: <defaults>
</compile_context>

<pallas_src>
import functools

import jax
import jax.numpy as jnp
from jax import lax
from jax.experimental import pallas as pl
from jax.experimental.pallas import tpu as pltpu


def _round_up(x, m):
    return (x + m - 1) // m * m


# ------------------------------------------------------------------
# Fused Pallas kernel: N-layer pointwise MLP (+ optional fused group max)
# ------------------------------------------------------------------

def fused_mlp(x, layers, *, relu_last=True, group_k=None, max_rows_per_step=2048):
    """Fused chain of 1x1-conv + folded-BN + ReLU layers, optionally followed by a
    per-group max over contiguous blocks of `group_k` rows.

    x      : [M, Cin] float32 (rows are points, or group-major samples if group_k).
    layers : list of (w_fused [Cin_i, Cout_i] f32, bias [Cout_i] f32); BN scale already
             folded into w_fused, bias = beta + (conv_b - mean) * scale.
    group_k: if not None, M = G*group_k and the output is the per-group max -> [G, Cout];
             otherwise -> [M, Cout].
    """
    m, cin = x.shape
    n_layers = len(layers)
    cout_last = layers[-1][0].shape[1]

    # Pad the contraction dim only to the f32 sublane granule (8), not to 128.
    cin_p = _round_up(cin, 8)

    # ---- choose row tiling --------------------------------------------------
    if group_k is None:
        m8 = _round_up(m, 8)
        if m8 <= 8:
            tm = m8                                       # single full block (== full dim)
        else:
            tm = min(max_rows_per_step, _round_up((m8 + 1) // 2, 8))   # >=2 grid steps
        m_p = _round_up(m8, tm)
        out_rows_p, out_rows, out_block_rows = m_p, m, tm
    else:
        k = group_k
        assert k % 8 == 0 and m % k == 0
        g = m // k
        if g <= 8:
            tg = g                                        # single full block (== full dim)
        else:
            tg = _round_up((g + 1) // 2, 8)               # aim for 2 parallel grid steps
            cap = max(8, (max_rows_per_step // k) // 8 * 8)
            tg = min(tg, cap)
        g_p = _round_up(g, tg)
        tm = tg * k
        m_p = g_p * k
        out_rows_p, out_rows, out_block_rows = g_p, g, tg

    # ---- operands (weight pads/casts fold into jit-time constants) ----------
    x_p = jnp.pad(x.astype(jnp.float32), ((0, m_p - m), (0, cin_p - cin))).astype(jnp.bfloat16)

    w_list, b_list = [], []
    for li, (w, b) in enumerate(layers):
        w = w.astype(jnp.float32)
        if li == 0 and w.shape[0] != cin_p:
            w = jnp.pad(w, ((0, cin_p - w.shape[0]), (0, 0)))
        w_list.append(w.astype(jnp.bfloat16))
        b_list.append(b.astype(jnp.float32).reshape(1, -1))

    # ---- kernel --------------------------------------------------------------
    def kernel(*refs):
        x_ref, o_ref = refs[0], refs[-1]
        h = x_ref[...]                                           # [tm, cin_p] bf16
        for i in range(n_layers):
            w_ref = refs[1 + 2 * i]
            b_ref = refs[2 + 2 * i]
            y = jnp.dot(h, w_ref[...], preferred_element_type=jnp.float32)
            y = y + b_ref[...]                                   # f32 epilogue (bias only)
            if i < n_layers - 1 or relu_last:
                y = jnp.maximum(y, 0.0)
            h = y.astype(jnp.bfloat16) if i < n_layers - 1 else y
        if group_k is None:
            o_ref[...] = h.astype(o_ref.dtype)
        else:
            rows, cout = h.shape
            hg = h.reshape(rows // group_k, group_k, cout)       # layout no-op split
            o_ref[...] = jnp.max(hg, axis=1).astype(o_ref.dtype)

    in_specs = [pl.BlockSpec((tm, cin_p), lambda i: (i, 0))]
    operands = [x_p]
    for w, b in zip(w_list, b_list):
        in_specs.append(pl.BlockSpec(w.shape, lambda i: (0, 0)))   # resident weight
        in_specs.append(pl.BlockSpec(b.shape, lambda i: (0, 0)))   # resident bias
        operands.append(w)
        operands.append(b)

    out = pl.pallas_call(
        kernel,
        out_shape=jax.ShapeDtypeStruct((out_rows_p, cout_last), jnp.float32),
        grid=(m_p // tm,),
        in_specs=in_specs,
        out_specs=pl.BlockSpec((out_block_rows, cout_last), lambda i: (i, 0)),
        compiler_params=pltpu.CompilerParams(dimension_semantics=("parallel",)),
    )(*operands)
    return out[:out_rows]


# ------------------------------------------------------------------
# Plain-JAX glue: sampling / grouping / interpolation
# (data-dependent gathers; no clean Pallas equivalent at these sizes)
# ------------------------------------------------------------------

def square_distance(src, dst):
    # ||a-b||^2 = ||a||^2 + ||b||^2 - 2 a.b   (matmul form -> MXU, no rank-4 broadcast)
    s2 = jnp.sum(src * src, axis=-1, keepdims=True)        # [B,N,1]
    d2 = jnp.sum(dst * dst, axis=-1)[:, None, :]            # [B,1,M]
    return s2 + d2 - 2.0 * jnp.einsum('bnc,bmc->bnm', src, dst)


def index_points(points, idx):
    # points [B, N, C], idx int [B, ...] -> [B, ..., C]
    b = points.shape[0]
    batch = jnp.arange(b).reshape((b,) + (1,) * (idx.ndim - 1))
    return points[batch, idx]


def farthest_point_sample(xyz, npoint):
    # Deterministic FPS (reference PyTorch uses a random start index; we start at 0).
    # TODO(synk): FPS is an inherently sequential data-dependent argmax loop; kept in plain JAX.
    b, n, _ = xyz.shape

    def body(i, state):
        centroids, distance, farthest = state
        centroids = centroids.at[:, i].set(farthest)
        centroid = jnp.take_along_axis(xyz, farthest[:, None, None], axis=1)  # [B,1,3]
        dist = jnp.sum((xyz - centroid) ** 2, axis=-1)                        # [B,N]
        distance = jnp.minimum(distance, dist)
        farthest = jnp.argmax(distance, axis=-1).astype(jnp.int32)
        return centroids, distance, farthest

    init = (jnp.zeros((b, npoint), jnp.int32),
            jnp.full((b, n), 1e10, xyz.dtype),
            jnp.zeros((b,), jnp.int32))
    centroids, _, _ = jax.lax.fori_loop(0, npoint, body, init)
    return centroids


def query_ball_point(radius, nsample, xyz, new_xyz):
    b, n, _ = xyz.shape
    s = new_xyz.shape[1]
    sqrdists = square_distance(new_xyz, xyz)                          # [B,S,N]
    group_idx = jnp.broadcast_to(jnp.arange(n, dtype=jnp.int32), (b, s, n))
    group_idx = jnp.where(sqrdists > radius ** 2, n, group_idx)
    # nsample smallest indices == top_k of the negated values (replaces full sort over N)
    group_idx = -lax.top_k(-group_idx, nsample)[0]
    group_first = jnp.broadcast_to(group_idx[:, :, :1], group_idx.shape)
    group_idx = jnp.where(group_idx == n, group_first, group_idx)
    return group_idx


# ------------------------------------------------------------------
# PointNet++ blocks (channel-last throughout; no BCN<->BNC transposes)
# ------------------------------------------------------------------

def set_abstraction(xyz, points, layers, npoint, radius, nsample, group_all):
    # xyz [B,N,3], points [B,N,C] or None -> (new_xyz [B,S,3], new_points [B,S,Cout])
    b = xyz.shape[0]

    if group_all:
        new_xyz = jnp.zeros((b, 1, 3), xyz.dtype)
        grouped = xyz[:, None, :, :]                                      # [B,1,N,3]
        if points is not None:
            grouped = jnp.concatenate([grouped, points[:, None, :, :]], axis=-1)
    else:
        fps_idx = farthest_point_sample(xyz, npoint)
        new_xyz = index_points(xyz, fps_idx)                              # [B,S,3]
        idx = query_ball_point(radius, nsample, xyz, new_xyz)             # [B,S,K]
        grouped_xyz = index_points(xyz, idx) - new_xyz[:, :, None, :]
        if points is not None:
            grouped = jnp.concatenate([grouped_xyz, index_points(points, idx)], axis=-1)
        else:
            grouped = grouped_xyz

    bb, s, k, cin = grouped.shape
    # Pad K to the sublane granule by replicating sample 0 (max-pool invariant).
    k_p = _round_up(k, 8)
    if k_p != k:
        pad = jnp.broadcast_to(grouped[:, :, :1, :], (bb, s, k_p - k, cin))
        grouped = jnp.concatenate([grouped, pad], axis=2)
        k = k_p

    feat = grouped.reshape(bb * s * k, cin)
    pooled = fused_mlp(feat, layers, relu_last=True, group_k=k)           # [B*S, Cout]
    return new_xyz, pooled.reshape(bb, s, -1)


def feature_propagation(xyz1, xyz2, points1, points2, layers, relu_last=True):
    # xyz1 [B,N,3], xyz2 [B,S,3], points1 [B,N,D1] or None, points2 [B,S,D2] -> [B,N,Cout]
    b, n, _ = xyz1.shape
    s = xyz2.shape[1]

    if s == 1:
        interp = jnp.broadcast_to(points2, (b, n, points2.shape[-1]))
    else:
        dists = square_distance(xyz1, xyz2)           # [B,N,S]
        neg_d, idx = lax.top_k(-dists, 3)             # 3-NN without a full argsort
        d = jnp.maximum(-neg_d, 0.0)                  # guard fp negatives of matmul form
        recip = 1.0 / (d + 1e-8)
        weight = recip / jnp.sum(recip, axis=-1, keepdims=True)
        interp = jnp.sum(index_points(points2, idx) * weight[..., None], axis=2)

    if points1 is not None:
        new_points = jnp.concatenate([points1, interp], axis=-1)
    else:
        new_points = interp

    cin = new_points.shape[-1]
    feat = new_points.reshape(b * n, cin)
    feat = fused_mlp(feat, layers, relu_last=relu_last)
    return feat.reshape(b, n, -1)


# ------------------------------------------------------------------
# Parameter init (deterministic, synthetic; eval-mode BN folded into weights)
# ------------------------------------------------------------------

def init_mlp(key, cin, channels, bn_eps=1e-5):
    layers = []
    for cout in channels:
        key, kw, kb, kg, kbe = jax.random.split(key, 5)
        w = jax.random.normal(kw, (cin, cout), jnp.float32) * (2.0 / cin) ** 0.5
        conv_b = 0.01 * jax.random.normal(kb, (cout,), jnp.float32)
        gamma = 1.0 + 0.01 * jax.random.normal(kg, (cout,), jnp.float32)
        beta = 0.01 * jax.random.normal(kbe, (cout,), jnp.float32)
        run_mean = jnp.zeros((cout,), jnp.float32)
        run_var = jnp.ones((cout,), jnp.float32)
        scale = gamma / jnp.sqrt(run_var + bn_eps)      # eval-mode BN
        w_fused = w * scale[None, :]                    # BN scale folded into the weight
        bias = beta + (conv_b - run_mean) * scale
        layers.append((w_fused, bias))
        cin = cout
    return key, layers


def init_pointnet_plus(key, in_channel=3):
    params = {}
    key, params["sa1"] = init_mlp(key, in_channel, [64, 64, 128])
    key, params["sa2"] = init_mlp(key, 128 + 3, [128, 128, 256])
    key, params["sa3"] = init_mlp(key, 256 + 3, [256, 512, 1024])
    key, params["fp3"] = init_mlp(key, 1280, [256, 256])
    key, params["fp2"] = init_mlp(key, 384, [256, 128])
    key, params["fp1"] = init_mlp(key, 128 + in_channel, [128, 128, 128])
    key, params["fc"] = init_mlp(key, 128, [128])       # Conv1d + BN1d (+Dropout=id), no ReLU
    return params


def pointnet_plus_forward(params, l0_xyz_bn3, l0_points_bn3=None,
                          sa1_cfg=(32, 0.2, 16), sa2_cfg=(8, 0.4, 16)):
    # l0_xyz_bn3: [B, N, 3] (module permutes to BCN internally; we stay channel-last and
    # only transpose the final result to the module's [B, C, N] output layout).
    l0_xyz = l0_xyz_bn3
    l0_points = l0_points_bn3

    l1_xyz, l1_points = set_abstraction(l0_xyz, l0_points, params["sa1"], *sa1_cfg, group_all=False)
    l2_xyz, l2_points = set_abstraction(l1_xyz, l1_points, params["sa2"], *sa2_cfg, group_all=False)
    l3_xyz, l3_points = set_abstraction(l2_xyz, l2_points, params["sa3"], None, None, None, group_all=True)

    l2_points = feature_propagation(l2_xyz, l3_xyz, l2_points, l3_points, params["fp3"])
    l1_points = feature_propagation(l1_xyz, l2_xyz, l1_points, l2_points, params["fp2"])

    if l0_points is not None:
        p1 = jnp.concatenate([l0_xyz, l0_points], axis=-1)
    else:
        p1 = l0_xyz

    # fp1 MLP + fc head (Conv1d(128,128,1) + BatchNorm1d eval + Dropout eval=identity,
    # no ReLU) fused into ONE Pallas kernel — the fp1 activation never touches HBM.
    feat = feature_propagation(l0_xyz, l1_xyz, p1, l1_points,
                               params["fp1"] + params["fc"], relu_last=False)
    return jnp.transpose(feat, (0, 2, 1))     # [B,128,N]


if __name__ == "__main__":
    key = jax.random.PRNGKey(0)
    kparam, kdata = jax.random.split(key)
    params = init_pointnet_plus(kparam, in_channel=3)

    # SMALL shapes: B=2 point clouds of N=128 points; SA npoint/nsample scaled down
    # (channel widths kept exactly as the module: 64/128/256/512/1024/...).
    B, N = 2, 128
    l0_xyz = jax.random.uniform(kdata, (B, N, 3), jnp.float32)

    fwd = jax.jit(functools.partial(pointnet_plus_forward, params))
    out = jax.block_until_ready(fwd(l0_xyz))
    assert out.shape == (B, 128, N) and out.dtype == jnp.float32
    print("KERNEL_OK")
</pallas_src>

<mosaic_0001>
module attributes {stable_mosaic.version = 11 : i64} {
  func.func @kernel(%arg0: i32, %arg1: memref<512x8xbf16, #tpu.memory_space<vmem>>, %arg2: memref<8x64xbf16, #tpu.memory_space<vmem>>, %arg3: memref<1x64xf32, #tpu.memory_space<vmem>>, %arg4: memref<64x64xbf16, #tpu.memory_space<vmem>>, %arg5: memref<1x64xf32, #tpu.memory_space<vmem>>, %arg6: memref<64x128xbf16, #tpu.memory_space<vmem>>, %arg7: memref<1x128xf32, #tpu.memory_space<vmem>>, %arg8: memref<32x128xf32, #tpu.memory_space<vmem>>) attributes {dimension_semantics = [#tpu.dimension_semantics<parallel>], iteration_bounds = array<i64: 2>, scalar_prefetch = 0 : i64, scratch_operands = 0 : i64, tpu.core_type = #tpu.core_type<tc>, window_params = [{transform_indices = @transform_0, window_bounds = array<i64: 512, 8>}, {pipeline_mode = #tpu.pipeline_mode<synchronous>, transform_indices = @transform_1, window_bounds = array<i64: 8, 64>}, {pipeline_mode = #tpu.pipeline_mode<synchronous>, transform_indices = @transform_2, window_bounds = array<i64: 1, 64>}, {pipeline_mode = #tpu.pipeline_mode<synchronous>, transform_indices = @transform_3, window_bounds = array<i64: 64, 64>}, {pipeline_mode = #tpu.pipeline_mode<synchronous>, transform_indices = @transform_4, window_bounds = array<i64: 1, 64>}, {pipeline_mode = #tpu.pipeline_mode<synchronous>, transform_indices = @transform_5, window_bounds = array<i64: 64, 128>}, {pipeline_mode = #tpu.pipeline_mode<synchronous>, transform_indices = @transform_6, window_bounds = array<i64: 1, 128>}, {transform_indices = @transform_7, window_bounds = array<i64: 32, 128>}]} {
    %c0 = arith.constant 0 : index
    %c0_0 = arith.constant 0 : index
    %0 = vector.load %arg1[%c0, %c0_0] : memref<512x8xbf16, #tpu.memory_space<vmem>>, vector<512x8xbf16>
    %c0_1 = arith.constant 0 : index
    %c0_2 = arith.constant 0 : index
    %1 = vector.load %arg2[%c0_1, %c0_2] : memref<8x64xbf16, #tpu.memory_space<vmem>>, vector<8x64xbf16>
    %cst = arith.constant dense<0.000000e+00> : vector<512x64xf32>
    %2 = tpu.matmul %0, %1, %cst {dimension_numbers = #tpu.dot_dimension_numbers<[1], [0], [0], [1], [0, 0, 1, 1], [], []>} : vector<512x8xbf16>, vector<8x64xbf16>, vector<512x64xf32> -> vector<512x64xf32>
    %c0_3 = arith.constant 0 : index
    %c0_4 = arith.constant 0 : index
    %3 = vector.load %arg3[%c0_3, %c0_4] : memref<1x64xf32, #tpu.memory_space<vmem>>, vector<1x64xf32>
    %4 = vector.broadcast %3 : vector<1x64xf32> to vector<512x64xf32>
    %5 = arith.addf %2, %4 : vector<512x64xf32>
    %cst_5 = arith.constant 0.000000e+00 : f32
    %6 = vector.broadcast %cst_5 : f32 to vector<512x64xf32>
    %7 = arith.maximumf %5, %6 : vector<512x64xf32>
    %8 = arith.truncf %7 : vector<512x64xf32> to vector<512x64xbf16>
    %c0_6 = arith.constant 0 : index
    %c0_7 = arith.constant 0 : index
    %9 = vector.load %arg4[%c0_6, %c0_7] : memref<64x64xbf16, #tpu.memory_space<vmem>>, vector<64x64xbf16>
    %cst_8 = arith.constant dense<0.000000e+00> : vector<512x64xf32>
    %10 = tpu.matmul %8, %9, %cst_8 {dimension_numbers = #tpu.dot_dimension_numbers<[1], [0], [0], [1], [0, 0, 1, 1], [], []>} : vector<512x64xbf16>, vector<64x64xbf16>, vector<512x64xf32> -> vector<512x64xf32>
    %c0_9 = arith.constant 0 : index
    %c0_10 = arith.constant 0 : index
    %11 = vector.load %arg5[%c0_9, %c0_10] : memref<1x64xf32, #tpu.memory_space<vmem>>, vector<1x64xf32>
    %12 = vector.broadcast %11 : vector<1x64xf32> to vector<512x64xf32>
    %13 = arith.addf %10, %12 : vector<512x64xf32>
    %cst_11 = arith.constant 0.000000e+00 : f32
    %14 = vector.broadcast %cst_11 : f32 to vector<512x64xf32>
    %15 = arith.maximumf %13, %14 : vector<512x64xf32>
    %16 = arith.truncf %15 : vector<512x64xf32> to vector<512x64xbf16>
    %c0_12 = arith.constant 0 : index
    %c0_13 = arith.constant 0 : index
    %17 = vector.load %arg6[%c0_12, %c0_13] : memref<64x128xbf16, #tpu.memory_space<vmem>>, vector<64x128xbf16>
    %cst_14 = arith.constant dense<0.000000e+00> : vector<512x128xf32>
    %18 = tpu.matmul %16, %17, %cst_14 {dimension_numbers = #tpu.dot_dimension_numbers<[1], [0], [0], [1], [0, 0, 1, 1], [], []>} : vector<512x64xbf16>, vector<64x128xbf16>, vector<512x128xf32> -> vector<512x128xf32>
    %c0_15 = arith.constant 0 : index
    %c0_16 = arith.constant 0 : index
    %19 = vector.load %arg7[%c0_15, %c0_16] : memref<1x128xf32, #tpu.memory_space<vmem>>, vector<1x128xf32>
    %20 = vector.broadcast %19 : vector<1x128xf32> to vector<512x128xf32>
    %21 = arith.addf %18, %20 : vector<512x128xf32>
    %cst_17 = arith.constant 0.000000e+00 : f32
    %22 = vector.broadcast %cst_17 : f32 to vector<512x128xf32>
    %23 = arith.maximumf %21, %22 : vector<512x128xf32>
    %24 = vector.shape_cast %23 : vector<512x128xf32> to vector<32x16x128xf32>
    %cst_18 = arith.constant dense<0xFF800000> : vector<32x128xf32>
    %25 = vector.multi_reduction <maximumf>, %24, %cst_18 [1] : vector<32x16x128xf32> to vector<32x128xf32>
    %c0_19 = arith.constant 0 : index
    %c0_20 = arith.constant 0 : index
    %26 = vector.load %arg8[%c0_19, %c0_20] : memref<32x128xf32, #tpu.memory_space<vmem>>, vector<32x128xf32>
    tpu.vector_store %arg8[%c0_19, %c0_20], %25 {strides = array<i32>} : memref<32x128xf32, #tpu.memory_space<vmem>>, vector<32x128xf32>,
    return
  }
  func.func @transform_0(%arg0: i32) -> (i32, i32) {
    %c0_i32 = arith.constant 0 : i32
    %c0_i32_0 = arith.constant 0 : i32
    return %arg0, %c0_i32 : i32, i32
  }
  func.func @transform_1(%arg0: i32) -> (i32, i32) {
    %c0_i32 = arith.constant 0 : i32
    %c0_i32_0 = arith.constant 0 : i32
    %c0_i32_1 = arith.constant 0 : i32
    return %c0_i32, %c0_i32_0 : i32, i32
  }
  func.func @transform_2(%arg0: i32) -> (i32, i32) {
    %c0_i32 = arith.constant 0 : i32
    %c0_i32_0 = arith.constant 0 : i32
    %c0_i32_1 = arith.constant 0 : i32
    return %c0_i32, %c0_i32_0 : i32, i32
  }
  func.func @transform_3(%arg0: i32) -> (i32, i32) {
    %c0_i32 = arith.constant 0 : i32
    %c0_i32_0 = arith.constant 0 : i32
    %c0_i32_1 = arith.constant 0 : i32
    return %c0_i32, %c0_i32_0 : i32, i32
  }
  func.func @transform_4(%arg0: i32) -> (i32, i32) {
    %c0_i32 = arith.constant 0 : i32
    %c0_i32_0 = arith.constant 0 : i32
    %c0_i32_1 = arith.constant 0 : i32
    return %c0_i32, %c0_i32_0 : i32, i32
  }
  func.func @transform_5(%arg0: i32) -> (i32, i32) {
    %c0_i32 = arith.constant 0 : i32
    %c0_i32_0 = arith.constant 0 : i32
    %c0_i32_1 = arith.constant 0 : i32
    return %c0_i32, %c0_i32_0 : i32, i32
  }
  func.func @transform_6(%arg0: i32) -> (i32, i32) {
    %c0_i32 = arith.constant 0 : i32
    %c0_i32_0 = arith.constant 0 : i32
    %c0_i32_1 = arith.constant 0 : i32
    return %c0_i32, %c0_i32_0 : i32, i32
  }
  func.func @transform_7(%arg0: i32) -> (i32, i32) {
    %c0_i32 = arith.constant 0 : i32
    %c0_i32_0 = arith.constant 0 : i32
    return %arg0, %c0_i32 : i32, i32
  }
}

module attributes {stable_mosaic.version = 11 : i64} {
  func.func @kernel(%arg0: i32, %arg1: memref<128x136xbf16, #tpu.memory_space<vmem>>, %arg2: memref<136x128xbf16, #tpu.memory_space<vmem>>, %arg3: memref<1x128xf32, #tpu.memory_space<vmem>>, %arg4: memref<128x128xbf16, #tpu.memory_space<vmem>>, %arg5: memref<1x128xf32, #tpu.memory_space<vmem>>, %arg6: memref<128x256xbf16, #tpu.memory_space<vmem>>, %arg7: memref<1x256xf32, #tpu.memory_space<vmem>>, %arg8: memref<8x256xf32, #tpu.memory_space<vmem>>) attributes {dimension_semantics = [#tpu.dimension_semantics<parallel>], iteration_bounds = array<i64: 2>, scalar_prefetch = 0 : i64, scratch_operands = 0 : i64, tpu.core_type = #tpu.core_type<tc>, window_params = [{transform_indices = @transform_0, window_bounds = array<i64: 128, 136>}, {pipeline_mode = #tpu.pipeline_mode<synchronous>, transform_indices = @transform_1, window_bounds = array<i64: 136, 128>}, {pipeline_mode = #tpu.pipeline_mode<synchronous>, transform_indices = @transform_2, window_bounds = array<i64: 1, 128>}, {pipeline_mode = #tpu.pipeline_mode<synchronous>, transform_indices = @transform_3, window_bounds = array<i64: 128, 128>}, {pipeline_mode = #tpu.pipeline_mode<synchronous>, transform_indices = @transform_4, window_bounds = array<i64: 1, 128>}, {pipeline_mode = #tpu.pipeline_mode<synchronous>, transform_indices = @transform_5, window_bounds = array<i64: 128, 256>}, {pipeline_mode = #tpu.pipeline_mode<synchronous>, transform_indices = @transform_6, window_bounds = array<i64: 1, 256>}, {transform_indices = @transform_7, window_bounds = array<i64: 8, 256>}]} {
    %c0 = arith.constant 0 : index
    %c0_0 = arith.constant 0 : index
    %0 = vector.load %arg1[%c0, %c0_0] : memref<128x136xbf16, #tpu.memory_space<vmem>>, vector<128x136xbf16>
    %c0_1 = arith.constant 0 : index
    %c0_2 = arith.constant 0 : index
    %1 = vector.load %arg2[%c0_1, %c0_2] : memref<136x128xbf16, #tpu.memory_space<vmem>>, vector<136x128xbf16>
    %cst = arith.constant dense<0.000000e+00> : vector<128x128xf32>
    %2 = tpu.matmul %0, %1, %cst {dimension_numbers = #tpu.dot_dimension_numbers<[1], [0], [0], [1], [0, 0, 1, 1], [], []>} : vector<128x136xbf16>, vector<136x128xbf16>, vector<128x128xf32> -> vector<128x128xf32>
    %c0_3 = arith.constant 0 : index
    %c0_4 = arith.constant 0 : index
    %3 = vector.load %arg3[%c0_3, %c0_4] : memref<1x128xf32, #tpu.memory_space<vmem>>, vector<1x128xf32>
    %4 = vector.broadcast %3 : vector<1x128xf32> to vector<128x128xf32>
    %5 = arith.addf %2, %4 : vector<128x128xf32>
    %cst_5 = arith.constant 0.000000e+00 : f32
    %6 = vector.broadcast %cst_5 : f32 to vector<128x128xf32>
    %7 = arith.maximumf %5, %6 : vector<128x128xf32>
    %8 = arith.truncf %7 : vector<128x128xf32> to vector<128x128xbf16>
    %c0_6 = arith.constant 0 : index
    %c0_7 = arith.constant 0 : index
    %9 = vector.load %arg4[%c0_6, %c0_7] : memref<128x128xbf16, #tpu.memory_space<vmem>>, vector<128x128xbf16>
    %cst_8 = arith.constant dense<0.000000e+00> : vector<128x128xf32>
    %10 = tpu.matmul %8, %9, %cst_8 {dimension_numbers = #tpu.dot_dimension_numbers<[1], [0], [0], [1], [0, 0, 1, 1], [], []>} : vector<128x128xbf16>, vector<128x128xbf16>, vector<128x128xf32> -> vector<128x128xf32>
    %c0_9 = arith.constant 0 : index
    %c0_10 = arith.constant 0 : index
    %11 = vector.load %arg5[%c0_9, %c0_10] : memref<1x128xf32, #tpu.memory_space<vmem>>, vector<1x128xf32>
    %12 = vector.broadcast %11 : vector<1x128xf32> to vector<128x128xf32>
    %13 = arith.addf %10, %12 : vector<128x128xf32>
    %cst_11 = arith.constant 0.000000e+00 : f32
    %14 = vector.broadcast %cst_11 : f32 to vector<128x128xf32>
    %15 = arith.maximumf %13, %14 : vector<128x128xf32>
    %16 = arith.truncf %15 : vector<128x128xf32> to vector<128x128xbf16>
    %c0_12 = arith.constant 0 : index
    %c0_13 = arith.constant 0 : index
    %17 = vector.load %arg6[%c0_12, %c0_13] : memref<128x256xbf16, #tpu.memory_space<vmem>>, vector<128x256xbf16>
    %cst_14 = arith.constant dense<0.000000e+00> : vector<128x256xf32>
    %18 = tpu.matmul %16, %17, %cst_14 {dimension_numbers = #tpu.dot_dimension_numbers<[1], [0], [0], [1], [0, 0, 1, 1], [], []>} : vector<128x128xbf16>, vector<128x256xbf16>, vector<128x256xf32> -> vector<128x256xf32>
    %c0_15 = arith.constant 0 : index
    %c0_16 = arith.constant 0 : index
    %19 = vector.load %arg7[%c0_15, %c0_16] : memref<1x256xf32, #tpu.memory_space<vmem>>, vector<1x256xf32>
    %20 = vector.broadcast %19 : vector<1x256xf32> to vector<128x256xf32>
    %21 = arith.addf %18, %20 : vector<128x256xf32>
    %cst_17 = arith.constant 0.000000e+00 : f32
    %22 = vector.broadcast %cst_17 : f32 to vector<128x256xf32>
    %23 = arith.maximumf %21, %22 : vector<128x256xf32>
    %24 = vector.shape_cast %23 : vector<128x256xf32> to vector<8x16x256xf32>
    %cst_18 = arith.constant dense<0xFF800000> : vector<8x256xf32>
    %25 = vector.multi_reduction <maximumf>, %24, %cst_18 [1] : vector<8x16x256xf32> to vector<8x256xf32>
    %c0_19 = arith.constant 0 : index
    %c0_20 = arith.constant 0 : index
    %26 = vector.load %arg8[%c0_19, %c0_20] : memref<8x256xf32, #tpu.memory_space<vmem>>, vector<8x256xf32>
    tpu.vector_store %arg8[%c0_19, %c0_20], %25 {strides = array<i32>} : memref<8x256xf32, #tpu.memory_space<vmem>>, vector<8x256xf32>,
    return
  }
  func.func @transform_0(%arg0: i32) -> (i32, i32) {
    %c0_i32 = arith.constant 0 : i32
    %c0_i32_0 = arith.constant 0 : i32
    return %arg0, %c0_i32 : i32, i32
  }
  func.func @transform_1(%arg0: i32) -> (i32, i32) {
    %c0_i32 = arith.constant 0 : i32
    %c0_i32_0 = arith.constant 0 : i32
    %c0_i32_1 = arith.constant 0 : i32
    return %c0_i32, %c0_i32_0 : i32, i32
  }
  func.func @transform_2(%arg0: i32) -> (i32, i32) {
    %c0_i32 = arith.constant 0 : i32
    %c0_i32_0 = arith.constant 0 : i32
    %c0_i32_1 = arith.constant 0 : i32
    return %c0_i32, %c0_i32_0 : i32, i32
  }
  func.func @transform_3(%arg0: i32) -> (i32, i32) {
    %c0_i32 = arith.constant 0 : i32
    %c0_i32_0 = arith.constant 0 : i32
    %c0_i32_1 = arith.constant 0 : i32
    return %c0_i32, %c0_i32_0 : i32, i32
  }
  func.func @transform_4(%arg0: i32) -> (i32, i32) {
    %c0_i32 = arith.constant 0 : i32
    %c0_i32_0 = arith.constant 0 : i32
    %c0_i32_1 = arith.constant 0 : i32
    return %c0_i32, %c0_i32_0 : i32, i32
  }
  func.func @transform_5(%arg0: i32) -> (i32, i32) {
    %c0_i32 = arith.constant 0 : i32
    %c0_i32_0 = arith.constant 0 : i32
    %c0_i32_1 = arith.constant 0 : i32
    return %c0_i32, %c0_i32_0 : i32, i32
  }
  func.func @transform_6(%arg0: i32) -> (i32, i32) {
    %c0_i32 = arith.constant 0 : i32
    %c0_i32_0 = arith.constant 0 : i32
    %c0_i32_1 = arith.constant 0 : i32
    return %c0_i32, %c0_i32_0 : i32, i32
  }
  func.func @transform_7(%arg0: i32) -> (i32, i32) {
    %c0_i32 = arith.constant 0 : i32
    %c0_i32_0 = arith.constant 0 : i32
    return %arg0, %c0_i32 : i32, i32
  }
}

module attributes {stable_mosaic.version = 11 : i64} {
  func.func @kernel(%arg0: i32, %arg1: memref<16x264xbf16, #tpu.memory_space<vmem>>, %arg2: memref<264x256xbf16, #tpu.memory_space<vmem>>, %arg3: memref<1x256xf32, #tpu.memory_space<vmem>>, %arg4: memref<256x512xbf16, #tpu.memory_space<vmem>>, %arg5: memref<1x512xf32, #tpu.memory_space<vmem>>, %arg6: memref<512x1024xbf16, #tpu.memory_space<vmem>>, %arg7: memref<1x1024xf32, #tpu.memory_space<vmem>>, %arg8: memref<2x1024xf32, #tpu.memory_space<vmem>>) attributes {dimension_semantics = [#tpu.dimension_semantics<parallel>], iteration_bounds = array<i64: 1>, scalar_prefetch = 0 : i64, scratch_operands = 0 : i64, tpu.core_type = #tpu.core_type<tc>, window_params = [{transform_indices = @transform_0, window_bounds = array<i64: 16, 264>}, {pipeline_mode = #tpu.pipeline_mode<synchronous>, transform_indices = @transform_1, window_bounds = array<i64: 264, 256>}, {pipeline_mode = #tpu.pipeline_mode<synchronous>, transform_indices = @transform_2, window_bounds = array<i64: 1, 256>}, {pipeline_mode = #tpu.pipeline_mode<synchronous>, transform_indices = @transform_3, window_bounds = array<i64: 256, 512>}, {pipeline_mode = #tpu.pipeline_mode<synchronous>, transform_indices = @transform_4, window_bounds = array<i64: 1, 512>}, {pipeline_mode = #tpu.pipeline_mode<synchronous>, transform_indices = @transform_5, window_bounds = array<i64: 512, 1024>}, {pipeline_mode = #tpu.pipeline_mode<synchronous>, transform_indices = @transform_6, window_bounds = array<i64: 1, 1024>}, {transform_indices = @transform_7, window_bounds = array<i64: 2, 1024>}]} {
    %c0 = arith.constant 0 : index
    %c0_0 = arith.constant 0 : index
    %0 = vector.load %arg1[%c0, %c0_0] : memref<16x264xbf16, #tpu.memory_space<vmem>>, vector<16x264xbf16>
    %c0_1 = arith.constant 0 : index
    %c0_2 = arith.constant 0 : index
    %1 = vector.load %arg2[%c0_1, %c0_2] : memref<264x256xbf16, #tpu.memory_space<vmem>>, vector<264x256xbf16>
    %cst = arith.constant dense<0.000000e+00> : vector<16x256xf32>
    %2 = tpu.matmul %0, %1, %cst {dimension_numbers = #tpu.dot_dimension_numbers<[1], [0], [0], [1], [0, 0, 1, 1], [], []>} : vector<16x264xbf16>, vector<264x256xbf16>, vector<16x256xf32> -> vector<16x256xf32>
    %c0_3 = arith.constant 0 : index
    %c0_4 = arith.constant 0 : index
    %3 = vector.load %arg3[%c0_3, %c0_4] : memref<1x256xf32, #tpu.memory_space<vmem>>, vector<1x256xf32>
    %4 = vector.broadcast %3 : vector<1x256xf32> to vector<16x256xf32>
    %5 = arith.addf %2, %4 : vector<16x256xf32>
    %cst_5 = arith.constant 0.000000e+00 : f32
    %6 = vector.broadcast %cst_5 : f32 to vector<16x256xf32>
    %7 = arith.maximumf %5, %6 : vector<16x256xf32>
    %8 = arith.truncf %7 : vector<16x256xf32> to vector<16x256xbf16>
    %c0_6 = arith.constant 0 : index
    %c0_7 = arith.constant 0 : index
    %9 = vector.load %arg4[%c0_6, %c0_7] : memref<256x512xbf16, #tpu.memory_space<vmem>>, vector<256x512xbf16>
    %cst_8 = arith.constant dense<0.000000e+00> : vector<16x512xf32>
    %10 = tpu.matmul %8, %9, %cst_8 {dimension_numbers = #tpu.dot_dimension_numbers<[1], [0], [0], [1], [0, 0, 1, 1], [], []>} : vector<16x256xbf16>, vector<256x512xbf16>, vector<16x512xf32> -> vector<16x512xf32>
    %c0_9 = arith.constant 0 : index
    %c0_10 = arith.constant 0 : index
    %11 = vector.load %arg5[%c0_9, %c0_10] : memref<1x512xf32, #tpu.memory_space<vmem>>, vector<1x512xf32>
    %12 = vector.broadcast %11 : vector<1x512xf32> to vector<16x512xf32>
    %13 = arith.addf %10, %12 : vector<16x512xf32>
    %cst_11 = arith.constant 0.000000e+00 : f32
    %14 = vector.broadcast %cst_11 : f32 to vector<16x512xf32>
    %15 = arith.maximumf %13, %14 : vector<16x512xf32>
    %16 = arith.truncf %15 : vector<16x512xf32> to vector<16x512xbf16>
    %c0_12 = arith.constant 0 : index
    %c0_13 = arith.constant 0 : index
    %17 = vector.load %arg6[%c0_12, %c0_13] : memref<512x1024xbf16, #tpu.memory_space<vmem>>, vector<512x1024xbf16>
    %cst_14 = arith.constant dense<0.000000e+00> : vector<16x1024xf32>
    %18 = tpu.matmul %16, %17, %cst_14 {dimension_numbers = #tpu.dot_dimension_numbers<[1], [0], [0], [1], [0, 0, 1, 1], [], []>} : vector<16x512xbf16>, vector<512x1024xbf16>, vector<16x1024xf32> -> vector<16x1024xf32>
    %c0_15 = arith.constant 0 : index
    %c0_16 = arith.constant 0 : index
    %19 = vector.load %arg7[%c0_15, %c0_16] : memref<1x1024xf32, #tpu.memory_space<vmem>>, vector<1x1024xf32>
    %20 = vector.broadcast %19 : vector<1x1024xf32> to vector<16x1024xf32>
    %21 = arith.addf %18, %20 : vector<16x1024xf32>
    %cst_17 = arith.constant 0.000000e+00 : f32
    %22 = vector.broadcast %cst_17 : f32 to vector<16x1024xf32>
    %23 = arith.maximumf %21, %22 : vector<16x1024xf32>
    %24 = vector.shape_cast %23 : vector<16x1024xf32> to vector<2x8x1024xf32>
    %cst_18 = arith.constant dense<0xFF800000> : vector<2x1024xf32>
    %25 = vector.multi_reduction <maximumf>, %24, %cst_18 [1] : vector<2x8x1024xf32> to vector<2x1024xf32>
    %c0_19 = arith.constant 0 : index
    %c0_20 = arith.constant 0 : index
    %26 = vector.load %arg8[%c0_19, %c0_20] : memref<2x1024xf32, #tpu.memory_space<vmem>>, vector<2x1024xf32>
    tpu.vector_store %arg8[%c0_19, %c0_20], %25 {strides = array<i32>} : memref<2x1024xf32, #tpu.memory_space<vmem>>, vector<2x1024xf32>,
    return
  }
  func.func @transform_0(%arg0: i32) -> (i32, i32) {
    %c0_i32 = arith.constant 0 : i32
    %c0_i32_0 = arith.constant 0 : i32
    return %arg0, %c0_i32 : i32, i32
  }
  func.func @transform_1(%arg0: i32) -> (i32, i32) {
    %c0_i32 = arith.constant 0 : i32
    %c0_i32_0 = arith.constant 0 : i32
    %c0_i32_1 = arith.constant 0 : i32
    return %c0_i32, %c0_i32_0 : i32, i32
  }
  func.func @transform_2(%arg0: i32) -> (i32, i32) {
    %c0_i32 = arith.constant 0 : i32
    %c0_i32_0 = arith.constant 0 : i32
    %c0_i32_1 = arith.constant 0 : i32
    return %c0_i32, %c0_i32_0 : i32, i32
  }
  func.func @transform_3(%arg0: i32) -> (i32, i32) {
    %c0_i32 = arith.constant 0 : i32
    %c0_i32_0 = arith.constant 0 : i32
    %c0_i32_1 = arith.constant 0 : i32
    return %c0_i32, %c0_i32_0 : i32, i32
  }
  func.func @transform_4(%arg0: i32) -> (i32, i32) {
    %c0_i32 = arith.constant 0 : i32
    %c0_i32_0 = arith.constant 0 : i32
    %c0_i32_1 = arith.constant 0 : i32
    return %c0_i32, %c0_i32_0 : i32, i32
  }
  func.func @transform_5(%arg0: i32) -> (i32, i32) {
    %c0_i32 = arith.constant 0 : i32
    %c0_i32_0 = arith.constant 0 : i32
    %c0_i32_1 = arith.constant 0 : i32
    return %c0_i32, %c0_i32_0 : i32, i32
  }
  func.func @transform_6(%arg0: i32) -> (i32, i32) {
    %c0_i32 = arith.constant 0 : i32
    %c0_i32_0 = arith.constant 0 : i32
    %c0_i32_1 = arith.constant 0 : i32
    return %c0_i32, %c0_i32_0 : i32, i32
  }
  func.func @transform_7(%arg0: i32) -> (i32, i32) {
    %c0_i32 = arith.constant 0 : i32
    %c0_i32_0 = arith.constant 0 : i32
    return %arg0, %c0_i32 : i32, i32
  }
}

module attributes {stable_mosaic.version = 11 : i64} {
  func.func @kernel(%arg0: i32, %arg1: memref<8x1280xbf16, #tpu.memory_space<vmem>>, %arg2: memref<1280x256xbf16, #tpu.memory_space<vmem>>, %arg3: memref<1x256xf32, #tpu.memory_space<vmem>>, %arg4: memref<256x256xbf16, #tpu.memory_space<vmem>>, %arg5: memref<1x256xf32, #tpu.memory_space<vmem>>, %arg6: memref<8x256xf32, #tpu.memory_space<vmem>>) attributes {dimension_semantics = [#tpu.dimension_semantics<parallel>], iteration_bounds = array<i64: 2>, scalar_prefetch = 0 : i64, scratch_operands = 0 : i64, tpu.core_type = #tpu.core_type<tc>, window_params = [{transform_indices = @transform_0, window_bounds = array<i64: 8, 1280>}, {pipeline_mode = #tpu.pipeline_mode<synchronous>, transform_indices = @transform_1, window_bounds = array<i64: 1280, 256>}, {pipeline_mode = #tpu.pipeline_mode<synchronous>, transform_indices = @transform_2, window_bounds = array<i64: 1, 256>}, {pipeline_mode = #tpu.pipeline_mode<synchronous>, transform_indices = @transform_3, window_bounds = array<i64: 256, 256>}, {pipeline_mode = #tpu.pipeline_mode<synchronous>, transform_indices = @transform_4, window_bounds = array<i64: 1, 256>}, {transform_indices = @transform_5, window_bounds = array<i64: 8, 256>}]} {
    %c0 = arith.constant 0 : index
    %c0_0 = arith.constant 0 : index
    %0 = vector.load %arg1[%c0, %c0_0] : memref<8x1280xbf16, #tpu.memory_space<vmem>>, vector<8x1280xbf16>
    %c0_1 = arith.constant 0 : index
    %c0_2 = arith.constant 0 : index
    %1 = vector.load %arg2[%c0_1, %c0_2] : memref<1280x256xbf16, #tpu.memory_space<vmem>>, vector<1280x256xbf16>
    %cst = arith.constant dense<0.000000e+00> : vector<8x256xf32>
    %2 = tpu.matmul %0, %1, %cst {dimension_numbers = #tpu.dot_dimension_numbers<[1], [0], [0], [1], [0, 0, 1, 1], [], []>} : vector<8x1280xbf16>, vector<1280x256xbf16>, vector<8x256xf32> -> vector<8x256xf32>
    %c0_3 = arith.constant 0 : index
    %c0_4 = arith.constant 0 : index
    %3 = vector.load %arg3[%c0_3, %c0_4] : memref<1x256xf32, #tpu.memory_space<vmem>>, vector<1x256xf32>
    %4 = vector.broadcast %3 : vector<1x256xf32> to vector<8x256xf32>
    %5 = arith.addf %2, %4 : vector<8x256xf32>
    %cst_5 = arith.constant 0.000000e+00 : f32
    %6 = vector.broadcast %cst_5 : f32 to vector<8x256xf32>
    %7 = arith.maximumf %5, %6 : vector<8x256xf32>
    %8 = arith.truncf %7 : vector<8x256xf32> to vector<8x256xbf16>
    %c0_6 = arith.constant 0 : index
    %c0_7 = arith.constant 0 : index
    %9 = vector.load %arg4[%c0_6, %c0_7] : memref<256x256xbf16, #tpu.memory_space<vmem>>, vector<256x256xbf16>
    %cst_8 = arith.constant dense<0.000000e+00> : vector<8x256xf32>
    %10 = tpu.matmul %8, %9, %cst_8 {dimension_numbers = #tpu.dot_dimension_numbers<[1], [0], [0], [1], [0, 0, 1, 1], [], []>} : vector<8x256xbf16>, vector<256x256xbf16>, vector<8x256xf32> -> vector<8x256xf32>
    %c0_9 = arith.constant 0 : index
    %c0_10 = arith.constant 0 : index
    %11 = vector.load %arg5[%c0_9, %c0_10] : memref<1x256xf32, #tpu.memory_space<vmem>>, vector<1x256xf32>
    %12 = vector.broadcast %11 : vector<1x256xf32> to vector<8x256xf32>
    %13 = arith.addf %10, %12 : vector<8x256xf32>
    %cst_11 = arith.constant 0.000000e+00 : f32
    %14 = vector.broadcast %cst_11 : f32 to vector<8x256xf32>
    %15 = arith.maximumf %13, %14 : vector<8x256xf32>
    %c0_12 = arith.constant 0 : index
    %c0_13 = arith.constant 0 : index
    %16 = vector.load %arg6[%c0_12, %c0_13] : memref<8x256xf32, #tpu.memory_space<vmem>>, vector<8x256xf32>
    tpu.vector_store %arg6[%c0_12, %c0_13], %15 {strides = array<i32>} : memref<8x256xf32, #tpu.memory_space<vmem>>, vector<8x256xf32>,
    return
  }
  func.func @transform_0(%arg0: i32) -> (i32, i32) {
    %c0_i32 = arith.constant 0 : i32
    %c0_i32_0 = arith.constant 0 : i32
    return %arg0, %c0_i32 : i32, i32
  }
  func.func @transform_1(%arg0: i32) -> (i32, i32) {
    %c0_i32 = arith.constant 0 : i32
    %c0_i32_0 = arith.constant 0 : i32
    %c0_i32_1 = arith.constant 0 : i32
    return %c0_i32, %c0_i32_0 : i32, i32
  }
  func.func @transform_2(%arg0: i32) -> (i32, i32) {
    %c0_i32 = arith.constant 0 : i32
    %c0_i32_0 = arith.constant 0 : i32
    %c0_i32_1 = arith.constant 0 : i32
    return %c0_i32, %c0_i32_0 : i32, i32
  }
  func.func @transform_3(%arg0: i32) -> (i32, i32) {
    %c0_i32 = arith.constant 0 : i32
    %c0_i32_0 = arith.constant 0 : i32
    %c0_i32_1 = arith.constant 0 : i32
    return %c0_i32, %c0_i32_0 : i32, i32
  }
  func.func @transform_4(%arg0: i32) -> (i32, i32) {
    %c0_i32 = arith.constant 0 : i32
    %c0_i32_0 = arith.constant 0 : i32
    %c0_i32_1 = arith.constant 0 : i32
    return %c0_i32, %c0_i32_0 : i32, i32
  }
  func.func @transform_5(%arg0: i32) -> (i32, i32) {
    %c0_i32 = arith.constant 0 : i32
    %c0_i32_0 = arith.constant 0 : i32
    return %arg0, %c0_i32 : i32, i32
  }
}

module attributes {stable_mosaic.version = 11 : i64} {
  func.func @kernel(%arg0: i32, %arg1: memref<32x384xbf16, #tpu.memory_space<vmem>>, %arg2: memref<384x256xbf16, #tpu.memory_space<vmem>>, %arg3: memref<1x256xf32, #tpu.memory_space<vmem>>, %arg4: memref<256x128xbf16, #tpu.memory_space<vmem>>, %arg5: memref<1x128xf32, #tpu.memory_space<vmem>>, %arg6: memref<32x128xf32, #tpu.memory_space<vmem>>) attributes {dimension_semantics = [#tpu.dimension_semantics<parallel>], iteration_bounds = array<i64: 2>, scalar_prefetch = 0 : i64, scratch_operands = 0 : i64, tpu.core_type = #tpu.core_type<tc>, window_params = [{transform_indices = @transform_0, window_bounds = array<i64: 32, 384>}, {pipeline_mode = #tpu.pipeline_mode<synchronous>, transform_indices = @transform_1, window_bounds = array<i64: 384, 256>}, {pipeline_mode = #tpu.pipeline_mode<synchronous>, transform_indices = @transform_2, window_bounds = array<i64: 1, 256>}, {pipeline_mode = #tpu.pipeline_mode<synchronous>, transform_indices = @transform_3, window_bounds = array<i64: 256, 128>}, {pipeline_mode = #tpu.pipeline_mode<synchronous>, transform_indices = @transform_4, window_bounds = array<i64: 1, 128>}, {transform_indices = @transform_5, window_bounds = array<i64: 32, 128>}]} {
    %c0 = arith.constant 0 : index
    %c0_0 = arith.constant 0 : index
    %0 = vector.load %arg1[%c0, %c0_0] : memref<32x384xbf16, #tpu.memory_space<vmem>>, vector<32x384xbf16>
    %c0_1 = arith.constant 0 : index
    %c0_2 = arith.constant 0 : index
    %1 = vector.load %arg2[%c0_1, %c0_2] : memref<384x256xbf16, #tpu.memory_space<vmem>>, vector<384x256xbf16>
    %cst = arith.constant dense<0.000000e+00> : vector<32x256xf32>
    %2 = tpu.matmul %0, %1, %cst {dimension_numbers = #tpu.dot_dimension_numbers<[1], [0], [0], [1], [0, 0, 1, 1], [], []>} : vector<32x384xbf16>, vector<384x256xbf16>, vector<32x256xf32> -> vector<32x256xf32>
    %c0_3 = arith.constant 0 : index
    %c0_4 = arith.constant 0 : index
    %3 = vector.load %arg3[%c0_3, %c0_4] : memref<1x256xf32, #tpu.memory_space<vmem>>, vector<1x256xf32>
    %4 = vector.broadcast %3 : vector<1x256xf32> to vector<32x256xf32>
    %5 = arith.addf %2, %4 : vector<32x256xf32>
    %cst_5 = arith.constant 0.000000e+00 : f32
    %6 = vector.broadcast %cst_5 : f32 to vector<32x256xf32>
    %7 = arith.maximumf %5, %6 : vector<32x256xf32>
    %8 = arith.truncf %7 : vector<32x256xf32> to vector<32x256xbf16>
    %c0_6 = arith.constant 0 : index
    %c0_7 = arith.constant 0 : index
    %9 = vector.load %arg4[%c0_6, %c0_7] : memref<256x128xbf16, #tpu.memory_space<vmem>>, vector<256x128xbf16>
    %cst_8 = arith.constant dense<0.000000e+00> : vector<32x128xf32>
    %10 = tpu.matmul %8, %9, %cst_8 {dimension_numbers = #tpu.dot_dimension_numbers<[1], [0], [0], [1], [0, 0, 1, 1], [], []>} : vector<32x256xbf16>, vector<256x128xbf16>, vector<32x128xf32> -> vector<32x128xf32>
    %c0_9 = arith.constant 0 : index
    %c0_10 = arith.constant 0 : index
    %11 = vector.load %arg5[%c0_9, %c0_10] : memref<1x128xf32, #tpu.memory_space<vmem>>, vector<1x128xf32>
    %12 = vector.broadcast %11 : vector<1x128xf32> to vector<32x128xf32>
    %13 = arith.addf %10, %12 : vector<32x128xf32>
    %cst_11 = arith.constant 0.000000e+00 : f32
    %14 = vector.broadcast %cst_11 : f32 to vector<32x128xf32>
    %15 = arith.maximumf %13, %14 : vector<32x128xf32>
    %c0_12 = arith.constant 0 : index
    %c0_13 = arith.constant 0 : index
    %16 = vector.load %arg6[%c0_12, %c0_13] : memref<32x128xf32, #tpu.memory_space<vmem>>, vector<32x128xf32>
    tpu.vector_store %arg6[%c0_12, %c0_13], %15 {strides = array<i32>} : memref<32x128xf32, #tpu.memory_space<vmem>>, vector<32x128xf32>,
    return
  }
  func.func @transform_0(%arg0: i32) -> (i32, i32) {
    %c0_i32 = arith.constant 0 : i32
    %c0_i32_0 = arith.constant 0 : i32
    return %arg0, %c0_i32 : i32, i32
  }
  func.func @transform_1(%arg0: i32) -> (i32, i32) {
    %c0_i32 = arith.constant 0 : i32
    %c0_i32_0 = arith.constant 0 : i32
    %c0_i32_1 = arith.constant 0 : i32
    return %c0_i32, %c0_i32_0 : i32, i32
  }
  func.func @transform_2(%arg0: i32) -> (i32, i32) {
    %c0_i32 = arith.constant 0 : i32
    %c0_i32_0 = arith.constant 0 : i32
    %c0_i32_1 = arith.constant 0 : i32
    return %c0_i32, %c0_i32_0 : i32, i32
  }
  func.func @transform_3(%arg0: i32) -> (i32, i32) {
    %c0_i32 = arith.constant 0 : i32
    %c0_i32_0 = arith.constant 0 : i32
    %c0_i32_1 = arith.constant 0 : i32
    return %c0_i32, %c0_i32_0 : i32, i32
  }
  func.func @transform_4(%arg0: i32) -> (i32, i32) {
    %c0_i32 = arith.constant 0 : i32
    %c0_i32_0 = arith.constant 0 : i32
    %c0_i32_1 = arith.constant 0 : i32
    return %c0_i32, %c0_i32_0 : i32, i32
  }
  func.func @transform_5(%arg0: i32) -> (i32, i32) {
    %c0_i32 = arith.constant 0 : i32
    %c0_i32_0 = arith.constant 0 : i32
    return %arg0, %c0_i32 : i32, i32
  }
}

module attributes {stable_mosaic.version = 11 : i64} {
  func.func @kernel(%arg0: i32, %arg1: memref<128x136xbf16, #tpu.memory_space<vmem>>, %arg2: memref<136x128xbf16, #tpu.memory_space<vmem>>, %arg3: memref<1x128xf32, #tpu.memory_space<vmem>>, %arg4: memref<128x128xbf16, #tpu.memory_space<vmem>>, %arg5: memref<1x128xf32, #tpu.memory_space<vmem>>, %arg6: memref<128x128xbf16, #tpu.memory_space<vmem>>, %arg7: memref<1x128xf32, #tpu.memory_space<vmem>>, %arg8: memref<128x128xbf16, #tpu.memory_space<vmem>>, %arg9: memref<1x128xf32, #tpu.memory_space<vmem>>, %arg10: memref<128x128xf32, #tpu.memory_space<vmem>>) attributes {dimension_semantics = [#tpu.dimension_semantics<parallel>], iteration_bounds = array<i64: 2>, scalar_prefetch = 0 : i64, scratch_operands = 0 : i64, tpu.core_type = #tpu.core_type<tc>, window_params = [{transform_indices = @transform_0, window_bounds = array<i64: 128, 136>}, {pipeline_mode = #tpu.pipeline_mode<synchronous>, transform_indices = @transform_1, window_bounds = array<i64: 136, 128>}, {pipeline_mode = #tpu.pipeline_mode<synchronous>, transform_indices = @transform_2, window_bounds = array<i64: 1, 128>}, {pipeline_mode = #tpu.pipeline_mode<synchronous>, transform_indices = @transform_3, window_bounds = array<i64: 128, 128>}, {pipeline_mode = #tpu.pipeline_mode<synchronous>, transform_indices = @transform_4, window_bounds = array<i64: 1, 128>}, {pipeline_mode = #tpu.pipeline_mode<synchronous>, transform_indices = @transform_5, window_bounds = array<i64: 128, 128>}, {pipeline_mode = #tpu.pipeline_mode<synchronous>, transform_indices = @transform_6, window_bounds = array<i64: 1, 128>}, {pipeline_mode = #tpu.pipeline_mode<synchronous>, transform_indices = @transform_7, window_bounds = array<i64: 128, 128>}, {pipeline_mode = #tpu.pipeline_mode<synchronous>, transform_indices = @transform_8, window_bounds = array<i64: 1, 128>}, {transform_indices = @transform_9, window_bounds = array<i64: 128, 128>}]} {
    %c0 = arith.constant 0 : index
    %c0_0 = arith.constant 0 : index
    %0 = vector.load %arg1[%c0, %c0_0] : memref<128x136xbf16, #tpu.memory_space<vmem>>, vector<128x136xbf16>
    %c0_1 = arith.constant 0 : index
    %c0_2 = arith.constant 0 : index
    %1 = vector.load %arg2[%c0_1, %c0_2] : memref<136x128xbf16, #tpu.memory_space<vmem>>, vector<136x128xbf16>
    %cst = arith.constant dense<0.000000e+00> : vector<128x128xf32>
    %2 = tpu.matmul %0, %1, %cst {dimension_numbers = #tpu.dot_dimension_numbers<[1], [0], [0], [1], [0, 0, 1, 1], [], []>} : vector<128x136xbf16>, vector<136x128xbf16>, vector<128x128xf32> -> vector<128x128xf32>
    %c0_3 = arith.constant 0 : index
    %c0_4 = arith.constant 0 : index
    %3 = vector.load %arg3[%c0_3, %c0_4] : memref<1x128xf32, #tpu.memory_space<vmem>>, vector<1x128xf32>
    %4 = vector.broadcast %3 : vector<1x128xf32> to vector<128x128xf32>
    %5 = arith.addf %2, %4 : vector<128x128xf32>
    %cst_5 = arith.constant 0.000000e+00 : f32
    %6 = vector.broadcast %cst_5 : f32 to vector<128x128xf32>
    %7 = arith.maximumf %5, %6 : vector<128x128xf32>
    %8 = arith.truncf %7 : vector<128x128xf32> to vector<128x128xbf16>
    %c0_6 = arith.constant 0 : index
    %c0_7 = arith.constant 0 : index
    %9 = vector.load %arg4[%c0_6, %c0_7] : memref<128x128xbf16, #tpu.memory_space<vmem>>, vector<128x128xbf16>
    %cst_8 = arith.constant dense<0.000000e+00> : vector<128x128xf32>
    %10 = tpu.matmul %8, %9, %cst_8 {dimension_numbers = #tpu.dot_dimension_numbers<[1], [0], [0], [1], [0, 0, 1, 1], [], []>} : vector<128x128xbf16>, vector<128x128xbf16>, vector<128x128xf32> -> vector<128x128xf32>
    %c0_9 = arith.constant 0 : index
    %c0_10 = arith.constant 0 : index
    %11 = vector.load %arg5[%c0_9, %c0_10] : memref<1x128xf32, #tpu.memory_space<vmem>>, vector<1x128xf32>
    %12 = vector.broadcast %11 : vector<1x128xf32> to vector<128x128xf32>
    %13 = arith.addf %10, %12 : vector<128x128xf32>
    %cst_11 = arith.constant 0.000000e+00 : f32
    %14 = vector.broadcast %cst_11 : f32 to vector<128x128xf32>
    %15 = arith.maximumf %13, %14 : vector<128x128xf32>
    %16 = arith.truncf %15 : vector<128x128xf32> to vector<128x128xbf16>
    %c0_12 = arith.constant 0 : index
    %c0_13 = arith.constant 0 : index
    %17 = vector.load %arg6[%c0_12, %c0_13] : memref<128x128xbf16, #tpu.memory_space<vmem>>, vector<128x128xbf16>
    %cst_14 = arith.constant dense<0.000000e+00> : vector<128x128xf32>
    %18 = tpu.matmul %16, %17, %cst_14 {dimension_numbers = #tpu.dot_dimension_numbers<[1], [0], [0], [1], [0, 0, 1, 1], [], []>} : vector<128x128xbf16>, vector<128x128xbf16>, vector<128x128xf32> -> vector<128x128xf32>
    %c0_15 = arith.constant 0 : index
    %c0_16 = arith.constant 0 : index
    %19 = vector.load %arg7[%c0_15, %c0_16] : memref<1x128xf32, #tpu.memory_space<vmem>>, vector<1x128xf32>
    %20 = vector.broadcast %19 : vector<1x128xf32> to vector<128x128xf32>
    %21 = arith.addf %18, %20 : vector<128x128xf32>
    %cst_17 = arith.constant 0.000000e+00 : f32
    %22 = vector.broadcast %cst_17 : f32 to vector<128x128xf32>
    %23 = arith.maximumf %21, %22 : vector<128x128xf32>
    %24 = arith.truncf %23 : vector<128x128xf32> to vector<128x128xbf16>
    %c0_18 = arith.constant 0 : index
    %c0_19 = arith.constant 0 : index
    %25 = vector.load %arg8[%c0_18, %c0_19] : memref<128x128xbf16, #tpu.memory_space<vmem>>, vector<128x128xbf16>
    %cst_20 = arith.constant dense<0.000000e+00> : vector<128x128xf32>
    %26 = tpu.matmul %24, %25, %cst_20 {dimension_numbers = #tpu.dot_dimension_numbers<[1], [0], [0], [1], [0, 0, 1, 1], [], []>} : vector<128x128xbf16>, vector<128x128xbf16>, vector<128x128xf32> -> vector<128x128xf32>
    %c0_21 = arith.constant 0 : index
    %c0_22 = arith.constant 0 : index
    %27 = vector.load %arg9[%c0_21, %c0_22] : memref<1x128xf32, #tpu.memory_space<vmem>>, vector<1x128xf32>
    %28 = vector.broadcast %27 : vector<1x128xf32> to vector<128x128xf32>
    %29 = arith.addf %26, %28 : vector<128x128xf32>
    %c0_23 = arith.constant 0 : index
    %c0_24 = arith.constant 0 : index
    %30 = vector.load %arg10[%c0_23, %c0_24] : memref<128x128xf32, #tpu.memory_space<vmem>>, vector<128x128xf32>
    tpu.vector_store %arg10[%c0_23, %c0_24], %29 {strides = array<i32>} : memref<128x128xf32, #tpu.memory_space<vmem>>, vector<128x128xf32>,
    return
  }
  func.func @transform_0(%arg0: i32) -> (i32, i32) {
    %c0_i32 = arith.constant 0 : i32
    %c0_i32_0 = arith.constant 0 : i32
    return %arg0, %c0_i32 : i32, i32
  }
  func.func @transform_1(%arg0: i32) -> (i32, i32) {
    %c0_i32 = arith.constant 0 : i32
    %c0_i32_0 = arith.constant 0 : i32
    %c0_i32_1 = arith.constant 0 : i32
    return %c0_i32, %c0_i32_0 : i32, i32
  }
  func.func @transform_2(%arg0: i32) -> (i32, i32) {
    %c0_i32 = arith.constant 0 : i32
    %c0_i32_0 = arith.constant 0 : i32
    %c0_i32_1 = arith.constant 0 : i32
    return %c0_i32, %c0_i32_0 : i32, i32
  }
  func.func @transform_3(%arg0: i32) -> (i32, i32) {
    %c0_i32 = arith.constant 0 : i32
    %c0_i32_0 = arith.constant 0 : i32
    %c0_i32_1 = arith.constant 0 : i32
    return %c0_i32, %c0_i32_0 : i32, i32
  }
  func.func @transform_4(%arg0: i32) -> (i32, i32) {
    %c0_i32 = arith.constant 0 : i32
    %c0_i32_0 = arith.constant 0 : i32
    %c0_i32_1 = arith.constant 0 : i32
    return %c0_i32, %c0_i32_0 : i32, i32
  }
  func.func @transform_5(%arg0: i32) -> (i32, i32) {
    %c0_i32 = arith.constant 0 : i32
    %c0_i32_0 = arith.constant 0 : i32
    %c0_i32_1 = arith.constant 0 : i32
    return %c0_i32, %c0_i32_0 : i32, i32
  }
  func.func @transform_6(%arg0: i32) -> (i32, i32) {
    %c0_i32 = arith.constant 0 : i32
    %c0_i32_0 = arith.constant 0 : i32
    %c0_i32_1 = arith.constant 0 : i32
    return %c0_i32, %c0_i32_0 : i32, i32
  }
  func.func @transform_7(%arg0: i32) -> (i32, i32) {
    %c0_i32 = arith.constant 0 : i32
    %c0_i32_0 = arith.constant 0 : i32
    %c0_i32_1 = arith.constant 0 : i32
    return %c0_i32, %c0_i32_0 : i32, i32
  }
  func.func @transform_8(%arg0: i32) -> (i32, i32) {
    %c0_i32 = arith.constant 0 : i32
    %c0_i32_0 = arith.constant 0 : i32
    %c0_i32_1 = arith.constant 0 : i32
    return %c0_i32, %c0_i32_0 : i32, i32
  }
  func.func @transform_9(%arg0: i32) -> (i32, i32) {
    %c0_i32 = arith.constant 0 : i32
    %c0_i32_0 = arith.constant 0 : i32
    return %arg0, %c0_i32 : i32, i32
  }
}

</mosaic_0001>

<llo_original>
// kernel: custom-call.18
$region0: #{custom-call.18}
  %s0 = inlined_call_operand.vmem [shape: f32[2,128], index: 0, kind: output, shape index: {}]

// kernel: custom-call.19
$region0: #{custom-call.19}
  %s0 = inlined_call_operand.vmem [shape: f32[2,32], index: 0, kind: output, shape index: {}]

// kernel: pointnet_plus_forward.6
$region0: #{pointnet_plus_forward.6}
  #allocation0 [shape = 'u32[]', space=smem, size = 0x4, offset = 0x4, fixed_abs, tag = 'smem constant byte address 0x4 - core index']
  #allocation1 [shape = 'u32[144,128]{1,0:T(1,128)}', space=vmem, size = 0x12000, scoped, tag = 'internal scratch']
  %s0 = inlined_call_operand.vmem [shape: bf16[1024,8], index: 0, kind: input, shape index: {}]
  %s1 = inlined_call_operand.vmem [shape: bf16[8,64], index: 1, kind: input, shape index: {}]
  %s2 = inlined_call_operand.vmem [shape: f32[1,64], index: 2, kind: input, shape index: {}]
  %s3 = inlined_call_operand.vmem [shape: bf16[64,64], index: 3, kind: input, shape index: {}]
  %s4 = inlined_call_operand.vmem [shape: f32[1,64], index: 4, kind: input, shape index: {}]
  %s5 = inlined_call_operand.vmem [shape: bf16[64,128], index: 5, kind: input, shape index: {}]
  %s6 = inlined_call_operand.vmem [shape: f32[1,128], index: 6, kind: input, shape index: {}]
  %s7 = inlined_call_operand.vmem [shape: f32[64,128], index: 7, kind: output, shape index: {}]
  %s8 = sld [smem:[#allocation0]]
  $region61: #{pointnet_plus_forward.6} parent=0
    _
  %s10 = ssub.s32 1, %s8
  %s11 = scalar_select 0, %s10, %s8
  loop: start=0, step=1, limit=4
  $region2: #{pointnet_plus_forward.6} parent=0 // loop_pre_header
    _
  $region3: #{pointnet_plus_forward.6} parent=0 // loop_header
    %s13 = sphi 0, %s17
    %p14 = scmp.ge.s32.totalorder %s13, 4
    %s23 = sphi 0, %s25
    %s26 = sphi 0, %s23
    %s27 = sphi 0, %s26
    %s43 = sphi 0, %s27
    %s47 = sphi 0, %s47
    %s49 = sphi 0, %s47
    %s50 = sphi 0, %s49
    %s64 = sphi 0, %s50
    %s68 = sphi 0, %s68
    %s70 = sphi 0, %s68
    %s71 = sphi 0, %s70
    %s85 = sphi 0, %s71
    %s89 = sphi 0, %s89
    %s91 = sphi 0, %s89
    %s92 = sphi 0, %s91
    %s106 = sphi 0, %s92
    %s110 = sphi 0, %s110
    %s112 = sphi 0, %s110
    %s113 = sphi 0, %s112
    %s127 = sphi 0, %s113
    %s131 = sphi 0, %s131
    %s133 = sphi 0, %s131
    %s134 = sphi 0, %s133
    %s148 = sphi 0, %s134
    %s152 = sphi 0, %s152
    %s154 = sphi 0, %s152
    %s155 = sphi 0, %s154
    %s169 = sphi 0, %s155
    %s175 = sphi 0, %s177
    %s178 = sphi 0, %s175
    %s179 = sphi 0, %s178
    %s195 = sphi 0, %s179
  $region4: #{pointnet_plus_forward.6} parent=0 // loop_header_branch
    %16 = sbr.rel (%p14) target = $region8
  $region5: #{pointnet_plus_forward.6} parent=0 // loop_body
    %s18 = ssub.s32 %s13, 1
    %s19 = ssub.s32 %s13, 2
    %s20 = sadd.s32 %s13, 1
    %s21 = ssub.s32 %s13, %s20
    %p22 = scmp.eq.s32.totalorder %s21, 0
    %s24 = sadd.s32 %s23, 1
    %s25 = scalar_select %p22, %s23, %s24
    %p28 = pneg %p22
    %p29 = scmp.eq.s32.totalorder %s13, 1
    %p30 = por %p28, %p29
    %p31 = scmp.ne.s32.totalorder %s23, %s26
    %p32 = scmp.eq.s32.totalorder %s13, 0
    %p33 = por %p31, %p32
    %p34 = scmp.ne.s32.totalorder %s23, %s26
    %p35 = scmp.eq.s32.totalorder %s18, 1
    %p36 = por %p34, %p35
    %p37 = scmp.ne.s32.totalorder %s26, %s27
    %p38 = scmp.eq.s32.totalorder %s18, 0
    %p39 = por %p37, %p38
    %p40 = scmp.ne.s32.totalorder %s26, %s27
    %p41 = scmp.eq.s32.totalorder %s19, 1
    %p42 = por %p40, %p41
    %p44 = scmp.ne.s32.totalorder %s27, %s43
    %p45 = scmp.eq.s32.totalorder %s19, 0
    %p46 = por %p44, %p45
    %s48 = sadd.s32 %s47, 1
    %p51 = scmp.eq.s32.totalorder %s13, 1
    %p52 = scmp.ne.s32.totalorder %s47, %s49
    %p53 = scmp.eq.s32.totalorder %s13, 0
    %p54 = por %p52, %p53
    %p55 = scmp.ne.s32.totalorder %s47, %s49
    %p56 = scmp.eq.s32.totalorder %s18, 1
    %p57 = por %p55, %p56
    %p58 = scmp.ne.s32.totalorder %s49, %s50
    %p59 = scmp.eq.s32.totalorder %s18, 0
    %p60 = por %p58, %p59
    %p61 = scmp.ne.s32.totalorder %s49, %s50
    %p62 = scmp.eq.s32.totalorder %s19, 1
    %p63 = por %p61, %p62
    %p65 = scmp.ne.s32.totalorder %s50, %s64
    %p66 = scmp.eq.s32.totalorder %s19, 0
    %p67 = por %p65, %p66
    %s69 = sadd.s32 %s68, 1
    %p72 = scmp.eq.s32.totalorder %s13, 1
    %p73 = scmp.ne.s32.totalorder %s68, %s70
    %p74 = scmp.eq.s32.totalorder %s13, 0
    %p75 = por %p73, %p74
    %p76 = scmp.ne.s32.totalorder %s68, %s70
    %p77 = scmp.eq.s32.totalorder %s18, 1
    %p78 = por %p76, %p77
    %p79 = scmp.ne.s32.totalorder %s70, %s71
    %p80 = scmp.eq.s32.totalorder %s18, 0
    %p81 = por %p79, %p80
    %p82 = scmp.ne.s32.totalorder %s70, %s71
    %p83 = scmp.eq.s32.totalorder %s19, 1
    %p84 = por %p82, %p83
    %p86 = scmp.ne.s32.totalorder %s71, %s85
    %p87 = scmp.eq.s32.totalorder %s19, 0
    %p88 = por %p86, %p87
    %s90 = sadd.s32 %s89, 1
    %p93 = scmp.eq.s32.totalorder %s13, 1
    %p94 = scmp.ne.s32.totalorder %s89, %s91
    %p95 = scmp.eq.s32.totalorder %s13, 0
    %p96 = por %p94, %p95
    %p97 = scmp.ne.s32.totalorder %s89, %s91
    %p98 = scmp.eq.s32.totalorder %s18, 1
    %p99 = por %p97, %p98
    %p100 = scmp.ne.s32.totalorder %s91, %s92
    %p101 = scmp.eq.s32.totalorder %s18, 0
    %p102 = por %p100, %p101
    %p103 = scmp.ne.s32.totalorder %s91, %s92
    %p104 = scmp.eq.s32.totalorder %s19, 1
    %p105 = por %p103, %p104
    %p107 = scmp.ne.s32.totalorder %s92, %s106
    %p108 = scmp.eq.s32.totalorder %s19, 0
    %p109 = por %p107, %p108
    %s111 = sadd.s32 %s110, 1
    %p114 = scmp.eq.s32.totalorder %s13, 1
    %p115 = scmp.ne.s32.totalorder %s110, %s112
    %p116 = scmp.eq.s32.totalorder %s13, 0
    %p117 = por %p115, %p116
    %p118 = scmp.ne.s32.totalorder %s110, %s112
    %p119 = scmp.eq.s32.totalorder %s18, 1
    %p120 = por %p118, %p119
    %p121 = scmp.ne.s32.totalorder %s112, %s113
    %p122 = scmp.eq.s32.totalorder %s18, 0
    %p123 = por %p121, %p122
    %p124 = scmp.ne.s32.totalorder %s112, %s113
    %p125 = scmp.eq.s32.totalorder %s19, 1
    %p126 = por %p124, %p125
    %p128 = scmp.ne.s32.totalorder %s113, %s127
    %p129 = scmp.eq.s32.totalorder %s19, 0
    %p130 = por %p128, %p129
    %s132 = sadd.s32 %s131, 1
    %p135 = scmp.eq.s32.totalorder %s13, 1
    %p136 = scmp.ne.s32.totalorder %s131, %s133
    %p137 = scmp.eq.s32.totalorder %s13, 0
    %p138 = por %p136, %p137
    %p139 = scmp.ne.s32.totalorder %s131, %s133
    %p140 = scmp.eq.s32.totalorder %s18, 1
    %p141 = por %p139, %p140
    %p142 = scmp.ne.s32.totalorder %s133, %s134
    %p143 = scmp.eq.s32.totalorder %s18, 0
    %p144 = por %p142, %p143
    %p145 = scmp.ne.s32.totalorder %s133, %s134
    %p146 = scmp.eq.s32.totalorder %s19, 1
    %p147 = por %p145, %p146
    %p149 = scmp.ne.s32.totalorder %s134, %s148
    %p150 = scmp.eq.s32.totalorder %s19, 0
    %p151 = por %p149, %p150
    %s153 = sadd.s32 %s152, 1
    %p156 = scmp.eq.s32.totalorder %s13, 1
    %p157 = scmp.ne.s32.totalorder %s152, %s154
    %p158 = scmp.eq.s32.totalorder %s13, 0
    %p159 = por %p157, %p158
    %p160 = scmp.ne.s32.totalorder %s152, %s154
    %p161 = scmp.eq.s32.totalorder %s18, 1
    %p162 = por %p160, %p161
    %p163 = scmp.ne.s32.totalorder %s154, %s155
    %p164 = scmp.eq.s32.totalorder %s18, 0
    %p165 = por %p163, %p164
    %p166 = scmp.ne.s32.totalorder %s154, %s155
    %p167 = scmp.eq.s32.totalorder %s19, 1
    %p168 = por %p166, %p167
    %p170 = scmp.ne.s32.totalorder %s155, %s169
    %p171 = scmp.eq.s32.totalorder %s19, 0
    %p172 = por %p170, %p171
    %s173 = ssub.s32 %s13, %s20
    %p174 = scmp.eq.s32.totalorder %s173, 0
    %s176 = sadd.s32 %s175, 1
    %s177 = scalar_select %p174, %s175, %s176
    %p180 = pneg %p174
    %p181 = scmp.eq.s32.totalorder %s13, 1
    %p182 = por %p180, %p181
    %p183 = scmp.ne.s32.totalorder %s175, %s178
    %p184 = scmp.eq.s32.totalorder %s13, 0
    %p185 = por %p183, %p184
    %p186 = scmp.ne.s32.totalorder %s175, %s178
    %p187 = scmp.eq.s32.totalorder %s18, 1
    %p188 = por %p186, %p187
    %p189 = scmp.ne.s32.totalorder %s178, %s179
    %p190 = scmp.eq.s32.totalorder %s18, 0
    %p191 = por %p189, %p190
    %p192 = scmp.ne.s32.totalorder %s178, %s179
    %p193 = scmp.eq.s32.totalorder %s19, 1
    %p194 = por %p192, %p193
    %p196 = scmp.ne.s32.totalorder %s179, %s195
    %p197 = scmp.eq.s32.totalorder %s19, 0
    %p198 = por %p196, %p197
    %p199 = scmp.le.s32.totalorder 1, %s13
    %p200 = scmp.lt.s32.totalorder %s13, 3
    %p201 = pnand %p199, %p200
    %p202 = pneg %p201
    // Predicated region
    $region9: #{pointnet_plus_forward.6} parent=5 // pred_check
      _
    $region10: #{pointnet_plus_forward.6} parent=5 // pred_check_branch
      %204 = sbr.rel (%p201) target = $region12
    $region11: #{pointnet_plus_forward.6} parent=5 // pred_region
      %s205 = ssub.s32 %s13, 1
      // Predicated region
      $region13: #{pointnet_plus_forward.6} parent=11 // pred_check
        %p206 = pneg %p60
      $region14: #{pointnet_plus_forward.6} parent=11 // pred_check_branch
        %208 = sbr.rel (%p206) target = $region16
      $region15: #{pointnet_plus_forward.6} parent=11 // pred_region
        _
      $region16: #{pointnet_plus_forward.6} parent=11 // pred_fallthru
        _
      // Predicated region
      $region17: #{pointnet_plus_forward.6} parent=11 // pred_check
        %p209 = pneg %p81
      $region18: #{pointnet_plus_forward.6} parent=11 // pred_check_branch
        %211 = sbr.rel (%p209) target = $region20
      $region19: #{pointnet_plus_forward.6} parent=11 // pred_region
        _
      $region20: #{pointnet_plus_forward.6} parent=11 // pred_fallthru
        _
      // Predicated region
      $region21: #{pointnet_plus_forward.6} parent=11 // pred_check
        %p212 = pneg %p102
      $region22: #{pointnet_plus_forward.6} parent=11 // pred_check_branch
        %214 = sbr.rel (%p212) target = $region24
      $region23: #{pointnet_plus_forward.6} parent=11 // pred_region
        _
      $region24: #{pointnet_plus_forward.6} parent=11 // pred_fallthru
        _
      // Predicated region
      $region25: #{pointnet_plus_forward.6} parent=11 // pred_check
        %p215 = pneg %p123
      $region26: #{pointnet_plus_forward.6} parent=11 // pred_check_branch
        %217 = sbr.rel (%p215) target = $region28
      $region27: #{pointnet_plus_forward.6} parent=11 // pred_region
        _
      $region28: #{pointnet_plus_forward.6} parent=11 // pred_fallthru
        _
      // Predicated region
      $region29: #{pointnet_plus_forward.6} parent=11 // pred_check
        %p218 = pneg %p144
      $region30: #{pointnet_plus_forward.6} parent=11 // pred_check_branch
        %220 = sbr.rel (%p218) target = $region32
      $region31: #{pointnet_plus_forward.6} parent=11 // pred_region
        _
      $region32: #{pointnet_plus_forward.6} parent=11 // pred_fallthru
        _
      // Predicated region
      $region33: #{pointnet_plus_forward.6} parent=11 // pred_check
        %p221 = pneg %p165
      $region34: #{pointnet_plus_forward.6} parent=11 // pred_check_branch
        %223 = sbr.rel (%p221) target = $region36
      $region35: #{pointnet_plus_forward.6} parent=11 // pred_region
        _
      $region36: #{pointnet_plus_forward.6} parent=11 // pred_fallthru
        _
    $region12: #{pointnet_plus_forward.6} parent=5 // pred_fallthru
      _
    %p224 = scmp.lt.s32.totalorder %s13, 2
    // Predicated region
    $region37: #{pointnet_plus_forward.6} parent=5 // pred_check
      %p225 = pneg %p224
    $region38: #{pointnet_plus_forward.6} parent=5 // pred_check_branch
      %227 = sbr.rel (%p225) target = $region40
    $region39: #{pointnet_plus_forward.6} parent=5 // pred_region
      // Predicated region
      $region41: #{pointnet_plus_forward.6} parent=39 // pred_check
        %p228 = pneg %p33
      $region42: #{pointnet_plus_forward.6} parent=39 // pred_check_branch
        %230 = sbr.rel (%p228) target = $region44
      $region43: #{pointnet_plus_forward.6} parent=39 // pred_region
        %s231 = smul.u32 64, %s13
        %p232 = scmp.lt.s32.totalorder %s231, 127
        %s233 = scalar_select %p232, %s231, 127
        %s234 = smul.addr %s233, 4
        %s235 = scalar_lea.vmem %s0, %s234
        %s236 = smul.u32 64, %s13
      $region44: #{pointnet_plus_forward.6} parent=39 // pred_fallthru
        _
    $region40: #{pointnet_plus_forward.6} parent=5 // pred_fallthru
      _
    %p237 = scmp.le.s32.totalorder 1, %s13
    %p238 = scmp.lt.s32.totalorder %s13, 3
    %p239 = pnand %p237, %p238
    %p240 = pneg %p239
    // Predicated region
    $region45: #{pointnet_plus_forward.6} parent=5 // pred_check
      _
    $region46: #{pointnet_plus_forward.6} parent=5 // pred_check_branch
      %242 = sbr.rel (%p239) target = $region48
    $region47: #{pointnet_plus_forward.6} parent=5 // pred_region
      %s243 = ssub.s32 %s13, 1
      %s244 = smul.u32 64, %s18
      %p245 = scmp.lt.s32.totalorder %s244, 127
      %s246 = scalar_select %p245, %s244, 127
      %s247 = smul.addr %s246, 4
      %s248 = scalar_lea.vmem %s0, %s247
      %p249 = pneg %p39
      %p250 = pneg %p36
      %p251 = pneg %p60
      %p252 = pneg %p57
      %p253 = pneg %p81
      %p254 = pneg %p78
      %p255 = pneg %p102
      %p256 = pneg %p99
      %p257 = pneg %p123
      %p258 = pneg %p120
      %p259 = pneg %p144
      %p260 = pneg %p141
      %p261 = pneg %p165
      %p262 = pneg %p162
      %p263 = pneg %p191
      %p264 = pneg %p188
      %s265 = smul.u32 4, %s18
      %p266 = scmp.lt.s32.totalorder %s265, 7
      %s267 = scalar_select %p266, %s265, 7
      %s268 = smul.addr %s267, 8
      %s269 = scalar_lea.vmem %s7, %s268
      %s270 = smul.u32 64, %s18
      %p271 = scmp.lt.s32.totalorder %s270, 127
      %s272 = scalar_select %p271, %s270, 127
      %s273 = smul.addr %s272, 4
      %s274 = scalar_lea.vmem %s0, %s273
      %s275 = smul.u32 64, %s18
      %s276 = smul.u32 4, %s18
      %p277 = scmp.lt.s32.totalorder %s276, 7
      %s278 = scalar_select %p277, %s276, 7
      %s279 = smul.addr %s278, 8
      %s280 = scalar_lea.vmem %s7, %s279
      %s281 = smul.u32 4, %s18
      %v283 = vld [vmem:[%s274] sm:$0xf]
      %v284 = vld [vmem:[%s274 + $0x4] sm:$0xf]
      %v285 = vld [vmem:[%s274 + $0x8] sm:$0xf]
      %v286 = vld [vmem:[%s274 + $0xc] sm:$0xf]
      %v287 = vld [vmem:[%s274 + $0x10] sm:$0xf]
      %v288 = vld [vmem:[%s274 + $0x14] sm:$0xf]
      %v289 = vld [vmem:[%s274 + $0x18] sm:$0xf]
      %v290 = vld [vmem:[%s274 + $0x1c] sm:$0xf]
      %v291 = vld [vmem:[%s274 + $0x20] sm:$0xf]
      %v292 = vld [vmem:[%s274 + $0x24] sm:$0xf]
      %v293 = vld [vmem:[%s274 + $0x28] sm:$0xf]
      %v294 = vld [vmem:[%s274 + $0x2c] sm:$0xf]
      %v295 = vld [vmem:[%s274 + $0x30] sm:$0xf]
      %v296 = vld [vmem:[%s274 + $0x34] sm:$0xf]
      %v297 = vld [vmem:[%s274 + $0x38] sm:$0xf]
      %v298 = vld [vmem:[%s274 + $0x3c] sm:$0xf]
      %v299 = vld [vmem:[%s274 + $0x40] sm:$0xf]
      %v300 = vld [vmem:[%s274 + $0x44] sm:$0xf]
      %v301 = vld [vmem:[%s274 + $0x48] sm:$0xf]
      %v302 = vld [vmem:[%s274 + $0x4c] sm:$0xf]
      %v303 = vld [vmem:[%s274 + $0x50] sm:$0xf]
      %v304 = vld [vmem:[%s274 + $0x54] sm:$0xf]
      %v305 = vld [vmem:[%s274 + $0x58] sm:$0xf]
      %v306 = vld [vmem:[%s274 + $0x5c] sm:$0xf]
      %v307 = vld [vmem:[%s274 + $0x60] sm:$0xf]
      %v308 = vld [vmem:[%s274 + $0x64] sm:$0xf]
      %v309 = vld [vmem:[%s274 + $0x68] sm:$0xf]
      %v310 = vld [vmem:[%s274 + $0x6c] sm:$0xf]
      %v311 = vld [vmem:[%s274 + $0x70] sm:$0xf]
      %v312 = vld [vmem:[%s274 + $0x74] sm:$0xf]
      %v313 = vld [vmem:[%s274 + $0x78] sm:$0xf]
      %v314 = vld [vmem:[%s274 + $0x7c] sm:$0xf]
      %v315 = vld [vmem:[%s274 + $0x80] sm:$0xf]
      %v316 = vld [vmem:[%s274 + $0x84] sm:$0xf]
      %v317 = vld [vmem:[%s274 + $0x88] sm:$0xf]
      %v318 = vld [vmem:[%s274 + $0x8c] sm:$0xf]
      %v319 = vld [vmem:[%s274 + $0x90] sm:$0xf]
      %v320 = vld [vmem:[%s274 + $0x94] sm:$0xf]
      %v321 = vld [vmem:[%s274 + $0x98] sm:$0xf]
      %v322 = vld [vmem:[%s274 + $0x9c] sm:$0xf]
      %v323 = vld [vmem:[%s274 + $0xa0] sm:$0xf]
      %v324 = vld [vmem:[%s274 + $0xa4] sm:$0xf]
      %v325 = vld [vmem:[%s274 + $0xa8] sm:$0xf]
      %v326 = vld [vmem:[%s274 + $0xac] sm:$0xf]
      %v327 = vld [vmem:[%s274 + $0xb0] sm:$0xf]
      %v328 = vld [vmem:[%s274 + $0xb4] sm:$0xf]
      %v329 = vld [vmem:[%s274 + $0xb8] sm:$0xf]
      %v330 = vld [vmem:[%s274 + $0xbc] sm:$0xf]
      %v331 = vld [vmem:[%s274 + $0xc0] sm:$0xf]
      %v332 = vld [vmem:[%s274 + $0xc4] sm:$0xf]
      %v333 = vld [vmem:[%s274 + $0xc8] sm:$0xf]
      %v334 = vld [vmem:[%s274 + $0xcc] sm:$0xf]
      %v335 = vld [vmem:[%s274 + $0xd0] sm:$0xf]
      %v336 = vld [vmem:[%s274 + $0xd4] sm:$0xf]
      %v337 = vld [vmem:[%s274 + $0xd8] sm:$0xf]
      %v338 = vld [vmem:[%s274 + $0xdc] sm:$0xf]
      %v339 = vld [vmem:[%s274 + $0xe0] sm:$0xf]
      %v340 = vld [vmem:[%s274 + $0xe4] sm:$0xf]
      %v341 = vld [vmem:[%s274 + $0xe8] sm:$0xf]
      %v342 = vld [vmem:[%s274 + $0xec] sm:$0xf]
      %v343 = vld [vmem:[%s274 + $0xf0] sm:$0xf]
      %v344 = vld [vmem:[%s274 + $0xf4] sm:$0xf]
      %v345 = vld [vmem:[%s274 + $0xf8] sm:$0xf]
      %v346 = vld [vmem:[%s274 + $0xfc] sm:$0xf]
      %v347 = vld [vmem:[%s1] sm:$0xf]
      %v348 = vld [vmem:[%s2] sm:$0x1]
      %v350 = vlaneseq
      %v351 = vshrl.u32 %v350, 7
      %v352 = vsub.s32 0, %v351
      %v353 = vrot.slane %v348, %v352
      %v419 = vunpack.c.l.b16 %v283
      %v420 = vunpack.c.l.b16 %v284
      %v421 = vunpack.c.l.b16 %v285
      %v422 = vunpack.c.l.b16 %v286
      %v423 = vunpack.c.l.b16 %v287
      %v424 = vunpack.c.l.b16 %v288
      %v425 = vunpack.c.l.b16 %v289
      %v426 = vunpack.c.l.b16 %v290
      %v427 = vunpack.c.l.b16 %v291
      %v428 = vunpack.c.l.b16 %v292
      %v429 = vunpack.c.l.b16 %v293
      %v430 = vunpack.c.l.b16 %v294
      %v431 = vunpack.c.l.b16 %v295
      %v432 = vunpack.c.l.b16 %v296
      %v433 = vunpack.c.l.b16 %v297
      %v434 = vunpack.c.l.b16 %v298
      %v435 = vunpack.c.l.b16 %v299
      %v436 = vunpack.c.l.b16 %v300
      %v437 = vunpack.c.l.b16 %v301
      %v438 = vunpack.c.l.b16 %v302
      %v439 = vunpack.c.l.b16 %v303
      %v440 = vunpack.c.l.b16 %v304
      %v441 = vunpack.c.l.b16 %v305
      %v442 = vunpack.c.l.b16 %v306
      %v443 = vunpack.c.l.b16 %v307
      %v444 = vunpack.c.l.b16 %v308
      %v445 = vunpack.c.l.b16 %v309
      %v446 = vunpack.c.l.b16 %v310
      %v447 = vunpack.c.l.b16 %v311
      %v448 = vunpack.c.l.b16 %v312
      %v449 = vunpack.c.l.b16 %v313
      %v450 = vunpack.c.l.b16 %v314
      %v451 = vunpack.c.l.b16 %v315
      %v452 = vunpack.c.l.b16 %v316
      %v453 = vunpack.c.l.b16 %v317
      %v454 = vunpack.c.l.b16 %v318
      %v455 = vunpack.c.l.b16 %v319
      %v456 = vunpack.c.l.b16 %v320
      %v457 = vunpack.c.l.b16 %v321
      %v458 = vunpack.c.l.b16 %v322
      %v459 = vunpack.c.l.b16 %v323
      %v460 = vunpack.c.l.b16 %v324
      %v461 = vunpack.c.l.b16 %v325
      %v462 = vunpack.c.l.b16 %v326
      %v463 = vunpack.c.l.b16 %v327
      %v464 = vunpack.c.l.b16 %v328
      %v465 = vunpack.c.l.b16 %v329
      %v466 = vunpack.c.l.b16 %v330
      %v467 = vunpack.c.l.b16 %v331
      %v468 = vunpack.c.l.b16 %v332
      %v469 = vunpack.c.l.b16 %v333
      %v470 = vunpack.c.l.b16 %v334
      %v471 = vunpack.c.l.b16 %v335
      %v472 = vunpack.c.l.b16 %v336
      %v473 = vunpack.c.l.b16 %v337
      %v474 = vunpack.c.l.b16 %v338
      %v475 = vunpack.c.l.b16 %v339
      %v476 = vunpack.c.l.b16 %v340
      %v477 = vunpack.c.l.b16 %v341
      %v478 = vunpack.c.l.b16 %v342
      %v479 = vunpack.c.l.b16 %v343
      %v480 = vunpack.c.l.b16 %v344
      %v481 = vunpack.c.l.b16 %v345
      %v482 = vunpack.c.l.b16 %v346
      %v483 = vpack.c.b16 %v420, %v419
      %v484 = vpack.c.b16 %v422, %v421
      %v485 = vpack.c.b16 %v424, %v423
      %v486 = vpack.c.b16 %v426, %v425
      %v487 = vpack.c.b16 %v428, %v427
      %v488 = vpack.c.b16 %v430, %v429
      %v489 = vpack.c.b16 %v432, %v431
      %v490 = vpack.c.b16 %v434, %v433
      %v491 = vpack.c.b16 %v436, %v435
      %v492 = vpack.c.b16 %v438, %v437
      %v493 = vpack.c.b16 %v440, %v439
      %v494 = vpack.c.b16 %v442, %v441
      %v495 = vpack.c.b16 %v444, %v443
      %v496 = vpack.c.b16 %v446, %v445
      %v497 = vpack.c.b16 %v448, %v447
      %v498 = vpack.c.b16 %v450, %v449
      %v499 = vpack.c.b16 %v452, %v451
      %v500 = vpack.c.b16 %v454, %v453
      %v501 = vpack.c.b16 %v456, %v455
      %v502 = vpack.c.b16 %v458, %v457
      %v503 = vpack.c.b16 %v460, %v459
      %v504 = vpack.c.b16 %v462, %v461
      %v505 = vpack.c.b16 %v464, %v463
      %v506 = vpack.c.b16 %v466, %v465
      %v507 = vpack.c.b16 %v468, %v467
      %v508 = vpack.c.b16 %v470, %v469
      %v509 = vpack.c.b16 %v472, %v471
      %v510 = vpack.c.b16 %v474, %v473
      %v511 = vpack.c.b16 %v476, %v475
      %v512 = vpack.c.b16 %v478, %v477
      %v513 = vpack.c.b16 %v480, %v479
      %v514 = vpack.c.b16 %v482, %v481
      %vm515 = vcmask 64512
      %v517 = vsel %vm515, %v483, 0
      %v520 = vsel %vm515, %v484, 0
      %v523 = vsel %vm515, %v485, 0
      %v526 = vsel %vm515, %v486, 0
      %v529 = vsel %vm515, %v487, 0
      %v532 = vsel %vm515, %v488, 0
      %v535 = vsel %vm515, %v489, 0
      %v538 = vsel %vm515, %v490, 0
      %v541 = vsel %vm515, %v491, 0
      %v544 = vsel %vm515, %v492, 0
      %v547 = vsel %vm515, %v493, 0
      %v550 = vsel %vm515, %v494, 0
      %v553 = vsel %vm515, %v495, 0
      %v556 = vsel %vm515, %v496, 0
      %v559 = vsel %vm515, %v497, 0
      %v562 = vsel %vm515, %v498, 0
      %v565 = vsel %vm515, %v499, 0
      %v568 = vsel %vm515, %v500, 0
      %v571 = vsel %vm515, %v501, 0
      %v574 = vsel %vm515, %v502, 0
      %v577 = vsel %vm515, %v503, 0
      %v580 = vsel %vm515, %v504, 0
      %v583 = vsel %vm515, %v505, 0
      %v586 = vsel %vm515, %v506, 0
      %v589 = vsel %vm515, %v507, 0
      %v592 = vsel %vm515, %v508, 0
      %v595 = vsel %vm515, %v509, 0
      %v598 = vsel %vm515, %v510, 0
      %v601 = vsel %vm515, %v511, 0
      %v604 = vsel %vm515, %v512, 0
      %v607 = vsel %vm515, %v513, 0
      %v610 = vsel %vm515, %v514, 0
      %vm612 = vcmask 1043456
      %v614 = vsel %vm612, %v347, 0
      %616 = vmatprep.subr.bf16.mxu0 0
      %617 = vmatpush1.bf16.msra.mxu0 %v614
      %618 = vmatprep.subr.bf16.mxu0 0
      %619 = vmatpush1.bf16.msra.mxu0 0
      %620 = vmatprep.subr.bf16.mxu0 0
      %621 = vmatpush1.bf16.msra.mxu0 0
      %622 = vmatprep.subr.bf16.mxu0 0
      %623 = vmatpush1.bf16.msra.mxu0 0
      %624 = vmatprep.subr.bf16.mxu0 0
      %625 = vmatpush1.bf16.msra.mxu0 0
      %626 = vmatprep.subr.bf16.mxu0 0
      %627 = vmatpush1.bf16.msra.mxu0 0
      %628 = vmatprep.subr.bf16.mxu0 0
      %629 = vmatpush1.bf16.msra.mxu0 0
      %630 = vmatprep.subr.bf16.mxu0 0
      %631 = vmatpush1.bf16.msra.mxu0 0
      %632 = vmatprep.subr.bf16.mxu0 0
      %633 = vmatpush1.bf16.msra.mxu0 0
      %634 = vmatprep.subr.bf16.mxu0 0
      %635 = vmatpush1.bf16.msra.mxu0 0
      %636 = vmatprep.subr.bf16.mxu0 0
      %637 = vmatpush1.bf16.msra.mxu0 0
      %638 = vmatprep.subr.bf16.mxu0 0
      %639 = vmatpush1.bf16.msra.mxu0 0
      %640 = vmatprep.subr.bf16.mxu0 0
      %641 = vmatpush1.bf16.msra.mxu0 0
      %642 = vmatprep.subr.bf16.mxu0 0
      %643 = vmatpush1.bf16.msra.mxu0 0
      %644 = vmatprep.subr.bf16.mxu0 0
      %645 = vmatpush1.bf16.msra.mxu0 0
      %646 = vmatprep.subr.bf16.mxu0 0
      %647 = vmatpush1.bf16.msra.mxu0 0
      %648 = vmatprep.mubr.bf16.mxu0 0
      %649 = vmatmul.mubr.bf16.gmra.mrb[0].mxu0 %v517
      %v650 = vpop.f32.mrb[0].mxu0
      %v651 = vadd.f32 %v353, %v650
      %v652 = vpop.f32.mrb[0].mxu0
      %v653 = vpop.f32.mrb[0].mxu0
      %v654 = vadd.f32 %v353, %v653
      %v655 = vpop.f32.mrb[0].mxu0
      %656 = vmatprep.mubr.bf16.mxu0 0
      %657 = vmatmul.mubr.bf16.gmra.mrb[0].mxu0 %v520
      %v658 = vpop.f32.mrb[0].mxu0
      %v659 = vadd.f32 %v353, %v658
      %v660 = vpop.f32.mrb[0].mxu0
      %v661 = vpop.f32.mrb[0].mxu0
      %v662 = vadd.f32 %v353, %v661
      %v663 = vpop.f32.mrb[0].mxu0
      %664 = vmatprep.mubr.bf16.mxu0 0
      %665 = vmatmul.mubr.bf16.gmra.mrb[0].mxu0 %v523
      %v666 = vpop.f32.mrb[0].mxu0
      %v667 = vadd.f32 %v353, %v666
      %v668 = vpop.f32.mrb[0].mxu0
      %v669 = vpop.f32.mrb[0].mxu0
      %v670 = vadd.f32 %v353, %v669
      %v671 = vpop.f32.mrb[0].mxu0
      %672 = vmatprep.mubr.bf16.mxu0 0
      %673 = vmatmul.mubr.bf16.gmra.mrb[0].mxu0 %v526
      %v674 = vpop.f32.mrb[0].mxu0
      %v675 = vadd.f32 %v353, %v674
      %v676 = vpop.f32.mrb[0].mxu0
      %v677 = vpop.f32.mrb[0].mxu0
      %v678 = vadd.f32 %v353, %v677
      %v679 = vpop.f32.mrb[0].mxu0
      %680 = vmatprep.mubr.bf16.mxu0 0
      %681 = vmatmul.mubr.bf16.gmra.mrb[0].mxu0 %v529
      %v682 = vpop.f32.mrb[0].mxu0
      %v683 = vadd.f32 %v353, %v682
      %v684 = vpop.f32.mrb[0].mxu0
      %v685 = vpop.f32.mrb[0].mxu0
      %v686 = vadd.f32 %v353, %v685
      %v687 = vpop.f32.mrb[0].mxu0
      %688 = vmatprep.mubr.bf16.mxu0 0
      %689 = vmatmul.mubr.bf16.gmra.mrb[0].mxu0 %v532
      %v690 = vpop.f32.mrb[0].mxu0
      %v691 = vadd.f32 %v353, %v690
      %v692 = vpop.f32.mrb[0].mxu0
      %v693 = vpop.f32.mrb[0].mxu0
      %v694 = vadd.f32 %v353, %v693
      %v695 = vpop.f32.mrb[0].mxu0
      %696 = vmatprep.mubr.bf16.mxu0 0
      %697 = vmatmul.mubr.bf16.gmra.mrb[0].mxu0 %v535
      %v698 = vpop.f32.mrb[0].mxu0
      %v699 = vadd.f32 %v353, %v698
      %v700 = vpop.f32.mrb[0].mxu0
      %v701 = vpop.f32.mrb[0].mxu0
      %v702 = vadd.f32 %v353, %v701
      %v703 = vpop.f32.mrb[0].mxu0
      %704 = vmatprep.mubr.bf16.mxu0 0
      %705 = vmatmul.mubr.bf16.gmra.mrb[0].mxu0 %v538
      %v706 = vpop.f32.mrb[0].mxu0
      %v707 = vadd.f32 %v353, %v706
      %v708 = vpop.f32.mrb[0].mxu0
      %v709 = vpop.f32.mrb[0].mxu0
      %v710 = vadd.f32 %v353, %v709
      %v711 = vpop.f32.mrb[0].mxu0
      %712 = vmatprep.mubr.bf16.mxu0 0
      %713 = vmatmul.mubr.bf16.gmra.mrb[0].mxu0 %v541
      %v714 = vpop.f32.mrb[0].mxu0
      %v715 = vadd.f32 %v353, %v714
      %v716 = vpop.f32.mrb[0].mxu0
      %v717 = vpop.f32.mrb[0].mxu0
      %v718 = vadd.f32 %v353, %v717
      %v719 = vpop.f32.mrb[0].mxu0
      %720 = vmatprep.mubr.bf16.mxu0 0
      %721 = vmatmul.mubr.bf16.gmra.mrb[0].mxu0 %v544
      %v722 = vpop.f32.mrb[0].mxu0
      %v723 = vadd.f32 %v353, %v722
      %v724 = vpop.f32.mrb[0].mxu0
      %v725 = vpop.f32.mrb[0].mxu0
      %v726 = vadd.f32 %v353, %v725
      %v727 = vpop.f32.mrb[0].mxu0
      %728 = vmatprep.mubr.bf16.mxu0 0
      %729 = vmatmul.mubr.bf16.gmra.mrb[0].mxu0 %v547
      %v730 = vpop.f32.mrb[0].mxu0
      %v731 = vadd.f32 %v353, %v730
      %v732 = vpop.f32.mrb[0].mxu0
      %v733 = vpop.f32.mrb[0].mxu0
      %v734 = vadd.f32 %v353, %v733
      %v735 = vpop.f32.mrb[0].mxu0
      %736 = vmatprep.mubr.bf16.mxu0 0
      %737 = vmatmul.mubr.bf16.gmra.mrb[0].mxu0 %v550
      %v738 = vpop.f32.mrb[0].mxu0
      %v739 = vadd.f32 %v353, %v738
      %v740 = vpop.f32.mrb[0].mxu0
      %v741 = vpop.f32.mrb[0].mxu0
      %v742 = vadd.f32 %v353, %v741
      %v743 = vpop.f32.mrb[0].mxu0
      %744 = vmatprep.mubr.bf16.mxu0 0
      %745 = vmatmul.mubr.bf16.gmra.mrb[0].mxu0 %v553
      %v746 = vpop.f32.mrb[0].mxu0
      %v747 = vadd.f32 %v353, %v746
      %v748 = vpop.f32.mrb[0].mxu0
      %v749 = vpop.f32.mrb[0].mxu0
      %v750 = vadd.f32 %v353, %v749
      %v751 = vpop.f32.mrb[0].mxu0
      %752 = vmatprep.mubr.bf16.mxu0 0
      %753 = vmatmul.mubr.bf16.gmra.mrb[0].mxu0 %v556
      %v754 = vpop.f32.mrb[0].mxu0
      %v755 = vadd.f32 %v353, %v754
      %v756 = vpop.f32.mrb[0].mxu0
      %v757 = vpop.f32.mrb[0].mxu0
      %v758 = vadd.f32 %v353, %v757
      %v759 = vpop.f32.mrb[0].mxu0
      %760 = vmatprep.mubr.bf16.mxu0 0
      %761 = vmatmul.mubr.bf16.gmra.mrb[0].mxu0 %v559
      %v762 = vpop.f32.mrb[0].mxu0
      %v763 = vadd.f32 %v353, %v762
      %v764 = vpop.f32.mrb[0].mxu0
      %v765 = vpop.f32.mrb[0].mxu0
      %v766 = vadd.f32 %v353, %v765
      %v767 = vpop.f32.mrb[0].mxu0
      %768 = vmatprep.mubr.bf16.mxu0 0
      %769 = vmatmul.mubr.bf16.gmra.mrb[0].mxu0 %v562
      %v770 = vpop.f32.mrb[0].mxu0
      %v771 = vadd.f32 %v353, %v770
      %v772 = vpop.f32.mrb[0].mxu0
      %v773 = vpop.f32.mrb[0].mxu0
      %v774 = vadd.f32 %v353, %v773
      %v775 = vpop.f32.mrb[0].mxu0
      %776 = vmatprep.mubr.bf16.mxu0 0
      %777 = vmatmul.mubr.bf16.gmra.mrb[0].mxu0 %v565
      %v778 = vpop.f32.mrb[0].mxu0
      %v779 = vadd.f32 %v353, %v778
      %v780 = vpop.f32.mrb[0].mxu0
      %v781 = vpop.f32.mrb[0].mxu0
      %v782 = vadd.f32 %v353, %v781
      %v783 = vpop.f32.mrb[0].mxu0
      %784 = vmatprep.mubr.bf16.mxu0 0
      %785 = vmatmul.mubr.bf16.gmra.mrb[0].mxu0 %v568
      %v786 = vpop.f32.mrb[0].mxu0
      %v787 = vadd.f32 %v353, %v786
      %v788 = vpop.f32.mrb[0].mxu0
      %v789 = vpop.f32.mrb[0].mxu0
      %v790 = vadd.f32 %v353, %v789
      %v791 = vpop.f32.mrb[0].mxu0
      %792 = vmatprep.mubr.bf16.mxu0 0
      %793 = vmatmul.mubr.bf16.gmra.mrb[0].mxu0 %v571
      %v794 = vpop.f32.mrb[0].mxu0
      %v795 = vadd.f32 %v353, %v794
      %v796 = vpop.f32.mrb[0].mxu0
      %v797 = vpop.f32.mrb[0].mxu0
      %v798 = vadd.f32 %v353, %v797
      %v799 = vpop.f32.mrb[0].mxu0
      %800 = vmatprep.mubr.bf16.mxu0 0
      %801 = vmatmul.mubr.bf16.gmra.mrb[0].mxu0 %v574
      %v802 = vpop.f32.mrb[0].mxu0
      %v803 = vadd.f32 %v353, %v802
      %v804 = vpop.f32.mrb[0].mxu0
      %v805 = vpop.f32.mrb[0].mxu0
      %v806 = vadd.f32 %v353, %v805
      %v807 = vpop.f32.mrb[0].mxu0
      %808 = vmatprep.mubr.bf16.mxu0 0
      %809 = vmatmul.mubr.bf16.gmra.mrb[0].mxu0 %v577
      %v810 = vpop.f32.mrb[0].mxu0
      %v811 = vadd.f32 %v353, %v810
      %v812 = vpop.f32.mrb[0].mxu0
      %v813 = vpop.f32.mrb[0].mxu0
      %v814 = vadd.f32 %v353, %v813
      %v815 = vpop.f32.mrb[0].mxu0
      %816 = vmatprep.mubr.bf16.mxu0 0
      %817 = vmatmul.mubr.bf16.gmra.mrb[0].mxu0 %v580
      %v818 = vpop.f32.mrb[0].mxu0
      %v819 = vadd.f32 %v353, %v818
      %v820 = vpop.f32.mrb[0].mxu0
      %v821 = vpop.f32.mrb[0].mxu0
      %v822 = vadd.f32 %v353, %v821
      %v823 = vpop.f32.mrb[0].mxu0
      %824 = vmatprep.mubr.bf16.mxu0 0
      %825 = vmatmul.mubr.bf16.gmra.mrb[0].mxu0 %v583
      %v826 = vpop.f32.mrb[0].mxu0
      %v827 = vadd.f32 %v353, %v826
      %v828 = vpop.f32.mrb[0].mxu0
      %v829 = vpop.f32.mrb[0].mxu0
      %v830 = vadd.f32 %v353, %v829
      %v831 = vpop.f32.mrb[0].mxu0
      %832 = vmatprep.mubr.bf16.mxu0 0
      %833 = vmatmul.mubr.bf16.gmra.mrb[0].mxu0 %v586
      %v834 = vpop.f32.mrb[0].mxu0
      %v835 = vadd.f32 %v353, %v834
      %v836 = vpop.f32.mrb[0].mxu0
      %v837 = vpop.f32.mrb[0].mxu0
      %v838 = vadd.f32 %v353, %v837
      %v839 = vpop.f32.mrb[0].mxu0
      %840 = vmatprep.mubr.bf16.mxu0 0
      %841 = vmatmul.mubr.bf16.gmra.mrb[0].mxu0 %v589
      %v842 = vpop.f32.mrb[0].mxu0
      %v843 = vadd.f32 %v353, %v842
      %v844 = vpop.f32.mrb[0].mxu0
      %v845 = vpop.f32.mrb[0].mxu0
      %v846 = vadd.f32 %v353, %v845
      %v847 = vpop.f32.mrb[0].mxu0
      %848 = vmatprep.mubr.bf16.mxu0 0
      %849 = vmatmul.mubr.bf16.gmra.mrb[0].mxu0 %v592
      %v850 = vpop.f32.mrb[0].mxu0
      %v851 = vadd.f32 %v353, %v850
      %v852 = vpop.f32.mrb[0].mxu0
      %v853 = vpop.f32.mrb[0].mxu0
      %v854 = vadd.f32 %v353, %v853
      %v855 = vpop.f32.mrb[0].mxu0
      %856 = vmatprep.mubr.bf16.mxu0 0
      %857 = vmatmul.mubr.bf16.gmra.mrb[0].mxu0 %v595
      %v858 = vpop.f32.mrb[0].mxu0
      %v859 = vadd.f32 %v353, %v858
      %v860 = vpop.f32.mrb[0].mxu0
      %v861 = vpop.f32.mrb[0].mxu0
      %v862 = vadd.f32 %v353, %v861
      %v863 = vpop.f32.mrb[0].mxu0
      %864 = vmatprep.mubr.bf16.mxu0 0
      %865 = vmatmul.mubr.bf16.gmra.mrb[0].mxu0 %v598
      %v866 = vpop.f32.mrb[0].mxu0
      %v867 = vadd.f32 %v353, %v866
      %v868 = vpop.f32.mrb[0].mxu0
      %v869 = vpop.f32.mrb[0].mxu0
      %v870 = vadd.f32 %v353, %v869
      %v871 = vpop.f32.mrb[0].mxu0
      %872 = vmatprep.mubr.bf16.mxu0 0
      %873 = vmatmul.mubr.bf16.gmra.mrb[0].mxu0 %v601
      %v874 = vpop.f32.mrb[0].mxu0
      %v875 = vadd.f32 %v353, %v874
      %v876 = vpop.f32.mrb[0].mxu0
      %v877 = vpop.f32.mrb[0].mxu0
      %v878 = vadd.f32 %v353, %v877
      %v879 = vpop.f32.mrb[0].mxu0
      %880 = vmatprep.mubr.bf16.mxu0 0
      %881 = vmatmul.mubr.bf16.gmra.mrb[0].mxu0 %v604
      %v882 = vpop.f32.mrb[0].mxu0
      %v883 = vadd.f32 %v353, %v882
      %v884 = vpop.f32.mrb[0].mxu0
      %v885 = vpop.f32.mrb[0].mxu0
      %v886 = vadd.f32 %v353, %v885
      %v887 = vpop.f32.mrb[0].mxu0
      %888 = vmatprep.mubr.bf16.mxu0 0
      %889 = vmatmul.mubr.bf16.gmra.mrb[0].mxu0 %v607
      %v890 = vpop.f32.mrb[0].mxu0
      %v891 = vadd.f32 %v353, %v890
      %v892 = vpop.f32.mrb[0].mxu0
      %v893 = vpop.f32.mrb[0].mxu0
      %v894 = vadd.f32 %v353, %v893
      %v895 = vpop.f32.mrb[0].mxu0
      %896 = vmatprep.mubr.bf16.mxu0 0
      %897 = vmatmul.mubr.bf16.gmra.mrb[0].mxu0 %v610
      %v898 = vpop.f32.mrb[0].mxu0
      %v899 = vadd.f32 %v353, %v898
      %v900 = vpop.f32.mrb[0].mxu0
      %v901 = vpop.f32.mrb[0].mxu0
      %v902 = vadd.f32 %v353, %v901
      %v903 = vpop.f32.mrb[0].mxu0
      %904 = vdwg.mxu0
      %v905 = vmax.f32 %v651, 0.0
      %v906 = vmax.f32 %v654, 0.0
      %v907 = vmax.f32 %v659, 0.0
      %v908 = vmax.f32 %v662, 0.0
      %v909 = vmax.f32 %v667, 0.0
      %v910 = vmax.f32 %v670, 0.0
      %v911 = vmax.f32 %v675, 0.0
      %v912 = vmax.f32 %v678, 0.0
      %v913 = vmax.f32 %v683, 0.0
      %v914 = vmax.f32 %v686, 0.0
      %v915 = vmax.f32 %v691, 0.0
      %v916 = vmax.f32 %v694, 0.0
      %v917 = vmax.f32 %v699, 0.0
      %v918 = vmax.f32 %v702, 0.0
      %v919 = vmax.f32 %v707, 0.0
      %v920 = vmax.f32 %v710, 0.0
      %v921 = vmax.f32 %v715, 0.0
      %v922 = vmax.f32 %v718, 0.0
      %v923 = vmax.f32 %v723, 0.0
      %v924 = vmax.f32 %v726, 0.0
      %v925 = vmax.f32 %v731, 0.0
      %v926 = vmax.f32 %v734, 0.0
      %v927 = vmax.f32 %v739, 0.0
      %v928 = vmax.f32 %v742, 0.0
      %v929 = vmax.f32 %v747, 0.0
      %v930 = vmax.f32 %v750, 0.0
      %v931 = vmax.f32 %v755, 0.0
      %v932 = vmax.f32 %v758, 0.0
      %v933 = vmax.f32 %v763, 0.0
      %v934 = vmax.f32 %v766, 0.0
      %v935 = vmax.f32 %v771, 0.0
      %v936 = vmax.f32 %v774, 0.0
      %v937 = vmax.f32 %v779, 0.0
      %v938 = vmax.f32 %v782, 0.0
      %v939 = vmax.f32 %v787, 0.0
      %v940 = vmax.f32 %v790, 0.0
      %v941 = vmax.f32 %v795, 0.0
      %v942 = vmax.f32 %v798, 0.0
      %v943 = vmax.f32 %v803, 0.0
      %v944 = vmax.f32 %v806, 0.0
      %v945 = vmax.f32 %v811, 0.0
      %v946 = vmax.f32 %v814, 0.0
      %v947 = vmax.f32 %v819, 0.0
      %v948 = vmax.f32 %v822, 0.0
      %v949 = vmax.f32 %v827, 0.0
      %v950 = vmax.f32 %v830, 0.0
      %v951 = vmax.f32 %v835, 0.0
      %v952 = vmax.f32 %v838, 0.0
      %v953 = vmax.f32 %v843, 0.0
      %v954 = vmax.f32 %v846, 0.0
      %v955 = vmax.f32 %v851, 0.0
      %v956 = vmax.f32 %v854, 0.0
      %v957 = vmax.f32 %v859, 0.0
      %v958 = vmax.f32 %v862, 0.0
      %v959 = vmax.f32 %v867, 0.0
      %v960 = vmax.f32 %v870, 0.0
      %v961 = vmax.f32 %v875, 0.0
      %v962 = vmax.f32 %v878, 0.0
      %v963 = vmax.f32 %v883, 0.0
      %v964 = vmax.f32 %v886, 0.0
      %v965 = vmax.f32 %v891, 0.0
      %v966 = vmax.f32 %v894, 0.0
      %v967 = vmax.f32 %v899, 0.0
      %v968 = vmax.f32 %v902, 0.0
      %v969 = vpack.c.bf16 %v906, %v905
      %v970 = vpack.c.bf16 %v908, %v907
      %v971 = vpack.c.bf16 %v910, %v909
      %v972 = vpack.c.bf16 %v912, %v911
      %v973 = vpack.c.bf16 %v914, %v913
      %v974 = vpack.c.bf16 %v916, %v915
      %v975 = vpack.c.bf16 %v918, %v917
      %v976 = vpack.c.bf16 %v920, %v919
      %v977 = vpack.c.bf16 %v922, %v921
      %v978 = vpack.c.bf16 %v924, %v923
      %v979 = vpack.c.bf16 %v926, %v925
      %v980 = vpack.c.bf16 %v928, %v927
      %v981 = vpack.c.bf16 %v930, %v929
      %v982 = vpack.c.bf16 %v932, %v931
      %v983 = vpack.c.bf16 %v934, %v933
      %v984 = vpack.c.bf16 %v936, %v935
      %v985 = vpack.c.bf16 %v938, %v937
      %v986 = vpack.c.bf16 %v940, %v939
      %v987 = vpack.c.bf16 %v942, %v941
      %v988 = vpack.c.bf16 %v944, %v943
      %v989 = vpack.c.bf16 %v946, %v945
      %v990 = vpack.c.bf16 %v948, %v947
      %v991 = vpack.c.bf16 %v950, %v949
      %v992 = vpack.c.bf16 %v952, %v951
      %v993 = vpack.c.bf16 %v954, %v953
      %v994 = vpack.c.bf16 %v956, %v955
      %v995 = vpack.c.bf16 %v958, %v957
      %v996 = vpack.c.bf16 %v960, %v959
      %v997 = vpack.c.bf16 %v962, %v961
      %v998 = vpack.c.bf16 %v964, %v963
      %v999 = vpack.c.bf16 %v966, %v965
      %v1000 = vpack.c.bf16 %v968, %v967
      %v1001 = vld [vmem:[%s3] sm:$0xf]
      %v1002 = vld [vmem:[%s3 + $0x4] sm:$0xf]
      %v1003 = vld [vmem:[%s3 + $0x8] sm:$0xf]
      %v1004 = vld [vmem:[%s3 + $0xc] sm:$0xf]
      %v1005 = vld [vmem:[%s3 + $0x10] sm:$0xf]
      %v1006 = vld [vmem:[%s3 + $0x14] sm:$0xf]
      %v1007 = vld [vmem:[%s3 + $0x18] sm:$0xf]
      %v1008 = vld [vmem:[%s3 + $0x1c] sm:$0xf]
      %v1009 = vld [vmem:[%s4] sm:$0x1]
      %v1011 = vlaneseq
      %v1012 = vshrl.u32 %v1011, 7
      %v1013 = vsub.s32 0, %v1012
      %v1014 = vrot.slane %v1009, %v1013
      %v1024 = vunpack.c.l.b16 %v1001
      %v1025 = vunpack.c.l.b16 %v1002
      %v1026 = vunpack.c.l.b16 %v1003
      %v1027 = vunpack.c.l.b16 %v1004
      %v1028 = vunpack.c.l.b16 %v1005
      %v1029 = vunpack.c.l.b16 %v1006
      %v1030 = vunpack.c.l.b16 %v1007
      %v1031 = vunpack.c.l.b16 %v1008
      %v1032 = vpack.c.b16 %v1025, %v1024
      %v1033 = vpack.c.b16 %v1027, %v1026
      %v1034 = vpack.c.b16 %v1029, %v1028
      %v1035 = vpack.c.b16 %v1031, %v1030
      %vm1040 = vcmask 523264
      %v1042 = vsel %vm1040, %v969, 0
      %v1045 = vsel %vm1040, %v970, 0
      %v1048 = vsel %vm1040, %v971, 0
      %v1051 = vsel %vm1040, %v972, 0
      %v1054 = vsel %vm1040, %v973, 0
      %v1057 = vsel %vm1040, %v974, 0
      %v1060 = vsel %vm1040, %v975, 0
      %v1063 = vsel %vm1040, %v976, 0
      %v1066 = vsel %vm1040, %v977, 0
      %v1069 = vsel %vm1040, %v978, 0
      %v1072 = vsel %vm1040, %v979, 0
      %v1075 = vsel %vm1040, %v980, 0
      %v1078 = vsel %vm1040, %v981, 0
      %v1081 = vsel %vm1040, %v982, 0
      %v1084 = vsel %vm1040, %v983, 0
      %v1087 = vsel %vm1040, %v984, 0
      %v1090 = vsel %vm1040, %v985, 0
      %v1093 = vsel %vm1040, %v986, 0
      %v1096 = vsel %vm1040, %v987, 0
      %v1099 = vsel %vm1040, %v988, 0
      %v1102 = vsel %vm1040, %v989, 0
      %v1105 = vsel %vm1040, %v990, 0
      %v1108 = vsel %vm1040, %v991, 0
      %v1111 = vsel %vm1040, %v992, 0
      %v1114 = vsel %vm1040, %v993, 0
      %v1117 = vsel %vm1040, %v994, 0
      %v1120 = vsel %vm1040, %v995, 0
      %v1123 = vsel %vm1040, %v996, 0
      %v1126 = vsel %vm1040, %v997, 0
      %v1129 = vsel %vm1040, %v998, 0
      %v1132 = vsel %vm1040, %v999, 0
      %v1135 = vsel %vm1040, %v1000, 0
      %1137 = vmatprep.subr.bf16.mxu0 0
      %1138 = vmatpush1.bf16.msra.mxu0 %v1032
      %1139 = vmatprep.subr.bf16.mxu0 0
      %1140 = vmatpush1.bf16.msra.mxu0 %v1033
      %1141 = vmatprep.subr.bf16.mxu0 0
      %1142 = vmatpush1.bf16.msra.mxu0 %v1034
      %1143 = vmatprep.subr.bf16.mxu0 0
      %1144 = vmatpush1.bf16.msra.mxu0 %v1035
      %1145 = vmatprep.subr.bf16.mxu0 0
      %1146 = vmatpush1.bf16.msra.mxu0 0
      %1147 = vmatprep.subr.bf16.mxu0 0
      %1148 = vmatpush1.bf16.msra.mxu0 0
      %1149 = vmatprep.subr.bf16.mxu0 0
      %1150 = vmatpush1.bf16.msra.mxu0 0
      %1151 = vmatprep.subr.bf16.mxu0 0
      %1152 = vmatpush1.bf16.msra.mxu0 0
      %1153 = vmatprep.subr.bf16.mxu0 0
      %1154 = vmatpush1.bf16.msra.mxu0 0
      %1155 = vmatprep.subr.bf16.mxu0 0
      %1156 = vmatpush1.bf16.msra.mxu0 0
      %1157 = vmatprep.subr.bf16.mxu0 0
      %1158 = vmatpush1.bf16.msra.mxu0 0
      %1159 = vmatprep.subr.bf16.mxu0 0
      %1160 = vmatpush1.bf16.msra.mxu0 0
      %1161 = vmatprep.subr.bf16.mxu0 0
      %1162 = vmatpush1.bf16.msra.mxu0 0
      %1163 = vmatprep.subr.bf16.mxu0 0
      %1164 = vmatpush1.bf16.msra.mxu0 0
      %1165 = vmatprep.subr.bf16.mxu0 0
      %1166 = vmatpush1.bf16.msra.mxu0 0
      %1167 = vmatprep.subr.bf16.mxu0 0
      %1168 = vmatpush1.bf16.msra.mxu0 0
      %1169 = vmatprep.mubr.bf16.mxu0 0
      %1170 = vmatmul.mubr.bf16.gmra.mrb[0].mxu0 %v1042
      %v1171 = vpop.f32.mrb[0].mxu0
      %v1172 = vadd.f32 %v1014, %v1171
      %v1173 = vpop.f32.mrb[0].mxu0
      %v1174 = vpop.f32.mrb[0].mxu0
      %v1175 = vadd.f32 %v1014, %v1174
      %v1176 = vpop.f32.mrb[0].mxu0
      %1177 = vmatprep.mubr.bf16.mxu0 0
      %1178 = vmatmul.mubr.bf16.gmra.mrb[0].mxu0 %v1045
      %v1179 = vpop.f32.mrb[0].mxu0
      %v1180 = vadd.f32 %v1014, %v1179
      %v1181 = vpop.f32.mrb[0].mxu0
      %v1182 = vpop.f32.mrb[0].mxu0
      %v1183 = vadd.f32 %v1014, %v1182
      %v1184 = vpop.f32.mrb[0].mxu0
      %1185 = vmatprep.mubr.bf16.mxu0 0
      %1186 = vmatmul.mubr.bf16.gmra.mrb[0].mxu0 %v1048
      %v1187 = vpop.f32.mrb[0].mxu0
      %v1188 = vadd.f32 %v1014, %v1187
      %v1189 = vpop.f32.mrb[0].mxu0
      %v1190 = vpop.f32.mrb[0].mxu0
      %v1191 = vadd.f32 %v1014, %v1190
      %v1192 = vpop.f32.mrb[0].mxu0
      %1193 = vmatprep.mubr.bf16.mxu0 0
      %1194 = vmatmul.mubr.bf16.gmra.mrb[0].mxu0 %v1051
      %v1195 = vpop.f32.mrb[0].mxu0
      %v1196 = vadd.f32 %v1014, %v1195
      %v1197 = vpop.f32.mrb[0].mxu0
      %v1198 = vpop.f32.mrb[0].mxu0
      %v1199 = vadd.f32 %v1014, %v1198
      %v1200 = vpop.f32.mrb[0].mxu0
      %1201 = vmatprep.mubr.bf16.mxu0 0
      %1202 = vmatmul.mubr.bf16.gmra.mrb[0].mxu0 %v1054
      %v1203 = vpop.f32.mrb[0].mxu0
      %v1204 = vadd.f32 %v1014, %v1203
      %v1205 = vpop.f32.mrb[0].mxu0
      %v1206 = vpop.f32.mrb[0].mxu0
      %v1207 = vadd.f32 %v1014, %v1206
      %v1208 = vpop.f32.mrb[0].mxu0
      %1209 = vmatprep.mubr.bf16.mxu0 0
      %1210 = vmatmul.mubr.bf16.gmra.mrb[0].mxu0 %v1057
      %v1211 = vpop.f32.mrb[0].mxu0
      %v1212 = vadd.f32 %v1014, %v1211
      %v1213 = vpop.f32.mrb[0].mxu0
      %v1214 = vpop.f32.mrb[0].mxu0
      %v1215 = vadd.f32 %v1014, %v1214
      %v1216 = vpop.f32.mrb[0].mxu0
      %1217 = vmatprep.mubr.bf16.mxu0 0
      %1218 = vmatmul.mubr.bf16.gmra.mrb[0].mxu0 %v1060
      %v1219 = vpop.f32.mrb[0].mxu0
      %v1220 = vadd.f32 %v1014, %v1219
      %v1221 = vpop.f32.mrb[0].mxu0
      %v1222 = vpop.f32.mrb[0].mxu0
      %v1223 = vadd.f32 %v1014, %v1222
      %v1224 = vpop.f32.mrb[0].mxu0
      %1225 = vmatprep.mubr.bf16.mxu0 0
      %1226 = vmatmul.mubr.bf16.gmra.mrb[0].mxu0 %v1063
      %v1227 = vpop.f32.mrb[0].mxu0
      %v1228 = vadd.f32 %v1014, %v1227
      %v1229 = vpop.f32.mrb[0].mxu0
      %v1230 = vpop.f32.mrb[0].mxu0
      %v1231 = vadd.f32 %v1014, %v1230
      %v1232 = vpop.f32.mrb[0].mxu0
      %1233 = vmatprep.mubr.bf16.mxu0 0
      %1234 = vmatmul.mubr.bf16.gmra.mrb[0].mxu0 %v1066
      %v1235 = vpop.f32.mrb[0].mxu0
      %v1236 = vadd.f32 %v1014, %v1235
      %v1237 = vpop.f32.mrb[0].mxu0
      %v1238 = vpop.f32.mrb[0].mxu0
      %v1239 = vadd.f32 %v1014, %v1238
      %v1240 = vpop.f32.mrb[0].mxu0
      %1241 = vmatprep.mubr.bf16.mxu0 0
      %1242 = vmatmul.mubr.bf16.gmra.mrb[0].mxu0 %v1069
      %v1243 = vpop.f32.mrb[0].mxu0
      %v1244 = vadd.f32 %v1014, %v1243
      %v1245 = vpop.f32.mrb[0].mxu0
      %v1246 = vpop.f32.mrb[0].mxu0
      %v1247 = vadd.f32 %v1014, %v1246
      %v1248 = vpop.f32.mrb[0].mxu0
      %1249 = vmatprep.mubr.bf16.mxu0 0
      %1250 = vmatmul.mubr.bf16.gmra.mrb[0].mxu0 %v1072
      %v1251 = vpop.f32.mrb[0].mxu0
      %v1252 = vadd.f32 %v1014, %v1251
      %v1253 = vpop.f32.mrb[0].mxu0
      %v1254 = vpop.f32.mrb[0].mxu0
      %v1255 = vadd.f32 %v1014, %v1254
      %v1256 = vpop.f32.mrb[0].mxu0
      %1257 = vmatprep.mubr.bf16.mxu0 0
      %1258 = vmatmul.mubr.bf16.gmra.mrb[0].mxu0 %v1075
      %v1259 = vpop.f32.mrb[0].mxu0
      %v1260 = vadd.f32 %v1014, %v1259
      %v1261 = vpop.f32.mrb[0].mxu0
      %v1262 = vpop.f32.mrb[0].mxu0
      %v1263 = vadd.f32 %v1014, %v1262
      %v1264 = vpop.f32.mrb[0].mxu0
      %1265 = vmatprep.mubr.bf16.mxu0 0
      %1266 = vmatmul.mubr.bf16.gmra.mrb[0].mxu0 %v1078
      %v1267 = vpop.f32.mrb[0].mxu0
      %v1268 = vadd.f32 %v1014, %v1267
      %v1269 = vpop.f32.mrb[0].mxu0
      %v1270 = vpop.f32.mrb[0].mxu0
      %v1271 = vadd.f32 %v1014, %v1270
      %v1272 = vpop.f32.mrb[0].mxu0
      %1273 = vmatprep.mubr.bf16.mxu0 0
      %1274 = vmatmul.mubr.bf16.gmra.mrb[0].mxu0 %v1081
      %v1275 = vpop.f32.mrb[0].mxu0
      %v1276 = vadd.f32 %v1014, %v1275
      %v1277 = vpop.f32.mrb[0].mxu0
      %v1278 = vpop.f32.mrb[0].mxu0
      %v1279 = vadd.f32 %v1014, %v1278
      %v1280 = vpop.f32.mrb[0].mxu0
      %1281 = vmatprep.mubr.bf16.mxu0 0
      %1282 = vmatmul.mubr.bf16.gmra.mrb[0].mxu0 %v1084
      %v1283 = vpop.f32.mrb[0].mxu0
      %v1284 = vadd.f32 %v1014, %v1283
      %v1285 = vpop.f32.mrb[0].mxu0
      %v1286 = vpop.f32.mrb[0].mxu0
      %v1287 = vadd.f32 %v1014, %v1286
      %v1288 = vpop.f32.mrb[0].mxu0
      %1289 = vmatprep.mubr.bf16.mxu0 0
      %1290 = vmatmul.mubr.bf16.gmra.mrb[0].mxu0 %v1087
      %v1291 = vpop.f32.mrb[0].mxu0
      %v1292 = vadd.f32 %v1014, %v1291
      %v1293 = vpop.f32.mrb[0].mxu0
      %v1294 = vpop.f32.mrb[0].mxu0
      %v1295 = vadd.f32 %v1014, %v1294
      %v1296 = vpop.f32.mrb[0].mxu0
      %1297 = vmatprep.mubr.bf16.mxu0 0
      %1298 = vmatmul.mubr.bf16.gmra.mrb[0].mxu0 %v1090
      %v1299 = vpop.f32.mrb[0].mxu0
      %v1300 = vadd.f32 %v1014, %v1299
      %v1301 = vpop.f32.mrb[0].mxu0
      %v1302 = vpop.f32.mrb[0].mxu0
      %v1303 = vadd.f32 %v1014, %v1302
      %v1304 = vpop.f32.mrb[0].mxu0
      %1305 = vmatprep.mubr.bf16.mxu0 0
      %1306 = vmatmul.mubr.bf16.gmra.mrb[0].mxu0 %v1093
      %v1307 = vpop.f32.mrb[0].mxu0
      %v1308 = vadd.f32 %v1014, %v1307
      %v1309 = vpop.f32.mrb[0].mxu0
      %v1310 = vpop.f32.mrb[0].mxu0
      %v1311 = vadd.f32 %v1014, %v1310
      %v1312 = vpop.f32.mrb[0].mxu0
      %1313 = vmatprep.mubr.bf16.mxu0 0
      %1314 = vmatmul.mubr.bf16.gmra.mrb[0].mxu0 %v1096
      %v1315 = vpop.f32.mrb[0].mxu0
      %v1316 = vadd.f32 %v1014, %v1315
      %v1317 = vpop.f32.mrb[0].mxu0
      %v1318 = vpop.f32.mrb[0].mxu0
      %v1319 = vadd.f32 %v1014, %v1318
      %v1320 = vpop.f32.mrb[0].mxu0
      %1321 = vmatprep.mubr.bf16.mxu0 0
      %1322 = vmatmul.mubr.bf16.gmra.mrb[0].mxu0 %v1099
      %v1323 = vpop.f32.mrb[0].mxu0
      %v1324 = vadd.f32 %v1014, %v1323
      %v1325 = vpop.f32.mrb[0].mxu0
      %v1326 = vpop.f32.mrb[0].mxu0
      %v1327 = vadd.f32 %v1014, %v1326
      %v1328 = vpop.f32.mrb[0].mxu0
      %1329 = vmatprep.mubr.bf16.mxu0 0
      %1330 = vmatmul.mubr.bf16.gmra.mrb[0].mxu0 %v1102
      %v1331 = vpop.f32.mrb[0].mxu0
      %v1332 = vadd.f32 %v1014, %v1331
      %v1333 = vpop.f32.mrb[0].mxu0
      %v1334 = vpop.f32.mrb[0].mxu0
      %v1335 = vadd.f32 %v1014, %v1334
      %v1336 = vpop.f32.mrb[0].mxu0
      %1337 = vmatprep.mubr.bf16.mxu0 0
      %1338 = vmatmul.mubr.bf16.gmra.mrb[0].mxu0 %v1105
      %v1339 = vpop.f32.mrb[0].mxu0
      %v1340 = vadd.f32 %v1014, %v1339
      %v1341 = vpop.f32.mrb[0].mxu0
      %v1342 = vpop.f32.mrb[0].mxu0
      %v1343 = vadd.f32 %v1014, %v1342
      %v1344 = vpop.f32.mrb[0].mxu0
      %1345 = vmatprep.mubr.bf16.mxu0 0
      %1346 = vmatmul.mubr.bf16.gmra.mrb[0].mxu0 %v1108
      %v1347 = vpop.f32.mrb[0].mxu0
      %v1348 = vadd.f32 %v1014, %v1347
      %v1349 = vpop.f32.mrb[0].mxu0
      %v1350 = vpop.f32.mrb[0].mxu0
      %v1351 = vadd.f32 %v1014, %v1350
      %v1352 = vpop.f32.mrb[0].mxu0
      %1353 = vmatprep.mubr.bf16.mxu0 0
      %1354 = vmatmul.mubr.bf16.gmra.mrb[0].mxu0 %v1111
      %v1355 = vpop.f32.mrb[0].mxu0
      %v1356 = vadd.f32 %v1014, %v1355
      %v1357 = vpop.f32.mrb[0].mxu0
      %v1358 = vpop.f32.mrb[0].mxu0
      %v1359 = vadd.f32 %v1014, %v1358
      %v1360 = vpop.f32.mrb[0].mxu0
      %1361 = vmatprep.mubr.bf16.mxu0 0
      %1362 = vmatmul.mubr.bf16.gmra.mrb[0].mxu0 %v1114
      %v1363 = vpop.f32.mrb[0].mxu0
      %v1364 = vadd.f32 %v1014, %v1363
      %v1365 = vpop.f32.mrb[0].mxu0
      %v1366 = vpop.f32.mrb[0].mxu0
      %v1367 = vadd.f32 %v1014, %v1366
      %v1368 = vpop.f32.mrb[0].mxu0
      %1369 = vmatprep.mubr.bf16.mxu0 0
      %1370 = vmatmul.mubr.bf16.gmra.mrb[0].mxu0 %v1117
      %v1371 = vpop.f32.mrb[0].mxu0
      %v1372 = vadd.f32 %v1014, %v1371
      %v1373 = vpop.f32.mrb[0].mxu0
      %v1374 = vpop.f32.mrb[0].mxu0
      %v1375 = vadd.f32 %v1014, %v1374
      %v1376 = vpop.f32.mrb[0].mxu0
      %1377 = vmatprep.mubr.bf16.mxu0 0
      %1378 = vmatmul.mubr.bf16.gmra.mrb[0].mxu0 %v1120
      %v1379 = vpop.f32.mrb[0].mxu0
      %v1380 = vadd.f32 %v1014, %v1379
      %v1381 = vpop.f32.mrb[0].mxu0
      %v1382 = vpop.f32.mrb[0].mxu0
      %v1383 = vadd.f32 %v1014, %v1382
      %v1384 = vpop.f32.mrb[0].mxu0
      %1385 = vmatprep.mubr.bf16.mxu0 0
      %1386 = vmatmul.mubr.bf16.gmra.mrb[0].mxu0 %v1123
      %v1387 = vpop.f32.mrb[0].mxu0
      %v1388 = vadd.f32 %v1014, %v1387
      %v1389 = vpop.f32.mrb[0].mxu0
      %v1390 = vpop.f32.mrb[0].mxu0
      %v1391 = vadd.f32 %v1014, %v1390
      %v1392 = vpop.f32.mrb[0].mxu0
      %1393 = vmatprep.mubr.bf16.mxu0 0
      %1394 = vmatmul.mubr.bf16.gmra.mrb[0].mxu0 %v1126
      %v1395 = vpop.f32.mrb[0].mxu0
      %v1396 = vadd.f32 %v1014, %v1395
      %v1397 = vpop.f32.mrb[0].mxu0
      %v1398 = vpop.f32.mrb[0].mxu0
      %v1399 = vadd.f32 %v1014, %v1398
      %v1400 = vpop.f32.mrb[0].mxu0
      %1401 = vmatprep.mubr.bf16.mxu0 0
      %1402 = vmatmul.mubr.bf16.gmra.mrb[0].mxu0 %v1129
      %v1403 = vpop.f32.mrb[0].mxu0
      %v1404 = vadd.f32 %v1014, %v1403
      %v1405 = vpop.f32.mrb[0].mxu0
      %v1406 = vpop.f32.mrb[0].mxu0
      %v1407 = vadd.f32 %v1014, %v1406
      %v1408 = vpop.f32.mrb[0].mxu0
      %1409 = vmatprep.mubr.bf16.mxu0 0
      %1410 = vmatmul.mubr.bf16.gmra.mrb[0].mxu0 %v1132
      %v1411 = vpop.f32.mrb[0].mxu0
      %v1412 = vadd.f32 %v1014, %v1411
      %v1413 = vpop.f32.mrb[0].mxu0
      %v1414 = vpop.f32.mrb[0].mxu0
      %v1415 = vadd.f32 %v1014, %v1414
      %v1416 = vpop.f32.mrb[0].mxu0
      %1417 = vmatprep.mubr.bf16.mxu0 0
      %1418 = vmatmul.mubr.bf16.gmra.mrb[0].mxu0 %v1135
      %v1419 = vpop.f32.mrb[0].mxu0
      %v1420 = vadd.f32 %v1014, %v1419
      %v1421 = vpop.f32.mrb[0].mxu0
      %v1422 = vpop.f32.mrb[0].mxu0
      %v1423 = vadd.f32 %v1014, %v1422
      %v1424 = vpop.f32.mrb[0].mxu0
      %1425 = vdwg.mxu0
      %v1426 = vmax.f32 %v1172, 0.0
      %v1427 = vmax.f32 %v1175, 0.0
      %v1428 = vmax.f32 %v1180, 0.0
      %v1429 = vmax.f32 %v1183, 0.0
      %v1430 = vmax.f32 %v1188, 0.0
      %v1431 = vmax.f32 %v1191, 0.0
      %v1432 = vmax.f32 %v1196, 0.0
      %v1433 = vmax.f32 %v1199, 0.0
      %v1434 = vmax.f32 %v1204, 0.0
      %v1435 = vmax.f32 %v1207, 0.0
      %v1436 = vmax.f32 %v1212, 0.0
      %v1437 = vmax.f32 %v1215, 0.0
      %v1438 = vmax.f32 %v1220, 0.0
      %v1439 = vmax.f32 %v1223, 0.0
      %v1440 = vmax.f32 %v1228, 0.0
      %v1441 = vmax.f32 %v1231, 0.0
      %v1442 = vmax.f32 %v1236, 0.0
      %v1443 = vmax.f32 %v1239, 0.0
      %v1444 = vmax.f32 %v1244, 0.0
      %v1445 = vmax.f32 %v1247, 0.0
      %v1446 = vmax.f32 %v1252, 0.0
      %v1447 = vmax.f32 %v1255, 0.0
      %v1448 = vmax.f32 %v1260, 0.0
      %v1449 = vmax.f32 %v1263, 0.0
      %v1450 = vmax.f32 %v1268, 0.0
      %v1451 = vmax.f32 %v1271, 0.0
      %v1452 = vmax.f32 %v1276, 0.0
      %v1453 = vmax.f32 %v1279, 0.0
      %v1454 = vmax.f32 %v1284, 0.0
      %v1455 = vmax.f32 %v1287, 0.0
      %v1456 = vmax.f32 %v1292, 0.0
      %v1457 = vmax.f32 %v1295, 0.0
      %v1458 = vmax.f32 %v1300, 0.0
      %v1459 = vmax.f32 %v1303, 0.0
      %v1460 = vmax.f32 %v1308, 0.0
      %v1461 = vmax.f32 %v1311, 0.0
      %v1462 = vmax.f32 %v1316, 0.0
      %v1463 = vmax.f32 %v1319, 0.0
      %v1464 = vmax.f32 %v1324, 0.0
      %v1465 = vmax.f32 %v1327, 0.0
      %v1466 = vmax.f32 %v1332, 0.0
      %v1467 = vmax.f32 %v1335, 0.0
      %v1468 = vmax.f32 %v1340, 0.0
      %v1469 = vmax.f32 %v1343, 0.0
      %v1470 = vmax.f32 %v1348, 0.0
      %v1471 = vmax.f32 %v1351, 0.0
      %v1472 = vmax.f32 %v1356, 0.0
      %v1473 = vmax.f32 %v1359, 0.0
      %v1474 = vmax.f32 %v1364, 0.0
      %v1475 = vmax.f32 %v1367, 0.0
      %v1476 = vmax.f32 %v1372, 0.0
      %v1477 = vmax.f32 %v1375, 0.0
      %v1478 = vmax.f32 %v1380, 0.0
      %v1479 = vmax.f32 %v1383, 0.0
      %v1480 = vmax.f32 %v1388, 0.0
      %v1481 = vmax.f32 %v1391, 0.0
      %v1482 = vmax.f32 %v1396, 0.0
      %v1483 = vmax.f32 %v1399, 0.0
      %v1484 = vmax.f32 %v1404, 0.0
      %v1485 = vmax.f32 %v1407, 0.0
      %v1486 = vmax.f32 %v1412, 0.0
      %v1487 = vmax.f32 %v1415, 0.0
      %v1488 = vmax.f32 %v1420, 0.0
      %v1489 = vmax.f32 %v1423, 0.0
      %v1490 = vpack.c.bf16 %v1427, %v1426
      %v1491 = vpack.c.bf16 %v1429, %v1428
      %v1492 = vpack.c.bf16 %v1431, %v1430
      %v1493 = vpack.c.bf16 %v1433, %v1432
      %v1494 = vpack.c.bf16 %v1435, %v1434
      %v1495 = vpack.c.bf16 %v1437, %v1436
      %v1496 = vpack.c.bf16 %v1439, %v1438
      %v1497 = vpack.c.bf16 %v1441, %v1440
      %v1498 = vpack.c.bf16 %v1443, %v1442
      %v1499 = vpack.c.bf16 %v1445, %v1444
      %v1500 = vpack.c.bf16 %v1447, %v1446
      %v1501 = vpack.c.bf16 %v1449, %v1448
      %v1502 = vpack.c.bf16 %v1451, %v1450
      %v1503 = vpack.c.bf16 %v1453, %v1452
      %v1504 = vpack.c.bf16 %v1455, %v1454
      %v1505 = vpack.c.bf16 %v1457, %v1456
      %v1506 = vpack.c.bf16 %v1459, %v1458
      %v1507 = vpack.c.bf16 %v1461, %v1460
      %v1508 = vpack.c.bf16 %v1463, %v1462
      %v1509 = vpack.c.bf16 %v1465, %v1464
      %v1510 = vpack.c.bf16 %v1467, %v1466
      %v1511 = vpack.c.bf16 %v1469, %v1468
      %v1512 = vpack.c.bf16 %v1471, %v1470
      %v1513 = vpack.c.bf16 %v1473, %v1472
      %v1514 = vpack.c.bf16 %v1475, %v1474
      %v1515 = vpack.c.bf16 %v1477, %v1476
      %v1516 = vpack.c.bf16 %v1479, %v1478
      %v1517 = vpack.c.bf16 %v1481, %v1480
      %v1518 = vpack.c.bf16 %v1483, %v1482
      %v1519 = vpack.c.bf16 %v1485, %v1484
      %v1520 = vpack.c.bf16 %v1487, %v1486
      %v1521 = vpack.c.bf16 %v1489, %v1488
      %v1522 = vld [vmem:[%s5] sm:$0xf]
      %v1523 = vld [vmem:[%s5 + $0x4] sm:$0xf]
      %v1524 = vld [vmem:[%s5 + $0x8] sm:$0xf]
      %v1525 = vld [vmem:[%s5 + $0xc] sm:$0xf]
      %v1526 = vld [vmem:[%s5 + $0x10] sm:$0xf]
      %v1527 = vld [vmem:[%s5 + $0x14] sm:$0xf]
      %v1528 = vld [vmem:[%s5 + $0x18] sm:$0xf]
      %v1529 = vld [vmem:[%s5 + $0x1c] sm:$0xf]
      %v1530 = vld [vmem:[%s6] sm:$0x1]
      %v1532 = vlaneseq
      %v1533 = vshrl.u32 %v1532, 7
      %v1534 = vsub.s32 0, %v1533
      %v1535 = vrot.slane %v1530, %v1534
      %v1545 = vunpack.c.l.b16 %v1522
      %v1546 = vunpack.c.l.b16 %v1523
      %v1547 = vunpack.c.l.b16 %v1524
      %v1548 = vunpack.c.l.b16 %v1525
      %v1549 = vunpack.c.l.b16 %v1526
      %v1550 = vunpack.c.l.b16 %v1527
      %v1551 = vunpack.c.l.b16 %v1528
      %v1552 = vunpack.c.l.b16 %v1529
      %v1553 = vpack.c.b16 %v1546, %v1545
      %v1554 = vpack.c.b16 %v1548, %v1547
      %v1555 = vpack.c.b16 %v1550, %v1549
      %v1556 = vpack.c.b16 %v1552, %v1551
      %v1562 = vsel %vm1040, %v1490, 0
      %v1565 = vsel %vm1040, %v1491, 0
      %v1568 = vsel %vm1040, %v1492, 0
      %v1571 = vsel %vm1040, %v1493, 0
      %v1574 = vsel %vm1040, %v1494, 0
      %v1577 = vsel %vm1040, %v1495, 0
      %v1580 = vsel %vm1040, %v1496, 0
      %v1583 = vsel %vm1040, %v1497, 0
      %v1586 = vsel %vm1040, %v1498, 0
      %v1589 = vsel %vm1040, %v1499, 0
      %v1592 = vsel %vm1040, %v1500, 0
      %v1595 = vsel %vm1040, %v1501, 0
      %v1598 = vsel %vm1040, %v1502, 0
      %v1601 = vsel %vm1040, %v1503, 0
      %v1604 = vsel %vm1040, %v1504, 0
      %v1607 = vsel %vm1040, %v1505, 0
      %v1610 = vsel %vm1040, %v1506, 0
      %v1613 = vsel %vm1040, %v1507, 0
      %v1616 = vsel %vm1040, %v1508, 0
      %v1619 = vsel %vm1040, %v1509, 0
      %v1622 = vsel %vm1040, %v1510, 0
      %v1625 = vsel %vm1040, %v1511, 0
      %v1628 = vsel %vm1040, %v1512, 0
      %v1631 = vsel %vm1040, %v1513, 0
      %v1634 = vsel %vm1040, %v1514, 0
      %v1637 = vsel %vm1040, %v1515, 0
      %v1640 = vsel %vm1040, %v1516, 0
      %v1643 = vsel %vm1040, %v1517, 0
      %v1646 = vsel %vm1040, %v1518, 0
      %v1649 = vsel %vm1040, %v1519, 0
      %v1652 = vsel %vm1040, %v1520, 0
      %v1655 = vsel %vm1040, %v1521, 0
      %1657 = vmatprep.subr.bf16.mxu0 0
      %1658 = vmatpush1.bf16.msra.mxu0 %v1553
      %1659 = vmatprep.subr.bf16.mxu0 0
      %1660 = vmatpush1.bf16.msra.mxu0 %v1554
      %1661 = vmatprep.subr.bf16.mxu0 0
      %1662 = vmatpush1.bf16.msra.mxu0 %v1555
      %1663 = vmatprep.subr.bf16.mxu0 0
      %1664 = vmatpush1.bf16.msra.mxu0 %v1556
      %1665 = vmatprep.subr.bf16.mxu0 0
      %1666 = vmatpush1.bf16.msra.mxu0 0
      %1667 = vmatprep.subr.bf16.mxu0 0
      %1668 = vmatpush1.bf16.msra.mxu0 0
      %1669 = vmatprep.subr.bf16.mxu0 0
      %1670 = vmatpush1.bf16.msra.mxu0 0
      %1671 = vmatprep.subr.bf16.mxu0 0
      %1672 = vmatpush1.bf16.msra.mxu0 0
      %1673 = vmatprep.subr.bf16.mxu0 0
      %1674 = vmatpush1.bf16.msra.mxu0 0
      %1675 = vmatprep.subr.bf16.mxu0 0
      %1676 = vmatpush1.bf16.msra.mxu0 0
      %1677 = vmatprep.subr.bf16.mxu0 0
      %1678 = vmatpush1.bf16.msra.mxu0 0
      %1679 = vmatprep.subr.bf16.mxu0 0
      %1680 = vmatpush1.bf16.msra.mxu0 0
      %1681 = vmatprep.subr.bf16.mxu0 0
      %1682 = vmatpush1.bf16.msra.mxu0 0
      %1683 = vmatprep.subr.bf16.mxu0 0
      %1684 = vmatpush1.bf16.msra.mxu0 0
      %1685 = vmatprep.subr.bf16.mxu0 0
      %1686 = vmatpush1.bf16.msra.mxu0 0
      %1687 = vmatprep.subr.bf16.mxu0 0
      %1688 = vmatpush1.bf16.msra.mxu0 0
      %1689 = vmatprep.mubr.bf16.mxu0 0
      %1690 = vmatmul.mubr.bf16.gmra.mrb[0].mxu0 %v1562
      %v1691 = vpop.f32.mrb[0].mxu0
      %v1692 = vadd.f32 %v1535, %v1691
      %v1693 = vpop.f32.mrb[0].mxu0
      %v1694 = vpop.f32.mrb[0].mxu0
      %v1695 = vadd.f32 %v1535, %v1694
      %v1696 = vpop.f32.mrb[0].mxu0
      %1697 = vmatprep.mubr.bf16.mxu0 0
      %1698 = vmatmul.mubr.bf16.gmra.mrb[0].mxu0 %v1565
      %v1699 = vpop.f32.mrb[0].mxu0
      %v1700 = vadd.f32 %v1535, %v1699
      %v1701 = vpop.f32.mrb[0].mxu0
      %v1702 = vpop.f32.mrb[0].mxu0
      %v1703 = vadd.f32 %v1535, %v1702
      %v1704 = vpop.f32.mrb[0].mxu0
      %1705 = vmatprep.mubr.bf16.mxu0 0
      %1706 = vmatmul.mubr.bf16.gmra.mrb[0].mxu0 %v1568
      %v1707 = vpop.f32.mrb[0].mxu0
      %v1708 = vadd.f32 %v1535, %v1707
      %v1709 = vpop.f32.mrb[0].mxu0
      %v1710 = vpop.f32.mrb[0].mxu0
      %v1711 = vadd.f32 %v1535, %v1710
      %v1712 = vpop.f32.mrb[0].mxu0
      %1713 = vmatprep.mubr.bf16.mxu0 0
      %1714 = vmatmul.mubr.bf16.gmra.mrb[0].mxu0 %v1571
      %v1715 = vpop.f32.mrb[0].mxu0
      %v1716 = vadd.f32 %v1535, %v1715
      %v1717 = vpop.f32.mrb[0].mxu0
      %v1718 = vpop.f32.mrb[0].mxu0
      %v1719 = vadd.f32 %v1535, %v1718
      %v1720 = vpop.f32.mrb[0].mxu0
      %1721 = vmatprep.mubr.bf16.mxu0 0
      %1722 = vmatmul.mubr.bf16.gmra.mrb[0].mxu0 %v1574
      %v1723 = vpop.f32.mrb[0].mxu0
      %v1724 = vadd.f32 %v1535, %v1723
      %v1725 = vpop.f32.mrb[0].mxu0
      %v1726 = vpop.f32.mrb[0].mxu0
      %v1727 = vadd.f32 %v1535, %v1726
      %v1728 = vpop.f32.mrb[0].mxu0
      %1729 = vmatprep.mubr.bf16.mxu0 0
      %1730 = vmatmul.mubr.bf16.gmra.mrb[0].mxu0 %v1577
      %v1731 = vpop.f32.mrb[0].mxu0
      %v1732 = vadd.f32 %v1535, %v1731
      %v1733 = vpop.f32.mrb[0].mxu0
      %v1734 = vpop.f32.mrb[0].mxu0
      %v1735 = vadd.f32 %v1535, %v1734
      %v1736 = vpop.f32.mrb[0].mxu0
      %1737 = vmatprep.mubr.bf16.mxu0 0
      %1738 = vmatmul.mubr.bf16.gmra.mrb[0].mxu0 %v1580
      %v1739 = vpop.f32.mrb[0].mxu0
      %v1740 = vadd.f32 %v1535, %v1739
      %v1741 = vpop.f32.mrb[0].mxu0
      %v1742 = vpop.f32.mrb[0].mxu0
      %v1743 = vadd.f32 %v1535, %v1742
      %v1744 = vpop.f32.mrb[0].mxu0
      %1745 = vmatprep.mubr.bf16.mxu0 0
      %1746 = vmatmul.mubr.bf16.gmra.mrb[0].mxu0 %v1583
      %v1747 = vpop.f32.mrb[0].mxu0
      %v1748 = vadd.f32 %v1535, %v1747
      %v1749 = vpop.f32.mrb[0].mxu0
      %v1750 = vpop.f32.mrb[0].mxu0
      %v1751 = vadd.f32 %v1535, %v1750
      %v1752 = vpop.f32.mrb[0].mxu0
      %1753 = vmatprep.mubr.bf16.mxu0 0
      %1754 = vmatmul.mubr.bf16.gmra.mrb[0].mxu0 %v1586
      %v1755 = vpop.f32.mrb[0].mxu0
      %v1756 = vadd.f32 %v1535, %v1755
      %v1757 = vpop.f32.mrb[0].mxu0
      %v1758 = vpop.f32.mrb[0].mxu0
      %v1759 = vadd.f32 %v1535, %v1758
      %v1760 = vpop.f32.mrb[0].mxu0
      %1761 = vmatprep.mubr.bf16.mxu0 0
      %1762 = vmatmul.mubr.bf16.gmra.mrb[0].mxu0 %v1589
      %v1763 = vpop.f32.mrb[0].mxu0
      %v1764 = vadd.f32 %v1535, %v1763
      %v1765 = vpop.f32.mrb[0].mxu0
      %v1766 = vpop.f32.mrb[0].mxu0
      %v1767 = vadd.f32 %v1535, %v1766
      %v1768 = vpop.f32.mrb[0].mxu0
      %1769 = vmatprep.mubr.bf16.mxu0 0
      %1770 = vmatmul.mubr.bf16.gmra.mrb[0].mxu0 %v1592
      %v1771 = vpop.f32.mrb[0].mxu0
      %v1772 = vadd.f32 %v1535, %v1771
      %v1773 = vpop.f32.mrb[0].mxu0
      %v1774 = vpop.f32.mrb[0].mxu0
      %v1775 = vadd.f32 %v1535, %v1774
      %v1776 = vpop.f32.mrb[0].mxu0
      %1777 = vmatprep.mubr.bf16.mxu0 0
      %1778 = vmatmul.mubr.bf16.gmra.mrb[0].mxu0 %v1595
      %v1779 = vpop.f32.mrb[0].mxu0
      %v1780 = vadd.f32 %v1535, %v1779
      %v1781 = vpop.f32.mrb[0].mxu0
      %v1782 = vpop.f32.mrb[0].mxu0
      %v1783 = vadd.f32 %v1535, %v1782
      %v1784 = vpop.f32.mrb[0].mxu0
      %1785 = vmatprep.mubr.bf16.mxu0 0
      %1786 = vmatmul.mubr.bf16.gmra.mrb[0].mxu0 %v1598
      %v1787 = vpop.f32.mrb[0].mxu0
      %v1788 = vadd.f32 %v1535, %v1787
      %v1789 = vpop.f32.mrb[0].mxu0
      %v1790 = vpop.f32.mrb[0].mxu0
      %v1791 = vadd.f32 %v1535, %v1790
      %v1792 = vpop.f32.mrb[0].mxu0
      %1793 = vmatprep.mubr.bf16.mxu0 0
      %1794 = vmatmul.mubr.bf16.gmra.mrb[0].mxu0 %v1601
      %v1795 = vpop.f32.mrb[0].mxu0
      %v1796 = vadd.f32 %v1535, %v1795
      %v1797 = vpop.f32.mrb[0].mxu0
      %v1798 = vpop.f32.mrb[0].mxu0
      %v1799 = vadd.f32 %v1535, %v1798
      %v1800 = vpop.f32.mrb[0].mxu0
      %1801 = vmatprep.mubr.bf16.mxu0 0
      %1802 = vmatmul.mubr.bf16.gmra.mrb[0].mxu0 %v1604
      %v1803 = vpop.f32.mrb[0].mxu0
      %v1804 = vadd.f32 %v1535, %v1803
      %v1805 = vpop.f32.mrb[0].mxu0
      %v1806 = vpop.f32.mrb[0].mxu0
      %v1807 = vadd.f32 %v1535, %v1806
      %v1808 = vpop.f32.mrb[0].mxu0
      %1809 = vmatprep.mubr.bf16.mxu0 0
      %1810 = vmatmul.mubr.bf16.gmra.mrb[0].mxu0 %v1607
      %v1811 = vpop.f32.mrb[0].mxu0
      %v1812 = vadd.f32 %v1535, %v1811
      %v1813 = vpop.f32.mrb[0].mxu0
      %v1814 = vpop.f32.mrb[0].mxu0
      %v1815 = vadd.f32 %v1535, %v1814
      %v1816 = vpop.f32.mrb[0].mxu0
      %1817 = vmatprep.mubr.bf16.mxu0 0
      %1818 = vmatmul.mubr.bf16.gmra.mrb[0].mxu0 %v1610
      %v1819 = vpop.f32.mrb[0].mxu0
      %v1820 = vadd.f32 %v1535, %v1819
      %v1821 = vpop.f32.mrb[0].mxu0
      %v1822 = vpop.f32.mrb[0].mxu0
      %v1823 = vadd.f32 %v1535, %v1822
      %v1824 = vpop.f32.mrb[0].mxu0
      %1825 = vmatprep.mubr.bf16.mxu0 0
      %1826 = vmatmul.mubr.bf16.gmra.mrb[0].mxu0 %v1613
      %v1827 = vpop.f32.mrb[0].mxu0
      %v1828 = vadd.f32 %v1535, %v1827
      %v1829 = vpop.f32.mrb[0].mxu0
      %v1830 = vpop.f32.mrb[0].mxu0
      %v1831 = vadd.f32 %v1535, %v1830
      %v1832 = vpop.f32.mrb[0].mxu0
      %1833 = vmatprep.mubr.bf16.mxu0 0
      %1834 = vmatmul.mubr.bf16.gmra.mrb[0].mxu0 %v1616
      %v1835 = vpop.f32.mrb[0].mxu0
      %v1836 = vadd.f32 %v1535, %v1835
      %v1837 = vpop.f32.mrb[0].mxu0
      %v1838 = vpop.f32.mrb[0].mxu0
      %v1839 = vadd.f32 %v1535, %v1838
      %v1840 = vpop.f32.mrb[0].mxu0
      %1841 = vmatprep.mubr.bf16.mxu0 0
      %1842 = vmatmul.mubr.bf16.gmra.mrb[0].mxu0 %v1619
      %v1843 = vpop.f32.mrb[0].mxu0
      %v1844 = vadd.f32 %v1535, %v1843
      %v1845 = vpop.f32.mrb[0].mxu0
      %v1846 = vpop.f32.mrb[0].mxu0
      %v1847 = vadd.f32 %v1535, %v1846
      %v1848 = vpop.f32.mrb[0].mxu0
      %1849 = vmatprep.mubr.bf16.mxu0 0
      %1850 = vmatmul.mubr.bf16.gmra.mrb[0].mxu0 %v1622
      %v1851 = vpop.f32.mrb[0].mxu0
      %v1852 = vadd.f32 %v1535, %v1851
      %v1853 = vpop.f32.mrb[0].mxu0
      %v1854 = vpop.f32.mrb[0].mxu0
      %v1855 = vadd.f32 %v1535, %v1854
      %v1856 = vpop.f32.mrb[0].mxu0
      %1857 = vmatprep.mubr.bf16.mxu0 0
      %1858 = vmatmul.mubr.bf16.gmra.mrb[0].mxu0 %v1625
      %v1859 = vpop.f32.mrb[0].mxu0
      %v1860 = vadd.f32 %v1535, %v1859
      %v1861 = vpop.f32.mrb[0].mxu0
      %v1862 = vpop.f32.mrb[0].mxu0
      %v1863 = vadd.f32 %v1535, %v1862
      %v1864 = vpop.f32.mrb[0].mxu0
      %1865 = vmatprep.mubr.bf16.mxu0 0
      %1866 = vmatmul.mubr.bf16.gmra.mrb[0].mxu0 %v1628
      %v1867 = vpop.f32.mrb[0].mxu0
      %v1868 = vadd.f32 %v1535, %v1867
      %v1869 = vpop.f32.mrb[0].mxu0
      %v1870 = vpop.f32.mrb[0].mxu0
      %v1871 = vadd.f32 %v1535, %v1870
      %v1872 = vpop.f32.mrb[0].mxu0
      %1873 = vmatprep.mubr.bf16.mxu0 0
      %1874 = vmatmul.mubr.bf16.gmra.mrb[0].mxu0 %v1631
      %v1875 = vpop.f32.mrb[0].mxu0
      %v1876 = vadd.f32 %v1535, %v1875
      %v1877 = vpop.f32.mrb[0].mxu0
      %v1878 = vpop.f32.mrb[0].mxu0
      %v1879 = vadd.f32 %v1535, %v1878
      %v1880 = vpop.f32.mrb[0].mxu0
      %1881 = vmatprep.mubr.bf16.mxu0 0
      %1882 = vmatmul.mubr.bf16.gmra.mrb[0].mxu0 %v1634
      %v1883 = vpop.f32.mrb[0].mxu0
      %v1884 = vadd.f32 %v1535, %v1883
      %v1885 = vpop.f32.mrb[0].mxu0
      %v1886 = vpop.f32.mrb[0].mxu0
      %v1887 = vadd.f32 %v1535, %v1886
      %v1888 = vpop.f32.mrb[0].mxu0
      %1889 = vmatprep.mubr.bf16.mxu0 0
      %1890 = vmatmul.mubr.bf16.gmra.mrb[0].mxu0 %v1637
      %v1891 = vpop.f32.mrb[0].mxu0
      %v1892 = vadd.f32 %v1535, %v1891
      %v1893 = vpop.f32.mrb[0].mxu0
      %v1894 = vpop.f32.mrb[0].mxu0
      %v1895 = vadd.f32 %v1535, %v1894
      %v1896 = vpop.f32.mrb[0].mxu0
      %1897 = vmatprep.mubr.bf16.mxu0 0
      %1898 = vmatmul.mubr.bf16.gmra.mrb[0].mxu0 %v1640
      %v1899 = vpop.f32.mrb[0].mxu0
      %v1900 = vadd.f32 %v1535, %v1899
      %v1901 = vpop.f32.mrb[0].mxu0
      %v1902 = vpop.f32.mrb[0].mxu0
      %v1903 = vadd.f32 %v1535, %v1902
      %v1904 = vpop.f32.mrb[0].mxu0
      %1905 = vmatprep.mubr.bf16.mxu0 0
      %1906 = vmatmul.mubr.bf16.gmra.mrb[0].mxu0 %v1643
      %v1907 = vpop.f32.mrb[0].mxu0
      %v1908 = vadd.f32 %v1535, %v1907
      %v1909 = vpop.f32.mrb[0].mxu0
      %v1910 = vpop.f32.mrb[0].mxu0
      %v1911 = vadd.f32 %v1535, %v1910
      %v1912 = vpop.f32.mrb[0].mxu0
      %1913 = vmatprep.mubr.bf16.mxu0 0
      %1914 = vmatmul.mubr.bf16.gmra.mrb[0].mxu0 %v1646
      %v1915 = vpop.f32.mrb[0].mxu0
      %v1916 = vadd.f32 %v1535, %v1915
      %v1917 = vpop.f32.mrb[0].mxu0
      %v1918 = vpop.f32.mrb[0].mxu0
      %v1919 = vadd.f32 %v1535, %v1918
      %v1920 = vpop.f32.mrb[0].mxu0
      %1921 = vmatprep.mubr.bf16.mxu0 0
      %1922 = vmatmul.mubr.bf16.gmra.mrb[0].mxu0 %v1649
      %v1923 = vpop.f32.mrb[0].mxu0
      %v1924 = vadd.f32 %v1535, %v1923
      %v1925 = vpop.f32.mrb[0].mxu0
      %v1926 = vpop.f32.mrb[0].mxu0
      %v1927 = vadd.f32 %v1535, %v1926
      %v1928 = vpop.f32.mrb[0].mxu0
      %1929 = vmatprep.mubr.bf16.mxu0 0
      %1930 = vmatmul.mubr.bf16.gmra.mrb[0].mxu0 %v1652
      %v1931 = vpop.f32.mrb[0].mxu0
      %v1932 = vadd.f32 %v1535, %v1931
      %v1933 = vpop.f32.mrb[0].mxu0
      %v1934 = vpop.f32.mrb[0].mxu0
      %v1935 = vadd.f32 %v1535, %v1934
      %v1936 = vpop.f32.mrb[0].mxu0
      %1937 = vmatprep.mubr.bf16.mxu0 0
      %1938 = vmatmul.mubr.bf16.gmra.mrb[0].mxu0 %v1655
      %v1939 = vpop.f32.mrb[0].mxu0
      %v1940 = vadd.f32 %v1535, %v1939
      %v1941 = vpop.f32.mrb[0].mxu0
      %v1942 = vpop.f32.mrb[0].mxu0
      %v1943 = vadd.f32 %v1535, %v1942
      %v1944 = vpop.f32.mrb[0].mxu0
      %1945 = vdwg.mxu0
      %v1946 = vmax.f32 %v1692, 0.0
      %v1947 = vmax.f32 %v1695, 0.0
      %v1948 = vmax.f32 %v1700, 0.0
      %v1949 = vmax.f32 %v1703, 0.0
      %v1950 = vmax.f32 %v1708, 0.0
      %v1951 = vmax.f32 %v1711, 0.0
      %v1952 = vmax.f32 %v1716, 0.0
      %v1953 = vmax.f32 %v1719, 0.0
      %v1954 = vmax.f32 %v1724, 0.0
      %v1955 = vmax.f32 %v1727, 0.0
      %v1956 = vmax.f32 %v1732, 0.0
      %v1957 = vmax.f32 %v1735, 0.0
      %v1958 = vmax.f32 %v1740, 0.0
      %v1959 = vmax.f32 %v1743, 0.0
      %v1960 = vmax.f32 %v1748, 0.0
      %v1961 = vmax.f32 %v1751, 0.0
      %v1962 = vmax.f32 %v1756, 0.0
      %v1963 = vmax.f32 %v1759, 0.0
      %v1964 = vmax.f32 %v1764, 0.0
      %v1965 = vmax.f32 %v1767, 0.0
      %v1966 = vmax.f32 %v1772, 0.0
      %v1967 = vmax.f32 %v1775, 0.0
      %v1968 = vmax.f32 %v1780, 0.0
      %v1969 = vmax.f32 %v1783, 0.0
      %v1970 = vmax.f32 %v1788, 0.0
      %v1971 = vmax.f32 %v1791, 0.0
      %v1972 = vmax.f32 %v1796, 0.0
      %v1973 = vmax.f32 %v1799, 0.0
      %v1974 = vmax.f32 %v1804, 0.0
      %v1975 = vmax.f32 %v1807, 0.0
      %v1976 = vmax.f32 %v1812, 0.0
      %v1977 = vmax.f32 %v1815, 0.0
      %v1978 = vmax.f32 %v1820, 0.0
      %v1979 = vmax.f32 %v1823, 0.0
      %v1980 = vmax.f32 %v1828, 0.0
      %v1981 = vmax.f32 %v1831, 0.0
      %v1982 = vmax.f32 %v1836, 0.0
      %v1983 = vmax.f32 %v1839, 0.0
      %v1984 = vmax.f32 %v1844, 0.0
      %v1985 = vmax.f32 %v1847, 0.0
      %v1986 = vmax.f32 %v1852, 0.0
      %v1987 = vmax.f32 %v1855, 0.0
      %v1988 = vmax.f32 %v1860, 0.0
      %v1989 = vmax.f32 %v1863, 0.0
      %v1990 = vmax.f32 %v1868, 0.0
      %v1991 = vmax.f32 %v1871, 0.0
      %v1992 = vmax.f32 %v1876, 0.0
      %v1993 = vmax.f32 %v1879, 0.0
      %v1994 = vmax.f32 %v1884, 0.0
      %v1995 = vmax.f32 %v1887, 0.0
      %v1996 = vmax.f32 %v1892, 0.0
      %v1997 = vmax.f32 %v1895, 0.0
      %v1998 = vmax.f32 %v1900, 0.0
      %v1999 = vmax.f32 %v1903, 0.0
      %v2000 = vmax.f32 %v1908, 0.0
      %v2001 = vmax.f32 %v1911, 0.0
      %v2002 = vmax.f32 %v1916, 0.0
      %v2003 = vmax.f32 %v1919, 0.0
      %v2004 = vmax.f32 %v1924, 0.0
      %v2005 = vmax.f32 %v1927, 0.0
      %v2006 = vmax.f32 %v1932, 0.0
      %v2007 = vmax.f32 %v1935, 0.0
      %v2008 = vmax.f32 %v1940, 0.0
      %v2009 = vmax.f32 %v1943, 0.0
      %v2010 = vmax.f32 %v1946, %v1947
      %v2011 = vrot.slane %v2010, 4
      %v2012 = vmax.f32 %v2010, %v2011
      %v2013 = vrot.slane %v2012, 2
      %v2014 = vmax.f32 %v2012, %v2013
      %v2015 = vrot.slane %v2014, 1
      %v2016 = vmax.f32 %v2014, %v2015
      %v2017 = vmax.f32 %v1948, %v1949
      %v2018 = vrot.slane %v2017, 4
      %v2019 = vmax.f32 %v2017, %v2018
      %v2020 = vrot.slane %v2019, 2
      %v2021 = vmax.f32 %v2019, %v2020
      %v2022 = vrot.slane %v2021, 1
      %v2023 = vmax.f32 %v2021, %v2022
      %v2024 = vmax.f32 %v1950, %v1951
      %v2025 = vrot.slane %v2024, 4
      %v2026 = vmax.f32 %v2024, %v2025
      %v2027 = vrot.slane %v2026, 2
      %v2028 = vmax.f32 %v2026, %v2027
      %v2029 = vrot.slane %v2028, 1
      %v2030 = vmax.f32 %v2028, %v2029
      %v2031 = vmax.f32 %v1952, %v1953
      %v2032 = vrot.slane %v2031, 4
      %v2033 = vmax.f32 %v2031, %v2032
      %v2034 = vrot.slane %v2033, 2
      %v2035 = vmax.f32 %v2033, %v2034
      %v2036 = vrot.slane %v2035, 1
      %v2037 = vmax.f32 %v2035, %v2036
      %v2038 = vmax.f32 %v1954, %v1955
      %v2039 = vrot.slane %v2038, 4
      %v2040 = vmax.f32 %v2038, %v2039
      %v2041 = vrot.slane %v2040, 2
      %v2042 = vmax.f32 %v2040, %v2041
      %v2043 = vrot.slane %v2042, 1
      %v2044 = vmax.f32 %v2042, %v2043
      %v2045 = vmax.f32 %v1956, %v1957
      %v2046 = vrot.slane %v2045, 4
      %v2047 = vmax.f32 %v2045, %v2046
      %v2048 = vrot.slane %v2047, 2
      %v2049 = vmax.f32 %v2047, %v2048
      %v2050 = vrot.slane %v2049, 1
      %v2051 = vmax.f32 %v2049, %v2050
      %v2052 = vmax.f32 %v1958, %v1959
      %v2053 = vrot.slane %v2052, 4
      %v2054 = vmax.f32 %v2052, %v2053
      %v2055 = vrot.slane %v2054, 2
      %v2056 = vmax.f32 %v2054, %v2055
      %v2057 = vrot.slane %v2056, 1
      %v2058 = vmax.f32 %v2056, %v2057
      %v2059 = vmax.f32 %v1960, %v1961
      %v2060 = vrot.slane %v2059, 4
      %v2061 = vmax.f32 %v2059, %v2060
      %v2062 = vrot.slane %v2061, 2
      %v2063 = vmax.f32 %v2061, %v2062
      %v2064 = vrot.slane %v2063, 1
      %v2065 = vmax.f32 %v2063, %v2064
      %v2066 = vmax.f32 %v1962, %v1963
      %v2067 = vrot.slane %v2066, 4
      %v2068 = vmax.f32 %v2066, %v2067
      %v2069 = vrot.slane %v2068, 2
      %v2070 = vmax.f32 %v2068, %v2069
      %v2071 = vrot.slane %v2070, 1
      %v2072 = vmax.f32 %v2070, %v2071
      %v2073 = vmax.f32 %v1964, %v1965
      %v2074 = vrot.slane %v2073, 4
      %v2075 = vmax.f32 %v2073, %v2074
      %v2076 = vrot.slane %v2075, 2
      %v2077 = vmax.f32 %v2075, %v2076
      %v2078 = vrot.slane %v2077, 1
      %v2079 = vmax.f32 %v2077, %v2078
      %v2080 = vmax.f32 %v1966, %v1967
      %v2081 = vrot.slane %v2080, 4
      %v2082 = vmax.f32 %v2080, %v2081
      %v2083 = vrot.slane %v2082, 2
      %v2084 = vmax.f32 %v2082, %v2083
      %v2085 = vrot.slane %v2084, 1
      %v2086 = vmax.f32 %v2084, %v2085
      %v2087 = vmax.f32 %v1968, %v1969
      %v2088 = vrot.slane %v2087, 4
      %v2089 = vmax.f32 %v2087, %v2088
      %v2090 = vrot.slane %v2089, 2
      %v2091 = vmax.f32 %v2089, %v2090
      %v2092 = vrot.slane %v2091, 1
      %v2093 = vmax.f32 %v2091, %v2092
      %v2094 = vmax.f32 %v1970, %v1971
      %v2095 = vrot.slane %v2094, 4
      %v2096 = vmax.f32 %v2094, %v2095
      %v2097 = vrot.slane %v2096, 2
      %v2098 = vmax.f32 %v2096, %v2097
      %v2099 = vrot.slane %v2098, 1
      %v2100 = vmax.f32 %v2098, %v2099
      %v2101 = vmax.f32 %v1972, %v1973
      %v2102 = vrot.slane %v2101, 4
      %v2103 = vmax.f32 %v2101, %v2102
      %v2104 = vrot.slane %v2103, 2
      %v2105 = vmax.f32 %v2103, %v2104
      %v2106 = vrot.slane %v2105, 1
      %v2107 = vmax.f32 %v2105, %v2106
      %v2108 = vmax.f32 %v1974, %v1975
      %v2109 = vrot.slane %v2108, 4
      %v2110 = vmax.f32 %v2108, %v2109
      %v2111 = vrot.slane %v2110, 2
      %v2112 = vmax.f32 %v2110, %v2111
      %v2113 = vrot.slane %v2112, 1
      %v2114 = vmax.f32 %v2112, %v2113
      %v2115 = vmax.f32 %v1976, %v1977
      %v2116 = vrot.slane %v2115, 4
      %v2117 = vmax.f32 %v2115, %v2116
      %v2118 = vrot.slane %v2117, 2
      %v2119 = vmax.f32 %v2117, %v2118
      %v2120 = vrot.slane %v2119, 1
      %v2121 = vmax.f32 %v2119, %v2120
      %v2122 = vmax.f32 %v1978, %v1979
      %v2123 = vrot.slane %v2122, 4
      %v2124 = vmax.f32 %v2122, %v2123
      %v2125 = vrot.slane %v2124, 2
      %v2126 = vmax.f32 %v2124, %v2125
      %v2127 = vrot.slane %v2126, 1
      %v2128 = vmax.f32 %v2126, %v2127
      %v2129 = vmax.f32 %v1980, %v1981
      %v2130 = vrot.slane %v2129, 4
      %v2131 = vmax.f32 %v2129, %v2130
      %v2132 = vrot.slane %v2131, 2
      %v2133 = vmax.f32 %v2131, %v2132
      %v2134 = vrot.slane %v2133, 1
      %v2135 = vmax.f32 %v2133, %v2134
      %v2136 = vmax.f32 %v1982, %v1983
      %v2137 = vrot.slane %v2136, 4
      %v2138 = vmax.f32 %v2136, %v2137
      %v2139 = vrot.slane %v2138, 2
      %v2140 = vmax.f32 %v2138, %v2139
      %v2141 = vrot.slane %v2140, 1
      %v2142 = vmax.f32 %v2140, %v2141
      %v2143 = vmax.f32 %v1984, %v1985
      %v2144 = vrot.slane %v2143, 4
      %v2145 = vmax.f32 %v2143, %v2144
      %v2146 = vrot.slane %v2145, 2
      %v2147 = vmax.f32 %v2145, %v2146
      %v2148 = vrot.slane %v2147, 1
      %v2149 = vmax.f32 %v2147, %v2148
      %v2150 = vmax.f32 %v1986, %v1987
      %v2151 = vrot.slane %v2150, 4
      %v2152 = vmax.f32 %v2150, %v2151
      %v2153 = vrot.slane %v2152, 2
      %v2154 = vmax.f32 %v2152, %v2153
      %v2155 = vrot.slane %v2154, 1
      %v2156 = vmax.f32 %v2154, %v2155
      %v2157 = vmax.f32 %v1988, %v1989
      %v2158 = vrot.slane %v2157, 4
      %v2159 = vmax.f32 %v2157, %v2158
      %v2160 = vrot.slane %v2159, 2
      %v2161 = vmax.f32 %v2159, %v2160
      %v2162 = vrot.slane %v2161, 1
      %v2163 = vmax.f32 %v2161, %v2162
      %v2164 = vmax.f32 %v1990, %v1991
      %v2165 = vrot.slane %v2164, 4
      %v2166 = vmax.f32 %v2164, %v2165
      %v2167 = vrot.slane %v2166, 2
      %v2168 = vmax.f32 %v2166, %v2167
      %v2169 = vrot.slane %v2168, 1
      %v2170 = vmax.f32 %v2168, %v2169
      %v2171 = vmax.f32 %v1992, %v1993
      %v2172 = vrot.slane %v2171, 4
      %v2173 = vmax.f32 %v2171, %v2172
      %v2174 = vrot.slane %v2173, 2
      %v2175 = vmax.f32 %v2173, %v2174
      %v2176 = vrot.slane %v2175, 1
      %v2177 = vmax.f32 %v2175, %v2176
      %v2178 = vmax.f32 %v1994, %v1995
      %v2179 = vrot.slane %v2178, 4
      %v2180 = vmax.f32 %v2178, %v2179
      %v2181 = vrot.slane %v2180, 2
      %v2182 = vmax.f32 %v2180, %v2181
      %v2183 = vrot.slane %v2182, 1
      %v2184 = vmax.f32 %v2182, %v2183
      %v2185 = vmax.f32 %v1996, %v1997
      %v2186 = vrot.slane %v2185, 4
      %v2187 = vmax.f32 %v2185, %v2186
      %v2188 = vrot.slane %v2187, 2
      %v2189 = vmax.f32 %v2187, %v2188
      %v2190 = vrot.slane %v2189, 1
      %v2191 = vmax.f32 %v2189, %v2190
      %v2192 = vmax.f32 %v1998, %v1999
      %v2193 = vrot.slane %v2192, 4
      %v2194 = vmax.f32 %v2192, %v2193
      %v2195 = vrot.slane %v2194, 2
      %v2196 = vmax.f32 %v2194, %v2195
      %v2197 = vrot.slane %v2196, 1
      %v2198 = vmax.f32 %v2196, %v2197
      %v2199 = vmax.f32 %v2000, %v2001
      %v2200 = vrot.slane %v2199, 4
      %v2201 = vmax.f32 %v2199, %v2200
      %v2202 = vrot.slane %v2201, 2
      %v2203 = vmax.f32 %v2201, %v2202
      %v2204 = vrot.slane %v2203, 1
      %v2205 = vmax.f32 %v2203, %v2204
      %v2206 = vmax.f32 %v2002, %v2003
      %v2207 = vrot.slane %v2206, 4
      %v2208 = vmax.f32 %v2206, %v2207
      %v2209 = vrot.slane %v2208, 2
      %v2210 = vmax.f32 %v2208, %v2209
      %v2211 = vrot.slane %v2210, 1
      %v2212 = vmax.f32 %v2210, %v2211
      %v2213 = vmax.f32 %v2004, %v2005
      %v2214 = vrot.slane %v2213, 4
      %v2215 = vmax.f32 %v2213, %v2214
      %v2216 = vrot.slane %v2215, 2
      %v2217 = vmax.f32 %v2215, %v2216
      %v2218 = vrot.slane %v2217, 1
      %v2219 = vmax.f32 %v2217, %v2218
      %v2220 = vmax.f32 %v2006, %v2007
      %v2221 = vrot.slane %v2220, 4
      %v2222 = vmax.f32 %v2220, %v2221
      %v2223 = vrot.slane %v2222, 2
      %v2224 = vmax.f32 %v2222, %v2223
      %v2225 = vrot.slane %v2224, 1
      %v2226 = vmax.f32 %v2224, %v2225
      %v2227 = vmax.f32 %v2008, %v2009
      %v2228 = vrot.slane %v2227, 4
      %v2229 = vmax.f32 %v2227, %v2228
      %v2230 = vrot.slane %v2229, 2
      %v2231 = vmax.f32 %v2229, %v2230
      %v2232 = vrot.slane %v2231, 1
      %v2233 = vmax.f32 %v2231, %v2232
      %vm2266 = vcmask 1041409
      %v2267 = vsel %vm2266, %v2023, %v2016
      %vm2268 = vcmask 1042434
      %v2269 = vsel %vm2268, %v2030, %v2267
      %vm2270 = vcmask 1043459
      %v2271 = vsel %vm2270, %v2037, %v2269
      %vm2272 = vcmask 1044484
      %v2273 = vsel %vm2272, %v2044, %v2271
      %vm2274 = vcmask 1045509
      %v2275 = vsel %vm2274, %v2051, %v2273
      %vm2276 = vcmask 1046534
      %v2277 = vsel %vm2276, %v2058, %v2275
      %vm2278 = vcmask 1047559
      %v2279 = vsel %vm2278, %v2065, %v2277
      %v2280 = vsel %vm2266, %v2079, %v2072
      %v2281 = vsel %vm2268, %v2086, %v2280
      %v2282 = vsel %vm2270, %v2093, %v2281
      %v2283 = vsel %vm2272, %v2100, %v2282
      %v2284 = vsel %vm2274, %v2107, %v2283
      %v2285 = vsel %vm2276, %v2114, %v2284
      %v2286 = vsel %vm2278, %v2121, %v2285
      %v2287 = vsel %vm2266, %v2135, %v2128
      %v2288 = vsel %vm2268, %v2142, %v2287
      %v2289 = vsel %vm2270, %v2149, %v2288
      %v2290 = vsel %vm2272, %v2156, %v2289
      %v2291 = vsel %vm2274, %v2163, %v2290
      %v2292 = vsel %vm2276, %v2170, %v2291
      %v2293 = vsel %vm2278, %v2177, %v2292
      %v2294 = vsel %vm2266, %v2191, %v2184
      %v2295 = vsel %vm2268, %v2198, %v2294
      %v2296 = vsel %vm2270, %v2205, %v2295
      %v2297 = vsel %vm2272, %v2212, %v2296
      %v2298 = vsel %vm2274, %v2219, %v2297
      %v2299 = vsel %vm2276, %v2226, %v2298
      %v2300 = vsel %vm2278, %v2233, %v2299
      %2305 = vst [vmem:[%s280] sm:$0xff] %v2279
      %2306 = vst [vmem:[%s280 + $0x8] sm:$0xff] %v2286
      %2307 = vst [vmem:[%s280 + $0x10] sm:$0xff] %v2293
      %2308 = vst [vmem:[%s280 + $0x18] sm:$0xff] %v2300
      %s2309 = smul.u32 4, %s18
      %p2310 = scmp.lt.s32.totalorder %s2309, 7
      %s2311 = scalar_select %p2310, %s2309, 7
      %s2312 = smul.addr %s2311, 8
      %s2313 = scalar_lea.vmem %s7, %s2312
      // Predicated region
      $region49: #{pointnet_plus_forward.6} parent=47 // pred_check
        %p2314 = pneg %p188
      $region50: #{pointnet_plus_forward.6} parent=47 // pred_check_branch
        %2316 = sbr.rel (%p2314) target = $region52
      $region51: #{pointnet_plus_forward.6} parent=47 // pred_region
        %s2317 = smul.u32 4, %s18
      $region52: #{pointnet_plus_forward.6} parent=47 // pred_fallthru
        _
    $region48: #{pointnet_plus_forward.6} parent=5 // pred_fallthru
      _
    %p2318 = scmp.le.s32.totalorder 2, %s13
    // Predicated region
    $region53: #{pointnet_plus_forward.6} parent=5 // pred_check
      %p2319 = pneg %p2318
    $region54: #{pointnet_plus_forward.6} parent=5 // pred_check_branch
      %2321 = sbr.rel (%p2319) target = $region56
    $region55: #{pointnet_plus_forward.6} parent=5 // pred_region
      %s2322 = ssub.s32 %s13, 2
      // Predicated region
      $region57: #{pointnet_plus_forward.6} parent=55 // pred_check
        %p2323 = pneg %p194
      $region58: #{pointnet_plus_forward.6} parent=55 // pred_check_branch
        %2325 = sbr.rel (%p2323) target = $region60
      $region59: #{pointnet_plus_forward.6} parent=55 // pred_region
        %s2326 = smul.u32 4, %s19
        %p2327 = scmp.lt.s32.totalorder %s2326, 7
        %s2328 = scalar_select %p2327, %s2326, 7
        %s2329 = smul.addr %s2328, 8
        %s2330 = scalar_lea.vmem %s7, %s2329
      $region60: #{pointnet_plus_forward.6} parent=55 // pred_fallthru
        _
    $region56: #{pointnet_plus_forward.6} parent=5 // pred_fallthru
      _
  $region6: #{pointnet_plus_forward.6} parent=0 // loop_footer
    %s17 = sadd.s32 1, %s13
  $region7: #{pointnet_plus_forward.6} parent=0 // loop_footer_branch
    %12 = sbr.rel target = $region3
  $region8: #{pointnet_plus_forward.6} parent=0 // loop_exit
    _

// kernel: pointnet_plus_forward.7
$region0: #{pointnet_plus_forward.7}
  #allocation0 [shape = 'u32[]', space=smem, size = 0x4, offset = 0x4, fixed_abs, tag = 'smem constant byte address 0x4 - core index']
  #allocation1 [shape = 'u32[144,128]{1,0:T(1,128)}', space=vmem, size = 0x12000, scoped, tag = 'internal scratch']
  %s0 = inlined_call_operand.vmem [shape: bf16[256,136], index: 0, kind: input, shape index: {}]
  %s1 = inlined_call_operand.vmem [shape: bf16[136,128], index: 1, kind: input, shape index: {}]
  %s2 = inlined_call_operand.vmem [shape: f32[1,128], index: 2, kind: input, shape index: {}]
  %s3 = inlined_call_operand.vmem [shape: bf16[128,128], index: 3, kind: input, shape index: {}]
  %s4 = inlined_call_operand.vmem [shape: f32[1,128], index: 4, kind: input, shape index: {}]
  %s5 = inlined_call_operand.vmem [shape: bf16[128,256], index: 5, kind: input, shape index: {}]
  %s6 = inlined_call_operand.vmem [shape: f32[1,256], index: 6, kind: input, shape index: {}]
  %s7 = inlined_call_operand.vmem [shape: f32[16,256], index: 7, kind: output, shape index: {}]
  %s8 = sld [smem:[#allocation0]]
  $region61: #{pointnet_plus_forward.7} parent=0
    _
  %s10 = ssub.s32 1, %s8
  %s11 = scalar_select 0, %s10, %s8
  loop: start=0, step=1, limit=4
  $region2: #{pointnet_plus_forward.7} parent=0 // loop_pre_header
    _
  $region3: #{pointnet_plus_forward.7} parent=0 // loop_header
    %s13 = sphi 0, %s17
    %p14 = scmp.ge.s32.totalorder %s13, 4
    %s23 = sphi 0, %s25
    %s26 = sphi 0, %s23
    %s27 = sphi 0, %s26
    %s43 = sphi 0, %s27
    %s47 = sphi 0, %s47
    %s49 = sphi 0, %s47
    %s50 = sphi 0, %s49
    %s64 = sphi 0, %s50
    %s68 = sphi 0, %s68
    %s70 = sphi 0, %s68
    %s71 = sphi 0, %s70
    %s85 = sphi 0, %s71
    %s89 = sphi 0, %s89
    %s91 = sphi 0, %s89
    %s92 = sphi 0, %s91
    %s106 = sphi 0, %s92
    %s110 = sphi 0, %s110
    %s112 = sphi 0, %s110
    %s113 = sphi 0, %s112
    %s127 = sphi 0, %s113
    %s131 = sphi 0, %s131
    %s133 = sphi 0, %s131
    %s134 = sphi 0, %s133
    %s148 = sphi 0, %s134
    %s152 = sphi 0, %s152
    %s154 = sphi 0, %s152
    %s155 = sphi 0, %s154
    %s169 = sphi 0, %s155
    %s175 = sphi 0, %s177
    %s178 = sphi 0, %s175
    %s179 = sphi 0, %s178
    %s195 = sphi 0, %s179
  $region4: #{pointnet_plus_forward.7} parent=0 // loop_header_branch
    %16 = sbr.rel (%p14) target = $region8
  $region5: #{pointnet_plus_forward.7} parent=0 // loop_body
    %s18 = ssub.s32 %s13, 1
    %s19 = ssub.s32 %s13, 2
    %s20 = sadd.s32 %s13, 1
    %s21 = ssub.s32 %s13, %s20
    %p22 = scmp.eq.s32.totalorder %s21, 0
    %s24 = sadd.s32 %s23, 1
    %s25 = scalar_select %p22, %s23, %s24
    %p28 = pneg %p22
    %p29 = scmp.eq.s32.totalorder %s13, 1
    %p30 = por %p28, %p29
    %p31 = scmp.ne.s32.totalorder %s23, %s26
    %p32 = scmp.eq.s32.totalorder %s13, 0
    %p33 = por %p31, %p32
    %p34 = scmp.ne.s32.totalorder %s23, %s26
    %p35 = scmp.eq.s32.totalorder %s18, 1
    %p36 = por %p34, %p35
    %p37 = scmp.ne.s32.totalorder %s26, %s27
    %p38 = scmp.eq.s32.totalorder %s18, 0
    %p39 = por %p37, %p38
    %p40 = scmp.ne.s32.totalorder %s26, %s27
    %p41 = scmp.eq.s32.totalorder %s19, 1
    %p42 = por %p40, %p41
    %p44 = scmp.ne.s32.totalorder %s27, %s43
    %p45 = scmp.eq.s32.totalorder %s19, 0
    %p46 = por %p44, %p45
    %s48 = sadd.s32 %s47, 1
    %p51 = scmp.eq.s32.totalorder %s13, 1
    %p52 = scmp.ne.s32.totalorder %s47, %s49
    %p53 = scmp.eq.s32.totalorder %s13, 0
    %p54 = por %p52, %p53
    %p55 = scmp.ne.s32.totalorder %s47, %s49
    %p56 = scmp.eq.s32.totalorder %s18, 1
    %p57 = por %p55, %p56
    %p58 = scmp.ne.s32.totalorder %s49, %s50
    %p59 = scmp.eq.s32.totalorder %s18, 0
    %p60 = por %p58, %p59
    %p61 = scmp.ne.s32.totalorder %s49, %s50
    %p62 = scmp.eq.s32.totalorder %s19, 1
    %p63 = por %p61, %p62
    %p65 = scmp.ne.s32.totalorder %s50, %s64
    %p66 = scmp.eq.s32.totalorder %s19, 0
    %p67 = por %p65, %p66
    %s69 = sadd.s32 %s68, 1
    %p72 = scmp.eq.s32.totalorder %s13, 1
    %p73 = scmp.ne.s32.totalorder %s68, %s70
    %p74 = scmp.eq.s32.totalorder %s13, 0
    %p75 = por %p73, %p74
    %p76 = scmp.ne.s32.totalorder %s68, %s70
    %p77 = scmp.eq.s32.totalorder %s18, 1
    %p78 = por %p76, %p77
    %p79 = scmp.ne.s32.totalorder %s70, %s71
    %p80 = scmp.eq.s32.totalorder %s18, 0
    %p81 = por %p79, %p80
    %p82 = scmp.ne.s32.totalorder %s70, %s71
    %p83 = scmp.eq.s32.totalorder %s19, 1
    %p84 = por %p82, %p83
    %p86 = scmp.ne.s32.totalorder %s71, %s85
    %p87 = scmp.eq.s32.totalorder %s19, 0
    %p88 = por %p86, %p87
    %s90 = sadd.s32 %s89, 1
    %p93 = scmp.eq.s32.totalorder %s13, 1
    %p94 = scmp.ne.s32.totalorder %s89, %s91
    %p95 = scmp.eq.s32.totalorder %s13, 0
    %p96 = por %p94, %p95
    %p97 = scmp.ne.s32.totalorder %s89, %s91
    %p98 = scmp.eq.s32.totalorder %s18, 1
    %p99 = por %p97, %p98
    %p100 = scmp.ne.s32.totalorder %s91, %s92
    %p101 = scmp.eq.s32.totalorder %s18, 0
    %p102 = por %p100, %p101
    %p103 = scmp.ne.s32.totalorder %s91, %s92
    %p104 = scmp.eq.s32.totalorder %s19, 1
    %p105 = por %p103, %p104
    %p107 = scmp.ne.s32.totalorder %s92, %s106
    %p108 = scmp.eq.s32.totalorder %s19, 0
    %p109 = por %p107, %p108
    %s111 = sadd.s32 %s110, 1
    %p114 = scmp.eq.s32.totalorder %s13, 1
    %p115 = scmp.ne.s32.totalorder %s110, %s112
    %p116 = scmp.eq.s32.totalorder %s13, 0
    %p117 = por %p115, %p116
    %p118 = scmp.ne.s32.totalorder %s110, %s112
    %p119 = scmp.eq.s32.totalorder %s18, 1
    %p120 = por %p118, %p119
    %p121 = scmp.ne.s32.totalorder %s112, %s113
    %p122 = scmp.eq.s32.totalorder %s18, 0
    %p123 = por %p121, %p122
    %p124 = scmp.ne.s32.totalorder %s112, %s113
    %p125 = scmp.eq.s32.totalorder %s19, 1
    %p126 = por %p124, %p125
    %p128 = scmp.ne.s32.totalorder %s113, %s127
    %p129 = scmp.eq.s32.totalorder %s19, 0
    %p130 = por %p128, %p129
    %s132 = sadd.s32 %s131, 1
    %p135 = scmp.eq.s32.totalorder %s13, 1
    %p136 = scmp.ne.s32.totalorder %s131, %s133
    %p137 = scmp.eq.s32.totalorder %s13, 0
    %p138 = por %p136, %p137
    %p139 = scmp.ne.s32.totalorder %s131, %s133
    %p140 = scmp.eq.s32.totalorder %s18, 1
    %p141 = por %p139, %p140
    %p142 = scmp.ne.s32.totalorder %s133, %s134
    %p143 = scmp.eq.s32.totalorder %s18, 0
    %p144 = por %p142, %p143
    %p145 = scmp.ne.s32.totalorder %s133, %s134
    %p146 = scmp.eq.s32.totalorder %s19, 1
    %p147 = por %p145, %p146
    %p149 = scmp.ne.s32.totalorder %s134, %s148
    %p150 = scmp.eq.s32.totalorder %s19, 0
    %p151 = por %p149, %p150
    %s153 = sadd.s32 %s152, 1
    %p156 = scmp.eq.s32.totalorder %s13, 1
    %p157 = scmp.ne.s32.totalorder %s152, %s154
    %p158 = scmp.eq.s32.totalorder %s13, 0
    %p159 = por %p157, %p158
    %p160 = scmp.ne.s32.totalorder %s152, %s154
    %p161 = scmp.eq.s32.totalorder %s18, 1
    %p162 = por %p160, %p161
    %p163 = scmp.ne.s32.totalorder %s154, %s155
    %p164 = scmp.eq.s32.totalorder %s18, 0
    %p165 = por %p163, %p164
    %p166 = scmp.ne.s32.totalorder %s154, %s155
    %p167 = scmp.eq.s32.totalorder %s19, 1
    %p168 = por %p166, %p167
    %p170 = scmp.ne.s32.totalorder %s155, %s169
    %p171 = scmp.eq.s32.totalorder %s19, 0
    %p172 = por %p170, %p171
    %s173 = ssub.s32 %s13, %s20
    %p174 = scmp.eq.s32.totalorder %s173, 0
    %s176 = sadd.s32 %s175, 1
    %s177 = scalar_select %p174, %s175, %s176
    %p180 = pneg %p174
    %p181 = scmp.eq.s32.totalorder %s13, 1
    %p182 = por %p180, %p181
    %p183 = scmp.ne.s32.totalorder %s175, %s178
    %p184 = scmp.eq.s32.totalorder %s13, 0
    %p185 = por %p183, %p184
    %p186 = scmp.ne.s32.totalorder %s175, %s178
    %p187 = scmp.eq.s32.totalorder %s18, 1
    %p188 = por %p186, %p187
    %p189 = scmp.ne.s32.totalorder %s178, %s179
    %p190 = scmp.eq.s32.totalorder %s18, 0
    %p191 = por %p189, %p190
    %p192 = scmp.ne.s32.totalorder %s178, %s179
    %p193 = scmp.eq.s32.totalorder %s19, 1
    %p194 = por %p192, %p193
    %p196 = scmp.ne.s32.totalorder %s179, %s195
    %p197 = scmp.eq.s32.totalorder %s19, 0
    %p198 = por %p196, %p197
    %p199 = scmp.le.s32.totalorder 1, %s13
    %p200 = scmp.lt.s32.totalorder %s13, 3
    %p201 = pnand %p199, %p200
    %p202 = pneg %p201
    // Predicated region
    $region9: #{pointnet_plus_forward.7} parent=5 // pred_check
      _
    $region10: #{pointnet_plus_forward.7} parent=5 // pred_check_branch
      %204 = sbr.rel (%p201) target = $region12
    $region11: #{pointnet_plus_forward.7} parent=5 // pred_region
      %s205 = ssub.s32 %s13, 1
      // Predicated region
      $region13: #{pointnet_plus_forward.7} parent=11 // pred_check
        %p206 = pneg %p60
      $region14: #{pointnet_plus_forward.7} parent=11 // pred_check_branch
        %208 = sbr.rel (%p206) target = $region16
      $region15: #{pointnet_plus_forward.7} parent=11 // pred_region
        _
      $region16: #{pointnet_plus_forward.7} parent=11 // pred_fallthru
        _
      // Predicated region
      $region17: #{pointnet_plus_forward.7} parent=11 // pred_check
        %p209 = pneg %p81
      $region18: #{pointnet_plus_forward.7} parent=11 // pred_check_branch
        %211 = sbr.rel (%p209) target = $region20
      $region19: #{pointnet_plus_forward.7} parent=11 // pred_region
        _
      $region20: #{pointnet_plus_forward.7} parent=11 // pred_fallthru
        _
      // Predicated region
      $region21: #{pointnet_plus_forward.7} parent=11 // pred_check
        %p212 = pneg %p102
      $region22: #{pointnet_plus_forward.7} parent=11 // pred_check_branch
        %214 = sbr.rel (%p212) target = $region24
      $region23: #{pointnet_plus_forward.7} parent=11 // pred_region
        _
      $region24: #{pointnet_plus_forward.7} parent=11 // pred_fallthru
        _
      // Predicated region
      $region25: #{pointnet_plus_forward.7} parent=11 // pred_check
        %p215 = pneg %p123
      $region26: #{pointnet_plus_forward.7} parent=11 // pred_check_branch
        %217 = sbr.rel (%p215) target = $region28
      $region27: #{pointnet_plus_forward.7} parent=11 // pred_region
        _
      $region28: #{pointnet_plus_forward.7} parent=11 // pred_fallthru
        _
      // Predicated region
      $region29: #{pointnet_plus_forward.7} parent=11 // pred_check
        %p218 = pneg %p144
      $region30: #{pointnet_plus_forward.7} parent=11 // pred_check_branch
        %220 = sbr.rel (%p218) target = $region32
      $region31: #{pointnet_plus_forward.7} parent=11 // pred_region
        _
      $region32: #{pointnet_plus_forward.7} parent=11 // pred_fallthru
        _
      // Predicated region
      $region33: #{pointnet_plus_forward.7} parent=11 // pred_check
        %p221 = pneg %p165
      $region34: #{pointnet_plus_forward.7} parent=11 // pred_check_branch
        %223 = sbr.rel (%p221) target = $region36
      $region35: #{pointnet_plus_forward.7} parent=11 // pred_region
        _
      $region36: #{pointnet_plus_forward.7} parent=11 // pred_fallthru
        _
    $region12: #{pointnet_plus_forward.7} parent=5 // pred_fallthru
      _
    %p224 = scmp.lt.s32.totalorder %s13, 2
    // Predicated region
    $region37: #{pointnet_plus_forward.7} parent=5 // pred_check
      %p225 = pneg %p224
    $region38: #{pointnet_plus_forward.7} parent=5 // pred_check_branch
      %227 = sbr.rel (%p225) target = $region40
    $region39: #{pointnet_plus_forward.7} parent=5 // pred_region
      // Predicated region
      $region41: #{pointnet_plus_forward.7} parent=39 // pred_check
        %p228 = pneg %p33
      $region42: #{pointnet_plus_forward.7} parent=39 // pred_check_branch
        %230 = sbr.rel (%p228) target = $region44
      $region43: #{pointnet_plus_forward.7} parent=39 // pred_region
        %s231 = smul.u32 16, %s13
        %p232 = scmp.lt.s32.totalorder %s231, 31
        %s233 = scalar_select %p232, %s231, 31
        %s234 = smul.addr %s233, 2
        %s235 = smul.addr %s234, 4
        %s236 = scalar_lea.vmem %s0, %s235
        %s237 = smul.u32 16, %s13
      $region44: #{pointnet_plus_forward.7} parent=39 // pred_fallthru
        _
    $region40: #{pointnet_plus_forward.7} parent=5 // pred_fallthru
      _
    %p238 = scmp.le.s32.totalorder 1, %s13
    %p239 = scmp.lt.s32.totalorder %s13, 3
    %p240 = pnand %p238, %p239
    %p241 = pneg %p240
    // Predicated region
    $region45: #{pointnet_plus_forward.7} parent=5 // pred_check
      _
    $region46: #{pointnet_plus_forward.7} parent=5 // pred_check_branch
      %243 = sbr.rel (%p240) target = $region48
    $region47: #{pointnet_plus_forward.7} parent=5 // pred_region
      %s244 = ssub.s32 %s13, 1
      %s245 = smul.u32 16, %s18
      %p246 = scmp.lt.s32.totalorder %s245, 31
      %s247 = scalar_select %p246, %s245, 31
      %s248 = smul.addr %s247, 2
      %s249 = smul.addr %s248, 4
      %s250 = scalar_lea.vmem %s0, %s249
      %p251 = pneg %p39
      %p252 = pneg %p36
      %p253 = pneg %p60
      %p254 = pneg %p57
      %p255 = pneg %p81
      %p256 = pneg %p78
      %p257 = pneg %p102
      %p258 = pneg %p99
      %p259 = pneg %p123
      %p260 = pneg %p120
      %p261 = pneg %p144
      %p262 = pneg %p141
      %p263 = pneg %p165
      %p264 = pneg %p162
      %p265 = pneg %p191
      %p266 = pneg %p188
      %p267 = scmp.lt.s32.totalorder %s18, 1
      %s268 = scalar_select %p267, %s18, 1
      %s269 = smul.addr %s268, 2
      %s270 = smul.addr %s269, 8
      %s271 = scalar_lea.vmem %s7, %s270
      %s272 = smul.u32 16, %s18
      %p273 = scmp.lt.s32.totalorder %s272, 31
      %s274 = scalar_select %p273, %s272, 31
      %s275 = smul.addr %s274, 2
      %s276 = smul.addr %s275, 4
      %s277 = scalar_lea.vmem %s0, %s276
      %s278 = smul.u32 16, %s18
      %p279 = scmp.lt.s32.totalorder %s18, 1
      %s280 = scalar_select %p279, %s18, 1
      %s281 = smul.addr %s280, 2
      %s282 = smul.addr %s281, 8
      %s283 = scalar_lea.vmem %s7, %s282
      %v285 = vld [vmem:[%s277] sm:$0xff]
      %v286 = vld [vmem:[%s277 + $0x8] sm:$0xff]
      %v287 = vld [vmem:[%s277 + $0x10] sm:$0xff]
      %v288 = vld [vmem:[%s277 + $0x18] sm:$0xff]
      %v289 = vld [vmem:[%s277 + $0x20] sm:$0xff]
      %v290 = vld [vmem:[%s277 + $0x28] sm:$0xff]
      %v291 = vld [vmem:[%s277 + $0x30] sm:$0xff]
      %v292 = vld [vmem:[%s277 + $0x38] sm:$0xff]
      %v293 = vld [vmem:[%s277 + $0x40] sm:$0xff]
      %v294 = vld [vmem:[%s277 + $0x48] sm:$0xff]
      %v295 = vld [vmem:[%s277 + $0x50] sm:$0xff]
      %v296 = vld [vmem:[%s277 + $0x58] sm:$0xff]
      %v297 = vld [vmem:[%s277 + $0x60] sm:$0xff]
      %v298 = vld [vmem:[%s277 + $0x68] sm:$0xff]
      %v299 = vld [vmem:[%s277 + $0x70] sm:$0xff]
      %v300 = vld [vmem:[%s277 + $0x78] sm:$0xff]
      %v301 = vld [vmem:[%s1] sm:$0xf]
      %v302 = vld [vmem:[%s1 + $0x4] sm:$0xf]
      %v303 = vld [vmem:[%s1 + $0x8] sm:$0xf]
      %v304 = vld [vmem:[%s1 + $0xc] sm:$0xf]
      %v305 = vld [vmem:[%s1 + $0x10] sm:$0xf]
      %v306 = vld [vmem:[%s1 + $0x14] sm:$0xf]
      %v307 = vld [vmem:[%s1 + $0x18] sm:$0xf]
      %v308 = vld [vmem:[%s1 + $0x1c] sm:$0xf]
      %v309 = vld [vmem:[%s1 + $0x20] sm:$0xf]
      %v310 = vld [vmem:[%s1 + $0x24] sm:$0xf]
      %v311 = vld [vmem:[%s1 + $0x28] sm:$0xf]
      %v312 = vld [vmem:[%s1 + $0x2c] sm:$0xf]
      %v313 = vld [vmem:[%s1 + $0x30] sm:$0xf]
      %v314 = vld [vmem:[%s1 + $0x34] sm:$0xf]
      %v315 = vld [vmem:[%s1 + $0x38] sm:$0xf]
      %v316 = vld [vmem:[%s1 + $0x3c] sm:$0xf]
      %v317 = vld [vmem:[%s1 + $0x40] sm:$0xf]
      %v318 = vld [vmem:[%s2] sm:$0x1]
      %v320 = vlaneseq
      %v321 = vshrl.u32 %v320, 7
      %v322 = vsub.s32 0, %v321
      %v323 = vrot.slane %v318, %v322
      %v341 = vunpack.c.l.b16 %v285
      %v342 = vunpack.c.h.b16 %v285
      %v343 = vunpack.c.l.b16 %v286
      %v344 = vunpack.c.h.b16 %v286
      %v345 = vunpack.c.l.b16 %v287
      %v346 = vunpack.c.h.b16 %v287
      %v347 = vunpack.c.l.b16 %v288
      %v348 = vunpack.c.h.b16 %v288
      %v349 = vunpack.c.l.b16 %v289
      %v350 = vunpack.c.h.b16 %v289
      %v351 = vunpack.c.l.b16 %v290
      %v352 = vunpack.c.h.b16 %v290
      %v353 = vunpack.c.l.b16 %v291
      %v354 = vunpack.c.h.b16 %v291
      %v355 = vunpack.c.l.b16 %v292
      %v356 = vunpack.c.h.b16 %v292
      %v357 = vunpack.c.l.b16 %v293
      %v358 = vunpack.c.h.b16 %v293
      %v359 = vunpack.c.l.b16 %v294
      %v360 = vunpack.c.h.b16 %v294
      %v361 = vunpack.c.l.b16 %v295
      %v362 = vunpack.c.h.b16 %v295
      %v363 = vunpack.c.l.b16 %v296
      %v364 = vunpack.c.h.b16 %v296
      %v365 = vunpack.c.l.b16 %v297
      %v366 = vunpack.c.h.b16 %v297
      %v367 = vunpack.c.l.b16 %v298
      %v368 = vunpack.c.h.b16 %v298
      %v369 = vunpack.c.l.b16 %v299
      %v370 = vunpack.c.h.b16 %v299
      %v371 = vunpack.c.l.b16 %v300
      %v372 = vunpack.c.h.b16 %v300
      %v373 = vpack.c.b16 %v343, %v341
      %v374 = vpack.c.b16 %v344, %v342
      %v375 = vpack.c.b16 %v347, %v345
      %v376 = vpack.c.b16 %v348, %v346
      %v377 = vpack.c.b16 %v351, %v349
      %v378 = vpack.c.b16 %v352, %v350
      %v379 = vpack.c.b16 %v355, %v353
      %v380 = vpack.c.b16 %v356, %v354
      %v381 = vpack.c.b16 %v359, %v357
      %v382 = vpack.c.b16 %v360, %v358
      %v383 = vpack.c.b16 %v363, %v361
      %v384 = vpack.c.b16 %v364, %v362
      %v385 = vpack.c.b16 %v367, %v365
      %v386 = vpack.c.b16 %v368, %v366
      %v387 = vpack.c.b16 %v371, %v369
      %v388 = vpack.c.b16 %v372, %v370
      %v414 = vunpack.c.l.b16 %v301
      %v415 = vunpack.c.l.b16 %v302
      %v416 = vunpack.c.l.b16 %v303
      %v417 = vunpack.c.l.b16 %v304
      %v418 = vunpack.c.l.b16 %v305
      %v419 = vunpack.c.l.b16 %v306
      %v420 = vunpack.c.l.b16 %v307
      %v421 = vunpack.c.l.b16 %v308
      %v422 = vunpack.c.l.b16 %v309
      %v423 = vunpack.c.l.b16 %v310
      %v424 = vunpack.c.l.b16 %v311
      %v425 = vunpack.c.l.b16 %v312
      %v426 = vunpack.c.l.b16 %v313
      %v427 = vunpack.c.l.b16 %v314
      %v428 = vunpack.c.l.b16 %v315
      %v429 = vunpack.c.l.b16 %v316
      %v430 = vunpack.c.l.b16 %v317
      %v431 = vpack.c.b16 %v415, %v414
      %v432 = vpack.c.b16 %v417, %v416
      %v433 = vpack.c.b16 %v419, %v418
      %v434 = vpack.c.b16 %v421, %v420
      %v435 = vpack.c.b16 %v423, %v422
      %v436 = vpack.c.b16 %v425, %v424
      %v437 = vpack.c.b16 %v427, %v426
      %v438 = vpack.c.b16 %v429, %v428
      %v439 = vpack.c.b16 %v430, %v430
      %vm448 = vcmask 64512
      %v450 = vsel %vm448, %v374, 0
      %v453 = vsel %vm448, %v376, 0
      %v456 = vsel %vm448, %v378, 0
      %v459 = vsel %vm448, %v380, 0
      %v462 = vsel %vm448, %v382, 0
      %v465 = vsel %vm448, %v384, 0
      %v468 = vsel %vm448, %v386, 0
      %v471 = vsel %vm448, %v388, 0
      %vm473 = vcmask 1043456
      %v475 = vsel %vm473, %v439, 0
      %477 = vmatprep.subr.bf16.mxu0 0
      %478 = vmatpush1.bf16.msra.mxu0 %v431
      %479 = vmatprep.subr.bf16.mxu0 0
      %480 = vmatpush1.bf16.msra.mxu0 %v432
      %481 = vmatprep.subr.bf16.mxu0 0
      %482 = vmatpush1.bf16.msra.mxu0 %v433
      %483 = vmatprep.subr.bf16.mxu0 0
      %484 = vmatpush1.bf16.msra.mxu0 %v434
      %485 = vmatprep.subr.bf16.mxu0 0
      %486 = vmatpush1.bf16.msra.mxu0 %v435
      %487 = vmatprep.subr.bf16.mxu0 0
      %488 = vmatpush1.bf16.msra.mxu0 %v436
      %489 = vmatprep.subr.bf16.mxu0 0
      %490 = vmatpush1.bf16.msra.mxu0 %v437
      %491 = vmatprep.subr.bf16.mxu0 0
      %492 = vmatpush1.bf16.msra.mxu0 %v438
      %493 = vmatprep.subr.bf16.mxu0 0
      %494 = vmatpush1.bf16.msra.mxu0 %v475
      %495 = vmatprep.subr.bf16.mxu0 0
      %496 = vmatpush1.bf16.msra.mxu0 0
      %497 = vmatprep.subr.bf16.mxu0 0
      %498 = vmatpush1.bf16.msra.mxu0 0
      %499 = vmatprep.subr.bf16.mxu0 0
      %500 = vmatpush1.bf16.msra.mxu0 0
      %501 = vmatprep.subr.bf16.mxu0 0
      %502 = vmatpush1.bf16.msra.mxu0 0
      %503 = vmatprep.subr.bf16.mxu0 0
      %504 = vmatpush1.bf16.msra.mxu0 0
      %505 = vmatprep.subr.bf16.mxu0 0
      %506 = vmatpush1.bf16.msra.mxu0 0
      %507 = vmatprep.subr.bf16.mxu0 0
      %508 = vmatpush1.bf16.msra.mxu0 0
      %509 = vmatprep.mubr.bf16.mxu0 %v450
      %510 = vmatmul.mubr.bf16.gmra.mrb[0].mxu0 %v373
      %v511 = vpop.f32.mrb[0].mxu0
      %v512 = vadd.f32 %v323, %v511
      %v513 = vpop.f32.mrb[0].mxu0
      %v514 = vpop.f32.mrb[0].mxu0
      %v515 = vadd.f32 %v323, %v514
      %v516 = vpop.f32.mrb[0].mxu0
      %517 = vmatprep.mubr.bf16.mxu0 %v453
      %518 = vmatmul.mubr.bf16.gmra.mrb[0].mxu0 %v375
      %v519 = vpop.f32.mrb[0].mxu0
      %v520 = vadd.f32 %v323, %v519
      %v521 = vpop.f32.mrb[0].mxu0
      %v522 = vpop.f32.mrb[0].mxu0
      %v523 = vadd.f32 %v323, %v522
      %v524 = vpop.f32.mrb[0].mxu0
      %525 = vmatprep.mubr.bf16.mxu0 %v456
      %526 = vmatmul.mubr.bf16.gmra.mrb[0].mxu0 %v377
      %v527 = vpop.f32.mrb[0].mxu0
      %v528 = vadd.f32 %v323, %v527
      %v529 = vpop.f32.mrb[0].mxu0
      %v530 = vpop.f32.mrb[0].mxu0
      %v531 = vadd.f32 %v323, %v530
      %v532 = vpop.f32.mrb[0].mxu0
      %533 = vmatprep.mubr.bf16.mxu0 %v459
      %534 = vmatmul.mubr.bf16.gmra.mrb[0].mxu0 %v379
      %v535 = vpop.f32.mrb[0].mxu0
      %v536 = vadd.f32 %v323, %v535
      %v537 = vpop.f32.mrb[0].mxu0
      %v538 = vpop.f32.mrb[0].mxu0
      %v539 = vadd.f32 %v323, %v538
      %v540 = vpop.f32.mrb[0].mxu0
      %541 = vmatprep.mubr.bf16.mxu0 %v462
      %542 = vmatmul.mubr.bf16.gmra.mrb[0].mxu0 %v381
      %v543 = vpop.f32.mrb[0].mxu0
      %v544 = vadd.f32 %v323, %v543
      %v545 = vpop.f32.mrb[0].mxu0
      %v546 = vpop.f32.mrb[0].mxu0
      %v547 = vadd.f32 %v323, %v546
      %v548 = vpop.f32.mrb[0].mxu0
      %549 = vmatprep.mubr.bf16.mxu0 %v465
      %550 = vmatmul.mubr.bf16.gmra.mrb[0].mxu0 %v383
      %v551 = vpop.f32.mrb[0].mxu0
      %v552 = vadd.f32 %v323, %v551
      %v553 = vpop.f32.mrb[0].mxu0
      %v554 = vpop.f32.mrb[0].mxu0
      %v555 = vadd.f32 %v323, %v554
      %v556 = vpop.f32.mrb[0].mxu0
      %557 = vmatprep.mubr.bf16.mxu0 %v468
      %558 = vmatmul.mubr.bf16.gmra.mrb[0].mxu0 %v385
      %v559 = vpop.f32.mrb[0].mxu0
      %v560 = vadd.f32 %v323, %v559
      %v561 = vpop.f32.mrb[0].mxu0
      %v562 = vpop.f32.mrb[0].mxu0
      %v563 = vadd.f32 %v323, %v562
      %v564 = vpop.f32.mrb[0].mxu0
      %565 = vmatprep.mubr.bf16.mxu0 %v471
      %566 = vmatmul.mubr.bf16.gmra.mrb[0].mxu0 %v387
      %v567 = vpop.f32.mrb[0].mxu0
      %v568 = vadd.f32 %v323, %v567
      %v569 = vpop.f32.mrb[0].mxu0
      %v570 = vpop.f32.mrb[0].mxu0
      %v571 = vadd.f32 %v323, %v570
      %v572 = vpop.f32.mrb[0].mxu0
      %573 = vdwg.mxu0
      %v574 = vmax.f32 %v512, 0.0
      %v575 = vmax.f32 %v515, 0.0
      %v576 = vmax.f32 %v520, 0.0
      %v577 = vmax.f32 %v523, 0.0
      %v578 = vmax.f32 %v528, 0.0
      %v579 = vmax.f32 %v531, 0.0
      %v580 = vmax.f32 %v536, 0.0
      %v581 = vmax.f32 %v539, 0.0
      %v582 = vmax.f32 %v544, 0.0
      %v583 = vmax.f32 %v547, 0.0
      %v584 = vmax.f32 %v552, 0.0
      %v585 = vmax.f32 %v555, 0.0
      %v586 = vmax.f32 %v560, 0.0
      %v587 = vmax.f32 %v563, 0.0
      %v588 = vmax.f32 %v568, 0.0
      %v589 = vmax.f32 %v571, 0.0
      %v590 = vpack.c.bf16 %v575, %v574
      %v591 = vpack.c.bf16 %v577, %v576
      %v592 = vpack.c.bf16 %v579, %v578
      %v593 = vpack.c.bf16 %v581, %v580
      %v594 = vpack.c.bf16 %v583, %v582
      %v595 = vpack.c.bf16 %v585, %v584
      %v596 = vpack.c.bf16 %v587, %v586
      %v597 = vpack.c.bf16 %v589, %v588
      %v598 = vld [vmem:[%s3] sm:$0xf]
      %v599 = vld [vmem:[%s3 + $0x4] sm:$0xf]
      %v600 = vld [vmem:[%s3 + $0x8] sm:$0xf]
      %v601 = vld [vmem:[%s3 + $0xc] sm:$0xf]
      %v602 = vld [vmem:[%s3 + $0x10] sm:$0xf]
      %v603 = vld [vmem:[%s3 + $0x14] sm:$0xf]
      %v604 = vld [vmem:[%s3 + $0x18] sm:$0xf]
      %v605 = vld [vmem:[%s3 + $0x1c] sm:$0xf]
      %v606 = vld [vmem:[%s3 + $0x20] sm:$0xf]
      %v607 = vld [vmem:[%s3 + $0x24] sm:$0xf]
      %v608 = vld [vmem:[%s3 + $0x28] sm:$0xf]
      %v609 = vld [vmem:[%s3 + $0x2c] sm:$0xf]
      %v610 = vld [vmem:[%s3 + $0x30] sm:$0xf]
      %v611 = vld [vmem:[%s3 + $0x34] sm:$0xf]
      %v612 = vld [vmem:[%s3 + $0x38] sm:$0xf]
      %v613 = vld [vmem:[%s3 + $0x3c] sm:$0xf]
      %v614 = vld [vmem:[%s4] sm:$0x1]
      %v616 = vlaneseq
      %v617 = vshrl.u32 %v616, 7
      %v618 = vsub.s32 0, %v617
      %v619 = vrot.slane %v614, %v618
      %v637 = vunpack.c.l.b16 %v598
      %v638 = vunpack.c.l.b16 %v599
      %v639 = vunpack.c.l.b16 %v600
      %v640 = vunpack.c.l.b16 %v601
      %v641 = vunpack.c.l.b16 %v602
      %v642 = vunpack.c.l.b16 %v603
      %v643 = vunpack.c.l.b16 %v604
      %v644 = vunpack.c.l.b16 %v605
      %v645 = vunpack.c.l.b16 %v606
      %v646 = vunpack.c.l.b16 %v607
      %v647 = vunpack.c.l.b16 %v608
      %v648 = vunpack.c.l.b16 %v609
      %v649 = vunpack.c.l.b16 %v610
      %v650 = vunpack.c.l.b16 %v611
      %v651 = vunpack.c.l.b16 %v612
      %v652 = vunpack.c.l.b16 %v613
      %v653 = vpack.c.b16 %v638, %v637
      %v654 = vpack.c.b16 %v640, %v639
      %v655 = vpack.c.b16 %v642, %v641
      %v656 = vpack.c.b16 %v644, %v643
      %v657 = vpack.c.b16 %v646, %v645
      %v658 = vpack.c.b16 %v648, %v647
      %v659 = vpack.c.b16 %v650, %v649
      %v660 = vpack.c.b16 %v652, %v651
      %669 = vmatprep.subr.bf16.mxu0 0
      %670 = vmatpush1.bf16.msra.mxu0 %v653
      %671 = vmatprep.subr.bf16.mxu0 0
      %672 = vmatpush1.bf16.msra.mxu0 %v654
      %673 = vmatprep.subr.bf16.mxu0 0
      %674 = vmatpush1.bf16.msra.mxu0 %v655
      %675 = vmatprep.subr.bf16.mxu0 0
      %676 = vmatpush1.bf16.msra.mxu0 %v656
      %677 = vmatprep.subr.bf16.mxu0 0
      %678 = vmatpush1.bf16.msra.mxu0 %v657
      %679 = vmatprep.subr.bf16.mxu0 0
      %680 = vmatpush1.bf16.msra.mxu0 %v658
      %681 = vmatprep.subr.bf16.mxu0 0
      %682 = vmatpush1.bf16.msra.mxu0 %v659
      %683 = vmatprep.subr.bf16.mxu0 0
      %684 = vmatpush1.bf16.msra.mxu0 %v660
      %685 = vmatprep.subr.bf16.mxu0 0
      %686 = vmatpush1.bf16.msra.mxu0 0
      %687 = vmatprep.subr.bf16.mxu0 0
      %688 = vmatpush1.bf16.msra.mxu0 0
      %689 = vmatprep.subr.bf16.mxu0 0
      %690 = vmatpush1.bf16.msra.mxu0 0
      %691 = vmatprep.subr.bf16.mxu0 0
      %692 = vmatpush1.bf16.msra.mxu0 0
      %693 = vmatprep.subr.bf16.mxu0 0
      %694 = vmatpush1.bf16.msra.mxu0 0
      %695 = vmatprep.subr.bf16.mxu0 0
      %696 = vmatpush1.bf16.msra.mxu0 0
      %697 = vmatprep.subr.bf16.mxu0 0
      %698 = vmatpush1.bf16.msra.mxu0 0
      %699 = vmatprep.subr.bf16.mxu0 0
      %700 = vmatpush1.bf16.msra.mxu0 0
      %701 = vmatprep.mubr.bf16.mxu0 0
      %702 = vmatmul.mubr.bf16.gmra.mrb[0].mxu0 %v590
      %v703 = vpop.f32.mrb[0].mxu0
      %v704 = vadd.f32 %v619, %v703
      %v705 = vpop.f32.mrb[0].mxu0
      %v706 = vpop.f32.mrb[0].mxu0
      %v707 = vadd.f32 %v619, %v706
      %v708 = vpop.f32.mrb[0].mxu0
      %709 = vmatprep.mubr.bf16.mxu0 0
      %710 = vmatmul.mubr.bf16.gmra.mrb[0].mxu0 %v591
      %v711 = vpop.f32.mrb[0].mxu0
      %v712 = vadd.f32 %v619, %v711
      %v713 = vpop.f32.mrb[0].mxu0
      %v714 = vpop.f32.mrb[0].mxu0
      %v715 = vadd.f32 %v619, %v714
      %v716 = vpop.f32.mrb[0].mxu0
      %717 = vmatprep.mubr.bf16.mxu0 0
      %718 = vmatmul.mubr.bf16.gmra.mrb[0].mxu0 %v592
      %v719 = vpop.f32.mrb[0].mxu0
      %v720 = vadd.f32 %v619, %v719
      %v721 = vpop.f32.mrb[0].mxu0
      %v722 = vpop.f32.mrb[0].mxu0
      %v723 = vadd.f32 %v619, %v722
      %v724 = vpop.f32.mrb[0].mxu0
      %725 = vmatprep.mubr.bf16.mxu0 0
      %726 = vmatmul.mubr.bf16.gmra.mrb[0].mxu0 %v593
      %v727 = vpop.f32.mrb[0].mxu0
      %v728 = vadd.f32 %v619, %v727
      %v729 = vpop.f32.mrb[0].mxu0
      %v730 = vpop.f32.mrb[0].mxu0
      %v731 = vadd.f32 %v619, %v730
      %v732 = vpop.f32.mrb[0].mxu0
      %733 = vmatprep.mubr.bf16.mxu0 0
      %734 = vmatmul.mubr.bf16.gmra.mrb[0].mxu0 %v594
      %v735 = vpop.f32.mrb[0].mxu0
      %v736 = vadd.f32 %v619, %v735
      %v737 = vpop.f32.mrb[0].mxu0
      %v738 = vpop.f32.mrb[0].mxu0
      %v739 = vadd.f32 %v619, %v738
      %v740 = vpop.f32.mrb[0].mxu0
      %741 = vmatprep.mubr.bf16.mxu0 0
      %742 = vmatmul.mubr.bf16.gmra.mrb[0].mxu0 %v595
      %v743 = vpop.f32.mrb[0].mxu0
      %v744 = vadd.f32 %v619, %v743
      %v745 = vpop.f32.mrb[0].mxu0
      %v746 = vpop.f32.mrb[0].mxu0
      %v747 = vadd.f32 %v619, %v746
      %v748 = vpop.f32.mrb[0].mxu0
      %749 = vmatprep.mubr.bf16.mxu0 0
      %750 = vmatmul.mubr.bf16.gmra.mrb[0].mxu0 %v596
      %v751 = vpop.f32.mrb[0].mxu0
      %v752 = vadd.f32 %v619, %v751
      %v753 = vpop.f32.mrb[0].mxu0
      %v754 = vpop.f32.mrb[0].mxu0
      %v755 = vadd.f32 %v619, %v754
      %v756 = vpop.f32.mrb[0].mxu0
      %757 = vmatprep.mubr.bf16.mxu0 0
      %758 = vmatmul.mubr.bf16.gmra.mrb[0].mxu0 %v597
      %v759 = vpop.f32.mrb[0].mxu0
      %v760 = vadd.f32 %v619, %v759
      %v761 = vpop.f32.mrb[0].mxu0
      %v762 = vpop.f32.mrb[0].mxu0
      %v763 = vadd.f32 %v619, %v762
      %v764 = vpop.f32.mrb[0].mxu0
      %765 = vdwg.mxu0
      %v766 = vmax.f32 %v704, 0.0
      %v767 = vmax.f32 %v707, 0.0
      %v768 = vmax.f32 %v712, 0.0
      %v769 = vmax.f32 %v715, 0.0
      %v770 = vmax.f32 %v720, 0.0
      %v771 = vmax.f32 %v723, 0.0
      %v772 = vmax.f32 %v728, 0.0
      %v773 = vmax.f32 %v731, 0.0
      %v774 = vmax.f32 %v736, 0.0
      %v775 = vmax.f32 %v739, 0.0
      %v776 = vmax.f32 %v744, 0.0
      %v777 = vmax.f32 %v747, 0.0
      %v778 = vmax.f32 %v752, 0.0
      %v779 = vmax.f32 %v755, 0.0
      %v780 = vmax.f32 %v760, 0.0
      %v781 = vmax.f32 %v763, 0.0
      %v782 = vpack.c.bf16 %v767, %v766
      %v783 = vpack.c.bf16 %v769, %v768
      %v784 = vpack.c.bf16 %v771, %v770
      %v785 = vpack.c.bf16 %v773, %v772
      %v786 = vpack.c.bf16 %v775, %v774
      %v787 = vpack.c.bf16 %v777, %v776
      %v788 = vpack.c.bf16 %v779, %v778
      %v789 = vpack.c.bf16 %v781, %v780
      %v790 = vld [vmem:[%s5] sm:$0xff]
      %v791 = vld [vmem:[%s5 + $0x8] sm:$0xff]
      %v792 = vld [vmem:[%s5 + $0x10] sm:$0xff]
      %v793 = vld [vmem:[%s5 + $0x18] sm:$0xff]
      %v794 = vld [vmem:[%s5 + $0x20] sm:$0xff]
      %v795 = vld [vmem:[%s5 + $0x28] sm:$0xff]
      %v796 = vld [vmem:[%s5 + $0x30] sm:$0xff]
      %v797 = vld [vmem:[%s5 + $0x38] sm:$0xff]
      %v798 = vld [vmem:[%s5 + $0x40] sm:$0xff]
      %v799 = vld [vmem:[%s5 + $0x48] sm:$0xff]
      %v800 = vld [vmem:[%s5 + $0x50] sm:$0xff]
      %v801 = vld [vmem:[%s5 + $0x58] sm:$0xff]
      %v802 = vld [vmem:[%s5 + $0x60] sm:$0xff]
      %v803 = vld [vmem:[%s5 + $0x68] sm:$0xff]
      %v804 = vld [vmem:[%s5 + $0x70] sm:$0xff]
      %v805 = vld [vmem:[%s5 + $0x78] sm:$0xff]
      %v806 = vld [vmem:[%s6] sm:$0x3]
      %v808 = vlaneseq
      %v809 = vshrl.u32 %v808, 7
      %v810 = vsub.s32 0, %v809
      %v811 = vrot.slane %v806, %v810
      %v812 = vlaneseq
      %v813 = vshrl.u32 %v812, 7
      %v814 = vsub.s32 1, %v813
      %v815 = vrot.slane %v806, %v814
      %v834 = vunpack.c.l.b16 %v790
      %v835 = vunpack.c.h.b16 %v790
      %v836 = vunpack.c.l.b16 %v791
      %v837 = vunpack.c.h.b16 %v791
      %v838 = vunpack.c.l.b16 %v792
      %v839 = vunpack.c.h.b16 %v792
      %v840 = vunpack.c.l.b16 %v793
      %v841 = vunpack.c.h.b16 %v793
      %v842 = vunpack.c.l.b16 %v794
      %v843 = vunpack.c.h.b16 %v794
      %v844 = vunpack.c.l.b16 %v795
      %v845 = vunpack.c.h.b16 %v795
      %v846 = vunpack.c.l.b16 %v796
      %v847 = vunpack.c.h.b16 %v796
      %v848 = vunpack.c.l.b16 %v797
      %v849 = vunpack.c.h.b16 %v797
      %v850 = vunpack.c.l.b16 %v798
      %v851 = vunpack.c.h.b16 %v798
      %v852 = vunpack.c.l.b16 %v799
      %v853 = vunpack.c.h.b16 %v799
      %v854 = vunpack.c.l.b16 %v800
      %v855 = vunpack.c.h.b16 %v800
      %v856 = vunpack.c.l.b16 %v801
      %v857 = vunpack.c.h.b16 %v801
      %v858 = vunpack.c.l.b16 %v802
      %v859 = vunpack.c.h.b16 %v802
      %v860 = vunpack.c.l.b16 %v803
      %v861 = vunpack.c.h.b16 %v803
      %v862 = vunpack.c.l.b16 %v804
      %v863 = vunpack.c.h.b16 %v804
      %v864 = vunpack.c.l.b16 %v805
      %v865 = vunpack.c.h.b16 %v805
      %v866 = vpack.c.b16 %v836, %v834
      %v867 = vpack.c.b16 %v837, %v835
      %v868 = vpack.c.b16 %v840, %v838
      %v869 = vpack.c.b16 %v841, %v839
      %v870 = vpack.c.b16 %v844, %v842
      %v871 = vpack.c.b16 %v845, %v843
      %v872 = vpack.c.b16 %v848, %v846
      %v873 = vpack.c.b16 %v849, %v847
      %v874 = vpack.c.b16 %v852, %v850
      %v875 = vpack.c.b16 %v853, %v851
      %v876 = vpack.c.b16 %v856, %v854
      %v877 = vpack.c.b16 %v857, %v855
      %v878 = vpack.c.b16 %v860, %v858
      %v879 = vpack.c.b16 %v861, %v859
      %v880 = vpack.c.b16 %v864, %v862
      %v881 = vpack.c.b16 %v865, %v863
      %898 = vmatprep.subr.bf16.mxu0 %v867
      %899 = vmatpush1.bf16.msra.mxu0 %v866
      %900 = vmatprep.subr.bf16.mxu0 %v869
      %901 = vmatpush1.bf16.msra.mxu0 %v868
      %902 = vmatprep.subr.bf16.mxu0 %v871
      %903 = vmatpush1.bf16.msra.mxu0 %v870
      %904 = vmatprep.subr.bf16.mxu0 %v873
      %905 = vmatpush1.bf16.msra.mxu0 %v872
      %906 = vmatprep.subr.bf16.mxu0 %v875
      %907 = vmatpush1.bf16.msra.mxu0 %v874
      %908 = vmatprep.subr.bf16.mxu0 %v877
      %909 = vmatpush1.bf16.msra.mxu0 %v876
      %910 = vmatprep.subr.bf16.mxu0 %v879
      %911 = vmatpush1.bf16.msra.mxu0 %v878
      %912 = vmatprep.subr.bf16.mxu0 %v881
      %913 = vmatpush1.bf16.msra.mxu0 %v880
      %914 = vmatprep.subr.bf16.mxu0 0
      %915 = vmatpush1.bf16.msra.mxu0 0
      %916 = vmatprep.subr.bf16.mxu0 0
      %917 = vmatpush1.bf16.msra.mxu0 0
      %918 = vmatprep.subr.bf16.mxu0 0
      %919 = vmatpush1.bf16.msra.mxu0 0
      %920 = vmatprep.subr.bf16.mxu0 0
      %921 = vmatpush1.bf16.msra.mxu0 0
      %922 = vmatprep.subr.bf16.mxu0 0
      %923 = vmatpush1.bf16.msra.mxu0 0
      %924 = vmatprep.subr.bf16.mxu0 0
      %925 = vmatpush1.bf16.msra.mxu0 0
      %926 = vmatprep.subr.bf16.mxu0 0
      %927 = vmatpush1.bf16.msra.mxu0 0
      %928 = vmatprep.subr.bf16.mxu0 0
      %929 = vmatpush1.bf16.msra.mxu0 0
      %930 = vmatprep.mubr.bf16.mxu0 0
      %931 = vmatmul.mubr.bf16.gmra.mrb[0].mxu0 %v782
      %v932 = vpop.f32.mrb[0].mxu0
      %v933 = vadd.f32 %v811, %v932
      %v934 = vpop.f32.mrb[0].mxu0
      %v935 = vadd.f32 %v815, %v934
      %v936 = vpop.f32.mrb[0].mxu0
      %v937 = vadd.f32 %v811, %v936
      %v938 = vpop.f32.mrb[0].mxu0
      %v939 = vadd.f32 %v815, %v938
      %940 = vmatprep.mubr.bf16.mxu0 0
      %941 = vmatmul.mubr.bf16.gmra.mrb[0].mxu0 %v783
      %v942 = vpop.f32.mrb[0].mxu0
      %v943 = vadd.f32 %v811, %v942
      %v944 = vpop.f32.mrb[0].mxu0
      %v945 = vadd.f32 %v815, %v944
      %v946 = vpop.f32.mrb[0].mxu0
      %v947 = vadd.f32 %v811, %v946
      %v948 = vpop.f32.mrb[0].mxu0
      %v949 = vadd.f32 %v815, %v948
      %950 = vmatprep.mubr.bf16.mxu0 0
      %951 = vmatmul.mubr.bf16.gmra.mrb[0].mxu0 %v784
      %v952 = vpop.f32.mrb[0].mxu0
      %v953 = vadd.f32 %v811, %v952
      %v954 = vpop.f32.mrb[0].mxu0
      %v955 = vadd.f32 %v815, %v954
      %v956 = vpop.f32.mrb[0].mxu0
      %v957 = vadd.f32 %v811, %v956
      %v958 = vpop.f32.mrb[0].mxu0
      %v959 = vadd.f32 %v815, %v958
      %960 = vmatprep.mubr.bf16.mxu0 0
      %961 = vmatmul.mubr.bf16.gmra.mrb[0].mxu0 %v785
      %v962 = vpop.f32.mrb[0].mxu0
      %v963 = vadd.f32 %v811, %v962
      %v964 = vpop.f32.mrb[0].mxu0
      %v965 = vadd.f32 %v815, %v964
      %v966 = vpop.f32.mrb[0].mxu0
      %v967 = vadd.f32 %v811, %v966
      %v968 = vpop.f32.mrb[0].mxu0
      %v969 = vadd.f32 %v815, %v968
      %970 = vmatprep.mubr.bf16.mxu0 0
      %971 = vmatmul.mubr.bf16.gmra.mrb[0].mxu0 %v786
      %v972 = vpop.f32.mrb[0].mxu0
      %v973 = vadd.f32 %v811, %v972
      %v974 = vpop.f32.mrb[0].mxu0
      %v975 = vadd.f32 %v815, %v974
      %v976 = vpop.f32.mrb[0].mxu0
      %v977 = vadd.f32 %v811, %v976
      %v978 = vpop.f32.mrb[0].mxu0
      %v979 = vadd.f32 %v815, %v978
      %980 = vmatprep.mubr.bf16.mxu0 0
      %981 = vmatmul.mubr.bf16.gmra.mrb[0].mxu0 %v787
      %v982 = vpop.f32.mrb[0].mxu0
      %v983 = vadd.f32 %v811, %v982
      %v984 = vpop.f32.mrb[0].mxu0
      %v985 = vadd.f32 %v815, %v984
      %v986 = vpop.f32.mrb[0].mxu0
      %v987 = vadd.f32 %v811, %v986
      %v988 = vpop.f32.mrb[0].mxu0
      %v989 = vadd.f32 %v815, %v988
      %990 = vmatprep.mubr.bf16.mxu0 0
      %991 = vmatmul.mubr.bf16.gmra.mrb[0].mxu0 %v788
      %v992 = vpop.f32.mrb[0].mxu0
      %v993 = vadd.f32 %v811, %v992
      %v994 = vpop.f32.mrb[0].mxu0
      %v995 = vadd.f32 %v815, %v994
      %v996 = vpop.f32.mrb[0].mxu0
      %v997 = vadd.f32 %v811, %v996
      %v998 = vpop.f32.mrb[0].mxu0
      %v999 = vadd.f32 %v815, %v998
      %1000 = vmatprep.mubr.bf16.mxu0 0
      %1001 = vmatmul.mubr.bf16.gmra.mrb[0].mxu0 %v789
      %v1002 = vpop.f32.mrb[0].mxu0
      %v1003 = vadd.f32 %v811, %v1002
      %v1004 = vpop.f32.mrb[0].mxu0
      %v1005 = vadd.f32 %v815, %v1004
      %v1006 = vpop.f32.mrb[0].mxu0
      %v1007 = vadd.f32 %v811, %v1006
      %v1008 = vpop.f32.mrb[0].mxu0
      %v1009 = vadd.f32 %v815, %v1008
      %1010 = vdwg.mxu0
      %v1011 = vmax.f32 %v933, 0.0
      %v1012 = vmax.f32 %v935, 0.0
      %v1013 = vmax.f32 %v937, 0.0
      %v1014 = vmax.f32 %v939, 0.0
      %v1015 = vmax.f32 %v943, 0.0
      %v1016 = vmax.f32 %v945, 0.0
      %v1017 = vmax.f32 %v947, 0.0
      %v1018 = vmax.f32 %v949, 0.0
      %v1019 = vmax.f32 %v953, 0.0
      %v1020 = vmax.f32 %v955, 0.0
      %v1021 = vmax.f32 %v957, 0.0
      %v1022 = vmax.f32 %v959, 0.0
      %v1023 = vmax.f32 %v963, 0.0
      %v1024 = vmax.f32 %v965, 0.0
      %v1025 = vmax.f32 %v967, 0.0
      %v1026 = vmax.f32 %v969, 0.0
      %v1027 = vmax.f32 %v973, 0.0
      %v1028 = vmax.f32 %v975, 0.0
      %v1029 = vmax.f32 %v977, 0.0
      %v1030 = vmax.f32 %v979, 0.0
      %v1031 = vmax.f32 %v983, 0.0
      %v1032 = vmax.f32 %v985, 0.0
      %v1033 = vmax.f32 %v987, 0.0
      %v1034 = vmax.f32 %v989, 0.0
      %v1035 = vmax.f32 %v993, 0.0
      %v1036 = vmax.f32 %v995, 0.0
      %v1037 = vmax.f32 %v997, 0.0
      %v1038 = vmax.f32 %v999, 0.0
      %v1039 = vmax.f32 %v1003, 0.0
      %v1040 = vmax.f32 %v1005, 0.0
      %v1041 = vmax.f32 %v1007, 0.0
      %v1042 = vmax.f32 %v1009, 0.0
      %v1043 = vmax.f32 %v1011, %v1013
      %v1044 = vrot.slane %v1043, 4
      %v1045 = vmax.f32 %v1043, %v1044
      %v1046 = vrot.slane %v1045, 2
      %v1047 = vmax.f32 %v1045, %v1046
      %v1048 = vrot.slane %v1047, 1
      %v1049 = vmax.f32 %v1047, %v1048
      %v1050 = vmax.f32 %v1012, %v1014
      %v1051 = vrot.slane %v1050, 4
      %v1052 = vmax.f32 %v1050, %v1051
      %v1053 = vrot.slane %v1052, 2
      %v1054 = vmax.f32 %v1052, %v1053
      %v1055 = vrot.slane %v1054, 1
      %v1056 = vmax.f32 %v1054, %v1055
      %v1057 = vmax.f32 %v1015, %v1017
      %v1058 = vrot.slane %v1057, 4
      %v1059 = vmax.f32 %v1057, %v1058
      %v1060 = vrot.slane %v1059, 2
      %v1061 = vmax.f32 %v1059, %v1060
      %v1062 = vrot.slane %v1061, 1
      %v1063 = vmax.f32 %v1061, %v1062
      %v1064 = vmax.f32 %v1016, %v1018
      %v1065 = vrot.slane %v1064, 4
      %v1066 = vmax.f32 %v1064, %v1065
      %v1067 = vrot.slane %v1066, 2
      %v1068 = vmax.f32 %v1066, %v1067
      %v1069 = vrot.slane %v1068, 1
      %v1070 = vmax.f32 %v1068, %v1069
      %v1071 = vmax.f32 %v1019, %v1021
      %v1072 = vrot.slane %v1071, 4
      %v1073 = vmax.f32 %v1071, %v1072
      %v1074 = vrot.slane %v1073, 2
      %v1075 = vmax.f32 %v1073, %v1074
      %v1076 = vrot.slane %v1075, 1
      %v1077 = vmax.f32 %v1075, %v1076
      %v1078 = vmax.f32 %v1020, %v1022
      %v1079 = vrot.slane %v1078, 4
      %v1080 = vmax.f32 %v1078, %v1079
      %v1081 = vrot.slane %v1080, 2
      %v1082 = vmax.f32 %v1080, %v1081
      %v1083 = vrot.slane %v1082, 1
      %v1084 = vmax.f32 %v1082, %v1083
      %v1085 = vmax.f32 %v1023, %v1025
      %v1086 = vrot.slane %v1085, 4
      %v1087 = vmax.f32 %v1085, %v1086
      %v1088 = vrot.slane %v1087, 2
      %v1089 = vmax.f32 %v1087, %v1088
      %v1090 = vrot.slane %v1089, 1
      %v1091 = vmax.f32 %v1089, %v1090
      %v1092 = vmax.f32 %v1024, %v1026
      %v1093 = vrot.slane %v1092, 4
      %v1094 = vmax.f32 %v1092, %v1093
      %v1095 = vrot.slane %v1094, 2
      %v1096 = vmax.f32 %v1094, %v1095
      %v1097 = vrot.slane %v1096, 1
      %v1098 = vmax.f32 %v1096, %v1097
      %v1099 = vmax.f32 %v1027, %v1029
      %v1100 = vrot.slane %v1099, 4
      %v1101 = vmax.f32 %v1099, %v1100
      %v1102 = vrot.slane %v1101, 2
      %v1103 = vmax.f32 %v1101, %v1102
      %v1104 = vrot.slane %v1103, 1
      %v1105 = vmax.f32 %v1103, %v1104
      %v1106 = vmax.f32 %v1028, %v1030
      %v1107 = vrot.slane %v1106, 4
      %v1108 = vmax.f32 %v1106, %v1107
      %v1109 = vrot.slane %v1108, 2
      %v1110 = vmax.f32 %v1108, %v1109
      %v1111 = vrot.slane %v1110, 1
      %v1112 = vmax.f32 %v1110, %v1111
      %v1113 = vmax.f32 %v1031, %v1033
      %v1114 = vrot.slane %v1113, 4
      %v1115 = vmax.f32 %v1113, %v1114
      %v1116 = vrot.slane %v1115, 2
      %v1117 = vmax.f32 %v1115, %v1116
      %v1118 = vrot.slane %v1117, 1
      %v1119 = vmax.f32 %v1117, %v1118
      %v1120 = vmax.f32 %v1032, %v1034
      %v1121 = vrot.slane %v1120, 4
      %v1122 = vmax.f32 %v1120, %v1121
      %v1123 = vrot.slane %v1122, 2
      %v1124 = vmax.f32 %v1122, %v1123
      %v1125 = vrot.slane %v1124, 1
      %v1126 = vmax.f32 %v1124, %v1125
      %v1127 = vmax.f32 %v1035, %v1037
      %v1128 = vrot.slane %v1127, 4
      %v1129 = vmax.f32 %v1127, %v1128
      %v1130 = vrot.slane %v1129, 2
      %v1131 = vmax.f32 %v1129, %v1130
      %v1132 = vrot.slane %v1131, 1
      %v1133 = vmax.f32 %v1131, %v1132
      %v1134 = vmax.f32 %v1036, %v1038
      %v1135 = vrot.slane %v1134, 4
      %v1136 = vmax.f32 %v1134, %v1135
      %v1137 = vrot.slane %v1136, 2
      %v1138 = vmax.f32 %v1136, %v1137
      %v1139 = vrot.slane %v1138, 1
      %v1140 = vmax.f32 %v1138, %v1139
      %v1141 = vmax.f32 %v1039, %v1041
      %v1142 = vrot.slane %v1141, 4
      %v1143 = vmax.f32 %v1141, %v1142
      %v1144 = vrot.slane %v1143, 2
      %v1145 = vmax.f32 %v1143, %v1144
      %v1146 = vrot.slane %v1145, 1
      %v1147 = vmax.f32 %v1145, %v1146
      %v1148 = vmax.f32 %v1040, %v1042
      %v1149 = vrot.slane %v1148, 4
      %v1150 = vmax.f32 %v1148, %v1149
      %v1151 = vrot.slane %v1150, 2
      %v1152 = vmax.f32 %v1150, %v1151
      %v1153 = vrot.slane %v1152, 1
      %v1154 = vmax.f32 %v1152, %v1153
      %vm1171 = vcmask 1041409
      %v1172 = vsel %vm1171, %v1063, %v1049
      %vm1173 = vcmask 1042434
      %v1174 = vsel %vm1173, %v1077, %v1172
      %vm1175 = vcmask 1043459
      %v1176 = vsel %vm1175, %v1091, %v1174
      %vm1177 = vcmask 1044484
      %v1178 = vsel %vm1177, %v1105, %v1176
      %vm1179 = vcmask 1045509
      %v1180 = vsel %vm1179, %v1119, %v1178
      %vm1181 = vcmask 1046534
      %v1182 = vsel %vm1181, %v1133, %v1180
      %vm1183 = vcmask 1047559
      %v1184 = vsel %vm1183, %v1147, %v1182
      %v1185 = vsel %vm1171, %v1070, %v1056
      %v1186 = vsel %vm1173, %v1084, %v1185
      %v1187 = vsel %vm1175, %v1098, %v1186
      %v1188 = vsel %vm1177, %v1112, %v1187
      %v1189 = vsel %vm1179, %v1126, %v1188
      %v1190 = vsel %vm1181, %v1140, %v1189
      %v1191 = vsel %vm1183, %v1154, %v1190
      %1194 = vst [vmem:[%s283] sm:$0xff] %v1184
      %1195 = vst [vmem:[%s283 + $0x8] sm:$0xff] %v1191
      %p1196 = scmp.lt.s32.totalorder %s18, 1
      %s1197 = scalar_select %p1196, %s18, 1
      %s1198 = smul.addr %s1197, 2
      %s1199 = smul.addr %s1198, 8
      %s1200 = scalar_lea.vmem %s7, %s1199
      // Predicated region
      $region49: #{pointnet_plus_forward.7} parent=47 // pred_check
        %p1201 = pneg %p188
      $region50: #{pointnet_plus_forward.7} parent=47 // pred_check_branch
        %1203 = sbr.rel (%p1201) target = $region52
      $region51: #{pointnet_plus_forward.7} parent=47 // pred_region
        _
      $region52: #{pointnet_plus_forward.7} parent=47 // pred_fallthru
        _
    $region48: #{pointnet_plus_forward.7} parent=5 // pred_fallthru
      _
    %p1204 = scmp.le.s32.totalorder 2, %s13
    // Predicated region
    $region53: #{pointnet_plus_forward.7} parent=5 // pred_check
      %p1205 = pneg %p1204
    $region54: #{pointnet_plus_forward.7} parent=5 // pred_check_branch
      %1207 = sbr.rel (%p1205) target = $region56
    $region55: #{pointnet_plus_forward.7} parent=5 // pred_region
      %s1208 = ssub.s32 %s13, 2
      // Predicated region
      $region57: #{pointnet_plus_forward.7} parent=55 // pred_check
        %p1209 = pneg %p194
      $region58: #{pointnet_plus_forward.7} parent=55 // pred_check_branch
        %1211 = sbr.rel (%p1209) target = $region60
      $region59: #{pointnet_plus_forward.7} parent=55 // pred_region
        %p1212 = scmp.lt.s32.totalorder %s19, 1
        %s1213 = scalar_select %p1212, %s19, 1
        %s1214 = smul.addr %s1213, 2
        %s1215 = smul.addr %s1214, 8
        %s1216 = scalar_lea.vmem %s7, %s1215
      $region60: #{pointnet_plus_forward.7} parent=55 // pred_fallthru
        _
    $region56: #{pointnet_plus_forward.7} parent=5 // pred_fallthru
      _
  $region6: #{pointnet_plus_forward.7} parent=0 // loop_footer
    %s17 = sadd.s32 1, %s13
  $region7: #{pointnet_plus_forward.7} parent=0 // loop_footer_branch
    %12 = sbr.rel target = $region3
  $region8: #{pointnet_plus_forward.7} parent=0 // loop_exit
    _

// kernel: pointnet_plus_forward.9
$region0: #{pointnet_plus_forward.9}
  #allocation0 [shape = 'u32[]', space=smem, size = 0x4, offset = 0x4, fixed_abs, tag = 'smem constant byte address 0x4 - core index']
  #allocation1 [shape = 'u32[144,128]{1,0:T(1,128)}', space=vmem, size = 0x12000, scoped, tag = 'internal scratch']
  %s0 = inlined_call_operand.vmem [shape: bf16[16,1280], index: 0, kind: input, shape index: {}]
  %s1 = inlined_call_operand.vmem [shape: bf16[1280,256], index: 1, kind: input, shape index: {}]
  %s2 = inlined_call_operand.vmem [shape: f32[1,256], index: 2, kind: input, shape index: {}]
  %s3 = inlined_call_operand.vmem [shape: bf16[256,256], index: 3, kind: input, shape index: {}]
  %s4 = inlined_call_operand.vmem [shape: f32[1,256], index: 4, kind: input, shape index: {}]
  %s5 = inlined_call_operand.vmem [shape: f32[16,256], index: 5, kind: output, shape index: {}]
  %s6 = sld [smem:[#allocation0]]
  $region53: #{pointnet_plus_forward.9} parent=0
    _
  %s8 = ssub.s32 1, %s6
  %s9 = scalar_select 0, %s8, %s6
  loop: start=0, step=1, limit=4
  $region2: #{pointnet_plus_forward.9} parent=0 // loop_pre_header
    _
  $region3: #{pointnet_plus_forward.9} parent=0 // loop_header
    %s11 = sphi 0, %s15
    %p12 = scmp.ge.s32.totalorder %s11, 4
    %s21 = sphi 0, %s23
    %s24 = sphi 0, %s21
    %s25 = sphi 0, %s24
    %s41 = sphi 0, %s25
    %s45 = sphi 0, %s45
    %s47 = sphi 0, %s45
    %s48 = sphi 0, %s47
    %s62 = sphi 0, %s48
    %s66 = sphi 0, %s66
    %s68 = sphi 0, %s66
    %s69 = sphi 0, %s68
    %s83 = sphi 0, %s69
    %s87 = sphi 0, %s87
    %s89 = sphi 0, %s87
    %s90 = sphi 0, %s89
    %s104 = sphi 0, %s90
    %s108 = sphi 0, %s108
    %s110 = sphi 0, %s108
    %s111 = sphi 0, %s110
    %s125 = sphi 0, %s111
    %s131 = sphi 0, %s133
    %s134 = sphi 0, %s131
    %s135 = sphi 0, %s134
    %s151 = sphi 0, %s135
  $region4: #{pointnet_plus_forward.9} parent=0 // loop_header_branch
    %14 = sbr.rel (%p12) target = $region8
  $region5: #{pointnet_plus_forward.9} parent=0 // loop_body
    %s16 = ssub.s32 %s11, 1
    %s17 = ssub.s32 %s11, 2
    %s18 = sadd.s32 %s11, 1
    %s19 = ssub.s32 %s11, %s18
    %p20 = scmp.eq.s32.totalorder %s19, 0
    %s22 = sadd.s32 %s21, 1
    %s23 = scalar_select %p20, %s21, %s22
    %p26 = pneg %p20
    %p27 = scmp.eq.s32.totalorder %s11, 1
    %p28 = por %p26, %p27
    %p29 = scmp.ne.s32.totalorder %s21, %s24
    %p30 = scmp.eq.s32.totalorder %s11, 0
    %p31 = por %p29, %p30
    %p32 = scmp.ne.s32.totalorder %s21, %s24
    %p33 = scmp.eq.s32.totalorder %s16, 1
    %p34 = por %p32, %p33
    %p35 = scmp.ne.s32.totalorder %s24, %s25
    %p36 = scmp.eq.s32.totalorder %s16, 0
    %p37 = por %p35, %p36
    %p38 = scmp.ne.s32.totalorder %s24, %s25
    %p39 = scmp.eq.s32.totalorder %s17, 1
    %p40 = por %p38, %p39
    %p42 = scmp.ne.s32.totalorder %s25, %s41
    %p43 = scmp.eq.s32.totalorder %s17, 0
    %p44 = por %p42, %p43
    %s46 = sadd.s32 %s45, 1
    %p49 = scmp.eq.s32.totalorder %s11, 1
    %p50 = scmp.ne.s32.totalorder %s45, %s47
    %p51 = scmp.eq.s32.totalorder %s11, 0
    %p52 = por %p50, %p51
    %p53 = scmp.ne.s32.totalorder %s45, %s47
    %p54 = scmp.eq.s32.totalorder %s16, 1
    %p55 = por %p53, %p54
    %p56 = scmp.ne.s32.totalorder %s47, %s48
    %p57 = scmp.eq.s32.totalorder %s16, 0
    %p58 = por %p56, %p57
    %p59 = scmp.ne.s32.totalorder %s47, %s48
    %p60 = scmp.eq.s32.totalorder %s17, 1
    %p61 = por %p59, %p60
    %p63 = scmp.ne.s32.totalorder %s48, %s62
    %p64 = scmp.eq.s32.totalorder %s17, 0
    %p65 = por %p63, %p64
    %s67 = sadd.s32 %s66, 1
    %p70 = scmp.eq.s32.totalorder %s11, 1
    %p71 = scmp.ne.s32.totalorder %s66, %s68
    %p72 = scmp.eq.s32.totalorder %s11, 0
    %p73 = por %p71, %p72
    %p74 = scmp.ne.s32.totalorder %s66, %s68
    %p75 = scmp.eq.s32.totalorder %s16, 1
    %p76 = por %p74, %p75
    %p77 = scmp.ne.s32.totalorder %s68, %s69
    %p78 = scmp.eq.s32.totalorder %s16, 0
    %p79 = por %p77, %p78
    %p80 = scmp.ne.s32.totalorder %s68, %s69
    %p81 = scmp.eq.s32.totalorder %s17, 1
    %p82 = por %p80, %p81
    %p84 = scmp.ne.s32.totalorder %s69, %s83
    %p85 = scmp.eq.s32.totalorder %s17, 0
    %p86 = por %p84, %p85
    %s88 = sadd.s32 %s87, 1
    %p91 = scmp.eq.s32.totalorder %s11, 1
    %p92 = scmp.ne.s32.totalorder %s87, %s89
    %p93 = scmp.eq.s32.totalorder %s11, 0
    %p94 = por %p92, %p93
    %p95 = scmp.ne.s32.totalorder %s87, %s89
    %p96 = scmp.eq.s32.totalorder %s16, 1
    %p97 = por %p95, %p96
    %p98 = scmp.ne.s32.totalorder %s89, %s90
    %p99 = scmp.eq.s32.totalorder %s16, 0
    %p100 = por %p98, %p99
    %p101 = scmp.ne.s32.totalorder %s89, %s90
    %p102 = scmp.eq.s32.totalorder %s17, 1
    %p103 = por %p101, %p102
    %p105 = scmp.ne.s32.totalorder %s90, %s104
    %p106 = scmp.eq.s32.totalorder %s17, 0
    %p107 = por %p105, %p106
    %s109 = sadd.s32 %s108, 1
    %p112 = scmp.eq.s32.totalorder %s11, 1
    %p113 = scmp.ne.s32.totalorder %s108, %s110
    %p114 = scmp.eq.s32.totalorder %s11, 0
    %p115 = por %p113, %p114
    %p116 = scmp.ne.s32.totalorder %s108, %s110
    %p117 = scmp.eq.s32.totalorder %s16, 1
    %p118 = por %p116, %p117
    %p119 = scmp.ne.s32.totalorder %s110, %s111
    %p120 = scmp.eq.s32.totalorder %s16, 0
    %p121 = por %p119, %p120
    %p122 = scmp.ne.s32.totalorder %s110, %s111
    %p123 = scmp.eq.s32.totalorder %s17, 1
    %p124 = por %p122, %p123
    %p126 = scmp.ne.s32.totalorder %s111, %s125
    %p127 = scmp.eq.s32.totalorder %s17, 0
    %p128 = por %p126, %p127
    %s129 = ssub.s32 %s11, %s18
    %p130 = scmp.eq.s32.totalorder %s129, 0
    %s132 = sadd.s32 %s131, 1
    %s133 = scalar_select %p130, %s131, %s132
    %p136 = pneg %p130
    %p137 = scmp.eq.s32.totalorder %s11, 1
    %p138 = por %p136, %p137
    %p139 = scmp.ne.s32.totalorder %s131, %s134
    %p140 = scmp.eq.s32.totalorder %s11, 0
    %p141 = por %p139, %p140
    %p142 = scmp.ne.s32.totalorder %s131, %s134
    %p143 = scmp.eq.s32.totalorder %s16, 1
    %p144 = por %p142, %p143
    %p145 = scmp.ne.s32.totalorder %s134, %s135
    %p146 = scmp.eq.s32.totalorder %s16, 0
    %p147 = por %p145, %p146
    %p148 = scmp.ne.s32.totalorder %s134, %s135
    %p149 = scmp.eq.s32.totalorder %s17, 1
    %p150 = por %p148, %p149
    %p152 = scmp.ne.s32.totalorder %s135, %s151
    %p153 = scmp.eq.s32.totalorder %s17, 0
    %p154 = por %p152, %p153
    %p155 = scmp.le.s32.totalorder 1, %s11
    %p156 = scmp.lt.s32.totalorder %s11, 3
    %p157 = pnand %p155, %p156
    %p158 = pneg %p157
    // Predicated region
    $region9: #{pointnet_plus_forward.9} parent=5 // pred_check
      _
    $region10: #{pointnet_plus_forward.9} parent=5 // pred_check_branch
      %160 = sbr.rel (%p157) target = $region12
    $region11: #{pointnet_plus_forward.9} parent=5 // pred_region
      %s161 = ssub.s32 %s11, 1
      // Predicated region
      $region13: #{pointnet_plus_forward.9} parent=11 // pred_check
        %p162 = pneg %p58
      $region14: #{pointnet_plus_forward.9} parent=11 // pred_check_branch
        %164 = sbr.rel (%p162) target = $region16
      $region15: #{pointnet_plus_forward.9} parent=11 // pred_region
        _
      $region16: #{pointnet_plus_forward.9} parent=11 // pred_fallthru
        _
      // Predicated region
      $region17: #{pointnet_plus_forward.9} parent=11 // pred_check
        %p165 = pneg %p79
      $region18: #{pointnet_plus_forward.9} parent=11 // pred_check_branch
        %167 = sbr.rel (%p165) target = $region20
      $region19: #{pointnet_plus_forward.9} parent=11 // pred_region
        _
      $region20: #{pointnet_plus_forward.9} parent=11 // pred_fallthru
        _
      // Predicated region
      $region21: #{pointnet_plus_forward.9} parent=11 // pred_check
        %p168 = pneg %p100
      $region22: #{pointnet_plus_forward.9} parent=11 // pred_check_branch
        %170 = sbr.rel (%p168) target = $region24
      $region23: #{pointnet_plus_forward.9} parent=11 // pred_region
        _
      $region24: #{pointnet_plus_forward.9} parent=11 // pred_fallthru
        _
      // Predicated region
      $region25: #{pointnet_plus_forward.9} parent=11 // pred_check
        %p171 = pneg %p121
      $region26: #{pointnet_plus_forward.9} parent=11 // pred_check_branch
        %173 = sbr.rel (%p171) target = $region28
      $region27: #{pointnet_plus_forward.9} parent=11 // pred_region
        _
      $region28: #{pointnet_plus_forward.9} parent=11 // pred_fallthru
        _
    $region12: #{pointnet_plus_forward.9} parent=5 // pred_fallthru
      _
    %p174 = scmp.lt.s32.totalorder %s11, 2
    // Predicated region
    $region29: #{pointnet_plus_forward.9} parent=5 // pred_check
      %p175 = pneg %p174
    $region30: #{pointnet_plus_forward.9} parent=5 // pred_check_branch
      %177 = sbr.rel (%p175) target = $region32
    $region31: #{pointnet_plus_forward.9} parent=5 // pred_region
      // Predicated region
      $region33: #{pointnet_plus_forward.9} parent=31 // pred_check
        %p178 = pneg %p31
      $region34: #{pointnet_plus_forward.9} parent=31 // pred_check_branch
        %180 = sbr.rel (%p178) target = $region36
      $region35: #{pointnet_plus_forward.9} parent=31 // pred_region
        %p181 = scmp.lt.s32.totalorder %s11, 1
        %s182 = scalar_select %p181, %s11, 1
        %s183 = smul.addr %s182, 10
        %s184 = smul.addr %s183, 4
        %s185 = scalar_lea.vmem %s0, %s184
      $region36: #{pointnet_plus_forward.9} parent=31 // pred_fallthru
        _
    $region32: #{pointnet_plus_forward.9} parent=5 // pred_fallthru
      _
    %p186 = scmp.le.s32.totalorder 1, %s11
    %p187 = scmp.lt.s32.totalorder %s11, 3
    %p188 = pnand %p186, %p187
    %p189 = pneg %p188
    // Predicated region
    $region37: #{pointnet_plus_forward.9} parent=5 // pred_check
      _
    $region38: #{pointnet_plus_forward.9} parent=5 // pred_check_branch
      %191 = sbr.rel (%p188) target = $region40
    $region39: #{pointnet_plus_forward.9} parent=5 // pred_region
      %s192 = ssub.s32 %s11, 1
      %p193 = scmp.lt.s32.totalorder %s16, 1
      %s194 = scalar_select %p193, %s16, 1
      %s195 = smul.addr %s194, 10
      %s196 = smul.addr %s195, 4
      %s197 = scalar_lea.vmem %s0, %s196
      %p198 = pneg %p37
      %p199 = pneg %p34
      %p200 = pneg %p58
      %p201 = pneg %p55
      %p202 = pneg %p79
      %p203 = pneg %p76
      %p204 = pneg %p100
      %p205 = pneg %p97
      %p206 = pneg %p121
      %p207 = pneg %p118
      %p208 = pneg %p147
      %p209 = pneg %p144
      %p210 = scmp.lt.s32.totalorder %s16, 1
      %s211 = scalar_select %p210, %s16, 1
      %s212 = smul.addr %s211, 2
      %s213 = smul.addr %s212, 8
      %s214 = scalar_lea.vmem %s5, %s213
      %p215 = scmp.lt.s32.totalorder %s16, 1
      %s216 = scalar_select %p215, %s16, 1
      %s217 = smul.addr %s216, 10
      %s218 = smul.addr %s217, 4
      %s219 = scalar_lea.vmem %s0, %s218
      %p220 = scmp.lt.s32.totalorder %s16, 1
      %s221 = scalar_select %p220, %s16, 1
      %s222 = smul.addr %s221, 2
      %s223 = smul.addr %s222, 8
      %s224 = scalar_lea.vmem %s5, %s223
      %v225 = vld [vmem:[%s219] sm:$0xff]
      %v226 = vld [vmem:[%s219 + $0x8] sm:$0xff]
      %v227 = vld [vmem:[%s219 + $0x10] sm:$0xff]
      %v228 = vld [vmem:[%s219 + $0x18] sm:$0xff]
      %v229 = vld [vmem:[%s219 + $0x20] sm:$0xff]
      %v230 = vld [vmem:[%s1] sm:$0xff]
      %v231 = vld [vmem:[%s1 + $0x8] sm:$0xff]
      %v232 = vld [vmem:[%s1 + $0x10] sm:$0xff]
      %v233 = vld [vmem:[%s1 + $0x18] sm:$0xff]
      %v234 = vld [vmem:[%s1 + $0x20] sm:$0xff]
      %v235 = vld [vmem:[%s1 + $0x28] sm:$0xff]
      %v236 = vld [vmem:[%s1 + $0x30] sm:$0xff]
      %v237 = vld [vmem:[%s1 + $0x38] sm:$0xff]
      %v238 = vld [vmem:[%s1 + $0x40] sm:$0xff]
      %v239 = vld [vmem:[%s1 + $0x48] sm:$0xff]
      %v240 = vld [vmem:[%s1 + $0x50] sm:$0xff]
      %v241 = vld [vmem:[%s1 + $0x58] sm:$0xff]
      %v242 = vld [vmem:[%s1 + $0x60] sm:$0xff]
      %v243 = vld [vmem:[%s1 + $0x68] sm:$0xff]
      %v244 = vld [vmem:[%s1 + $0x70] sm:$0xff]
      %v245 = vld [vmem:[%s1 + $0x78] sm:$0xff]
      %v246 = vld [vmem:[%s1 + $0x80] sm:$0xff]
      %v247 = vld [vmem:[%s1 + $0x88] sm:$0xff]
      %v248 = vld [vmem:[%s1 + $0x90] sm:$0xff]
      %v249 = vld [vmem:[%s1 + $0x98] sm:$0xff]
      %v250 = vld [vmem:[%s1 + $0xa0] sm:$0xff]
      %v251 = vld [vmem:[%s1 + $0xa8] sm:$0xff]
      %v252 = vld [vmem:[%s1 + $0xb0] sm:$0xff]
      %v253 = vld [vmem:[%s1 + $0xb8] sm:$0xff]
      %v254 = vld [vmem:[%s1 + $0xc0] sm:$0xff]
      %v255 = vld [vmem:[%s1 + $0xc8] sm:$0xff]
      %v256 = vld [vmem:[%s1 + $0xd0] sm:$0xff]
      %v257 = vld [vmem:[%s1 + $0xd8] sm:$0xff]
      %v258 = vld [vmem:[%s1 + $0xe0] sm:$0xff]
      %v259 = vld [vmem:[%s1 + $0xe8] sm:$0xff]
      %v260 = vld [vmem:[%s1 + $0xf0] sm:$0xff]
      %v261 = vld [vmem:[%s1 + $0xf8] sm:$0xff]
      %v262 = vld [vmem:[%s1 + $0x100] sm:$0xff]
      %v263 = vld [vmem:[%s1 + $0x108] sm:$0xff]
      %v264 = vld [vmem:[%s1 + $0x110] sm:$0xff]
      %v265 = vld [vmem:[%s1 + $0x118] sm:$0xff]
      %v266 = vld [vmem:[%s1 + $0x120] sm:$0xff]
      %v267 = vld [vmem:[%s1 + $0x128] sm:$0xff]
      %v268 = vld [vmem:[%s1 + $0x130] sm:$0xff]
      %v269 = vld [vmem:[%s1 + $0x138] sm:$0xff]
      %v270 = vld [vmem:[%s1 + $0x140] sm:$0xff]
      %v271 = vld [vmem:[%s1 + $0x148] sm:$0xff]
      %v272 = vld [vmem:[%s1 + $0x150] sm:$0xff]
      %v273 = vld [vmem:[%s1 + $0x158] sm:$0xff]
      %v274 = vld [vmem:[%s1 + $0x160] sm:$0xff]
      %v275 = vld [vmem:[%s1 + $0x168] sm:$0xff]
      %v276 = vld [vmem:[%s1 + $0x170] sm:$0xff]
      %v277 = vld [vmem:[%s1 + $0x178] sm:$0xff]
      %v278 = vld [vmem:[%s1 + $0x180] sm:$0xff]
      %v279 = vld [vmem:[%s1 + $0x188] sm:$0xff]
      %v280 = vld [vmem:[%s1 + $0x190] sm:$0xff]
      %v281 = vld [vmem:[%s1 + $0x198] sm:$0xff]
      %v282 = vld [vmem:[%s1 + $0x1a0] sm:$0xff]
      %v283 = vld [vmem:[%s1 + $0x1a8] sm:$0xff]
      %v284 = vld [vmem:[%s1 + $0x1b0] sm:$0xff]
      %v285 = vld [vmem:[%s1 + $0x1b8] sm:$0xff]
      %v286 = vld [vmem:[%s1 + $0x1c0] sm:$0xff]
      %v287 = vld [vmem:[%s1 + $0x1c8] sm:$0xff]
      %v288 = vld [vmem:[%s1 + $0x1d0] sm:$0xff]
      %v289 = vld [vmem:[%s1 + $0x1d8] sm:$0xff]
      %v290 = vld [vmem:[%s1 + $0x1e0] sm:$0xff]
      %v291 = vld [vmem:[%s1 + $0x1e8] sm:$0xff]
      %v292 = vld [vmem:[%s1 + $0x1f0] sm:$0xff]
      %v293 = vld [vmem:[%s1 + $0x1f8] sm:$0xff]
      %v294 = vld [vmem:[%s1 + $0x200] sm:$0xff]
      %v295 = vld [vmem:[%s1 + $0x208] sm:$0xff]
      %v296 = vld [vmem:[%s1 + $0x210] sm:$0xff]
      %v297 = vld [vmem:[%s1 + $0x218] sm:$0xff]
      %v298 = vld [vmem:[%s1 + $0x220] sm:$0xff]
      %v299 = vld [vmem:[%s1 + $0x228] sm:$0xff]
      %v300 = vld [vmem:[%s1 + $0x230] sm:$0xff]
      %v301 = vld [vmem:[%s1 + $0x238] sm:$0xff]
      %v302 = vld [vmem:[%s1 + $0x240] sm:$0xff]
      %v303 = vld [vmem:[%s1 + $0x248] sm:$0xff]
      %v304 = vld [vmem:[%s1 + $0x250] sm:$0xff]
      %v305 = vld [vmem:[%s1 + $0x258] sm:$0xff]
      %v306 = vld [vmem:[%s1 + $0x260] sm:$0xff]
      %v307 = vld [vmem:[%s1 + $0x268] sm:$0xff]
      %v308 = vld [vmem:[%s1 + $0x270] sm:$0xff]
      %v309 = vld [vmem:[%s1 + $0x278] sm:$0xff]
      %v310 = vld [vmem:[%s1 + $0x280] sm:$0xff]
      %v311 = vld [vmem:[%s1 + $0x288] sm:$0xff]
      %v312 = vld [vmem:[%s1 + $0x290] sm:$0xff]
      %v313 = vld [vmem:[%s1 + $0x298] sm:$0xff]
      %v314 = vld [vmem:[%s1 + $0x2a0] sm:$0xff]
      %v315 = vld [vmem:[%s1 + $0x2a8] sm:$0xff]
      %v316 = vld [vmem:[%s1 + $0x2b0] sm:$0xff]
      %v317 = vld [vmem:[%s1 + $0x2b8] sm:$0xff]
      %v318 = vld [vmem:[%s1 + $0x2c0] sm:$0xff]
      %v319 = vld [vmem:[%s1 + $0x2c8] sm:$0xff]
      %v320 = vld [vmem:[%s1 + $0x2d0] sm:$0xff]
      %v321 = vld [vmem:[%s1 + $0x2d8] sm:$0xff]
      %v322 = vld [vmem:[%s1 + $0x2e0] sm:$0xff]
      %v323 = vld [vmem:[%s1 + $0x2e8] sm:$0xff]
      %v324 = vld [vmem:[%s1 + $0x2f0] sm:$0xff]
      %v325 = vld [vmem:[%s1 + $0x2f8] sm:$0xff]
      %v326 = vld [vmem:[%s1 + $0x300] sm:$0xff]
      %v327 = vld [vmem:[%s1 + $0x308] sm:$0xff]
      %v328 = vld [vmem:[%s1 + $0x310] sm:$0xff]
      %v329 = vld [vmem:[%s1 + $0x318] sm:$0xff]
      %v330 = vld [vmem:[%s1 + $0x320] sm:$0xff]
      %v331 = vld [vmem:[%s1 + $0x328] sm:$0xff]
      %v332 = vld [vmem:[%s1 + $0x330] sm:$0xff]
      %v333 = vld [vmem:[%s1 + $0x338] sm:$0xff]
      %v334 = vld [vmem:[%s1 + $0x340] sm:$0xff]
      %v335 = vld [vmem:[%s1 + $0x348] sm:$0xff]
      %v336 = vld [vmem:[%s1 + $0x350] sm:$0xff]
      %v337 = vld [vmem:[%s1 + $0x358] sm:$0xff]
      %v338 = vld [vmem:[%s1 + $0x360] sm:$0xff]
      %v339 = vld [vmem:[%s1 + $0x368] sm:$0xff]
      %v340 = vld [vmem:[%s1 + $0x370] sm:$0xff]
      %v341 = vld [vmem:[%s1 + $0x378] sm:$0xff]
      %v342 = vld [vmem:[%s1 + $0x380] sm:$0xff]
      %v343 = vld [vmem:[%s1 + $0x388] sm:$0xff]
      %v344 = vld [vmem:[%s1 + $0x390] sm:$0xff]
      %v345 = vld [vmem:[%s1 + $0x398] sm:$0xff]
      %v346 = vld [vmem:[%s1 + $0x3a0] sm:$0xff]
      %v347 = vld [vmem:[%s1 + $0x3a8] sm:$0xff]
      %v348 = vld [vmem:[%s1 + $0x3b0] sm:$0xff]
      %v349 = vld [vmem:[%s1 + $0x3b8] sm:$0xff]
      %v350 = vld [vmem:[%s1 + $0x3c0] sm:$0xff]
      %v351 = vld [vmem:[%s1 + $0x3c8] sm:$0xff]
      %v352 = vld [vmem:[%s1 + $0x3d0] sm:$0xff]
      %v353 = vld [vmem:[%s1 + $0x3d8] sm:$0xff]
      %v354 = vld [vmem:[%s1 + $0x3e0] sm:$0xff]
      %v355 = vld [vmem:[%s1 + $0x3e8] sm:$0xff]
      %v356 = vld [vmem:[%s1 + $0x3f0] sm:$0xff]
      %v357 = vld [vmem:[%s1 + $0x3f8] sm:$0xff]
      %v358 = vld [vmem:[%s1 + $0x400] sm:$0xff]
      %v359 = vld [vmem:[%s1 + $0x408] sm:$0xff]
      %v360 = vld [vmem:[%s1 + $0x410] sm:$0xff]
      %v361 = vld [vmem:[%s1 + $0x418] sm:$0xff]
      %v362 = vld [vmem:[%s1 + $0x420] sm:$0xff]
      %v363 = vld [vmem:[%s1 + $0x428] sm:$0xff]
      %v364 = vld [vmem:[%s1 + $0x430] sm:$0xff]
      %v365 = vld [vmem:[%s1 + $0x438] sm:$0xff]
      %v366 = vld [vmem:[%s1 + $0x440] sm:$0xff]
      %v367 = vld [vmem:[%s1 + $0x448] sm:$0xff]
      %v368 = vld [vmem:[%s1 + $0x450] sm:$0xff]
      %v369 = vld [vmem:[%s1 + $0x458] sm:$0xff]
      %v370 = vld [vmem:[%s1 + $0x460] sm:$0xff]
      %v371 = vld [vmem:[%s1 + $0x468] sm:$0xff]
      %v372 = vld [vmem:[%s1 + $0x470] sm:$0xff]
      %v373 = vld [vmem:[%s1 + $0x478] sm:$0xff]
      %v374 = vld [vmem:[%s1 + $0x480] sm:$0xff]
      %v375 = vld [vmem:[%s1 + $0x488] sm:$0xff]
      %v376 = vld [vmem:[%s1 + $0x490] sm:$0xff]
      %v377 = vld [vmem:[%s1 + $0x498] sm:$0xff]
      %v378 = vld [vmem:[%s1 + $0x4a0] sm:$0xff]
      %v379 = vld [vmem:[%s1 + $0x4a8] sm:$0xff]
      %v380 = vld [vmem:[%s1 + $0x4b0] sm:$0xff]
      %v381 = vld [vmem:[%s1 + $0x4b8] sm:$0xff]
      %v382 = vld [vmem:[%s1 + $0x4c0] sm:$0xff]
      %v383 = vld [vmem:[%s1 + $0x4c8] sm:$0xff]
      %v384 = vld [vmem:[%s1 + $0x4d0] sm:$0xff]
      %v385 = vld [vmem:[%s1 + $0x4d8] sm:$0xff]
      %v386 = vld [vmem:[%s1 + $0x4e0] sm:$0xff]
      %v387 = vld [vmem:[%s1 + $0x4e8] sm:$0xff]
      %v388 = vld [vmem:[%s1 + $0x4f0] sm:$0xff]
      %v389 = vld [vmem:[%s1 + $0x4f8] sm:$0xff]
      %v390 = vld [vmem:[%s2] sm:$0x3]
      %v392 = vlaneseq
      %v393 = vshrl.u32 %v392, 7
      %v394 = vsub.s32 0, %v393
      %v395 = vrot.slane %v390, %v394
      %v396 = vlaneseq
      %v397 = vshrl.u32 %v396, 7
      %v398 = vsub.s32 1, %v397
      %v399 = vrot.slane %v390, %v398
      %v407 = vunpack.c.l.b16 %v225
      %v408 = vunpack.c.h.b16 %v225
      %v409 = vunpack.c.l.b16 %v226
      %v410 = vunpack.c.h.b16 %v226
      %v411 = vunpack.c.l.b16 %v227
      %v412 = vunpack.c.h.b16 %v227
      %v413 = vunpack.c.l.b16 %v228
      %v414 = vunpack.c.h.b16 %v228
      %v415 = vunpack.c.l.b16 %v229
      %v416 = vunpack.c.h.b16 %v229
      %v417 = vpack.c.b16 %v407, %v407
      %v418 = vpack.c.b16 %v408, %v408
      %v419 = vpack.c.b16 %v409, %v409
      %v420 = vpack.c.b16 %v410, %v410
      %v421 = vpack.c.b16 %v411, %v411
      %v422 = vpack.c.b16 %v412, %v412
      %v423 = vpack.c.b16 %v413, %v413
      %v424 = vpack.c.b16 %v414, %v414
      %v425 = vpack.c.b16 %v415, %v415
      %v426 = vpack.c.b16 %v416, %v416
      %v597 = vunpack.c.l.b16 %v230
      %v598 = vunpack.c.h.b16 %v230
      %v599 = vunpack.c.l.b16 %v231
      %v600 = vunpack.c.h.b16 %v231
      %v601 = vunpack.c.l.b16 %v232
      %v602 = vunpack.c.h.b16 %v232
      %v603 = vunpack.c.l.b16 %v233
      %v604 = vunpack.c.h.b16 %v233
      %v605 = vunpack.c.l.b16 %v234
      %v606 = vunpack.c.h.b16 %v234
      %v607 = vunpack.c.l.b16 %v235
      %v608 = vunpack.c.h.b16 %v235
      %v609 = vunpack.c.l.b16 %v236
      %v610 = vunpack.c.h.b16 %v236
      %v611 = vunpack.c.l.b16 %v237
      %v612 = vunpack.c.h.b16 %v237
      %v613 = vunpack.c.l.b16 %v238
      %v614 = vunpack.c.h.b16 %v238
      %v615 = vunpack.c.l.b16 %v239
      %v616 = vunpack.c.h.b16 %v239
      %v617 = vunpack.c.l.b16 %v240
      %v618 = vunpack.c.h.b16 %v240
      %v619 = vunpack.c.l.b16 %v241
      %v620 = vunpack.c.h.b16 %v241
      %v621 = vunpack.c.l.b16 %v242
      %v622 = vunpack.c.h.b16 %v242
      %v623 = vunpack.c.l.b16 %v243
      %v624 = vunpack.c.h.b16 %v243
      %v625 = vunpack.c.l.b16 %v244
      %v626 = vunpack.c.h.b16 %v244
      %v627 = vunpack.c.l.b16 %v245
      %v628 = vunpack.c.h.b16 %v245
      %v629 = vunpack.c.l.b16 %v246
      %v630 = vunpack.c.h.b16 %v246
      %v631 = vunpack.c.l.b16 %v247
      %v632 = vunpack.c.h.b16 %v247
      %v633 = vunpack.c.l.b16 %v248
      %v634 = vunpack.c.h.b16 %v248
      %v635 = vunpack.c.l.b16 %v249
      %v636 = vunpack.c.h.b16 %v249
      %v637 = vunpack.c.l.b16 %v250
      %v638 = vunpack.c.h.b16 %v250
      %v639 = vunpack.c.l.b16 %v251
      %v640 = vunpack.c.h.b16 %v251
      %v641 = vunpack.c.l.b16 %v252
      %v642 = vunpack.c.h.b16 %v252
      %v643 = vunpack.c.l.b16 %v253
      %v644 = vunpack.c.h.b16 %v253
      %v645 = vunpack.c.l.b16 %v254
      %v646 = vunpack.c.h.b16 %v254
      %v647 = vunpack.c.l.b16 %v255
      %v648 = vunpack.c.h.b16 %v255
      %v649 = vunpack.c.l.b16 %v256
      %v650 = vunpack.c.h.b16 %v256
      %v651 = vunpack.c.l.b16 %v257
      %v652 = vunpack.c.h.b16 %v257
      %v653 = vunpack.c.l.b16 %v258
      %v654 = vunpack.c.h.b16 %v258
      %v655 = vunpack.c.l.b16 %v259
      %v656 = vunpack.c.h.b16 %v259
      %v657 = vunpack.c.l.b16 %v260
      %v658 = vunpack.c.h.b16 %v260
      %v659 = vunpack.c.l.b16 %v261
      %v660 = vunpack.c.h.b16 %v261
      %v661 = vunpack.c.l.b16 %v262
      %v662 = vunpack.c.h.b16 %v262
      %v663 = vunpack.c.l.b16 %v263
      %v664 = vunpack.c.h.b16 %v263
      %v665 = vunpack.c.l.b16 %v264
      %v666 = vunpack.c.h.b16 %v264
      %v667 = vunpack.c.l.b16 %v265
      %v668 = vunpack.c.h.b16 %v265
      %v669 = vunpack.c.l.b16 %v266
      %v670 = vunpack.c.h.b16 %v266
      %v671 = vunpack.c.l.b16 %v267
      %v672 = vunpack.c.h.b16 %v267
      %v673 = vunpack.c.l.b16 %v268
      %v674 = vunpack.c.h.b16 %v268
      %v675 = vunpack.c.l.b16 %v269
      %v676 = vunpack.c.h.b16 %v269
      %v677 = vunpack.c.l.b16 %v270
      %v678 = vunpack.c.h.b16 %v270
      %v679 = vunpack.c.l.b16 %v271
      %v680 = vunpack.c.h.b16 %v271
      %v681 = vunpack.c.l.b16 %v272
      %v682 = vunpack.c.h.b16 %v272
      %v683 = vunpack.c.l.b16 %v273
      %v684 = vunpack.c.h.b16 %v273
      %v685 = vunpack.c.l.b16 %v274
      %v686 = vunpack.c.h.b16 %v274
      %v687 = vunpack.c.l.b16 %v275
      %v688 = vunpack.c.h.b16 %v275
      %v689 = vunpack.c.l.b16 %v276
      %v690 = vunpack.c.h.b16 %v276
      %v691 = vunpack.c.l.b16 %v277
      %v692 = vunpack.c.h.b16 %v277
      %v693 = vunpack.c.l.b16 %v278
      %v694 = vunpack.c.h.b16 %v278
      %v695 = vunpack.c.l.b16 %v279
      %v696 = vunpack.c.h.b16 %v279
      %v697 = vunpack.c.l.b16 %v280
      %v698 = vunpack.c.h.b16 %v280
      %v699 = vunpack.c.l.b16 %v281
      %v700 = vunpack.c.h.b16 %v281
      %v701 = vunpack.c.l.b16 %v282
      %v702 = vunpack.c.h.b16 %v282
      %v703 = vunpack.c.l.b16 %v283
      %v704 = vunpack.c.h.b16 %v283
      %v705 = vunpack.c.l.b16 %v284
      %v706 = vunpack.c.h.b16 %v284
      %v707 = vunpack.c.l.b16 %v285
      %v708 = vunpack.c.h.b16 %v285
      %v709 = vunpack.c.l.b16 %v286
      %v710 = vunpack.c.h.b16 %v286
      %v711 = vunpack.c.l.b16 %v287
      %v712 = vunpack.c.h.b16 %v287
      %v713 = vunpack.c.l.b16 %v288
      %v714 = vunpack.c.h.b16 %v288
      %v715 = vunpack.c.l.b16 %v289
      %v716 = vunpack.c.h.b16 %v289
      %v717 = vunpack.c.l.b16 %v290
      %v718 = vunpack.c.h.b16 %v290
      %v719 = vunpack.c.l.b16 %v291
      %v720 = vunpack.c.h.b16 %v291
      %v721 = vunpack.c.l.b16 %v292
      %v722 = vunpack.c.h.b16 %v292
      %v723 = vunpack.c.l.b16 %v293
      %v724 = vunpack.c.h.b16 %v293
      %v725 = vunpack.c.l.b16 %v294
      %v726 = vunpack.c.h.b16 %v294
      %v727 = vunpack.c.l.b16 %v295
      %v728 = vunpack.c.h.b16 %v295
      %v729 = vunpack.c.l.b16 %v296
      %v730 = vunpack.c.h.b16 %v296
      %v731 = vunpack.c.l.b16 %v297
      %v732 = vunpack.c.h.b16 %v297
      %v733 = vunpack.c.l.b16 %v298
      %v734 = vunpack.c.h.b16 %v298
      %v735 = vunpack.c.l.b16 %v299
      %v736 = vunpack.c.h.b16 %v299
      %v737 = vunpack.c.l.b16 %v300
      %v738 = vunpack.c.h.b16 %v300
      %v739 = vunpack.c.l.b16 %v301
      %v740 = vunpack.c.h.b16 %v301
      %v741 = vunpack.c.l.b16 %v302
      %v742 = vunpack.c.h.b16 %v302
      %v743 = vunpack.c.l.b16 %v303
      %v744 = vunpack.c.h.b16 %v303
      %v745 = vunpack.c.l.b16 %v304
      %v746 = vunpack.c.h.b16 %v304
      %v747 = vunpack.c.l.b16 %v305
      %v748 = vunpack.c.h.b16 %v305
      %v749 = vunpack.c.l.b16 %v306
      %v750 = vunpack.c.h.b16 %v306
      %v751 = vunpack.c.l.b16 %v307
      %v752 = vunpack.c.h.b16 %v307
      %v753 = vunpack.c.l.b16 %v308
      %v754 = vunpack.c.h.b16 %v308
      %v755 = vunpack.c.l.b16 %v309
      %v756 = vunpack.c.h.b16 %v309
      %v757 = vunpack.c.l.b16 %v310
      %v758 = vunpack.c.h.b16 %v310
      %v759 = vunpack.c.l.b16 %v311
      %v760 = vunpack.c.h.b16 %v311
      %v761 = vunpack.c.l.b16 %v312
      %v762 = vunpack.c.h.b16 %v312
      %v763 = vunpack.c.l.b16 %v313
      %v764 = vunpack.c.h.b16 %v313
      %v765 = vunpack.c.l.b16 %v314
      %v766 = vunpack.c.h.b16 %v314
      %v767 = vunpack.c.l.b16 %v315
      %v768 = vunpack.c.h.b16 %v315
      %v769 = vunpack.c.l.b16 %v316
      %v770 = vunpack.c.h.b16 %v316
      %v771 = vunpack.c.l.b16 %v317
      %v772 = vunpack.c.h.b16 %v317
      %v773 = vunpack.c.l.b16 %v318
      %v774 = vunpack.c.h.b16 %v318
      %v775 = vunpack.c.l.b16 %v319
      %v776 = vunpack.c.h.b16 %v319
      %v777 = vunpack.c.l.b16 %v320
      %v778 = vunpack.c.h.b16 %v320
      %v779 = vunpack.c.l.b16 %v321
      %v780 = vunpack.c.h.b16 %v321
      %v781 = vunpack.c.l.b16 %v322
      %v782 = vunpack.c.h.b16 %v322
      %v783 = vunpack.c.l.b16 %v323
      %v784 = vunpack.c.h.b16 %v323
      %v785 = vunpack.c.l.b16 %v324
      %v786 = vunpack.c.h.b16 %v324
      %v787 = vunpack.c.l.b16 %v325
      %v788 = vunpack.c.h.b16 %v325
      %v789 = vunpack.c.l.b16 %v326
      %v790 = vunpack.c.h.b16 %v326
      %v791 = vunpack.c.l.b16 %v327
      %v792 = vunpack.c.h.b16 %v327
      %v793 = vunpack.c.l.b16 %v328
      %v794 = vunpack.c.h.b16 %v328
      %v795 = vunpack.c.l.b16 %v329
      %v796 = vunpack.c.h.b16 %v329
      %v797 = vunpack.c.l.b16 %v330
      %v798 = vunpack.c.h.b16 %v330
      %v799 = vunpack.c.l.b16 %v331
      %v800 = vunpack.c.h.b16 %v331
      %v801 = vunpack.c.l.b16 %v332
      %v802 = vunpack.c.h.b16 %v332
      %v803 = vunpack.c.l.b16 %v333
      %v804 = vunpack.c.h.b16 %v333
      %v805 = vunpack.c.l.b16 %v334
      %v806 = vunpack.c.h.b16 %v334
      %v807 = vunpack.c.l.b16 %v335
      %v808 = vunpack.c.h.b16 %v335
      %v809 = vunpack.c.l.b16 %v336
      %v810 = vunpack.c.h.b16 %v336
      %v811 = vunpack.c.l.b16 %v337
      %v812 = vunpack.c.h.b16 %v337
      %v813 = vunpack.c.l.b16 %v338
      %v814 = vunpack.c.h.b16 %v338
      %v815 = vunpack.c.l.b16 %v339
      %v816 = vunpack.c.h.b16 %v339
      %v817 = vunpack.c.l.b16 %v340
      %v818 = vunpack.c.h.b16 %v340
      %v819 = vunpack.c.l.b16 %v341
      %v820 = vunpack.c.h.b16 %v341
      %v821 = vunpack.c.l.b16 %v342
      %v822 = vunpack.c.h.b16 %v342
      %v823 = vunpack.c.l.b16 %v343
      %v824 = vunpack.c.h.b16 %v343
      %v825 = vunpack.c.l.b16 %v344
      %v826 = vunpack.c.h.b16 %v344
      %v827 = vunpack.c.l.b16 %v345
      %v828 = vunpack.c.h.b16 %v345
      %v829 = vunpack.c.l.b16 %v346
      %v830 = vunpack.c.h.b16 %v346
      %v831 = vunpack.c.l.b16 %v347
      %v832 = vunpack.c.h.b16 %v347
      %v833 = vunpack.c.l.b16 %v348
      %v834 = vunpack.c.h.b16 %v348
      %v835 = vunpack.c.l.b16 %v349
      %v836 = vunpack.c.h.b16 %v349
      %v837 = vunpack.c.l.b16 %v350
      %v838 = vunpack.c.h.b16 %v350
      %v839 = vunpack.c.l.b16 %v351
      %v840 = vunpack.c.h.b16 %v351
      %v841 = vunpack.c.l.b16 %v352
      %v842 = vunpack.c.h.b16 %v352
      %v843 = vunpack.c.l.b16 %v353
      %v844 = vunpack.c.h.b16 %v353
      %v845 = vunpack.c.l.b16 %v354
      %v846 = vunpack.c.h.b16 %v354
      %v847 = vunpack.c.l.b16 %v355
      %v848 = vunpack.c.h.b16 %v355
      %v849 = vunpack.c.l.b16 %v356
      %v850 = vunpack.c.h.b16 %v356
      %v851 = vunpack.c.l.b16 %v357
      %v852 = vunpack.c.h.b16 %v357
      %v853 = vunpack.c.l.b16 %v358
      %v854 = vunpack.c.h.b16 %v358
      %v855 = vunpack.c.l.b16 %v359
      %v856 = vunpack.c.h.b16 %v359
      %v857 = vunpack.c.l.b16 %v360
      %v858 = vunpack.c.h.b16 %v360
      %v859 = vunpack.c.l.b16 %v361
      %v860 = vunpack.c.h.b16 %v361
      %v861 = vunpack.c.l.b16 %v362
      %v862 = vunpack.c.h.b16 %v362
      %v863 = vunpack.c.l.b16 %v363
      %v864 = vunpack.c.h.b16 %v363
      %v865 = vunpack.c.l.b16 %v364
      %v866 = vunpack.c.h.b16 %v364
      %v867 = vunpack.c.l.b16 %v365
      %v868 = vunpack.c.h.b16 %v365
      %v869 = vunpack.c.l.b16 %v366
      %v870 = vunpack.c.h.b16 %v366
      %v871 = vunpack.c.l.b16 %v367
      %v872 = vunpack.c.h.b16 %v367
      %v873 = vunpack.c.l.b16 %v368
      %v874 = vunpack.c.h.b16 %v368
      %v875 = vunpack.c.l.b16 %v369
      %v876 = vunpack.c.h.b16 %v369
      %v877 = vunpack.c.l.b16 %v370
      %v878 = vunpack.c.h.b16 %v370
      %v879 = vunpack.c.l.b16 %v371
      %v880 = vunpack.c.h.b16 %v371
      %v881 = vunpack.c.l.b16 %v372
      %v882 = vunpack.c.h.b16 %v372
      %v883 = vunpack.c.l.b16 %v373
      %v884 = vunpack.c.h.b16 %v373
      %v885 = vunpack.c.l.b16 %v374
      %v886 = vunpack.c.h.b16 %v374
      %v887 = vunpack.c.l.b16 %v375
      %v888 = vunpack.c.h.b16 %v375
      %v889 = vunpack.c.l.b16 %v376
      %v890 = vunpack.c.h.b16 %v376
      %v891 = vunpack.c.l.b16 %v377
      %v892 = vunpack.c.h.b16 %v377
      %v893 = vunpack.c.l.b16 %v378
      %v894 = vunpack.c.h.b16 %v378
      %v895 = vunpack.c.l.b16 %v379
      %v896 = vunpack.c.h.b16 %v379
      %v897 = vunpack.c.l.b16 %v380
      %v898 = vunpack.c.h.b16 %v380
      %v899 = vunpack.c.l.b16 %v381
      %v900 = vunpack.c.h.b16 %v381
      %v901 = vunpack.c.l.b16 %v382
      %v902 = vunpack.c.h.b16 %v382
      %v903 = vunpack.c.l.b16 %v383
      %v904 = vunpack.c.h.b16 %v383
      %v905 = vunpack.c.l.b16 %v384
      %v906 = vunpack.c.h.b16 %v384
      %v907 = vunpack.c.l.b16 %v385
      %v908 = vunpack.c.h.b16 %v385
      %v909 = vunpack.c.l.b16 %v386
      %v910 = vunpack.c.h.b16 %v386
      %v911 = vunpack.c.l.b16 %v387
      %v912 = vunpack.c.h.b16 %v387
      %v913 = vunpack.c.l.b16 %v388
      %v914 = vunpack.c.h.b16 %v388
      %v915 = vunpack.c.l.b16 %v389
      %v916 = vunpack.c.h.b16 %v389
      %v917 = vpack.c.b16 %v599, %v597
      %v918 = vpack.c.b16 %v600, %v598
      %v919 = vpack.c.b16 %v603, %v601
      %v920 = vpack.c.b16 %v604, %v602
      %v921 = vpack.c.b16 %v607, %v605
      %v922 = vpack.c.b16 %v608, %v606
      %v923 = vpack.c.b16 %v611, %v609
      %v924 = vpack.c.b16 %v612, %v610
      %v925 = vpack.c.b16 %v615, %v613
      %v926 = vpack.c.b16 %v616, %v614
      %v927 = vpack.c.b16 %v619, %v617
      %v928 = vpack.c.b16 %v620, %v618
      %v929 = vpack.c.b16 %v623, %v621
      %v930 = vpack.c.b16 %v624, %v622
      %v931 = vpack.c.b16 %v627, %v625
      %v932 = vpack.c.b16 %v628, %v626
      %v933 = vpack.c.b16 %v631, %v629
      %v934 = vpack.c.b16 %v632, %v630
      %v935 = vpack.c.b16 %v635, %v633
      %v936 = vpack.c.b16 %v636, %v634
      %v937 = vpack.c.b16 %v639, %v637
      %v938 = vpack.c.b16 %v640, %v638
      %v939 = vpack.c.b16 %v643, %v641
      %v940 = vpack.c.b16 %v644, %v642
      %v941 = vpack.c.b16 %v647, %v645
      %v942 = vpack.c.b16 %v648, %v646
      %v943 = vpack.c.b16 %v651, %v649
      %v944 = vpack.c.b16 %v652, %v650
      %v945 = vpack.c.b16 %v655, %v653
      %v946 = vpack.c.b16 %v656, %v654
      %v947 = vpack.c.b16 %v659, %v657
      %v948 = vpack.c.b16 %v660, %v658
      %v949 = vpack.c.b16 %v663, %v661
      %v950 = vpack.c.b16 %v664, %v662
      %v951 = vpack.c.b16 %v667, %v665
      %v952 = vpack.c.b16 %v668, %v666
      %v953 = vpack.c.b16 %v671, %v669
      %v954 = vpack.c.b16 %v672, %v670
      %v955 = vpack.c.b16 %v675, %v673
      %v956 = vpack.c.b16 %v676, %v674
      %v957 = vpack.c.b16 %v679, %v677
      %v958 = vpack.c.b16 %v680, %v678
      %v959 = vpack.c.b16 %v683, %v681
      %v960 = vpack.c.b16 %v684, %v682
      %v961 = vpack.c.b16 %v687, %v685
      %v962 = vpack.c.b16 %v688, %v686
      %v963 = vpack.c.b16 %v691, %v689
      %v964 = vpack.c.b16 %v692, %v690
      %v965 = vpack.c.b16 %v695, %v693
      %v966 = vpack.c.b16 %v696, %v694
      %v967 = vpack.c.b16 %v699, %v697
      %v968 = vpack.c.b16 %v700, %v698
      %v969 = vpack.c.b16 %v703, %v701
      %v970 = vpack.c.b16 %v704, %v702
      %v971 = vpack.c.b16 %v707, %v705
      %v972 = vpack.c.b16 %v708, %v706
      %v973 = vpack.c.b16 %v711, %v709
      %v974 = vpack.c.b16 %v712, %v710
      %v975 = vpack.c.b16 %v715, %v713
      %v976 = vpack.c.b16 %v716, %v714
      %v977 = vpack.c.b16 %v719, %v717
      %v978 = vpack.c.b16 %v720, %v718
      %v979 = vpack.c.b16 %v723, %v721
      %v980 = vpack.c.b16 %v724, %v722
      %v981 = vpack.c.b16 %v727, %v725
      %v982 = vpack.c.b16 %v728, %v726
      %v983 = vpack.c.b16 %v731, %v729
      %v984 = vpack.c.b16 %v732, %v730
      %v985 = vpack.c.b16 %v735, %v733
      %v986 = vpack.c.b16 %v736, %v734
      %v987 = vpack.c.b16 %v739, %v737
      %v988 = vpack.c.b16 %v740, %v738
      %v989 = vpack.c.b16 %v743, %v741
      %v990 = vpack.c.b16 %v744, %v742
      %v991 = vpack.c.b16 %v747, %v745
      %v992 = vpack.c.b16 %v748, %v746
      %v993 = vpack.c.b16 %v751, %v749
      %v994 = vpack.c.b16 %v752, %v750
      %v995 = vpack.c.b16 %v755, %v753
      %v996 = vpack.c.b16 %v756, %v754
      %v997 = vpack.c.b16 %v759, %v757
      %v998 = vpack.c.b16 %v760, %v758
      %v999 = vpack.c.b16 %v763, %v761
      %v1000 = vpack.c.b16 %v764, %v762
      %v1001 = vpack.c.b16 %v767, %v765
      %v1002 = vpack.c.b16 %v768, %v766
      %v1003 = vpack.c.b16 %v771, %v769
      %v1004 = vpack.c.b16 %v772, %v770
      %v1005 = vpack.c.b16 %v775, %v773
      %v1006 = vpack.c.b16 %v776, %v774
      %v1007 = vpack.c.b16 %v779, %v777
      %v1008 = vpack.c.b16 %v780, %v778
      %v1009 = vpack.c.b16 %v783, %v781
      %v1010 = vpack.c.b16 %v784, %v782
      %v1011 = vpack.c.b16 %v787, %v785
      %v1012 = vpack.c.b16 %v788, %v786
      %v1013 = vpack.c.b16 %v791, %v789
      %v1014 = vpack.c.b16 %v792, %v790
      %v1015 = vpack.c.b16 %v795, %v793
      %v1016 = vpack.c.b16 %v796, %v794
      %v1017 = vpack.c.b16 %v799, %v797
      %v1018 = vpack.c.b16 %v800, %v798
      %v1019 = vpack.c.b16 %v803, %v801
      %v1020 = vpack.c.b16 %v804, %v802
      %v1021 = vpack.c.b16 %v807, %v805
      %v1022 = vpack.c.b16 %v808, %v806
      %v1023 = vpack.c.b16 %v811, %v809
      %v1024 = vpack.c.b16 %v812, %v810
      %v1025 = vpack.c.b16 %v815, %v813
      %v1026 = vpack.c.b16 %v816, %v814
      %v1027 = vpack.c.b16 %v819, %v817
      %v1028 = vpack.c.b16 %v820, %v818
      %v1029 = vpack.c.b16 %v823, %v821
      %v1030 = vpack.c.b16 %v824, %v822
      %v1031 = vpack.c.b16 %v827, %v825
      %v1032 = vpack.c.b16 %v828, %v826
      %v1033 = vpack.c.b16 %v831, %v829
      %v1034 = vpack.c.b16 %v832, %v830
      %v1035 = vpack.c.b16 %v835, %v833
      %v1036 = vpack.c.b16 %v836, %v834
      %v1037 = vpack.c.b16 %v839, %v837
      %v1038 = vpack.c.b16 %v840, %v838
      %v1039 = vpack.c.b16 %v843, %v841
      %v1040 = vpack.c.b16 %v844, %v842
      %v1041 = vpack.c.b16 %v847, %v845
      %v1042 = vpack.c.b16 %v848, %v846
      %v1043 = vpack.c.b16 %v851, %v849
      %v1044 = vpack.c.b16 %v852, %v850
      %v1045 = vpack.c.b16 %v855, %v853
      %v1046 = vpack.c.b16 %v856, %v854
      %v1047 = vpack.c.b16 %v859, %v857
      %v1048 = vpack.c.b16 %v860, %v858
      %v1049 = vpack.c.b16 %v863, %v861
      %v1050 = vpack.c.b16 %v864, %v862
      %v1051 = vpack.c.b16 %v867, %v865
      %v1052 = vpack.c.b16 %v868, %v866
      %v1053 = vpack.c.b16 %v871, %v869
      %v1054 = vpack.c.b16 %v872, %v870
      %v1055 = vpack.c.b16 %v875, %v873
      %v1056 = vpack.c.b16 %v876, %v874
      %v1057 = vpack.c.b16 %v879, %v877
      %v1058 = vpack.c.b16 %v880, %v878
      %v1059 = vpack.c.b16 %v883, %v881
      %v1060 = vpack.c.b16 %v884, %v882
      %v1061 = vpack.c.b16 %v887, %v885
      %v1062 = vpack.c.b16 %v888, %v886
      %v1063 = vpack.c.b16 %v891, %v889
      %v1064 = vpack.c.b16 %v892, %v890
      %v1065 = vpack.c.b16 %v895, %v893
      %v1066 = vpack.c.b16 %v896, %v894
      %v1067 = vpack.c.b16 %v899, %v897
      %v1068 = vpack.c.b16 %v900, %v898
      %v1069 = vpack.c.b16 %v903, %v901
      %v1070 = vpack.c.b16 %v904, %v902
      %v1071 = vpack.c.b16 %v907, %v905
      %v1072 = vpack.c.b16 %v908, %v906
      %v1073 = vpack.c.b16 %v911, %v909
      %v1074 = vpack.c.b16 %v912, %v910
      %v1075 = vpack.c.b16 %v915, %v913
      %v1076 = vpack.c.b16 %v916, %v914
      %1237 = vmatprep.subr.bf16.mxu0 %v918
      %1238 = vmatpush1.bf16.msra.mxu0 %v917
      %1239 = vmatprep.subr.bf16.mxu0 %v920
      %1240 = vmatpush1.bf16.msra.mxu0 %v919
      %1241 = vmatprep.subr.bf16.mxu0 %v922
      %1242 = vmatpush1.bf16.msra.mxu0 %v921
      %1243 = vmatprep.subr.bf16.mxu0 %v924
      %1244 = vmatpush1.bf16.msra.mxu0 %v923
      %1245 = vmatprep.subr.bf16.mxu0 %v926
      %1246 = vmatpush1.bf16.msra.mxu0 %v925
      %1247 = vmatprep.subr.bf16.mxu0 %v928
      %1248 = vmatpush1.bf16.msra.mxu0 %v927
      %1249 = vmatprep.subr.bf16.mxu0 %v930
      %1250 = vmatpush1.bf16.msra.mxu0 %v929
      %1251 = vmatprep.subr.bf16.mxu0 %v932
      %1252 = vmatpush1.bf16.msra.mxu0 %v931
      %1253 = vmatprep.subr.bf16.mxu0 %v934
      %1254 = vmatpush1.bf16.msra.mxu0 %v933
      %1255 = vmatprep.subr.bf16.mxu0 %v936
      %1256 = vmatpush1.bf16.msra.mxu0 %v935
      %1257 = vmatprep.subr.bf16.mxu0 %v938
      %1258 = vmatpush1.bf16.msra.mxu0 %v937
      %1259 = vmatprep.subr.bf16.mxu0 %v940
      %1260 = vmatpush1.bf16.msra.mxu0 %v939
      %1261 = vmatprep.subr.bf16.mxu0 %v942
      %1262 = vmatpush1.bf16.msra.mxu0 %v941
      %1263 = vmatprep.subr.bf16.mxu0 %v944
      %1264 = vmatpush1.bf16.msra.mxu0 %v943
      %1265 = vmatprep.subr.bf16.mxu0 %v946
      %1266 = vmatpush1.bf16.msra.mxu0 %v945
      %1267 = vmatprep.subr.bf16.mxu0 %v948
      %1268 = vmatpush1.bf16.msra.mxu0 %v947
      %1269 = vmatprep.mubr.bf16.mxu0 %v418
      %1270 = vmatmul.mubr.bf16.gmra.mrb[0].mxu0 %v417
      %v1271 = vpop.f32.mrb[0].mxu0
      %v1272 = vadd.f32 %v395, %v1271
      %v1273 = vpop.f32.mrb[0].mxu0
      %v1274 = vadd.f32 %v399, %v1273
      %v1275 = vpop.f32.mrb[0].mxu0
      %v1276 = vpop.f32.mrb[0].mxu0
      %1277 = vdwg.mxu0
      %1278 = vmatprep.subr.bf16.mxu0 %v950
      %1279 = vmatpush1.bf16.msra.mxu0 %v949
      %1280 = vmatprep.subr.bf16.mxu0 %v952
      %1281 = vmatpush1.bf16.msra.mxu0 %v951
      %1282 = vmatprep.subr.bf16.mxu0 %v954
      %1283 = vmatpush1.bf16.msra.mxu0 %v953
      %1284 = vmatprep.subr.bf16.mxu0 %v956
      %1285 = vmatpush1.bf16.msra.mxu0 %v955
      %1286 = vmatprep.subr.bf16.mxu0 %v958
      %1287 = vmatpush1.bf16.msra.mxu0 %v957
      %1288 = vmatprep.subr.bf16.mxu0 %v960
      %1289 = vmatpush1.bf16.msra.mxu0 %v959
      %1290 = vmatprep.subr.bf16.mxu0 %v962
      %1291 = vmatpush1.bf16.msra.mxu0 %v961
      %1292 = vmatprep.subr.bf16.mxu0 %v964
      %1293 = vmatpush1.bf16.msra.mxu0 %v963
      %1294 = vmatprep.subr.bf16.mxu0 %v966
      %1295 = vmatpush1.bf16.msra.mxu0 %v965
      %1296 = vmatprep.subr.bf16.mxu0 %v968
      %1297 = vmatpush1.bf16.msra.mxu0 %v967
      %1298 = vmatprep.subr.bf16.mxu0 %v970
      %1299 = vmatpush1.bf16.msra.mxu0 %v969
      %1300 = vmatprep.subr.bf16.mxu0 %v972
      %1301 = vmatpush1.bf16.msra.mxu0 %v971
      %1302 = vmatprep.subr.bf16.mxu0 %v974
      %1303 = vmatpush1.bf16.msra.mxu0 %v973
      %1304 = vmatprep.subr.bf16.mxu0 %v976
      %1305 = vmatpush1.bf16.msra.mxu0 %v975
      %1306 = vmatprep.subr.bf16.mxu0 %v978
      %1307 = vmatpush1.bf16.msra.mxu0 %v977
      %1308 = vmatprep.subr.bf16.mxu0 %v980
      %1309 = vmatpush1.bf16.msra.mxu0 %v979
      %1310 = vmatprep.mubr.bf16.mxu0 %v420
      %1311 = vmatmul.mubr.bf16.gmra.mrb[0].mxu0 %v419
      %v1312 = vpop.f32.mrb[0].mxu0
      %v1313 = vadd.f32 %v1272, %v1312
      %v1314 = vpop.f32.mrb[0].mxu0
      %v1315 = vadd.f32 %v1274, %v1314
      %v1316 = vpop.f32.mrb[0].mxu0
      %v1317 = vpop.f32.mrb[0].mxu0
      %1318 = vdwg.mxu0
      %1319 = vmatprep.subr.bf16.mxu0 %v982
      %1320 = vmatpush1.bf16.msra.mxu0 %v981
      %1321 = vmatprep.subr.bf16.mxu0 %v984
      %1322 = vmatpush1.bf16.msra.mxu0 %v983
      %1323 = vmatprep.subr.bf16.mxu0 %v986
      %1324 = vmatpush1.bf16.msra.mxu0 %v985
      %1325 = vmatprep.subr.bf16.mxu0 %v988
      %1326 = vmatpush1.bf16.msra.mxu0 %v987
      %1327 = vmatprep.subr.bf16.mxu0 %v990
      %1328 = vmatpush1.bf16.msra.mxu0 %v989
      %1329 = vmatprep.subr.bf16.mxu0 %v992
      %1330 = vmatpush1.bf16.msra.mxu0 %v991
      %1331 = vmatprep.subr.bf16.mxu0 %v994
      %1332 = vmatpush1.bf16.msra.mxu0 %v993
      %1333 = vmatprep.subr.bf16.mxu0 %v996
      %1334 = vmatpush1.bf16.msra.mxu0 %v995
      %1335 = vmatprep.subr.bf16.mxu0 %v998
      %1336 = vmatpush1.bf16.msra.mxu0 %v997
      %1337 = vmatprep.subr.bf16.mxu0 %v1000
      %1338 = vmatpush1.bf16.msra.mxu0 %v999
      %1339 = vmatprep.subr.bf16.mxu0 %v1002
      %1340 = vmatpush1.bf16.msra.mxu0 %v1001
      %1341 = vmatprep.subr.bf16.mxu0 %v1004
      %1342 = vmatpush1.bf16.msra.mxu0 %v1003
      %1343 = vmatprep.subr.bf16.mxu0 %v1006
      %1344 = vmatpush1.bf16.msra.mxu0 %v1005
      %1345 = vmatprep.subr.bf16.mxu0 %v1008
      %1346 = vmatpush1.bf16.msra.mxu0 %v1007
      %1347 = vmatprep.subr.bf16.mxu0 %v1010
      %1348 = vmatpush1.bf16.msra.mxu0 %v1009
      %1349 = vmatprep.subr.bf16.mxu0 %v1012
      %1350 = vmatpush1.bf16.msra.mxu0 %v1011
      %1351 = vmatprep.mubr.bf16.mxu0 %v422
      %1352 = vmatmul.mubr.bf16.gmra.mrb[0].mxu0 %v421
      %v1353 = vpop.f32.mrb[0].mxu0
      %v1354 = vadd.f32 %v1313, %v1353
      %v1355 = vpop.f32.mrb[0].mxu0
      %v1356 = vadd.f32 %v1315, %v1355
      %v1357 = vpop.f32.mrb[0].mxu0
      %v1358 = vpop.f32.mrb[0].mxu0
      %1359 = vdwg.mxu0
      %1360 = vmatprep.subr.bf16.mxu0 %v1014
      %1361 = vmatpush1.bf16.msra.mxu0 %v1013
      %1362 = vmatprep.subr.bf16.mxu0 %v1016
      %1363 = vmatpush1.bf16.msra.mxu0 %v1015
      %1364 = vmatprep.subr.bf16.mxu0 %v1018
      %1365 = vmatpush1.bf16.msra.mxu0 %v1017
      %1366 = vmatprep.subr.bf16.mxu0 %v1020
      %1367 = vmatpush1.bf16.msra.mxu0 %v1019
      %1368 = vmatprep.subr.bf16.mxu0 %v1022
      %1369 = vmatpush1.bf16.msra.mxu0 %v1021
      %1370 = vmatprep.subr.bf16.mxu0 %v1024
      %1371 = vmatpush1.bf16.msra.mxu0 %v1023
      %1372 = vmatprep.subr.bf16.mxu0 %v1026
      %1373 = vmatpush1.bf16.msra.mxu0 %v1025
      %1374 = vmatprep.subr.bf16.mxu0 %v1028
      %1375 = vmatpush1.bf16.msra.mxu0 %v1027
      %1376 = vmatprep.subr.bf16.mxu0 %v1030
      %1377 = vmatpush1.bf16.msra.mxu0 %v1029
      %1378 = vmatprep.subr.bf16.mxu0 %v1032
      %1379 = vmatpush1.bf16.msra.mxu0 %v1031
      %1380 = vmatprep.subr.bf16.mxu0 %v1034
      %1381 = vmatpush1.bf16.msra.mxu0 %v1033
      %1382 = vmatprep.subr.bf16.mxu0 %v1036
      %1383 = vmatpush1.bf16.msra.mxu0 %v1035
      %1384 = vmatprep.subr.bf16.mxu0 %v1038
      %1385 = vmatpush1.bf16.msra.mxu0 %v1037
      %1386 = vmatprep.subr.bf16.mxu0 %v1040
      %1387 = vmatpush1.bf16.msra.mxu0 %v1039
      %1388 = vmatprep.subr.bf16.mxu0 %v1042
      %1389 = vmatpush1.bf16.msra.mxu0 %v1041
      %1390 = vmatprep.subr.bf16.mxu0 %v1044
      %1391 = vmatpush1.bf16.msra.mxu0 %v1043
      %1392 = vmatprep.mubr.bf16.mxu0 %v424
      %1393 = vmatmul.mubr.bf16.gmra.mrb[0].mxu0 %v423
      %v1394 = vpop.f32.mrb[0].mxu0
      %v1395 = vadd.f32 %v1354, %v1394
      %v1396 = vpop.f32.mrb[0].mxu0
      %v1397 = vadd.f32 %v1356, %v1396
      %v1398 = vpop.f32.mrb[0].mxu0
      %v1399 = vpop.f32.mrb[0].mxu0
      %1400 = vdwg.mxu0
      %1401 = vmatprep.subr.bf16.mxu0 %v1046
      %1402 = vmatpush1.bf16.msra.mxu0 %v1045
      %1403 = vmatprep.subr.bf16.mxu0 %v1048
      %1404 = vmatpush1.bf16.msra.mxu0 %v1047
      %1405 = vmatprep.subr.bf16.mxu0 %v1050
      %1406 = vmatpush1.bf16.msra.mxu0 %v1049
      %1407 = vmatprep.subr.bf16.mxu0 %v1052
      %1408 = vmatpush1.bf16.msra.mxu0 %v1051
      %1409 = vmatprep.subr.bf16.mxu0 %v1054
      %1410 = vmatpush1.bf16.msra.mxu0 %v1053
      %1411 = vmatprep.subr.bf16.mxu0 %v1056
      %1412 = vmatpush1.bf16.msra.mxu0 %v1055
      %1413 = vmatprep.subr.bf16.mxu0 %v1058
      %1414 = vmatpush1.bf16.msra.mxu0 %v1057
      %1415 = vmatprep.subr.bf16.mxu0 %v1060
      %1416 = vmatpush1.bf16.msra.mxu0 %v1059
      %1417 = vmatprep.subr.bf16.mxu0 %v1062
      %1418 = vmatpush1.bf16.msra.mxu0 %v1061
      %1419 = vmatprep.subr.bf16.mxu0 %v1064
      %1420 = vmatpush1.bf16.msra.mxu0 %v1063
      %1421 = vmatprep.subr.bf16.mxu0 %v1066
      %1422 = vmatpush1.bf16.msra.mxu0 %v1065
      %1423 = vmatprep.subr.bf16.mxu0 %v1068
      %1424 = vmatpush1.bf16.msra.mxu0 %v1067
      %1425 = vmatprep.subr.bf16.mxu0 %v1070
      %1426 = vmatpush1.bf16.msra.mxu0 %v1069
      %1427 = vmatprep.subr.bf16.mxu0 %v1072
      %1428 = vmatpush1.bf16.msra.mxu0 %v1071
      %1429 = vmatprep.subr.bf16.mxu0 %v1074
      %1430 = vmatpush1.bf16.msra.mxu0 %v1073
      %1431 = vmatprep.subr.bf16.mxu0 %v1076
      %1432 = vmatpush1.bf16.msra.mxu0 %v1075
      %1433 = vmatprep.mubr.bf16.mxu0 %v426
      %1434 = vmatmul.mubr.bf16.gmra.mrb[0].mxu0 %v425
      %v1435 = vpop.f32.mrb[0].mxu0
      %v1436 = vadd.f32 %v1395, %v1435
      %v1437 = vpop.f32.mrb[0].mxu0
      %v1438 = vadd.f32 %v1397, %v1437
      %v1439 = vpop.f32.mrb[0].mxu0
      %v1440 = vpop.f32.mrb[0].mxu0
      %1441 = vdwg.mxu0
      %v1442 = vmax.f32 %v1436, 0.0
      %v1443 = vmax.f32 %v1438, 0.0
      %v1444 = vpack.c.bf16 %v1442, %v1442
      %v1445 = vpack.c.bf16 %v1443, %v1443
      %v1446 = vld [vmem:[%s3] sm:$0xff]
      %v1447 = vld [vmem:[%s3 + $0x8] sm:$0xff]
      %v1448 = vld [vmem:[%s3 + $0x10] sm:$0xff]
      %v1449 = vld [vmem:[%s3 + $0x18] sm:$0xff]
      %v1450 = vld [vmem:[%s3 + $0x20] sm:$0xff]
      %v1451 = vld [vmem:[%s3 + $0x28] sm:$0xff]
      %v1452 = vld [vmem:[%s3 + $0x30] sm:$0xff]
      %v1453 = vld [vmem:[%s3 + $0x38] sm:$0xff]
      %v1454 = vld [vmem:[%s3 + $0x40] sm:$0xff]
      %v1455 = vld [vmem:[%s3 + $0x48] sm:$0xff]
      %v1456 = vld [vmem:[%s3 + $0x50] sm:$0xff]
      %v1457 = vld [vmem:[%s3 + $0x58] sm:$0xff]
      %v1458 = vld [vmem:[%s3 + $0x60] sm:$0xff]
      %v1459 = vld [vmem:[%s3 + $0x68] sm:$0xff]
      %v1460 = vld [vmem:[%s3 + $0x70] sm:$0xff]
      %v1461 = vld [vmem:[%s3 + $0x78] sm:$0xff]
      %v1462 = vld [vmem:[%s3 + $0x80] sm:$0xff]
      %v1463 = vld [vmem:[%s3 + $0x88] sm:$0xff]
      %v1464 = vld [vmem:[%s3 + $0x90] sm:$0xff]
      %v1465 = vld [vmem:[%s3 + $0x98] sm:$0xff]
      %v1466 = vld [vmem:[%s3 + $0xa0] sm:$0xff]
      %v1467 = vld [vmem:[%s3 + $0xa8] sm:$0xff]
      %v1468 = vld [vmem:[%s3 + $0xb0] sm:$0xff]
      %v1469 = vld [vmem:[%s3 + $0xb8] sm:$0xff]
      %v1470 = vld [vmem:[%s3 + $0xc0] sm:$0xff]
      %v1471 = vld [vmem:[%s3 + $0xc8] sm:$0xff]
      %v1472 = vld [vmem:[%s3 + $0xd0] sm:$0xff]
      %v1473 = vld [vmem:[%s3 + $0xd8] sm:$0xff]
      %v1474 = vld [vmem:[%s3 + $0xe0] sm:$0xff]
      %v1475 = vld [vmem:[%s3 + $0xe8] sm:$0xff]
      %v1476 = vld [vmem:[%s3 + $0xf0] sm:$0xff]
      %v1477 = vld [vmem:[%s3 + $0xf8] sm:$0xff]
      %v1478 = vld [vmem:[%s4] sm:$0x3]
      %v1480 = vlaneseq
      %v1481 = vshrl.u32 %v1480, 7
      %v1482 = vsub.s32 0, %v1481
      %v1483 = vrot.slane %v1478, %v1482
      %v1484 = vlaneseq
      %v1485 = vshrl.u32 %v1484, 7
      %v1486 = vsub.s32 1, %v1485
      %v1487 = vrot.slane %v1478, %v1486
      %v1522 = vunpack.c.l.b16 %v1446
      %v1523 = vunpack.c.h.b16 %v1446
      %v1524 = vunpack.c.l.b16 %v1447
      %v1525 = vunpack.c.h.b16 %v1447
      %v1526 = vunpack.c.l.b16 %v1448
      %v1527 = vunpack.c.h.b16 %v1448
      %v1528 = vunpack.c.l.b16 %v1449
      %v1529 = vunpack.c.h.b16 %v1449
      %v1530 = vunpack.c.l.b16 %v1450
      %v1531 = vunpack.c.h.b16 %v1450
      %v1532 = vunpack.c.l.b16 %v1451
      %v1533 = vunpack.c.h.b16 %v1451
      %v1534 = vunpack.c.l.b16 %v1452
      %v1535 = vunpack.c.h.b16 %v1452
      %v1536 = vunpack.c.l.b16 %v1453
      %v1537 = vunpack.c.h.b16 %v1453
      %v1538 = vunpack.c.l.b16 %v1454
      %v1539 = vunpack.c.h.b16 %v1454
      %v1540 = vunpack.c.l.b16 %v1455
      %v1541 = vunpack.c.h.b16 %v1455
      %v1542 = vunpack.c.l.b16 %v1456
      %v1543 = vunpack.c.h.b16 %v1456
      %v1544 = vunpack.c.l.b16 %v1457
      %v1545 = vunpack.c.h.b16 %v1457
      %v1546 = vunpack.c.l.b16 %v1458
      %v1547 = vunpack.c.h.b16 %v1458
      %v1548 = vunpack.c.l.b16 %v1459
      %v1549 = vunpack.c.h.b16 %v1459
      %v1550 = vunpack.c.l.b16 %v1460
      %v1551 = vunpack.c.h.b16 %v1460
      %v1552 = vunpack.c.l.b16 %v1461
      %v1553 = vunpack.c.h.b16 %v1461
      %v1554 = vunpack.c.l.b16 %v1462
      %v1555 = vunpack.c.h.b16 %v1462
      %v1556 = vunpack.c.l.b16 %v1463
      %v1557 = vunpack.c.h.b16 %v1463
      %v1558 = vunpack.c.l.b16 %v1464
      %v1559 = vunpack.c.h.b16 %v1464
      %v1560 = vunpack.c.l.b16 %v1465
      %v1561 = vunpack.c.h.b16 %v1465
      %v1562 = vunpack.c.l.b16 %v1466
      %v1563 = vunpack.c.h.b16 %v1466
      %v1564 = vunpack.c.l.b16 %v1467
      %v1565 = vunpack.c.h.b16 %v1467
      %v1566 = vunpack.c.l.b16 %v1468
      %v1567 = vunpack.c.h.b16 %v1468
      %v1568 = vunpack.c.l.b16 %v1469
      %v1569 = vunpack.c.h.b16 %v1469
      %v1570 = vunpack.c.l.b16 %v1470
      %v1571 = vunpack.c.h.b16 %v1470
      %v1572 = vunpack.c.l.b16 %v1471
      %v1573 = vunpack.c.h.b16 %v1471
      %v1574 = vunpack.c.l.b16 %v1472
      %v1575 = vunpack.c.h.b16 %v1472
      %v1576 = vunpack.c.l.b16 %v1473
      %v1577 = vunpack.c.h.b16 %v1473
      %v1578 = vunpack.c.l.b16 %v1474
      %v1579 = vunpack.c.h.b16 %v1474
      %v1580 = vunpack.c.l.b16 %v1475
      %v1581 = vunpack.c.h.b16 %v1475
      %v1582 = vunpack.c.l.b16 %v1476
      %v1583 = vunpack.c.h.b16 %v1476
      %v1584 = vunpack.c.l.b16 %v1477
      %v1585 = vunpack.c.h.b16 %v1477
      %v1586 = vpack.c.b16 %v1524, %v1522
      %v1587 = vpack.c.b16 %v1525, %v1523
      %v1588 = vpack.c.b16 %v1528, %v1526
      %v1589 = vpack.c.b16 %v1529, %v1527
      %v1590 = vpack.c.b16 %v1532, %v1530
      %v1591 = vpack.c.b16 %v1533, %v1531
      %v1592 = vpack.c.b16 %v1536, %v1534
      %v1593 = vpack.c.b16 %v1537, %v1535
      %v1594 = vpack.c.b16 %v1540, %v1538
      %v1595 = vpack.c.b16 %v1541, %v1539
      %v1596 = vpack.c.b16 %v1544, %v1542
      %v1597 = vpack.c.b16 %v1545, %v1543
      %v1598 = vpack.c.b16 %v1548, %v1546
      %v1599 = vpack.c.b16 %v1549, %v1547
      %v1600 = vpack.c.b16 %v1552, %v1550
      %v1601 = vpack.c.b16 %v1553, %v1551
      %v1602 = vpack.c.b16 %v1556, %v1554
      %v1603 = vpack.c.b16 %v1557, %v1555
      %v1604 = vpack.c.b16 %v1560, %v1558
      %v1605 = vpack.c.b16 %v1561, %v1559
      %v1606 = vpack.c.b16 %v1564, %v1562
      %v1607 = vpack.c.b16 %v1565, %v1563
      %v1608 = vpack.c.b16 %v1568, %v1566
      %v1609 = vpack.c.b16 %v1569, %v1567
      %v1610 = vpack.c.b16 %v1572, %v1570
      %v1611 = vpack.c.b16 %v1573, %v1571
      %v1612 = vpack.c.b16 %v1576, %v1574
      %v1613 = vpack.c.b16 %v1577, %v1575
      %v1614 = vpack.c.b16 %v1580, %v1578
      %v1615 = vpack.c.b16 %v1581, %v1579
      %v1616 = vpack.c.b16 %v1584, %v1582
      %v1617 = vpack.c.b16 %v1585, %v1583
      %1650 = vmatprep.subr.bf16.mxu0 %v1587
      %1651 = vmatpush1.bf16.msra.mxu0 %v1586
      %1652 = vmatprep.subr.bf16.mxu0 %v1589
      %1653 = vmatpush1.bf16.msra.mxu0 %v1588
      %1654 = vmatprep.subr.bf16.mxu0 %v1591
      %1655 = vmatpush1.bf16.msra.mxu0 %v1590
      %1656 = vmatprep.subr.bf16.mxu0 %v1593
      %1657 = vmatpush1.bf16.msra.mxu0 %v1592
      %1658 = vmatprep.subr.bf16.mxu0 %v1595
      %1659 = vmatpush1.bf16.msra.mxu0 %v1594
      %1660 = vmatprep.subr.bf16.mxu0 %v1597
      %1661 = vmatpush1.bf16.msra.mxu0 %v1596
      %1662 = vmatprep.subr.bf16.mxu0 %v1599
      %1663 = vmatpush1.bf16.msra.mxu0 %v1598
      %1664 = vmatprep.subr.bf16.mxu0 %v1601
      %1665 = vmatpush1.bf16.msra.mxu0 %v1600
      %1666 = vmatprep.subr.bf16.mxu0 %v1603
      %1667 = vmatpush1.bf16.msra.mxu0 %v1602
      %1668 = vmatprep.subr.bf16.mxu0 %v1605
      %1669 = vmatpush1.bf16.msra.mxu0 %v1604
      %1670 = vmatprep.subr.bf16.mxu0 %v1607
      %1671 = vmatpush1.bf16.msra.mxu0 %v1606
      %1672 = vmatprep.subr.bf16.mxu0 %v1609
      %1673 = vmatpush1.bf16.msra.mxu0 %v1608
      %1674 = vmatprep.subr.bf16.mxu0 %v1611
      %1675 = vmatpush1.bf16.msra.mxu0 %v1610
      %1676 = vmatprep.subr.bf16.mxu0 %v1613
      %1677 = vmatpush1.bf16.msra.mxu0 %v1612
      %1678 = vmatprep.subr.bf16.mxu0 %v1615
      %1679 = vmatpush1.bf16.msra.mxu0 %v1614
      %1680 = vmatprep.subr.bf16.mxu0 %v1617
      %1681 = vmatpush1.bf16.msra.mxu0 %v1616
      %1682 = vmatprep.mubr.bf16.mxu0 %v1445
      %1683 = vmatmul.mubr.bf16.gmra.mrb[0].mxu0 %v1444
      %v1684 = vpop.f32.mrb[0].mxu0
      %v1685 = vadd.f32 %v1483, %v1684
      %v1686 = vpop.f32.mrb[0].mxu0
      %v1687 = vadd.f32 %v1487, %v1686
      %v1688 = vpop.f32.mrb[0].mxu0
      %v1689 = vpop.f32.mrb[0].mxu0
      %1690 = vdwg.mxu0
      %v1691 = vmax.f32 %v1685, 0.0
      %v1692 = vmax.f32 %v1687, 0.0
      %1693 = vst [vmem:[%s224] sm:$0xff] %v1691
      %1694 = vst [vmem:[%s224 + $0x8] sm:$0xff] %v1692
      %p1695 = scmp.lt.s32.totalorder %s16, 1
      %s1696 = scalar_select %p1695, %s16, 1
      %s1697 = smul.addr %s1696, 2
      %s1698 = smul.addr %s1697, 8
      %s1699 = scalar_lea.vmem %s5, %s1698
      // Predicated region
      $region41: #{pointnet_plus_forward.9} parent=39 // pred_check
        %p1700 = pneg %p144
      $region42: #{pointnet_plus_forward.9} parent=39 // pred_check_branch
        %1702 = sbr.rel (%p1700) target = $region44
      $region43: #{pointnet_plus_forward.9} parent=39 // pred_region
        _
      $region44: #{pointnet_plus_forward.9} parent=39 // pred_fallthru
        _
    $region40: #{pointnet_plus_forward.9} parent=5 // pred_fallthru
      _
    %p1703 = scmp.le.s32.totalorder 2, %s11
    // Predicated region
    $region45: #{pointnet_plus_forward.9} parent=5 // pred_check
      %p1704 = pneg %p1703
    $region46: #{pointnet_plus_forward.9} parent=5 // pred_check_branch
      %1706 = sbr.rel (%p1704) target = $region48
    $region47: #{pointnet_plus_forward.9} parent=5 // pred_region
      %s1707 = ssub.s32 %s11, 2
      // Predicated region
      $region49: #{pointnet_plus_forward.9} parent=47 // pred_check
        %p1708 = pneg %p150
      $region50: #{pointnet_plus_forward.9} parent=47 // pred_check_branch
        %1710 = sbr.rel (%p1708) target = $region52
      $region51: #{pointnet_plus_forward.9} parent=47 // pred_region
        %p1711 = scmp.lt.s32.totalorder %s17, 1
        %s1712 = scalar_select %p1711, %s17, 1
        %s1713 = smul.addr %s1712, 2
        %s1714 = smul.addr %s1713, 8
        %s1715 = scalar_lea.vmem %s5, %s1714
      $region52: #{pointnet_plus_forward.9} parent=47 // pred_fallthru
        _
    $region48: #{pointnet_plus_forward.9} parent=5 // pred_fallthru
      _
  $region6: #{pointnet_plus_forward.9} parent=0 // loop_footer
    %s15 = sadd.s32 1, %s11
  $region7: #{pointnet_plus_forward.9} parent=0 // loop_footer_branch
    %10 = sbr.rel target = $region3
  $region8: #{pointnet_plus_forward.9} parent=0 // loop_exit
    _

// kernel: pointnet_plus_forward.8
$region0: #{pointnet_plus_forward.8}
  #allocation0 [shape = 'u32[]', space=smem, size = 0x4, offset = 0x4, fixed_abs, tag = 'smem constant byte address 0x4 - core index']
  #allocation1 [shape = 'u32[144,128]{1,0:T(1,128)}', space=vmem, size = 0x12000, scoped, tag = 'internal scratch']
  %s0 = inlined_call_operand.vmem [shape: bf16[16,264], index: 0, kind: input, shape index: {}]
  %s1 = inlined_call_operand.vmem [shape: bf16[264,256], index: 1, kind: input, shape index: {}]
  %s2 = inlined_call_operand.vmem [shape: f32[1,256], index: 2, kind: input, shape index: {}]
  %s3 = inlined_call_operand.vmem [shape: bf16[256,512], index: 3, kind: input, shape index: {}]
  %s4 = inlined_call_operand.vmem [shape: f32[1,512], index: 4, kind: input, shape index: {}]
  %s5 = inlined_call_operand.vmem [shape: bf16[512,1024], index: 5, kind: input, shape index: {}]
  %s6 = inlined_call_operand.vmem [shape: f32[1,1024], index: 6, kind: input, shape index: {}]
  %s7 = inlined_call_operand.vmem [shape: f32[2,1024], index: 7, kind: output, shape index: {}]
  %s8 = sld [smem:[#allocation0]]
  $region38: #{pointnet_plus_forward.8} parent=0
    _
  %s10 = ssub.s32 1, %s8
  %s11 = scalar_select 0, %s10, %s8
  // Predicated region
  $region2: #{pointnet_plus_forward.8} parent=0 // pred_check
    _
  $region3: #{pointnet_plus_forward.8} parent=0 // pred_check_branch
    %13 = sbr.rel (0) target = $region5
  $region4: #{pointnet_plus_forward.8} parent=0 // pred_region
    _
  $region5: #{pointnet_plus_forward.8} parent=0 // pred_fallthru
    _
  // Predicated region
  $region6: #{pointnet_plus_forward.8} parent=0 // pred_check
    _
  $region7: #{pointnet_plus_forward.8} parent=0 // pred_check_branch
    %15 = sbr.rel (0) target = $region9
  $region8: #{pointnet_plus_forward.8} parent=0 // pred_region
    _
  $region9: #{pointnet_plus_forward.8} parent=0 // pred_fallthru
    _
  // Predicated region
  $region10: #{pointnet_plus_forward.8} parent=0 // pred_check
    _
  $region11: #{pointnet_plus_forward.8} parent=0 // pred_check_branch
    %17 = sbr.rel (0) target = $region13
  $region12: #{pointnet_plus_forward.8} parent=0 // pred_region
    _
  $region13: #{pointnet_plus_forward.8} parent=0 // pred_fallthru
    _
  // Predicated region
  $region14: #{pointnet_plus_forward.8} parent=0 // pred_check
    _
  $region15: #{pointnet_plus_forward.8} parent=0 // pred_check_branch
    %19 = sbr.rel (0) target = $region17
  $region16: #{pointnet_plus_forward.8} parent=0 // pred_region
    _
  $region17: #{pointnet_plus_forward.8} parent=0 // pred_fallthru
    _
  // Predicated region
  $region18: #{pointnet_plus_forward.8} parent=0 // pred_check
    _
  $region19: #{pointnet_plus_forward.8} parent=0 // pred_check_branch
    %21 = sbr.rel (0) target = $region21
  $region20: #{pointnet_plus_forward.8} parent=0 // pred_region
    _
  $region21: #{pointnet_plus_forward.8} parent=0 // pred_fallthru
    _
  // Predicated region
  $region22: #{pointnet_plus_forward.8} parent=0 // pred_check
    _
  $region23: #{pointnet_plus_forward.8} parent=0 // pred_check_branch
    %23 = sbr.rel (0) target = $region25
  $region24: #{pointnet_plus_forward.8} parent=0 // pred_region
    _
  $region25: #{pointnet_plus_forward.8} parent=0 // pred_fallthru
    _
  // Predicated region
  $region26: #{pointnet_plus_forward.8} parent=0 // pred_check
    _
  $region27: #{pointnet_plus_forward.8} parent=0 // pred_check_branch
    %25 = sbr.rel (0) target = $region29
  $region28: #{pointnet_plus_forward.8} parent=0 // pred_region
    _
  $region29: #{pointnet_plus_forward.8} parent=0 // pred_fallthru
    _
  %v27 = vld [vmem:[%s0] sm:$0xff]
  %v28 = vld [vmem:[%s0 + $0x8] sm:$0xf]
  %v29 = vld [vmem:[%s0 + $0xc] sm:$0xff]
  %v30 = vld [vmem:[%s0 + $0x14] sm:$0xf]
  %v31 = vld [vmem:[%s1] sm:$0xff]
  %v32 = vld [vmem:[%s1 + $0x8] sm:$0xff]
  %v33 = vld [vmem:[%s1 + $0x10] sm:$0xff]
  %v34 = vld [vmem:[%s1 + $0x18] sm:$0xff]
  %v35 = vld [vmem:[%s1 + $0x20] sm:$0xff]
  %v36 = vld [vmem:[%s1 + $0x28] sm:$0xff]
  %v37 = vld [vmem:[%s1 + $0x30] sm:$0xff]
  %v38 = vld [vmem:[%s1 + $0x38] sm:$0xff]
  %v39 = vld [vmem:[%s1 + $0x40] sm:$0xff]
  %v40 = vld [vmem:[%s1 + $0x48] sm:$0xff]
  %v41 = vld [vmem:[%s1 + $0x50] sm:$0xff]
  %v42 = vld [vmem:[%s1 + $0x58] sm:$0xff]
  %v43 = vld [vmem:[%s1 + $0x60] sm:$0xff]
  %v44 = vld [vmem:[%s1 + $0x68] sm:$0xff]
  %v45 = vld [vmem:[%s1 + $0x70] sm:$0xff]
  %v46 = vld [vmem:[%s1 + $0x78] sm:$0xff]
  %v47 = vld [vmem:[%s1 + $0x80] sm:$0xff]
  %v48 = vld [vmem:[%s1 + $0x88] sm:$0xff]
  %v49 = vld [vmem:[%s1 + $0x90] sm:$0xff]
  %v50 = vld [vmem:[%s1 + $0x98] sm:$0xff]
  %v51 = vld [vmem:[%s1 + $0xa0] sm:$0xff]
  %v52 = vld [vmem:[%s1 + $0xa8] sm:$0xff]
  %v53 = vld [vmem:[%s1 + $0xb0] sm:$0xff]
  %v54 = vld [vmem:[%s1 + $0xb8] sm:$0xff]
  %v55 = vld [vmem:[%s1 + $0xc0] sm:$0xff]
  %v56 = vld [vmem:[%s1 + $0xc8] sm:$0xff]
  %v57 = vld [vmem:[%s1 + $0xd0] sm:$0xff]
  %v58 = vld [vmem:[%s1 + $0xd8] sm:$0xff]
  %v59 = vld [vmem:[%s1 + $0xe0] sm:$0xff]
  %v60 = vld [vmem:[%s1 + $0xe8] sm:$0xff]
  %v61 = vld [vmem:[%s1 + $0xf0] sm:$0xff]
  %v62 = vld [vmem:[%s1 + $0xf8] sm:$0xff]
  %v63 = vld [vmem:[%s1 + $0x100] sm:$0xff]
  %v64 = vld [vmem:[%s2] sm:$0x3]
  %v66 = vlaneseq
  %v67 = vshrl.u32 %v66, 7
  %v68 = vsub.s32 0, %v67
  %v69 = vrot.slane %v64, %v68
  %v70 = vlaneseq
  %v71 = vshrl.u32 %v70, 7
  %v72 = vsub.s32 1, %v71
  %v73 = vrot.slane %v64, %v72
  %v80 = vunpack.c.l.b16 %v27
  %v81 = vunpack.c.h.b16 %v27
  %v82 = vunpack.c.l.b16 %v28
  %v83 = vunpack.c.l.b16 %v29
  %v84 = vunpack.c.h.b16 %v29
  %v85 = vunpack.c.l.b16 %v30
  %v86 = vpack.c.b16 %v83, %v80
  %v87 = vpack.c.b16 %v84, %v81
  %v88 = vpack.c.b16 %v85, %v82
  %v124 = vunpack.c.l.b16 %v31
  %v125 = vunpack.c.h.b16 %v31
  %v126 = vunpack.c.l.b16 %v32
  %v127 = vunpack.c.h.b16 %v32
  %v128 = vunpack.c.l.b16 %v33
  %v129 = vunpack.c.h.b16 %v33
  %v130 = vunpack.c.l.b16 %v34
  %v131 = vunpack.c.h.b16 %v34
  %v132 = vunpack.c.l.b16 %v35
  %v133 = vunpack.c.h.b16 %v35
  %v134 = vunpack.c.l.b16 %v36
  %v135 = vunpack.c.h.b16 %v36
  %v136 = vunpack.c.l.b16 %v37
  %v137 = vunpack.c.h.b16 %v37
  %v138 = vunpack.c.l.b16 %v38
  %v139 = vunpack.c.h.b16 %v38
  %v140 = vunpack.c.l.b16 %v39
  %v141 = vunpack.c.h.b16 %v39
  %v142 = vunpack.c.l.b16 %v40
  %v143 = vunpack.c.h.b16 %v40
  %v144 = vunpack.c.l.b16 %v41
  %v145 = vunpack.c.h.b16 %v41
  %v146 = vunpack.c.l.b16 %v42
  %v147 = vunpack.c.h.b16 %v42
  %v148 = vunpack.c.l.b16 %v43
  %v149 = vunpack.c.h.b16 %v43
  %v150 = vunpack.c.l.b16 %v44
  %v151 = vunpack.c.h.b16 %v44
  %v152 = vunpack.c.l.b16 %v45
  %v153 = vunpack.c.h.b16 %v45
  %v154 = vunpack.c.l.b16 %v46
  %v155 = vunpack.c.h.b16 %v46
  %v156 = vunpack.c.l.b16 %v47
  %v157 = vunpack.c.h.b16 %v47
  %v158 = vunpack.c.l.b16 %v48
  %v159 = vunpack.c.h.b16 %v48
  %v160 = vunpack.c.l.b16 %v49
  %v161 = vunpack.c.h.b16 %v49
  %v162 = vunpack.c.l.b16 %v50
  %v163 = vunpack.c.h.b16 %v50
  %v164 = vunpack.c.l.b16 %v51
  %v165 = vunpack.c.h.b16 %v51
  %v166 = vunpack.c.l.b16 %v52
  %v167 = vunpack.c.h.b16 %v52
  %v168 = vunpack.c.l.b16 %v53
  %v169 = vunpack.c.h.b16 %v53
  %v170 = vunpack.c.l.b16 %v54
  %v171 = vunpack.c.h.b16 %v54
  %v172 = vunpack.c.l.b16 %v55
  %v173 = vunpack.c.h.b16 %v55
  %v174 = vunpack.c.l.b16 %v56
  %v175 = vunpack.c.h.b16 %v56
  %v176 = vunpack.c.l.b16 %v57
  %v177 = vunpack.c.h.b16 %v57
  %v178 = vunpack.c.l.b16 %v58
  %v179 = vunpack.c.h.b16 %v58
  %v180 = vunpack.c.l.b16 %v59
  %v181 = vunpack.c.h.b16 %v59
  %v182 = vunpack.c.l.b16 %v60
  %v183 = vunpack.c.h.b16 %v60
  %v184 = vunpack.c.l.b16 %v61
  %v185 = vunpack.c.h.b16 %v61
  %v186 = vunpack.c.l.b16 %v62
  %v187 = vunpack.c.h.b16 %v62
  %v188 = vunpack.c.l.b16 %v63
  %v189 = vunpack.c.h.b16 %v63
  %v190 = vpack.c.b16 %v126, %v124
  %v191 = vpack.c.b16 %v127, %v125
  %v192 = vpack.c.b16 %v130, %v128
  %v193 = vpack.c.b16 %v131, %v129
  %v194 = vpack.c.b16 %v134, %v132
  %v195 = vpack.c.b16 %v135, %v133
  %v196 = vpack.c.b16 %v138, %v136
  %v197 = vpack.c.b16 %v139, %v137
  %v198 = vpack.c.b16 %v142, %v140
  %v199 = vpack.c.b16 %v143, %v141
  %v200 = vpack.c.b16 %v146, %v144
  %v201 = vpack.c.b16 %v147, %v145
  %v202 = vpack.c.b16 %v150, %v148
  %v203 = vpack.c.b16 %v151, %v149
  %v204 = vpack.c.b16 %v154, %v152
  %v205 = vpack.c.b16 %v155, %v153
  %v206 = vpack.c.b16 %v158, %v156
  %v207 = vpack.c.b16 %v159, %v157
  %v208 = vpack.c.b16 %v162, %v160
  %v209 = vpack.c.b16 %v163, %v161
  %v210 = vpack.c.b16 %v166, %v164
  %v211 = vpack.c.b16 %v167, %v165
  %v212 = vpack.c.b16 %v170, %v168
  %v213 = vpack.c.b16 %v171, %v169
  %v214 = vpack.c.b16 %v174, %v172
  %v215 = vpack.c.b16 %v175, %v173
  %v216 = vpack.c.b16 %v178, %v176
  %v217 = vpack.c.b16 %v179, %v177
  %v218 = vpack.c.b16 %v182, %v180
  %v219 = vpack.c.b16 %v183, %v181
  %v220 = vpack.c.b16 %v186, %v184
  %v221 = vpack.c.b16 %v187, %v185
  %v222 = vpack.c.b16 %v188, %v188
  %v223 = vpack.c.b16 %v189, %v189
  %vm256 = vcmask 64512
  %v258 = vsel %vm256, %v88, 0
  %vm260 = vcmask 1043456
  %v262 = vsel %vm260, %v222, 0
  %v265 = vsel %vm260, %v223, 0
  %267 = vmatprep.subr.bf16.mxu0 %v191
  %268 = vmatpush1.bf16.msra.mxu0 %v190
  %269 = vmatprep.subr.bf16.mxu0 %v193
  %270 = vmatpush1.bf16.msra.mxu0 %v192
  %271 = vmatprep.subr.bf16.mxu0 %v195
  %272 = vmatpush1.bf16.msra.mxu0 %v194
  %273 = vmatprep.subr.bf16.mxu0 %v197
  %274 = vmatpush1.bf16.msra.mxu0 %v196
  %275 = vmatprep.subr.bf16.mxu0 %v199
  %276 = vmatpush1.bf16.msra.mxu0 %v198
  %277 = vmatprep.subr.bf16.mxu0 %v201
  %278 = vmatpush1.bf16.msra.mxu0 %v200
  %279 = vmatprep.subr.bf16.mxu0 %v203
  %280 = vmatpush1.bf16.msra.mxu0 %v202
  %281 = vmatprep.subr.bf16.mxu0 %v205
  %282 = vmatpush1.bf16.msra.mxu0 %v204
  %283 = vmatprep.subr.bf16.mxu0 %v207
  %284 = vmatpush1.bf16.msra.mxu0 %v206
  %285 = vmatprep.subr.bf16.mxu0 %v209
  %286 = vmatpush1.bf16.msra.mxu0 %v208
  %287 = vmatprep.subr.bf16.mxu0 %v211
  %288 = vmatpush1.bf16.msra.mxu0 %v210
  %289 = vmatprep.subr.bf16.mxu0 %v213
  %290 = vmatpush1.bf16.msra.mxu0 %v212
  %291 = vmatprep.subr.bf16.mxu0 %v215
  %292 = vmatpush1.bf16.msra.mxu0 %v214
  %293 = vmatprep.subr.bf16.mxu0 %v217
  %294 = vmatpush1.bf16.msra.mxu0 %v216
  %295 = vmatprep.subr.bf16.mxu0 %v219
  %296 = vmatpush1.bf16.msra.mxu0 %v218
  %297 = vmatprep.subr.bf16.mxu0 %v221
  %298 = vmatpush1.bf16.msra.mxu0 %v220
  %299 = vmatprep.mubr.bf16.mxu0 %v87
  %300 = vmatmul.mubr.bf16.gmra.mrb[0].mxu0 %v86
  %v301 = vpop.f32.mrb[0].mxu0
  %v302 = vadd.f32 %v69, %v301
  %v303 = vpop.f32.mrb[0].mxu0
  %v304 = vadd.f32 %v73, %v303
  %v305 = vpop.f32.mrb[0].mxu0
  %v306 = vadd.f32 %v69, %v305
  %v307 = vpop.f32.mrb[0].mxu0
  %v308 = vadd.f32 %v73, %v307
  %309 = vdwg.mxu0
  %310 = vmatprep.subr.bf16.mxu0 %v265
  %311 = vmatpush1.bf16.msra.mxu0 %v262
  %312 = vmatprep.subr.bf16.mxu0 0
  %313 = vmatpush1.bf16.msra.mxu0 0
  %314 = vmatprep.subr.bf16.mxu0 0
  %315 = vmatpush1.bf16.msra.mxu0 0
  %316 = vmatprep.subr.bf16.mxu0 0
  %317 = vmatpush1.bf16.msra.mxu0 0
  %318 = vmatprep.subr.bf16.mxu0 0
  %319 = vmatpush1.bf16.msra.mxu0 0
  %320 = vmatprep.subr.bf16.mxu0 0
  %321 = vmatpush1.bf16.msra.mxu0 0
  %322 = vmatprep.subr.bf16.mxu0 0
  %323 = vmatpush1.bf16.msra.mxu0 0
  %324 = vmatprep.subr.bf16.mxu0 0
  %325 = vmatpush1.bf16.msra.mxu0 0
  %326 = vmatprep.subr.bf16.mxu0 0
  %327 = vmatpush1.bf16.msra.mxu0 0
  %328 = vmatprep.subr.bf16.mxu0 0
  %329 = vmatpush1.bf16.msra.mxu0 0
  %330 = vmatprep.subr.bf16.mxu0 0
  %331 = vmatpush1.bf16.msra.mxu0 0
  %332 = vmatprep.subr.bf16.mxu0 0
  %333 = vmatpush1.bf16.msra.mxu0 0
  %334 = vmatprep.subr.bf16.mxu0 0
  %335 = vmatpush1.bf16.msra.mxu0 0
  %336 = vmatprep.subr.bf16.mxu0 0
  %337 = vmatpush1.bf16.msra.mxu0 0
  %338 = vmatprep.subr.bf16.mxu0 0
  %339 = vmatpush1.bf16.msra.mxu0 0
  %340 = vmatprep.subr.bf16.mxu0 0
  %341 = vmatpush1.bf16.msra.mxu0 0
  %342 = vmatprep.mubr.bf16.mxu0 0
  %343 = vmatmul.mubr.bf16.gmra.mrb[0].mxu0 %v258
  %v344 = vpop.f32.mrb[0].mxu0
  %v345 = vadd.f32 %v302, %v344
  %v346 = vpop.f32.mrb[0].mxu0
  %v347 = vadd.f32 %v304, %v346
  %v348 = vpop.f32.mrb[0].mxu0
  %v349 = vadd.f32 %v306, %v348
  %v350 = vpop.f32.mrb[0].mxu0
  %v351 = vadd.f32 %v308, %v350
  %352 = vdwg.mxu0
  %v353 = vmax.f32 %v345, 0.0
  %v354 = vmax.f32 %v347, 0.0
  %v355 = vmax.f32 %v349, 0.0
  %v356 = vmax.f32 %v351, 0.0
  %v357 = vpack.c.bf16 %v355, %v353
  %v358 = vpack.c.bf16 %v356, %v354
  %v359 = vld [vmem:[%s3] sm:$0xff]
  %v360 = vld [vmem:[%s3 + $0x8] sm:$0xff]
  %v361 = vld [vmem:[%s3 + $0x10] sm:$0xff]
  %v362 = vld [vmem:[%s3 + $0x18] sm:$0xff]
  %v363 = vld [vmem:[%s3 + $0x20] sm:$0xff]
  %v364 = vld [vmem:[%s3 + $0x28] sm:$0xff]
  %v365 = vld [vmem:[%s3 + $0x30] sm:$0xff]
  %v366 = vld [vmem:[%s3 + $0x38] sm:$0xff]
  %v367 = vld [vmem:[%s3 + $0x40] sm:$0xff]
  %v368 = vld [vmem:[%s3 + $0x48] sm:$0xff]
  %v369 = vld [vmem:[%s3 + $0x50] sm:$0xff]
  %v370 = vld [vmem:[%s3 + $0x58] sm:$0xff]
  %v371 = vld [vmem:[%s3 + $0x60] sm:$0xff]
  %v372 = vld [vmem:[%s3 + $0x68] sm:$0xff]
  %v373 = vld [vmem:[%s3 + $0x70] sm:$0xff]
  %v374 = vld [vmem:[%s3 + $0x78] sm:$0xff]
  %v375 = vld [vmem:[%s3 + $0x80] sm:$0xff]
  %v376 = vld [vmem:[%s3 + $0x88] sm:$0xff]
  %v377 = vld [vmem:[%s3 + $0x90] sm:$0xff]
  %v378 = vld [vmem:[%s3 + $0x98] sm:$0xff]
  %v379 = vld [vmem:[%s3 + $0xa0] sm:$0xff]
  %v380 = vld [vmem:[%s3 + $0xa8] sm:$0xff]
  %v381 = vld [vmem:[%s3 + $0xb0] sm:$0xff]
  %v382 = vld [vmem:[%s3 + $0xb8] sm:$0xff]
  %v383 = vld [vmem:[%s3 + $0xc0] sm:$0xff]
  %v384 = vld [vmem:[%s3 + $0xc8] sm:$0xff]
  %v385 = vld [vmem:[%s3 + $0xd0] sm:$0xff]
  %v386 = vld [vmem:[%s3 + $0xd8] sm:$0xff]
  %v387 = vld [vmem:[%s3 + $0xe0] sm:$0xff]
  %v388 = vld [vmem:[%s3 + $0xe8] sm:$0xff]
  %v389 = vld [vmem:[%s3 + $0xf0] sm:$0xff]
  %v390 = vld [vmem:[%s3 + $0xf8] sm:$0xff]
  %v391 = vld [vmem:[%s3 + $0x100] sm:$0xff]
  %v392 = vld [vmem:[%s3 + $0x108] sm:$0xff]
  %v393 = vld [vmem:[%s3 + $0x110] sm:$0xff]
  %v394 = vld [vmem:[%s3 + $0x118] sm:$0xff]
  %v395 = vld [vmem:[%s3 + $0x120] sm:$0xff]
  %v396 = vld [vmem:[%s3 + $0x128] sm:$0xff]
  %v397 = vld [vmem:[%s3 + $0x130] sm:$0xff]
  %v398 = vld [vmem:[%s3 + $0x138] sm:$0xff]
  %v399 = vld [vmem:[%s3 + $0x140] sm:$0xff]
  %v400 = vld [vmem:[%s3 + $0x148] sm:$0xff]
  %v401 = vld [vmem:[%s3 + $0x150] sm:$0xff]
  %v402 = vld [vmem:[%s3 + $0x158] sm:$0xff]
  %v403 = vld [vmem:[%s3 + $0x160] sm:$0xff]
  %v404 = vld [vmem:[%s3 + $0x168] sm:$0xff]
  %v405 = vld [vmem:[%s3 + $0x170] sm:$0xff]
  %v406 = vld [vmem:[%s3 + $0x178] sm:$0xff]
  %v407 = vld [vmem:[%s3 + $0x180] sm:$0xff]
  %v408 = vld [vmem:[%s3 + $0x188] sm:$0xff]
  %v409 = vld [vmem:[%s3 + $0x190] sm:$0xff]
  %v410 = vld [vmem:[%s3 + $0x198] sm:$0xff]
  %v411 = vld [vmem:[%s3 + $0x1a0] sm:$0xff]
  %v412 = vld [vmem:[%s3 + $0x1a8] sm:$0xff]
  %v413 = vld [vmem:[%s3 + $0x1b0] sm:$0xff]
  %v414 = vld [vmem:[%s3 + $0x1b8] sm:$0xff]
  %v415 = vld [vmem:[%s3 + $0x1c0] sm:$0xff]
  %v416 = vld [vmem:[%s3 + $0x1c8] sm:$0xff]
  %v417 = vld [vmem:[%s3 + $0x1d0] sm:$0xff]
  %v418 = vld [vmem:[%s3 + $0x1d8] sm:$0xff]
  %v419 = vld [vmem:[%s3 + $0x1e0] sm:$0xff]
  %v420 = vld [vmem:[%s3 + $0x1e8] sm:$0xff]
  %v421 = vld [vmem:[%s3 + $0x1f0] sm:$0xff]
  %v422 = vld [vmem:[%s3 + $0x1f8] sm:$0xff]
  %v423 = vld [vmem:[%s4] sm:$0xf]
  %v425 = vlaneseq
  %v426 = vshrl.u32 %v425, 7
  %v427 = vsub.s32 0, %v426
  %v428 = vrot.slane %v423, %v427
  %v429 = vlaneseq
  %v430 = vshrl.u32 %v429, 7
  %v431 = vsub.s32 1, %v430
  %v432 = vrot.slane %v423, %v431
  %v433 = vlaneseq
  %v434 = vshrl.u32 %v433, 7
  %v435 = vsub.s32 2, %v434
  %v436 = vrot.slane %v423, %v435
  %v437 = vlaneseq
  %v438 = vshrl.u32 %v437, 7
  %v439 = vsub.s32 3, %v438
  %v440 = vrot.slane %v423, %v439
  %v509 = vunpack.c.l.b16 %v359
  %v510 = vunpack.c.h.b16 %v359
  %v511 = vunpack.c.l.b16 %v360
  %v512 = vunpack.c.h.b16 %v360
  %v513 = vunpack.c.l.b16 %v361
  %v514 = vunpack.c.h.b16 %v361
  %v515 = vunpack.c.l.b16 %v362
  %v516 = vunpack.c.h.b16 %v362
  %v517 = vunpack.c.l.b16 %v363
  %v518 = vunpack.c.h.b16 %v363
  %v519 = vunpack.c.l.b16 %v364
  %v520 = vunpack.c.h.b16 %v364
  %v521 = vunpack.c.l.b16 %v365
  %v522 = vunpack.c.h.b16 %v365
  %v523 = vunpack.c.l.b16 %v366
  %v524 = vunpack.c.h.b16 %v366
  %v525 = vunpack.c.l.b16 %v367
  %v526 = vunpack.c.h.b16 %v367
  %v527 = vunpack.c.l.b16 %v368
  %v528 = vunpack.c.h.b16 %v368
  %v529 = vunpack.c.l.b16 %v369
  %v530 = vunpack.c.h.b16 %v369
  %v531 = vunpack.c.l.b16 %v370
  %v532 = vunpack.c.h.b16 %v370
  %v533 = vunpack.c.l.b16 %v371
  %v534 = vunpack.c.h.b16 %v371
  %v535 = vunpack.c.l.b16 %v372
  %v536 = vunpack.c.h.b16 %v372
  %v537 = vunpack.c.l.b16 %v373
  %v538 = vunpack.c.h.b16 %v373
  %v539 = vunpack.c.l.b16 %v374
  %v540 = vunpack.c.h.b16 %v374
  %v541 = vunpack.c.l.b16 %v375
  %v542 = vunpack.c.h.b16 %v375
  %v543 = vunpack.c.l.b16 %v376
  %v544 = vunpack.c.h.b16 %v376
  %v545 = vunpack.c.l.b16 %v377
  %v546 = vunpack.c.h.b16 %v377
  %v547 = vunpack.c.l.b16 %v378
  %v548 = vunpack.c.h.b16 %v378
  %v549 = vunpack.c.l.b16 %v379
  %v550 = vunpack.c.h.b16 %v379
  %v551 = vunpack.c.l.b16 %v380
  %v552 = vunpack.c.h.b16 %v380
  %v553 = vunpack.c.l.b16 %v381
  %v554 = vunpack.c.h.b16 %v381
  %v555 = vunpack.c.l.b16 %v382
  %v556 = vunpack.c.h.b16 %v382
  %v557 = vunpack.c.l.b16 %v383
  %v558 = vunpack.c.h.b16 %v383
  %v559 = vunpack.c.l.b16 %v384
  %v560 = vunpack.c.h.b16 %v384
  %v561 = vunpack.c.l.b16 %v385
  %v562 = vunpack.c.h.b16 %v385
  %v563 = vunpack.c.l.b16 %v386
  %v564 = vunpack.c.h.b16 %v386
  %v565 = vunpack.c.l.b16 %v387
  %v566 = vunpack.c.h.b16 %v387
  %v567 = vunpack.c.l.b16 %v388
  %v568 = vunpack.c.h.b16 %v388
  %v569 = vunpack.c.l.b16 %v389
  %v570 = vunpack.c.h.b16 %v389
  %v571 = vunpack.c.l.b16 %v390
  %v572 = vunpack.c.h.b16 %v390
  %v573 = vunpack.c.l.b16 %v391
  %v574 = vunpack.c.h.b16 %v391
  %v575 = vunpack.c.l.b16 %v392
  %v576 = vunpack.c.h.b16 %v392
  %v577 = vunpack.c.l.b16 %v393
  %v578 = vunpack.c.h.b16 %v393
  %v579 = vunpack.c.l.b16 %v394
  %v580 = vunpack.c.h.b16 %v394
  %v581 = vunpack.c.l.b16 %v395
  %v582 = vunpack.c.h.b16 %v395
  %v583 = vunpack.c.l.b16 %v396
  %v584 = vunpack.c.h.b16 %v396
  %v585 = vunpack.c.l.b16 %v397
  %v586 = vunpack.c.h.b16 %v397
  %v587 = vunpack.c.l.b16 %v398
  %v588 = vunpack.c.h.b16 %v398
  %v589 = vunpack.c.l.b16 %v399
  %v590 = vunpack.c.h.b16 %v399
  %v591 = vunpack.c.l.b16 %v400
  %v592 = vunpack.c.h.b16 %v400
  %v593 = vunpack.c.l.b16 %v401
  %v594 = vunpack.c.h.b16 %v401
  %v595 = vunpack.c.l.b16 %v402
  %v596 = vunpack.c.h.b16 %v402
  %v597 = vunpack.c.l.b16 %v403
  %v598 = vunpack.c.h.b16 %v403
  %v599 = vunpack.c.l.b16 %v404
  %v600 = vunpack.c.h.b16 %v404
  %v601 = vunpack.c.l.b16 %v405
  %v602 = vunpack.c.h.b16 %v405
  %v603 = vunpack.c.l.b16 %v406
  %v604 = vunpack.c.h.b16 %v406
  %v605 = vunpack.c.l.b16 %v407
  %v606 = vunpack.c.h.b16 %v407
  %v607 = vunpack.c.l.b16 %v408
  %v608 = vunpack.c.h.b16 %v408
  %v609 = vunpack.c.l.b16 %v409
  %v610 = vunpack.c.h.b16 %v409
  %v611 = vunpack.c.l.b16 %v410
  %v612 = vunpack.c.h.b16 %v410
  %v613 = vunpack.c.l.b16 %v411
  %v614 = vunpack.c.h.b16 %v411
  %v615 = vunpack.c.l.b16 %v412
  %v616 = vunpack.c.h.b16 %v412
  %v617 = vunpack.c.l.b16 %v413
  %v618 = vunpack.c.h.b16 %v413
  %v619 = vunpack.c.l.b16 %v414
  %v620 = vunpack.c.h.b16 %v414
  %v621 = vunpack.c.l.b16 %v415
  %v622 = vunpack.c.h.b16 %v415
  %v623 = vunpack.c.l.b16 %v416
  %v624 = vunpack.c.h.b16 %v416
  %v625 = vunpack.c.l.b16 %v417
  %v626 = vunpack.c.h.b16 %v417
  %v627 = vunpack.c.l.b16 %v418
  %v628 = vunpack.c.h.b16 %v418
  %v629 = vunpack.c.l.b16 %v419
  %v630 = vunpack.c.h.b16 %v419
  %v631 = vunpack.c.l.b16 %v420
  %v632 = vunpack.c.h.b16 %v420
  %v633 = vunpack.c.l.b16 %v421
  %v634 = vunpack.c.h.b16 %v421
  %v635 = vunpack.c.l.b16 %v422
  %v636 = vunpack.c.h.b16 %v422
  %v637 = vpack.c.b16 %v513, %v509
  %v638 = vpack.c.b16 %v514, %v510
  %v639 = vpack.c.b16 %v515, %v511
  %v640 = vpack.c.b16 %v516, %v512
  %v641 = vpack.c.b16 %v521, %v517
  %v642 = vpack.c.b16 %v522, %v518
  %v643 = vpack.c.b16 %v523, %v519
  %v644 = vpack.c.b16 %v524, %v520
  %v645 = vpack.c.b16 %v529, %v525
  %v646 = vpack.c.b16 %v530, %v526
  %v647 = vpack.c.b16 %v531, %v527
  %v648 = vpack.c.b16 %v532, %v528
  %v649 = vpack.c.b16 %v537, %v533
  %v650 = vpack.c.b16 %v538, %v534
  %v651 = vpack.c.b16 %v539, %v535
  %v652 = vpack.c.b16 %v540, %v536
  %v653 = vpack.c.b16 %v545, %v541
  %v654 = vpack.c.b16 %v546, %v542
  %v655 = vpack.c.b16 %v547, %v543
  %v656 = vpack.c.b16 %v548, %v544
  %v657 = vpack.c.b16 %v553, %v549
  %v658 = vpack.c.b16 %v554, %v550
  %v659 = vpack.c.b16 %v555, %v551
  %v660 = vpack.c.b16 %v556, %v552
  %v661 = vpack.c.b16 %v561, %v557
  %v662 = vpack.c.b16 %v562, %v558
  %v663 = vpack.c.b16 %v563, %v559
  %v664 = vpack.c.b16 %v564, %v560
  %v665 = vpack.c.b16 %v569, %v565
  %v666 = vpack.c.b16 %v570, %v566
  %v667 = vpack.c.b16 %v571, %v567
  %v668 = vpack.c.b16 %v572, %v568
  %v669 = vpack.c.b16 %v577, %v573
  %v670 = vpack.c.b16 %v578, %v574
  %v671 = vpack.c.b16 %v579, %v575
  %v672 = vpack.c.b16 %v580, %v576
  %v673 = vpack.c.b16 %v585, %v581
  %v674 = vpack.c.b16 %v586, %v582
  %v675 = vpack.c.b16 %v587, %v583
  %v676 = vpack.c.b16 %v588, %v584
  %v677 = vpack.c.b16 %v593, %v589
  %v678 = vpack.c.b16 %v594, %v590
  %v679 = vpack.c.b16 %v595, %v591
  %v680 = vpack.c.b16 %v596, %v592
  %v681 = vpack.c.b16 %v601, %v597
  %v682 = vpack.c.b16 %v602, %v598
  %v683 = vpack.c.b16 %v603, %v599
  %v684 = vpack.c.b16 %v604, %v600
  %v685 = vpack.c.b16 %v609, %v605
  %v686 = vpack.c.b16 %v610, %v606
  %v687 = vpack.c.b16 %v611, %v607
  %v688 = vpack.c.b16 %v612, %v608
  %v689 = vpack.c.b16 %v617, %v613
  %v690 = vpack.c.b16 %v618, %v614
  %v691 = vpack.c.b16 %v619, %v615
  %v692 = vpack.c.b16 %v620, %v616
  %v693 = vpack.c.b16 %v625, %v621
  %v694 = vpack.c.b16 %v626, %v622
  %v695 = vpack.c.b16 %v627, %v623
  %v696 = vpack.c.b16 %v628, %v624
  %v697 = vpack.c.b16 %v633, %v629
  %v698 = vpack.c.b16 %v634, %v630
  %v699 = vpack.c.b16 %v635, %v631
  %v700 = vpack.c.b16 %v636, %v632
  %765 = vmatprep.subr.bf16.mxu0 %v638
  %766 = vmatpush1.bf16.msra.mxu0 %v637
  %767 = vmatprep.subr.bf16.mxu0 %v642
  %768 = vmatpush1.bf16.msra.mxu0 %v641
  %769 = vmatprep.subr.bf16.mxu0 %v646
  %770 = vmatpush1.bf16.msra.mxu0 %v645
  %771 = vmatprep.subr.bf16.mxu0 %v650
  %772 = vmatpush1.bf16.msra.mxu0 %v649
  %773 = vmatprep.subr.bf16.mxu0 %v654
  %774 = vmatpush1.bf16.msra.mxu0 %v653
  %775 = vmatprep.subr.bf16.mxu0 %v658
  %776 = vmatpush1.bf16.msra.mxu0 %v657
  %777 = vmatprep.subr.bf16.mxu0 %v662
  %778 = vmatpush1.bf16.msra.mxu0 %v661
  %779 = vmatprep.subr.bf16.mxu0 %v666
  %780 = vmatpush1.bf16.msra.mxu0 %v665
  %781 = vmatprep.subr.bf16.mxu0 %v670
  %782 = vmatpush1.bf16.msra.mxu0 %v669
  %783 = vmatprep.subr.bf16.mxu0 %v674
  %784 = vmatpush1.bf16.msra.mxu0 %v673
  %785 = vmatprep.subr.bf16.mxu0 %v678
  %786 = vmatpush1.bf16.msra.mxu0 %v677
  %787 = vmatprep.subr.bf16.mxu0 %v682
  %788 = vmatpush1.bf16.msra.mxu0 %v681
  %789 = vmatprep.subr.bf16.mxu0 %v686
  %790 = vmatpush1.bf16.msra.mxu0 %v685
  %791 = vmatprep.subr.bf16.mxu0 %v690
  %792 = vmatpush1.bf16.msra.mxu0 %v689
  %793 = vmatprep.subr.bf16.mxu0 %v694
  %794 = vmatpush1.bf16.msra.mxu0 %v693
  %795 = vmatprep.subr.bf16.mxu0 %v698
  %796 = vmatpush1.bf16.msra.mxu0 %v697
  %797 = vmatprep.mubr.bf16.mxu0 %v358
  %798 = vmatmul.mubr.bf16.gmra.mrb[0].mxu0 %v357
  %v799 = vpop.f32.mrb[0].mxu0
  %v800 = vadd.f32 %v428, %v799
  %v801 = vpop.f32.mrb[0].mxu0
  %v802 = vadd.f32 %v432, %v801
  %v803 = vpop.f32.mrb[0].mxu0
  %v804 = vadd.f32 %v428, %v803
  %v805 = vpop.f32.mrb[0].mxu0
  %v806 = vadd.f32 %v432, %v805
  %807 = vdwg.mxu0
  %808 = vmatprep.subr.bf16.mxu0 %v640
  %809 = vmatpush1.bf16.msra.mxu0 %v639
  %810 = vmatprep.subr.bf16.mxu0 %v644
  %811 = vmatpush1.bf16.msra.mxu0 %v643
  %812 = vmatprep.subr.bf16.mxu0 %v648
  %813 = vmatpush1.bf16.msra.mxu0 %v647
  %814 = vmatprep.subr.bf16.mxu0 %v652
  %815 = vmatpush1.bf16.msra.mxu0 %v651
  %816 = vmatprep.subr.bf16.mxu0 %v656
  %817 = vmatpush1.bf16.msra.mxu0 %v655
  %818 = vmatprep.subr.bf16.mxu0 %v660
  %819 = vmatpush1.bf16.msra.mxu0 %v659
  %820 = vmatprep.subr.bf16.mxu0 %v664
  %821 = vmatpush1.bf16.msra.mxu0 %v663
  %822 = vmatprep.subr.bf16.mxu0 %v668
  %823 = vmatpush1.bf16.msra.mxu0 %v667
  %824 = vmatprep.subr.bf16.mxu0 %v672
  %825 = vmatpush1.bf16.msra.mxu0 %v671
  %826 = vmatprep.subr.bf16.mxu0 %v676
  %827 = vmatpush1.bf16.msra.mxu0 %v675
  %828 = vmatprep.subr.bf16.mxu0 %v680
  %829 = vmatpush1.bf16.msra.mxu0 %v679
  %830 = vmatprep.subr.bf16.mxu0 %v684
  %831 = vmatpush1.bf16.msra.mxu0 %v683
  %832 = vmatprep.subr.bf16.mxu0 %v688
  %833 = vmatpush1.bf16.msra.mxu0 %v687
  %834 = vmatprep.subr.bf16.mxu0 %v692
  %835 = vmatpush1.bf16.msra.mxu0 %v691
  %836 = vmatprep.subr.bf16.mxu0 %v696
  %837 = vmatpush1.bf16.msra.mxu0 %v695
  %838 = vmatprep.subr.bf16.mxu0 %v700
  %839 = vmatpush1.bf16.msra.mxu0 %v699
  %840 = vmatprep.mubr.bf16.mxu0 %v358
  %841 = vmatmul.mubr.bf16.gmra.mrb[0].mxu0 %v357
  %v842 = vpop.f32.mrb[0].mxu0
  %v843 = vadd.f32 %v436, %v842
  %v844 = vpop.f32.mrb[0].mxu0
  %v845 = vadd.f32 %v440, %v844
  %v846 = vpop.f32.mrb[0].mxu0
  %v847 = vadd.f32 %v436, %v846
  %v848 = vpop.f32.mrb[0].mxu0
  %v849 = vadd.f32 %v440, %v848
  %850 = vdwg.mxu0
  %v851 = vmax.f32 %v800, 0.0
  %v852 = vmax.f32 %v802, 0.0
  %v853 = vmax.f32 %v843, 0.0
  %v854 = vmax.f32 %v845, 0.0
  %v855 = vmax.f32 %v804, 0.0
  %v856 = vmax.f32 %v806, 0.0
  %v857 = vmax.f32 %v847, 0.0
  %v858 = vmax.f32 %v849, 0.0
  %v859 = vpack.c.bf16 %v855, %v851
  %v860 = vpack.c.bf16 %v856, %v852
  %v861 = vpack.c.bf16 %v857, %v853
  %v862 = vpack.c.bf16 %v858, %v854
  %v863 = vld [vmem:[%s5] sm:$0xff]
  %v864 = vld [vmem:[%s5 + $0x8] sm:$0xff]
  %v865 = vld [vmem:[%s5 + $0x10] sm:$0xff]
  %v866 = vld [vmem:[%s5 + $0x18] sm:$0xff]
  %v867 = vld [vmem:[%s5 + $0x20] sm:$0xff]
  %v868 = vld [vmem:[%s5 + $0x28] sm:$0xff]
  %v869 = vld [vmem:[%s5 + $0x30] sm:$0xff]
  %v870 = vld [vmem:[%s5 + $0x38] sm:$0xff]
  %v871 = vld [vmem:[%s5 + $0x40] sm:$0xff]
  %v872 = vld [vmem:[%s5 + $0x48] sm:$0xff]
  %v873 = vld [vmem:[%s5 + $0x50] sm:$0xff]
  %v874 = vld [vmem:[%s5 + $0x58] sm:$0xff]
  %v875 = vld [vmem:[%s5 + $0x60] sm:$0xff]
  %v876 = vld [vmem:[%s5 + $0x68] sm:$0xff]
  %v877 = vld [vmem:[%s5 + $0x70] sm:$0xff]
  %v878 = vld [vmem:[%s5 + $0x78] sm:$0xff]
  %v879 = vld [vmem:[%s5 + $0x80] sm:$0xff]
  %v880 = vld [vmem:[%s5 + $0x88] sm:$0xff]
  %v881 = vld [vmem:[%s5 + $0x90] sm:$0xff]
  %v882 = vld [vmem:[%s5 + $0x98] sm:$0xff]
  %v883 = vld [vmem:[%s5 + $0xa0] sm:$0xff]
  %v884 = vld [vmem:[%s5 + $0xa8] sm:$0xff]
  %v885 = vld [vmem:[%s5 + $0xb0] sm:$0xff]
  %v886 = vld [vmem:[%s5 + $0xb8] sm:$0xff]
  %v887 = vld [vmem:[%s5 + $0xc0] sm:$0xff]
  %v888 = vld [vmem:[%s5 + $0xc8] sm:$0xff]
  %v889 = vld [vmem:[%s5 + $0xd0] sm:$0xff]
  %v890 = vld [vmem:[%s5 + $0xd8] sm:$0xff]
  %v891 = vld [vmem:[%s5 + $0xe0] sm:$0xff]
  %v892 = vld [vmem:[%s5 + $0xe8] sm:$0xff]
  %v893 = vld [vmem:[%s5 + $0xf0] sm:$0xff]
  %v894 = vld [vmem:[%s5 + $0xf8] sm:$0xff]
  %v895 = vld [vmem:[%s5 + $0x100] sm:$0xff]
  %v896 = vld [vmem:[%s5 + $0x108] sm:$0xff]
  %v897 = vld [vmem:[%s5 + $0x110] sm:$0xff]
  %v898 = vld [vmem:[%s5 + $0x118] sm:$0xff]
  %v899 = vld [vmem:[%s5 + $0x120] sm:$0xff]
  %v900 = vld [vmem:[%s5 + $0x128] sm:$0xff]
  %v901 = vld [vmem:[%s5 + $0x130] sm:$0xff]
  %v902 = vld [vmem:[%s5 + $0x138] sm:$0xff]
  %v903 = vld [vmem:[%s5 + $0x140] sm:$0xff]
  %v904 = vld [vmem:[%s5 + $0x148] sm:$0xff]
  %v905 = vld [vmem:[%s5 + $0x150] sm:$0xff]
  %v906 = vld [vmem:[%s5 + $0x158] sm:$0xff]
  %v907 = vld [vmem:[%s5 + $0x160] sm:$0xff]
  %v908 = vld [vmem:[%s5 + $0x168] sm:$0xff]
  %v909 = vld [vmem:[%s5 + $0x170] sm:$0xff]
  %v910 = vld [vmem:[%s5 + $0x178] sm:$0xff]
  %v911 = vld [vmem:[%s5 + $0x180] sm:$0xff]
  %v912 = vld [vmem:[%s5 + $0x188] sm:$0xff]
  %v913 = vld [vmem:[%s5 + $0x190] sm:$0xff]
  %v914 = vld [vmem:[%s5 + $0x198] sm:$0xff]
  %v915 = vld [vmem:[%s5 + $0x1a0] sm:$0xff]
  %v916 = vld [vmem:[%s5 + $0x1a8] sm:$0xff]
  %v917 = vld [vmem:[%s5 + $0x1b0] sm:$0xff]
  %v918 = vld [vmem:[%s5 + $0x1b8] sm:$0xff]
  %v919 = vld [vmem:[%s5 + $0x1c0] sm:$0xff]
  %v920 = vld [vmem:[%s5 + $0x1c8] sm:$0xff]
  %v921 = vld [vmem:[%s5 + $0x1d0] sm:$0xff]
  %v922 = vld [vmem:[%s5 + $0x1d8] sm:$0xff]
  %v923 = vld [vmem:[%s5 + $0x1e0] sm:$0xff]
  %v924 = vld [vmem:[%s5 + $0x1e8] sm:$0xff]
  %v925 = vld [vmem:[%s5 + $0x1f0] sm:$0xff]
  %v926 = vld [vmem:[%s5 + $0x1f8] sm:$0xff]
  %v927 = vld [vmem:[%s5 + $0x200] sm:$0xff]
  %v928 = vld [vmem:[%s5 + $0x208] sm:$0xff]
  %v929 = vld [vmem:[%s5 + $0x210] sm:$0xff]
  %v930 = vld [vmem:[%s5 + $0x218] sm:$0xff]
  %v931 = vld [vmem:[%s5 + $0x220] sm:$0xff]
  %v932 = vld [vmem:[%s5 + $0x228] sm:$0xff]
  %v933 = vld [vmem:[%s5 + $0x230] sm:$0xff]
  %v934 = vld [vmem:[%s5 + $0x238] sm:$0xff]
  %v935 = vld [vmem:[%s5 + $0x240] sm:$0xff]
  %v936 = vld [vmem:[%s5 + $0x248] sm:$0xff]
  %v937 = vld [vmem:[%s5 + $0x250] sm:$0xff]
  %v938 = vld [vmem:[%s5 + $0x258] sm:$0xff]
  %v939 = vld [vmem:[%s5 + $0x260] sm:$0xff]
  %v940 = vld [vmem:[%s5 + $0x268] sm:$0xff]
  %v941 = vld [vmem:[%s5 + $0x270] sm:$0xff]
  %v942 = vld [vmem:[%s5 + $0x278] sm:$0xff]
  %v943 = vld [vmem:[%s5 + $0x280] sm:$0xff]
  %v944 = vld [vmem:[%s5 + $0x288] sm:$0xff]
  %v945 = vld [vmem:[%s5 + $0x290] sm:$0xff]
  %v946 = vld [vmem:[%s5 + $0x298] sm:$0xff]
  %v947 = vld [vmem:[%s5 + $0x2a0] sm:$0xff]
  %v948 = vld [vmem:[%s5 + $0x2a8] sm:$0xff]
  %v949 = vld [vmem:[%s5 + $0x2b0] sm:$0xff]
  %v950 = vld [vmem:[%s5 + $0x2b8] sm:$0xff]
  %v951 = vld [vmem:[%s5 + $0x2c0] sm:$0xff]
  %v952 = vld [vmem:[%s5 + $0x2c8] sm:$0xff]
  %v953 = vld [vmem:[%s5 + $0x2d0] sm:$0xff]
  %v954 = vld [vmem:[%s5 + $0x2d8] sm:$0xff]
  %v955 = vld [vmem:[%s5 + $0x2e0] sm:$0xff]
  %v956 = vld [vmem:[%s5 + $0x2e8] sm:$0xff]
  %v957 = vld [vmem:[%s5 + $0x2f0] sm:$0xff]
  %v958 = vld [vmem:[%s5 + $0x2f8] sm:$0xff]
  %v959 = vld [vmem:[%s5 + $0x300] sm:$0xff]
  %v960 = vld [vmem:[%s5 + $0x308] sm:$0xff]
  %v961 = vld [vmem:[%s5 + $0x310] sm:$0xff]
  %v962 = vld [vmem:[%s5 + $0x318] sm:$0xff]
  %v963 = vld [vmem:[%s5 + $0x320] sm:$0xff]
  %v964 = vld [vmem:[%s5 + $0x328] sm:$0xff]
  %v965 = vld [vmem:[%s5 + $0x330] sm:$0xff]
  %v966 = vld [vmem:[%s5 + $0x338] sm:$0xff]
  %v967 = vld [vmem:[%s5 + $0x340] sm:$0xff]
  %v968 = vld [vmem:[%s5 + $0x348] sm:$0xff]
  %v969 = vld [vmem:[%s5 + $0x350] sm:$0xff]
  %v970 = vld [vmem:[%s5 + $0x358] sm:$0xff]
  %v971 = vld [vmem:[%s5 + $0x360] sm:$0xff]
  %v972 = vld [vmem:[%s5 + $0x368] sm:$0xff]
  %v973 = vld [vmem:[%s5 + $0x370] sm:$0xff]
  %v974 = vld [vmem:[%s5 + $0x378] sm:$0xff]
  %v975 = vld [vmem:[%s5 + $0x380] sm:$0xff]
  %v976 = vld [vmem:[%s5 + $0x388] sm:$0xff]
  %v977 = vld [vmem:[%s5 + $0x390] sm:$0xff]
  %v978 = vld [vmem:[%s5 + $0x398] sm:$0xff]
  %v979 = vld [vmem:[%s5 + $0x3a0] sm:$0xff]
  %v980 = vld [vmem:[%s5 + $0x3a8] sm:$0xff]
  %v981 = vld [vmem:[%s5 + $0x3b0] sm:$0xff]
  %v982 = vld [vmem:[%s5 + $0x3b8] sm:$0xff]
  %v983 = vld [vmem:[%s5 + $0x3c0] sm:$0xff]
  %v984 = vld [vmem:[%s5 + $0x3c8] sm:$0xff]
  %v985 = vld [vmem:[%s5 + $0x3d0] sm:$0xff]
  %v986 = vld [vmem:[%s5 + $0x3d8] sm:$0xff]
  %v987 = vld [vmem:[%s5 + $0x3e0] sm:$0xff]
  %v988 = vld [vmem:[%s5 + $0x3e8] sm:$0xff]
  %v989 = vld [vmem:[%s5 + $0x3f0] sm:$0xff]
  %v990 = vld [vmem:[%s5 + $0x3f8] sm:$0xff]
  %v991 = vld [vmem:[%s5 + $0x400] sm:$0xff]
  %v992 = vld [vmem:[%s5 + $0x408] sm:$0xff]
  %v993 = vld [vmem:[%s5 + $0x410] sm:$0xff]
  %v994 = vld [vmem:[%s5 + $0x418] sm:$0xff]
  %v995 = vld [vmem:[%s5 + $0x420] sm:$0xff]
  %v996 = vld [vmem:[%s5 + $0x428] sm:$0xff]
  %v997 = vld [vmem:[%s5 + $0x430] sm:$0xff]
  %v998 = vld [vmem:[%s5 + $0x438] sm:$0xff]
  %v999 = vld [vmem:[%s5 + $0x440] sm:$0xff]
  %v1000 = vld [vmem:[%s5 + $0x448] sm:$0xff]
  %v1001 = vld [vmem:[%s5 + $0x450] sm:$0xff]
  %v1002 = vld [vmem:[%s5 + $0x458] sm:$0xff]
  %v1003 = vld [vmem:[%s5 + $0x460] sm:$0xff]
  %v1004 = vld [vmem:[%s5 + $0x468] sm:$0xff]
  %v1005 = vld [vmem:[%s5 + $0x470] sm:$0xff]
  %v1006 = vld [vmem:[%s5 + $0x478] sm:$0xff]
  %v1007 = vld [vmem:[%s5 + $0x480] sm:$0xff]
  %v1008 = vld [vmem:[%s5 + $0x488] sm:$0xff]
  %v1009 = vld [vmem:[%s5 + $0x490] sm:$0xff]
  %v1010 = vld [vmem:[%s5 + $0x498] sm:$0xff]
  %v1011 = vld [vmem:[%s5 + $0x4a0] sm:$0xff]
  %v1012 = vld [vmem:[%s5 + $0x4a8] sm:$0xff]
  %v1013 = vld [vmem:[%s5 + $0x4b0] sm:$0xff]
  %v1014 = vld [vmem:[%s5 + $0x4b8] sm:$0xff]
  %v1015 = vld [vmem:[%s5 + $0x4c0] sm:$0xff]
  %v1016 = vld [vmem:[%s5 + $0x4c8] sm:$0xff]
  %v1017 = vld [vmem:[%s5 + $0x4d0] sm:$0xff]
  %v1018 = vld [vmem:[%s5 + $0x4d8] sm:$0xff]
  %v1019 = vld [vmem:[%s5 + $0x4e0] sm:$0xff]
  %v1020 = vld [vmem:[%s5 + $0x4e8] sm:$0xff]
  %v1021 = vld [vmem:[%s5 + $0x4f0] sm:$0xff]
  %v1022 = vld [vmem:[%s5 + $0x4f8] sm:$0xff]
  %v1023 = vld [vmem:[%s5 + $0x500] sm:$0xff]
  %v1024 = vld [vmem:[%s5 + $0x508] sm:$0xff]
  %v1025 = vld [vmem:[%s5 + $0x510] sm:$0xff]
  %v1026 = vld [vmem:[%s5 + $0x518] sm:$0xff]
  %v1027 = vld [vmem:[%s5 + $0x520] sm:$0xff]
  %v1028 = vld [vmem:[%s5 + $0x528] sm:$0xff]
  %v1029 = vld [vmem:[%s5 + $0x530] sm:$0xff]
  %v1030 = vld [vmem:[%s5 + $0x538] sm:$0xff]
  %v1031 = vld [vmem:[%s5 + $0x540] sm:$0xff]
  %v1032 = vld [vmem:[%s5 + $0x548] sm:$0xff]
  %v1033 = vld [vmem:[%s5 + $0x550] sm:$0xff]
  %v1034 = vld [vmem:[%s5 + $0x558] sm:$0xff]
  %v1035 = vld [vmem:[%s5 + $0x560] sm:$0xff]
  %v1036 = vld [vmem:[%s5 + $0x568] sm:$0xff]
  %v1037 = vld [vmem:[%s5 + $0x570] sm:$0xff]
  %v1038 = vld [vmem:[%s5 + $0x578] sm:$0xff]
  %v1039 = vld [vmem:[%s5 + $0x580] sm:$0xff]
  %v1040 = vld [vmem:[%s5 + $0x588] sm:$0xff]
  %v1041 = vld [vmem:[%s5 + $0x590] sm:$0xff]
  %v1042 = vld [vmem:[%s5 + $0x598] sm:$0xff]
  %v1043 = vld [vmem:[%s5 + $0x5a0] sm:$0xff]
  %v1044 = vld [vmem:[%s5 + $0x5a8] sm:$0xff]
  %v1045 = vld [vmem:[%s5 + $0x5b0] sm:$0xff]
  %v1046 = vld [vmem:[%s5 + $0x5b8] sm:$0xff]
  %v1047 = vld [vmem:[%s5 + $0x5c0] sm:$0xff]
  %v1048 = vld [vmem:[%s5 + $0x5c8] sm:$0xff]
  %v1049 = vld [vmem:[%s5 + $0x5d0] sm:$0xff]
  %v1050 = vld [vmem:[%s5 + $0x5d8] sm:$0xff]
  %v1051 = vld [vmem:[%s5 + $0x5e0] sm:$0xff]
  %v1052 = vld [vmem:[%s5 + $0x5e8] sm:$0xff]
  %v1053 = vld [vmem:[%s5 + $0x5f0] sm:$0xff]
  %v1054 = vld [vmem:[%s5 + $0x5f8] sm:$0xff]
  %v1055 = vld [vmem:[%s5 + $0x600] sm:$0xff]
  %v1056 = vld [vmem:[%s5 + $0x608] sm:$0xff]
  %v1057 = vld [vmem:[%s5 + $0x610] sm:$0xff]
  %v1058 = vld [vmem:[%s5 + $0x618] sm:$0xff]
  %v1059 = vld [vmem:[%s5 + $0x620] sm:$0xff]
  %v1060 = vld [vmem:[%s5 + $0x628] sm:$0xff]
  %v1061 = vld [vmem:[%s5 + $0x630] sm:$0xff]
  %v1062 = vld [vmem:[%s5 + $0x638] sm:$0xff]
  %v1063 = vld [vmem:[%s5 + $0x640] sm:$0xff]
  %v1064 = vld [vmem:[%s5 + $0x648] sm:$0xff]
  %v1065 = vld [vmem:[%s5 + $0x650] sm:$0xff]
  %v1066 = vld [vmem:[%s5 + $0x658] sm:$0xff]
  %v1067 = vld [vmem:[%s5 + $0x660] sm:$0xff]
  %v1068 = vld [vmem:[%s5 + $0x668] sm:$0xff]
  %v1069 = vld [vmem:[%s5 + $0x670] sm:$0xff]
  %v1070 = vld [vmem:[%s5 + $0x678] sm:$0xff]
  %v1071 = vld [vmem:[%s5 + $0x680] sm:$0xff]
  %v1072 = vld [vmem:[%s5 + $0x688] sm:$0xff]
  %v1073 = vld [vmem:[%s5 + $0x690] sm:$0xff]
  %v1074 = vld [vmem:[%s5 + $0x698] sm:$0xff]
  %v1075 = vld [vmem:[%s5 + $0x6a0] sm:$0xff]
  %v1076 = vld [vmem:[%s5 + $0x6a8] sm:$0xff]
  %v1077 = vld [vmem:[%s5 + $0x6b0] sm:$0xff]
  %v1078 = vld [vmem:[%s5 + $0x6b8] sm:$0xff]
  %v1079 = vld [vmem:[%s5 + $0x6c0] sm:$0xff]
  %v1080 = vld [vmem:[%s5 + $0x6c8] sm:$0xff]
  %v1081 = vld [vmem:[%s5 + $0x6d0] sm:$0xff]
  %v1082 = vld [vmem:[%s5 + $0x6d8] sm:$0xff]
  %v1083 = vld [vmem:[%s5 + $0x6e0] sm:$0xff]
  %v1084 = vld [vmem:[%s5 + $0x6e8] sm:$0xff]
  %v1085 = vld [vmem:[%s5 + $0x6f0] sm:$0xff]
  %v1086 = vld [vmem:[%s5 + $0x6f8] sm:$0xff]
  %v1087 = vld [vmem:[%s5 + $0x700] sm:$0xff]
  %v1088 = vld [vmem:[%s5 + $0x708] sm:$0xff]
  %v1089 = vld [vmem:[%s5 + $0x710] sm:$0xff]
  %v1090 = vld [vmem:[%s5 + $0x718] sm:$0xff]
  %v1091 = vld [vmem:[%s5 + $0x720] sm:$0xff]
  %v1092 = vld [vmem:[%s5 + $0x728] sm:$0xff]
  %v1093 = vld [vmem:[%s5 + $0x730] sm:$0xff]
  %v1094 = vld [vmem:[%s5 + $0x738] sm:$0xff]
  %v1095 = vld [vmem:[%s5 + $0x740] sm:$0xff]
  %v1096 = vld [vmem:[%s5 + $0x748] sm:$0xff]
  %v1097 = vld [vmem:[%s5 + $0x750] sm:$0xff]
  %v1098 = vld [vmem:[%s5 + $0x758] sm:$0xff]
  %v1099 = vld [vmem:[%s5 + $0x760] sm:$0xff]
  %v1100 = vld [vmem:[%s5 + $0x768] sm:$0xff]
  %v1101 = vld [vmem:[%s5 + $0x770] sm:$0xff]
  %v1102 = vld [vmem:[%s5 + $0x778] sm:$0xff]
  %v1103 = vld [vmem:[%s5 + $0x780] sm:$0xff]
  %v1104 = vld [vmem:[%s5 + $0x788] sm:$0xff]
  %v1105 = vld [vmem:[%s5 + $0x790] sm:$0xff]
  %v1106 = vld [vmem:[%s5 + $0x798] sm:$0xff]
  %v1107 = vld [vmem:[%s5 + $0x7a0] sm:$0xff]
  %v1108 = vld [vmem:[%s5 + $0x7a8] sm:$0xff]
  %v1109 = vld [vmem:[%s5 + $0x7b0] sm:$0xff]
  %v1110 = vld [vmem:[%s5 + $0x7b8] sm:$0xff]
  %v1111 = vld [vmem:[%s5 + $0x7c0] sm:$0xff]
  %v1112 = vld [vmem:[%s5 + $0x7c8] sm:$0xff]
  %v1113 = vld [vmem:[%s5 + $0x7d0] sm:$0xff]
  %v1114 = vld [vmem:[%s5 + $0x7d8] sm:$0xff]
  %v1115 = vld [vmem:[%s5 + $0x7e0] sm:$0xff]
  %v1116 = vld [vmem:[%s5 + $0x7e8] sm:$0xff]
  %v1117 = vld [vmem:[%s5 + $0x7f0] sm:$0xff]
  %v1118 = vld [vmem:[%s5 + $0x7f8] sm:$0xff]
  %v1119 = vld [vmem:[%s6] sm:$0xff]
  %v1121 = vlaneseq
  %v1122 = vshrl.u32 %v1121, 7
  %v1123 = vsub.s32 0, %v1122
  %v1124 = vrot.slane %v1119, %v1123
  %v1125 = vlaneseq
  %v1126 = vshrl.u32 %v1125, 7
  %v1127 = vsub.s32 1, %v1126
  %v1128 = vrot.slane %v1119, %v1127
  %v1129 = vlaneseq
  %v1130 = vshrl.u32 %v1129, 7
  %v1131 = vsub.s32 2, %v1130
  %v1132 = vrot.slane %v1119, %v1131
  %v1133 = vlaneseq
  %v1134 = vshrl.u32 %v1133, 7
  %v1135 = vsub.s32 3, %v1134
  %v1136 = vrot.slane %v1119, %v1135
  %v1137 = vlaneseq
  %v1138 = vshrl.u32 %v1137, 7
  %v1139 = vsub.s32 4, %v1138
  %v1140 = vrot.slane %v1119, %v1139
  %v1141 = vlaneseq
  %v1142 = vshrl.u32 %v1141, 7
  %v1143 = vsub.s32 5, %v1142
  %v1144 = vrot.slane %v1119, %v1143
  %v1145 = vlaneseq
  %v1146 = vshrl.u32 %v1145, 7
  %v1147 = vsub.s32 6, %v1146
  %v1148 = vrot.slane %v1119, %v1147
  %v1149 = vlaneseq
  %v1150 = vshrl.u32 %v1149, 7
  %v1151 = vsub.s32 7, %v1150
  %v1152 = vrot.slane %v1119, %v1151
  %v1417 = vunpack.c.l.b16 %v863
  %v1418 = vunpack.c.h.b16 %v863
  %v1419 = vunpack.c.l.b16 %v864
  %v1420 = vunpack.c.h.b16 %v864
  %v1421 = vunpack.c.l.b16 %v865
  %v1422 = vunpack.c.h.b16 %v865
  %v1423 = vunpack.c.l.b16 %v866
  %v1424 = vunpack.c.h.b16 %v866
  %v1425 = vunpack.c.l.b16 %v867
  %v1426 = vunpack.c.h.b16 %v867
  %v1427 = vunpack.c.l.b16 %v868
  %v1428 = vunpack.c.h.b16 %v868
  %v1429 = vunpack.c.l.b16 %v869
  %v1430 = vunpack.c.h.b16 %v869
  %v1431 = vunpack.c.l.b16 %v870
  %v1432 = vunpack.c.h.b16 %v870
  %v1433 = vunpack.c.l.b16 %v871
  %v1434 = vunpack.c.h.b16 %v871
  %v1435 = vunpack.c.l.b16 %v872
  %v1436 = vunpack.c.h.b16 %v872
  %v1437 = vunpack.c.l.b16 %v873
  %v1438 = vunpack.c.h.b16 %v873
  %v1439 = vunpack.c.l.b16 %v874
  %v1440 = vunpack.c.h.b16 %v874
  %v1441 = vunpack.c.l.b16 %v875
  %v1442 = vunpack.c.h.b16 %v875
  %v1443 = vunpack.c.l.b16 %v876
  %v1444 = vunpack.c.h.b16 %v876
  %v1445 = vunpack.c.l.b16 %v877
  %v1446 = vunpack.c.h.b16 %v877
  %v1447 = vunpack.c.l.b16 %v878
  %v1448 = vunpack.c.h.b16 %v878
  %v1449 = vunpack.c.l.b16 %v879
  %v1450 = vunpack.c.h.b16 %v879
  %v1451 = vunpack.c.l.b16 %v880
  %v1452 = vunpack.c.h.b16 %v880
  %v1453 = vunpack.c.l.b16 %v881
  %v1454 = vunpack.c.h.b16 %v881
  %v1455 = vunpack.c.l.b16 %v882
  %v1456 = vunpack.c.h.b16 %v882
  %v1457 = vunpack.c.l.b16 %v883
  %v1458 = vunpack.c.h.b16 %v883
  %v1459 = vunpack.c.l.b16 %v884
  %v1460 = vunpack.c.h.b16 %v884
  %v1461 = vunpack.c.l.b16 %v885
  %v1462 = vunpack.c.h.b16 %v885
  %v1463 = vunpack.c.l.b16 %v886
  %v1464 = vunpack.c.h.b16 %v886
  %v1465 = vunpack.c.l.b16 %v887
  %v1466 = vunpack.c.h.b16 %v887
  %v1467 = vunpack.c.l.b16 %v888
  %v1468 = vunpack.c.h.b16 %v888
  %v1469 = vunpack.c.l.b16 %v889
  %v1470 = vunpack.c.h.b16 %v889
  %v1471 = vunpack.c.l.b16 %v890
  %v1472 = vunpack.c.h.b16 %v890
  %v1473 = vunpack.c.l.b16 %v891
  %v1474 = vunpack.c.h.b16 %v891
  %v1475 = vunpack.c.l.b16 %v892
  %v1476 = vunpack.c.h.b16 %v892
  %v1477 = vunpack.c.l.b16 %v893
  %v1478 = vunpack.c.h.b16 %v893
  %v1479 = vunpack.c.l.b16 %v894
  %v1480 = vunpack.c.h.b16 %v894
  %v1481 = vunpack.c.l.b16 %v895
  %v1482 = vunpack.c.h.b16 %v895
  %v1483 = vunpack.c.l.b16 %v896
  %v1484 = vunpack.c.h.b16 %v896
  %v1485 = vunpack.c.l.b16 %v897
  %v1486 = vunpack.c.h.b16 %v897
  %v1487 = vunpack.c.l.b16 %v898
  %v1488 = vunpack.c.h.b16 %v898
  %v1489 = vunpack.c.l.b16 %v899
  %v1490 = vunpack.c.h.b16 %v899
  %v1491 = vunpack.c.l.b16 %v900
  %v1492 = vunpack.c.h.b16 %v900
  %v1493 = vunpack.c.l.b16 %v901
  %v1494 = vunpack.c.h.b16 %v901
  %v1495 = vunpack.c.l.b16 %v902
  %v1496 = vunpack.c.h.b16 %v902
  %v1497 = vunpack.c.l.b16 %v903
  %v1498 = vunpack.c.h.b16 %v903
  %v1499 = vunpack.c.l.b16 %v904
  %v1500 = vunpack.c.h.b16 %v904
  %v1501 = vunpack.c.l.b16 %v905
  %v1502 = vunpack.c.h.b16 %v905
  %v1503 = vunpack.c.l.b16 %v906
  %v1504 = vunpack.c.h.b16 %v906
  %v1505 = vunpack.c.l.b16 %v907
  %v1506 = vunpack.c.h.b16 %v907
  %v1507 = vunpack.c.l.b16 %v908
  %v1508 = vunpack.c.h.b16 %v908
  %v1509 = vunpack.c.l.b16 %v909
  %v1510 = vunpack.c.h.b16 %v909
  %v1511 = vunpack.c.l.b16 %v910
  %v1512 = vunpack.c.h.b16 %v910
  %v1513 = vunpack.c.l.b16 %v911
  %v1514 = vunpack.c.h.b16 %v911
  %v1515 = vunpack.c.l.b16 %v912
  %v1516 = vunpack.c.h.b16 %v912
  %v1517 = vunpack.c.l.b16 %v913
  %v1518 = vunpack.c.h.b16 %v913
  %v1519 = vunpack.c.l.b16 %v914
  %v1520 = vunpack.c.h.b16 %v914
  %v1521 = vunpack.c.l.b16 %v915
  %v1522 = vunpack.c.h.b16 %v915
  %v1523 = vunpack.c.l.b16 %v916
  %v1524 = vunpack.c.h.b16 %v916
  %v1525 = vunpack.c.l.b16 %v917
  %v1526 = vunpack.c.h.b16 %v917
  %v1527 = vunpack.c.l.b16 %v918
  %v1528 = vunpack.c.h.b16 %v918
  %v1529 = vunpack.c.l.b16 %v919
  %v1530 = vunpack.c.h.b16 %v919
  %v1531 = vunpack.c.l.b16 %v920
  %v1532 = vunpack.c.h.b16 %v920
  %v1533 = vunpack.c.l.b16 %v921
  %v1534 = vunpack.c.h.b16 %v921
  %v1535 = vunpack.c.l.b16 %v922
  %v1536 = vunpack.c.h.b16 %v922
  %v1537 = vunpack.c.l.b16 %v923
  %v1538 = vunpack.c.h.b16 %v923
  %v1539 = vunpack.c.l.b16 %v924
  %v1540 = vunpack.c.h.b16 %v924
  %v1541 = vunpack.c.l.b16 %v925
  %v1542 = vunpack.c.h.b16 %v925
  %v1543 = vunpack.c.l.b16 %v926
  %v1544 = vunpack.c.h.b16 %v926
  %v1545 = vunpack.c.l.b16 %v927
  %v1546 = vunpack.c.h.b16 %v927
  %v1547 = vunpack.c.l.b16 %v928
  %v1548 = vunpack.c.h.b16 %v928
  %v1549 = vunpack.c.l.b16 %v929
  %v1550 = vunpack.c.h.b16 %v929
  %v1551 = vunpack.c.l.b16 %v930
  %v1552 = vunpack.c.h.b16 %v930
  %v1553 = vunpack.c.l.b16 %v931
  %v1554 = vunpack.c.h.b16 %v931
  %v1555 = vunpack.c.l.b16 %v932
  %v1556 = vunpack.c.h.b16 %v932
  %v1557 = vunpack.c.l.b16 %v933
  %v1558 = vunpack.c.h.b16 %v933
  %v1559 = vunpack.c.l.b16 %v934
  %v1560 = vunpack.c.h.b16 %v934
  %v1561 = vunpack.c.l.b16 %v935
  %v1562 = vunpack.c.h.b16 %v935
  %v1563 = vunpack.c.l.b16 %v936
  %v1564 = vunpack.c.h.b16 %v936
  %v1565 = vunpack.c.l.b16 %v937
  %v1566 = vunpack.c.h.b16 %v937
  %v1567 = vunpack.c.l.b16 %v938
  %v1568 = vunpack.c.h.b16 %v938
  %v1569 = vunpack.c.l.b16 %v939
  %v1570 = vunpack.c.h.b16 %v939
  %v1571 = vunpack.c.l.b16 %v940
  %v1572 = vunpack.c.h.b16 %v940
  %v1573 = vunpack.c.l.b16 %v941
  %v1574 = vunpack.c.h.b16 %v941
  %v1575 = vunpack.c.l.b16 %v942
  %v1576 = vunpack.c.h.b16 %v942
  %v1577 = vunpack.c.l.b16 %v943
  %v1578 = vunpack.c.h.b16 %v943
  %v1579 = vunpack.c.l.b16 %v944
  %v1580 = vunpack.c.h.b16 %v944
  %v1581 = vunpack.c.l.b16 %v945
  %v1582 = vunpack.c.h.b16 %v945
  %v1583 = vunpack.c.l.b16 %v946
  %v1584 = vunpack.c.h.b16 %v946
  %v1585 = vunpack.c.l.b16 %v947
  %v1586 = vunpack.c.h.b16 %v947
  %v1587 = vunpack.c.l.b16 %v948
  %v1588 = vunpack.c.h.b16 %v948
  %v1589 = vunpack.c.l.b16 %v949
  %v1590 = vunpack.c.h.b16 %v949
  %v1591 = vunpack.c.l.b16 %v950
  %v1592 = vunpack.c.h.b16 %v950
  %v1593 = vunpack.c.l.b16 %v951
  %v1594 = vunpack.c.h.b16 %v951
  %v1595 = vunpack.c.l.b16 %v952
  %v1596 = vunpack.c.h.b16 %v952
  %v1597 = vunpack.c.l.b16 %v953
  %v1598 = vunpack.c.h.b16 %v953
  %v1599 = vunpack.c.l.b16 %v954
  %v1600 = vunpack.c.h.b16 %v954
  %v1601 = vunpack.c.l.b16 %v955
  %v1602 = vunpack.c.h.b16 %v955
  %v1603 = vunpack.c.l.b16 %v956
  %v1604 = vunpack.c.h.b16 %v956
  %v1605 = vunpack.c.l.b16 %v957
  %v1606 = vunpack.c.h.b16 %v957
  %v1607 = vunpack.c.l.b16 %v958
  %v1608 = vunpack.c.h.b16 %v958
  %v1609 = vunpack.c.l.b16 %v959
  %v1610 = vunpack.c.h.b16 %v959
  %v1611 = vunpack.c.l.b16 %v960
  %v1612 = vunpack.c.h.b16 %v960
  %v1613 = vunpack.c.l.b16 %v961
  %v1614 = vunpack.c.h.b16 %v961
  %v1615 = vunpack.c.l.b16 %v962
  %v1616 = vunpack.c.h.b16 %v962
  %v1617 = vunpack.c.l.b16 %v963
  %v1618 = vunpack.c.h.b16 %v963
  %v1619 = vunpack.c.l.b16 %v964
  %v1620 = vunpack.c.h.b16 %v964
  %v1621 = vunpack.c.l.b16 %v965
  %v1622 = vunpack.c.h.b16 %v965
  %v1623 = vunpack.c.l.b16 %v966
  %v1624 = vunpack.c.h.b16 %v966
  %v1625 = vunpack.c.l.b16 %v967
  %v1626 = vunpack.c.h.b16 %v967
  %v1627 = vunpack.c.l.b16 %v968
  %v1628 = vunpack.c.h.b16 %v968
  %v1629 = vunpack.c.l.b16 %v969
  %v1630 = vunpack.c.h.b16 %v969
  %v1631 = vunpack.c.l.b16 %v970
  %v1632 = vunpack.c.h.b16 %v970
  %v1633 = vunpack.c.l.b16 %v971
  %v1634 = vunpack.c.h.b16 %v971
  %v1635 = vunpack.c.l.b16 %v972
  %v1636 = vunpack.c.h.b16 %v972
  %v1637 = vunpack.c.l.b16 %v973
  %v1638 = vunpack.c.h.b16 %v973
  %v1639 = vunpack.c.l.b16 %v974
  %v1640 = vunpack.c.h.b16 %v974
  %v1641 = vunpack.c.l.b16 %v975
  %v1642 = vunpack.c.h.b16 %v975
  %v1643 = vunpack.c.l.b16 %v976
  %v1644 = vunpack.c.h.b16 %v976
  %v1645 = vunpack.c.l.b16 %v977
  %v1646 = vunpack.c.h.b16 %v977
  %v1647 = vunpack.c.l.b16 %v978
  %v1648 = vunpack.c.h.b16 %v978
  %v1649 = vunpack.c.l.b16 %v979
  %v1650 = vunpack.c.h.b16 %v979
  %v1651 = vunpack.c.l.b16 %v980
  %v1652 = vunpack.c.h.b16 %v980
  %v1653 = vunpack.c.l.b16 %v981
  %v1654 = vunpack.c.h.b16 %v981
  %v1655 = vunpack.c.l.b16 %v982
  %v1656 = vunpack.c.h.b16 %v982
  %v1657 = vunpack.c.l.b16 %v983
  %v1658 = vunpack.c.h.b16 %v983
  %v1659 = vunpack.c.l.b16 %v984
  %v1660 = vunpack.c.h.b16 %v984
  %v1661 = vunpack.c.l.b16 %v985
  %v1662 = vunpack.c.h.b16 %v985
  %v1663 = vunpack.c.l.b16 %v986
  %v1664 = vunpack.c.h.b16 %v986
  %v1665 = vunpack.c.l.b16 %v987
  %v1666 = vunpack.c.h.b16 %v987
  %v1667 = vunpack.c.l.b16 %v988
  %v1668 = vunpack.c.h.b16 %v988
  %v1669 = vunpack.c.l.b16 %v989
  %v1670 = vunpack.c.h.b16 %v989
  %v1671 = vunpack.c.l.b16 %v990
  %v1672 = vunpack.c.h.b16 %v990
  %v1673 = vunpack.c.l.b16 %v991
  %v1674 = vunpack.c.h.b16 %v991
  %v1675 = vunpack.c.l.b16 %v992
  %v1676 = vunpack.c.h.b16 %v992
  %v1677 = vunpack.c.l.b16 %v993
  %v1678 = vunpack.c.h.b16 %v993
  %v1679 = vunpack.c.l.b16 %v994
  %v1680 = vunpack.c.h.b16 %v994
  %v1681 = vunpack.c.l.b16 %v995
  %v1682 = vunpack.c.h.b16 %v995
  %v1683 = vunpack.c.l.b16 %v996
  %v1684 = vunpack.c.h.b16 %v996
  %v1685 = vunpack.c.l.b16 %v997
  %v1686 = vunpack.c.h.b16 %v997
  %v1687 = vunpack.c.l.b16 %v998
  %v1688 = vunpack.c.h.b16 %v998
  %v1689 = vunpack.c.l.b16 %v999
  %v1690 = vunpack.c.h.b16 %v999
  %v1691 = vunpack.c.l.b16 %v1000
  %v1692 = vunpack.c.h.b16 %v1000
  %v1693 = vunpack.c.l.b16 %v1001
  %v1694 = vunpack.c.h.b16 %v1001
  %v1695 = vunpack.c.l.b16 %v1002
  %v1696 = vunpack.c.h.b16 %v1002
  %v1697 = vunpack.c.l.b16 %v1003
  %v1698 = vunpack.c.h.b16 %v1003
  %v1699 = vunpack.c.l.b16 %v1004
  %v1700 = vunpack.c.h.b16 %v1004
  %v1701 = vunpack.c.l.b16 %v1005
  %v1702 = vunpack.c.h.b16 %v1005
  %v1703 = vunpack.c.l.b16 %v1006
  %v1704 = vunpack.c.h.b16 %v1006
  %v1705 = vunpack.c.l.b16 %v1007
  %v1706 = vunpack.c.h.b16 %v1007
  %v1707 = vunpack.c.l.b16 %v1008
  %v1708 = vunpack.c.h.b16 %v1008
  %v1709 = vunpack.c.l.b16 %v1009
  %v1710 = vunpack.c.h.b16 %v1009
  %v1711 = vunpack.c.l.b16 %v1010
  %v1712 = vunpack.c.h.b16 %v1010
  %v1713 = vunpack.c.l.b16 %v1011
  %v1714 = vunpack.c.h.b16 %v1011
  %v1715 = vunpack.c.l.b16 %v1012
  %v1716 = vunpack.c.h.b16 %v1012
  %v1717 = vunpack.c.l.b16 %v1013
  %v1718 = vunpack.c.h.b16 %v1013
  %v1719 = vunpack.c.l.b16 %v1014
  %v1720 = vunpack.c.h.b16 %v1014
  %v1721 = vunpack.c.l.b16 %v1015
  %v1722 = vunpack.c.h.b16 %v1015
  %v1723 = vunpack.c.l.b16 %v1016
  %v1724 = vunpack.c.h.b16 %v1016
  %v1725 = vunpack.c.l.b16 %v1017
  %v1726 = vunpack.c.h.b16 %v1017
  %v1727 = vunpack.c.l.b16 %v1018
  %v1728 = vunpack.c.h.b16 %v1018
  %v1729 = vunpack.c.l.b16 %v1019
  %v1730 = vunpack.c.h.b16 %v1019
  %v1731 = vunpack.c.l.b16 %v1020
  %v1732 = vunpack.c.h.b16 %v1020
  %v1733 = vunpack.c.l.b16 %v1021
  %v1734 = vunpack.c.h.b16 %v1021
  %v1735 = vunpack.c.l.b16 %v1022
  %v1736 = vunpack.c.h.b16 %v1022
  %v1737 = vunpack.c.l.b16 %v1023
  %v1738 = vunpack.c.h.b16 %v1023
  %v1739 = vunpack.c.l.b16 %v1024
  %v1740 = vunpack.c.h.b16 %v1024
  %v1741 = vunpack.c.l.b16 %v1025
  %v1742 = vunpack.c.h.b16 %v1025
  %v1743 = vunpack.c.l.b16 %v1026
  %v1744 = vunpack.c.h.b16 %v1026
  %v1745 = vunpack.c.l.b16 %v1027
  %v1746 = vunpack.c.h.b16 %v1027
  %v1747 = vunpack.c.l.b16 %v1028
  %v1748 = vunpack.c.h.b16 %v1028
  %v1749 = vunpack.c.l.b16 %v1029
  %v1750 = vunpack.c.h.b16 %v1029
  %v1751 = vunpack.c.l.b16 %v1030
  %v1752 = vunpack.c.h.b16 %v1030
  %v1753 = vunpack.c.l.b16 %v1031
  %v1754 = vunpack.c.h.b16 %v1031
  %v1755 = vunpack.c.l.b16 %v1032
  %v1756 = vunpack.c.h.b16 %v1032
  %v1757 = vunpack.c.l.b16 %v1033
  %v1758 = vunpack.c.h.b16 %v1033
  %v1759 = vunpack.c.l.b16 %v1034
  %v1760 = vunpack.c.h.b16 %v1034
  %v1761 = vunpack.c.l.b16 %v1035
  %v1762 = vunpack.c.h.b16 %v1035
  %v1763 = vunpack.c.l.b16 %v1036
  %v1764 = vunpack.c.h.b16 %v1036
  %v1765 = vunpack.c.l.b16 %v1037
  %v1766 = vunpack.c.h.b16 %v1037
  %v1767 = vunpack.c.l.b16 %v1038
  %v1768 = vunpack.c.h.b16 %v1038
  %v1769 = vunpack.c.l.b16 %v1039
  %v1770 = vunpack.c.h.b16 %v1039
  %v1771 = vunpack.c.l.b16 %v1040
  %v1772 = vunpack.c.h.b16 %v1040
  %v1773 = vunpack.c.l.b16 %v1041
  %v1774 = vunpack.c.h.b16 %v1041
  %v1775 = vunpack.c.l.b16 %v1042
  %v1776 = vunpack.c.h.b16 %v1042
  %v1777 = vunpack.c.l.b16 %v1043
  %v1778 = vunpack.c.h.b16 %v1043
  %v1779 = vunpack.c.l.b16 %v1044
  %v1780 = vunpack.c.h.b16 %v1044
  %v1781 = vunpack.c.l.b16 %v1045
  %v1782 = vunpack.c.h.b16 %v1045
  %v1783 = vunpack.c.l.b16 %v1046
  %v1784 = vunpack.c.h.b16 %v1046
  %v1785 = vunpack.c.l.b16 %v1047
  %v1786 = vunpack.c.h.b16 %v1047
  %v1787 = vunpack.c.l.b16 %v1048
  %v1788 = vunpack.c.h.b16 %v1048
  %v1789 = vunpack.c.l.b16 %v1049
  %v1790 = vunpack.c.h.b16 %v1049
  %v1791 = vunpack.c.l.b16 %v1050
  %v1792 = vunpack.c.h.b16 %v1050
  %v1793 = vunpack.c.l.b16 %v1051
  %v1794 = vunpack.c.h.b16 %v1051
  %v1795 = vunpack.c.l.b16 %v1052
  %v1796 = vunpack.c.h.b16 %v1052
  %v1797 = vunpack.c.l.b16 %v1053
  %v1798 = vunpack.c.h.b16 %v1053
  %v1799 = vunpack.c.l.b16 %v1054
  %v1800 = vunpack.c.h.b16 %v1054
  %v1801 = vunpack.c.l.b16 %v1055
  %v1802 = vunpack.c.h.b16 %v1055
  %v1803 = vunpack.c.l.b16 %v1056
  %v1804 = vunpack.c.h.b16 %v1056
  %v1805 = vunpack.c.l.b16 %v1057
  %v1806 = vunpack.c.h.b16 %v1057
  %v1807 = vunpack.c.l.b16 %v1058
  %v1808 = vunpack.c.h.b16 %v1058
  %v1809 = vunpack.c.l.b16 %v1059
  %v1810 = vunpack.c.h.b16 %v1059
  %v1811 = vunpack.c.l.b16 %v1060
  %v1812 = vunpack.c.h.b16 %v1060
  %v1813 = vunpack.c.l.b16 %v1061
  %v1814 = vunpack.c.h.b16 %v1061
  %v1815 = vunpack.c.l.b16 %v1062
  %v1816 = vunpack.c.h.b16 %v1062
  %v1817 = vunpack.c.l.b16 %v1063
  %v1818 = vunpack.c.h.b16 %v1063
  %v1819 = vunpack.c.l.b16 %v1064
  %v1820 = vunpack.c.h.b16 %v1064
  %v1821 = vunpack.c.l.b16 %v1065
  %v1822 = vunpack.c.h.b16 %v1065
  %v1823 = vunpack.c.l.b16 %v1066
  %v1824 = vunpack.c.h.b16 %v1066
  %v1825 = vunpack.c.l.b16 %v1067
  %v1826 = vunpack.c.h.b16 %v1067
  %v1827 = vunpack.c.l.b16 %v1068
  %v1828 = vunpack.c.h.b16 %v1068
  %v1829 = vunpack.c.l.b16 %v1069
  %v1830 = vunpack.c.h.b16 %v1069
  %v1831 = vunpack.c.l.b16 %v1070
  %v1832 = vunpack.c.h.b16 %v1070
  %v1833 = vunpack.c.l.b16 %v1071
  %v1834 = vunpack.c.h.b16 %v1071
  %v1835 = vunpack.c.l.b16 %v1072
  %v1836 = vunpack.c.h.b16 %v1072
  %v1837 = vunpack.c.l.b16 %v1073
  %v1838 = vunpack.c.h.b16 %v1073
  %v1839 = vunpack.c.l.b16 %v1074
  %v1840 = vunpack.c.h.b16 %v1074
  %v1841 = vunpack.c.l.b16 %v1075
  %v1842 = vunpack.c.h.b16 %v1075
  %v1843 = vunpack.c.l.b16 %v1076
  %v1844 = vunpack.c.h.b16 %v1076
  %v1845 = vunpack.c.l.b16 %v1077
  %v1846 = vunpack.c.h.b16 %v1077
  %v1847 = vunpack.c.l.b16 %v1078
  %v1848 = vunpack.c.h.b16 %v1078
  %v1849 = vunpack.c.l.b16 %v1079
  %v1850 = vunpack.c.h.b16 %v1079
  %v1851 = vunpack.c.l.b16 %v1080
  %v1852 = vunpack.c.h.b16 %v1080
  %v1853 = vunpack.c.l.b16 %v1081
  %v1854 = vunpack.c.h.b16 %v1081
  %v1855 = vunpack.c.l.b16 %v1082
  %v1856 = vunpack.c.h.b16 %v1082
  %v1857 = vunpack.c.l.b16 %v1083
  %v1858 = vunpack.c.h.b16 %v1083
  %v1859 = vunpack.c.l.b16 %v1084
  %v1860 = vunpack.c.h.b16 %v1084
  %v1861 = vunpack.c.l.b16 %v1085
  %v1862 = vunpack.c.h.b16 %v1085
  %v1863 = vunpack.c.l.b16 %v1086
  %v1864 = vunpack.c.h.b16 %v1086
  %v1865 = vunpack.c.l.b16 %v1087
  %v1866 = vunpack.c.h.b16 %v1087
  %v1867 = vunpack.c.l.b16 %v1088
  %v1868 = vunpack.c.h.b16 %v1088
  %v1869 = vunpack.c.l.b16 %v1089
  %v1870 = vunpack.c.h.b16 %v1089
  %v1871 = vunpack.c.l.b16 %v1090
  %v1872 = vunpack.c.h.b16 %v1090
  %v1873 = vunpack.c.l.b16 %v1091
  %v1874 = vunpack.c.h.b16 %v1091
  %v1875 = vunpack.c.l.b16 %v1092
  %v1876 = vunpack.c.h.b16 %v1092
  %v1877 = vunpack.c.l.b16 %v1093
  %v1878 = vunpack.c.h.b16 %v1093
  %v1879 = vunpack.c.l.b16 %v1094
  %v1880 = vunpack.c.h.b16 %v1094
  %v1881 = vunpack.c.l.b16 %v1095
  %v1882 = vunpack.c.h.b16 %v1095
  %v1883 = vunpack.c.l.b16 %v1096
  %v1884 = vunpack.c.h.b16 %v1096
  %v1885 = vunpack.c.l.b16 %v1097
  %v1886 = vunpack.c.h.b16 %v1097
  %v1887 = vunpack.c.l.b16 %v1098
  %v1888 = vunpack.c.h.b16 %v1098
  %v1889 = vunpack.c.l.b16 %v1099
  %v1890 = vunpack.c.h.b16 %v1099
  %v1891 = vunpack.c.l.b16 %v1100
  %v1892 = vunpack.c.h.b16 %v1100
  %v1893 = vunpack.c.l.b16 %v1101
  %v1894 = vunpack.c.h.b16 %v1101
  %v1895 = vunpack.c.l.b16 %v1102
  %v1896 = vunpack.c.h.b16 %v1102
  %v1897 = vunpack.c.l.b16 %v1103
  %v1898 = vunpack.c.h.b16 %v1103
  %v1899 = vunpack.c.l.b16 %v1104
  %v1900 = vunpack.c.h.b16 %v1104
  %v1901 = vunpack.c.l.b16 %v1105
  %v1902 = vunpack.c.h.b16 %v1105
  %v1903 = vunpack.c.l.b16 %v1106
  %v1904 = vunpack.c.h.b16 %v1106
  %v1905 = vunpack.c.l.b16 %v1107
  %v1906 = vunpack.c.h.b16 %v1107
  %v1907 = vunpack.c.l.b16 %v1108
  %v1908 = vunpack.c.h.b16 %v1108
  %v1909 = vunpack.c.l.b16 %v1109
  %v1910 = vunpack.c.h.b16 %v1109
  %v1911 = vunpack.c.l.b16 %v1110
  %v1912 = vunpack.c.h.b16 %v1110
  %v1913 = vunpack.c.l.b16 %v1111
  %v1914 = vunpack.c.h.b16 %v1111
  %v1915 = vunpack.c.l.b16 %v1112
  %v1916 = vunpack.c.h.b16 %v1112
  %v1917 = vunpack.c.l.b16 %v1113
  %v1918 = vunpack.c.h.b16 %v1113
  %v1919 = vunpack.c.l.b16 %v1114
  %v1920 = vunpack.c.h.b16 %v1114
  %v1921 = vunpack.c.l.b16 %v1115
  %v1922 = vunpack.c.h.b16 %v1115
  %v1923 = vunpack.c.l.b16 %v1116
  %v1924 = vunpack.c.h.b16 %v1116
  %v1925 = vunpack.c.l.b16 %v1117
  %v1926 = vunpack.c.h.b16 %v1117
  %v1927 = vunpack.c.l.b16 %v1118
  %v1928 = vunpack.c.h.b16 %v1118
  %v1929 = vpack.c.b16 %v1425, %v1417
  %v1930 = vpack.c.b16 %v1426, %v1418
  %v1931 = vpack.c.b16 %v1427, %v1419
  %v1932 = vpack.c.b16 %v1428, %v1420
  %v1933 = vpack.c.b16 %v1429, %v1421
  %v1934 = vpack.c.b16 %v1430, %v1422
  %v1935 = vpack.c.b16 %v1431, %v1423
  %v1936 = vpack.c.b16 %v1432, %v1424
  %v1937 = vpack.c.b16 %v1441, %v1433
  %v1938 = vpack.c.b16 %v1442, %v1434
  %v1939 = vpack.c.b16 %v1443, %v1435
  %v1940 = vpack.c.b16 %v1444, %v1436
  %v1941 = vpack.c.b16 %v1445, %v1437
  %v1942 = vpack.c.b16 %v1446, %v1438
  %v1943 = vpack.c.b16 %v1447, %v1439
  %v1944 = vpack.c.b16 %v1448, %v1440
  %v1945 = vpack.c.b16 %v1457, %v1449
  %v1946 = vpack.c.b16 %v1458, %v1450
  %v1947 = vpack.c.b16 %v1459, %v1451
  %v1948 = vpack.c.b16 %v1460, %v1452
  %v1949 = vpack.c.b16 %v1461, %v1453
  %v1950 = vpack.c.b16 %v1462, %v1454
  %v1951 = vpack.c.b16 %v1463, %v1455
  %v1952 = vpack.c.b16 %v1464, %v1456
  %v1953 = vpack.c.b16 %v1473, %v1465
  %v1954 = vpack.c.b16 %v1474, %v1466
  %v1955 = vpack.c.b16 %v1475, %v1467
  %v1956 = vpack.c.b16 %v1476, %v1468
  %v1957 = vpack.c.b16 %v1477, %v1469
  %v1958 = vpack.c.b16 %v1478, %v1470
  %v1959 = vpack.c.b16 %v1479, %v1471
  %v1960 = vpack.c.b16 %v1480, %v1472
  %v1961 = vpack.c.b16 %v1489, %v1481
  %v1962 = vpack.c.b16 %v1490, %v1482
  %v1963 = vpack.c.b16 %v1491, %v1483
  %v1964 = vpack.c.b16 %v1492, %v1484
  %v1965 = vpack.c.b16 %v1493, %v1485
  %v1966 = vpack.c.b16 %v1494, %v1486
  %v1967 = vpack.c.b16 %v1495, %v1487
  %v1968 = vpack.c.b16 %v1496, %v1488
  %v1969 = vpack.c.b16 %v1505, %v1497
  %v1970 = vpack.c.b16 %v1506, %v1498
  %v1971 = vpack.c.b16 %v1507, %v1499
  %v1972 = vpack.c.b16 %v1508, %v1500
  %v1973 = vpack.c.b16 %v1509, %v1501
  %v1974 = vpack.c.b16 %v1510, %v1502
  %v1975 = vpack.c.b16 %v1511, %v1503
  %v1976 = vpack.c.b16 %v1512, %v1504
  %v1977 = vpack.c.b16 %v1521, %v1513
  %v1978 = vpack.c.b16 %v1522, %v1514
  %v1979 = vpack.c.b16 %v1523, %v1515
  %v1980 = vpack.c.b16 %v1524, %v1516
  %v1981 = vpack.c.b16 %v1525, %v1517
  %v1982 = vpack.c.b16 %v1526, %v1518
  %v1983 = vpack.c.b16 %v1527, %v1519
  %v1984 = vpack.c.b16 %v1528, %v1520
  %v1985 = vpack.c.b16 %v1537, %v1529
  %v1986 = vpack.c.b16 %v1538, %v1530
  %v1987 = vpack.c.b16 %v1539, %v1531
  %v1988 = vpack.c.b16 %v1540, %v1532
  %v1989 = vpack.c.b16 %v1541, %v1533
  %v1990 = vpack.c.b16 %v1542, %v1534
  %v1991 = vpack.c.b16 %v1543, %v1535
  %v1992 = vpack.c.b16 %v1544, %v1536
  %v1993 = vpack.c.b16 %v1553, %v1545
  %v1994 = vpack.c.b16 %v1554, %v1546
  %v1995 = vpack.c.b16 %v1555, %v1547
  %v1996 = vpack.c.b16 %v1556, %v1548
  %v1997 = vpack.c.b16 %v1557, %v1549
  %v1998 = vpack.c.b16 %v1558, %v1550
  %v1999 = vpack.c.b16 %v1559, %v1551
  %v2000 = vpack.c.b16 %v1560, %v1552
  %v2001 = vpack.c.b16 %v1569, %v1561
  %v2002 = vpack.c.b16 %v1570, %v1562
  %v2003 = vpack.c.b16 %v1571, %v1563
  %v2004 = vpack.c.b16 %v1572, %v1564
  %v2005 = vpack.c.b16 %v1573, %v1565
  %v2006 = vpack.c.b16 %v1574, %v1566
  %v2007 = vpack.c.b16 %v1575, %v1567
  %v2008 = vpack.c.b16 %v1576, %v1568
  %v2009 = vpack.c.b16 %v1585, %v1577
  %v2010 = vpack.c.b16 %v1586, %v1578
  %v2011 = vpack.c.b16 %v1587, %v1579
  %v2012 = vpack.c.b16 %v1588, %v1580
  %v2013 = vpack.c.b16 %v1589, %v1581
  %v2014 = vpack.c.b16 %v1590, %v1582
  %v2015 = vpack.c.b16 %v1591, %v1583
  %v2016 = vpack.c.b16 %v1592, %v1584
  %v2017 = vpack.c.b16 %v1601, %v1593
  %v2018 = vpack.c.b16 %v1602, %v1594
  %v2019 = vpack.c.b16 %v1603, %v1595
  %v2020 = vpack.c.b16 %v1604, %v1596
  %v2021 = vpack.c.b16 %v1605, %v1597
  %v2022 = vpack.c.b16 %v1606, %v1598
  %v2023 = vpack.c.b16 %v1607, %v1599
  %v2024 = vpack.c.b16 %v1608, %v1600
  %v2025 = vpack.c.b16 %v1617, %v1609
  %v2026 = vpack.c.b16 %v1618, %v1610
  %v2027 = vpack.c.b16 %v1619, %v1611
  %v2028 = vpack.c.b16 %v1620, %v1612
  %v2029 = vpack.c.b16 %v1621, %v1613
  %v2030 = vpack.c.b16 %v1622, %v1614
  %v2031 = vpack.c.b16 %v1623, %v1615
  %v2032 = vpack.c.b16 %v1624, %v1616
  %v2033 = vpack.c.b16 %v1633, %v1625
  %v2034 = vpack.c.b16 %v1634, %v1626
  %v2035 = vpack.c.b16 %v1635, %v1627
  %v2036 = vpack.c.b16 %v1636, %v1628
  %v2037 = vpack.c.b16 %v1637, %v1629
  %v2038 = vpack.c.b16 %v1638, %v1630
  %v2039 = vpack.c.b16 %v1639, %v1631
  %v2040 = vpack.c.b16 %v1640, %v1632
  %v2041 = vpack.c.b16 %v1649, %v1641
  %v2042 = vpack.c.b16 %v1650, %v1642
  %v2043 = vpack.c.b16 %v1651, %v1643
  %v2044 = vpack.c.b16 %v1652, %v1644
  %v2045 = vpack.c.b16 %v1653, %v1645
  %v2046 = vpack.c.b16 %v1654, %v1646
  %v2047 = vpack.c.b16 %v1655, %v1647
  %v2048 = vpack.c.b16 %v1656, %v1648
  %v2049 = vpack.c.b16 %v1665, %v1657
  %v2050 = vpack.c.b16 %v1666, %v1658
  %v2051 = vpack.c.b16 %v1667, %v1659
  %v2052 = vpack.c.b16 %v1668, %v1660
  %v2053 = vpack.c.b16 %v1669, %v1661
  %v2054 = vpack.c.b16 %v1670, %v1662
  %v2055 = vpack.c.b16 %v1671, %v1663
  %v2056 = vpack.c.b16 %v1672, %v1664
  %v2057 = vpack.c.b16 %v1681, %v1673
  %v2058 = vpack.c.b16 %v1682, %v1674
  %v2059 = vpack.c.b16 %v1683, %v1675
  %v2060 = vpack.c.b16 %v1684, %v1676
  %v2061 = vpack.c.b16 %v1685, %v1677
  %v2062 = vpack.c.b16 %v1686, %v1678
  %v2063 = vpack.c.b16 %v1687, %v1679
  %v2064 = vpack.c.b16 %v1688, %v1680
  %v2065 = vpack.c.b16 %v1697, %v1689
  %v2066 = vpack.c.b16 %v1698, %v1690
  %v2067 = vpack.c.b16 %v1699, %v1691
  %v2068 = vpack.c.b16 %v1700, %v1692
  %v2069 = vpack.c.b16 %v1701, %v1693
  %v2070 = vpack.c.b16 %v1702, %v1694
  %v2071 = vpack.c.b16 %v1703, %v1695
  %v2072 = vpack.c.b16 %v1704, %v1696
  %v2073 = vpack.c.b16 %v1713, %v1705
  %v2074 = vpack.c.b16 %v1714, %v1706
  %v2075 = vpack.c.b16 %v1715, %v1707
  %v2076 = vpack.c.b16 %v1716, %v1708
  %v2077 = vpack.c.b16 %v1717, %v1709
  %v2078 = vpack.c.b16 %v1718, %v1710
  %v2079 = vpack.c.b16 %v1719, %v1711
  %v2080 = vpack.c.b16 %v1720, %v1712
  %v2081 = vpack.c.b16 %v1729, %v1721
  %v2082 = vpack.c.b16 %v1730, %v1722
  %v2083 = vpack.c.b16 %v1731, %v1723
  %v2084 = vpack.c.b16 %v1732, %v1724
  %v2085 = vpack.c.b16 %v1733, %v1725
  %v2086 = vpack.c.b16 %v1734, %v1726
  %v2087 = vpack.c.b16 %v1735, %v1727
  %v2088 = vpack.c.b16 %v1736, %v1728
  %v2089 = vpack.c.b16 %v1745, %v1737
  %v2090 = vpack.c.b16 %v1746, %v1738
  %v2091 = vpack.c.b16 %v1747, %v1739
  %v2092 = vpack.c.b16 %v1748, %v1740
  %v2093 = vpack.c.b16 %v1749, %v1741
  %v2094 = vpack.c.b16 %v1750, %v1742
  %v2095 = vpack.c.b16 %v1751, %v1743
  %v2096 = vpack.c.b16 %v1752, %v1744
  %v2097 = vpack.c.b16 %v1761, %v1753
  %v2098 = vpack.c.b16 %v1762, %v1754
  %v2099 = vpack.c.b16 %v1763, %v1755
  %v2100 = vpack.c.b16 %v1764, %v1756
  %v2101 = vpack.c.b16 %v1765, %v1757
  %v2102 = vpack.c.b16 %v1766, %v1758
  %v2103 = vpack.c.b16 %v1767, %v1759
  %v2104 = vpack.c.b16 %v1768, %v1760
  %v2105 = vpack.c.b16 %v1777, %v1769
  %v2106 = vpack.c.b16 %v1778, %v1770
  %v2107 = vpack.c.b16 %v1779, %v1771
  %v2108 = vpack.c.b16 %v1780, %v1772
  %v2109 = vpack.c.b16 %v1781, %v1773
  %v2110 = vpack.c.b16 %v1782, %v1774
  %v2111 = vpack.c.b16 %v1783, %v1775
  %v2112 = vpack.c.b16 %v1784, %v1776
  %v2113 = vpack.c.b16 %v1793, %v1785
  %v2114 = vpack.c.b16 %v1794, %v1786
  %v2115 = vpack.c.b16 %v1795, %v1787
  %v2116 = vpack.c.b16 %v1796, %v1788
  %v2117 = vpack.c.b16 %v1797, %v1789
  %v2118 = vpack.c.b16 %v1798, %v1790
  %v2119 = vpack.c.b16 %v1799, %v1791
  %v2120 = vpack.c.b16 %v1800, %v1792
  %v2121 = vpack.c.b16 %v1809, %v1801
  %v2122 = vpack.c.b16 %v1810, %v1802
  %v2123 = vpack.c.b16 %v1811, %v1803
  %v2124 = vpack.c.b16 %v1812, %v1804
  %v2125 = vpack.c.b16 %v1813, %v1805
  %v2126 = vpack.c.b16 %v1814, %v1806
  %v2127 = vpack.c.b16 %v1815, %v1807
  %v2128 = vpack.c.b16 %v1816, %v1808
  %v2129 = vpack.c.b16 %v1825, %v1817
  %v2130 = vpack.c.b16 %v1826, %v1818
  %v2131 = vpack.c.b16 %v1827, %v1819
  %v2132 = vpack.c.b16 %v1828, %v1820
  %v2133 = vpack.c.b16 %v1829, %v1821
  %v2134 = vpack.c.b16 %v1830, %v1822
  %v2135 = vpack.c.b16 %v1831, %v1823
  %v2136 = vpack.c.b16 %v1832, %v1824
  %v2137 = vpack.c.b16 %v1841, %v1833
  %v2138 = vpack.c.b16 %v1842, %v1834
  %v2139 = vpack.c.b16 %v1843, %v1835
  %v2140 = vpack.c.b16 %v1844, %v1836
  %v2141 = vpack.c.b16 %v1845, %v1837
  %v2142 = vpack.c.b16 %v1846, %v1838
  %v2143 = vpack.c.b16 %v1847, %v1839
  %v2144 = vpack.c.b16 %v1848, %v1840
  %v2145 = vpack.c.b16 %v1857, %v1849
  %v2146 = vpack.c.b16 %v1858, %v1850
  %v2147 = vpack.c.b16 %v1859, %v1851
  %v2148 = vpack.c.b16 %v1860, %v1852
  %v2149 = vpack.c.b16 %v1861, %v1853
  %v2150 = vpack.c.b16 %v1862, %v1854
  %v2151 = vpack.c.b16 %v1863, %v1855
  %v2152 = vpack.c.b16 %v1864, %v1856
  %v2153 = vpack.c.b16 %v1873, %v1865
  %v2154 = vpack.c.b16 %v1874, %v1866
  %v2155 = vpack.c.b16 %v1875, %v1867
  %v2156 = vpack.c.b16 %v1876, %v1868
  %v2157 = vpack.c.b16 %v1877, %v1869
  %v2158 = vpack.c.b16 %v1878, %v1870
  %v2159 = vpack.c.b16 %v1879, %v1871
  %v2160 = vpack.c.b16 %v1880, %v1872
  %v2161 = vpack.c.b16 %v1889, %v1881
  %v2162 = vpack.c.b16 %v1890, %v1882
  %v2163 = vpack.c.b16 %v1891, %v1883
  %v2164 = vpack.c.b16 %v1892, %v1884
  %v2165 = vpack.c.b16 %v1893, %v1885
  %v2166 = vpack.c.b16 %v1894, %v1886
  %v2167 = vpack.c.b16 %v1895, %v1887
  %v2168 = vpack.c.b16 %v1896, %v1888
  %v2169 = vpack.c.b16 %v1905, %v1897
  %v2170 = vpack.c.b16 %v1906, %v1898
  %v2171 = vpack.c.b16 %v1907, %v1899
  %v2172 = vpack.c.b16 %v1908, %v1900
  %v2173 = vpack.c.b16 %v1909, %v1901
  %v2174 = vpack.c.b16 %v1910, %v1902
  %v2175 = vpack.c.b16 %v1911, %v1903
  %v2176 = vpack.c.b16 %v1912, %v1904
  %v2177 = vpack.c.b16 %v1921, %v1913
  %v2178 = vpack.c.b16 %v1922, %v1914
  %v2179 = vpack.c.b16 %v1923, %v1915
  %v2180 = vpack.c.b16 %v1924, %v1916
  %v2181 = vpack.c.b16 %v1925, %v1917
  %v2182 = vpack.c.b16 %v1926, %v1918
  %v2183 = vpack.c.b16 %v1927, %v1919
  %v2184 = vpack.c.b16 %v1928, %v1920
  %2441 = vmatprep.subr.bf16.mxu0 %v1930
  %2442 = vmatpush1.bf16.msra.mxu0 %v1929
  %2443 = vmatprep.subr.bf16.mxu0 %v1938
  %2444 = vmatpush1.bf16.msra.mxu0 %v1937
  %2445 = vmatprep.subr.bf16.mxu0 %v1946
  %2446 = vmatpush1.bf16.msra.mxu0 %v1945
  %2447 = vmatprep.subr.bf16.mxu0 %v1954
  %2448 = vmatpush1.bf16.msra.mxu0 %v1953
  %2449 = vmatprep.subr.bf16.mxu0 %v1962
  %2450 = vmatpush1.bf16.msra.mxu0 %v1961
  %2451 = vmatprep.subr.bf16.mxu0 %v1970
  %2452 = vmatpush1.bf16.msra.mxu0 %v1969
  %2453 = vmatprep.subr.bf16.mxu0 %v1978
  %2454 = vmatpush1.bf16.msra.mxu0 %v1977
  %2455 = vmatprep.subr.bf16.mxu0 %v1986
  %2456 = vmatpush1.bf16.msra.mxu0 %v1985
  %2457 = vmatprep.subr.bf16.mxu0 %v1994
  %2458 = vmatpush1.bf16.msra.mxu0 %v1993
  %2459 = vmatprep.subr.bf16.mxu0 %v2002
  %2460 = vmatpush1.bf16.msra.mxu0 %v2001
  %2461 = vmatprep.subr.bf16.mxu0 %v2010
  %2462 = vmatpush1.bf16.msra.mxu0 %v2009
  %2463 = vmatprep.subr.bf16.mxu0 %v2018
  %2464 = vmatpush1.bf16.msra.mxu0 %v2017
  %2465 = vmatprep.subr.bf16.mxu0 %v2026
  %2466 = vmatpush1.bf16.msra.mxu0 %v2025
  %2467 = vmatprep.subr.bf16.mxu0 %v2034
  %2468 = vmatpush1.bf16.msra.mxu0 %v2033
  %2469 = vmatprep.subr.bf16.mxu0 %v2042
  %2470 = vmatpush1.bf16.msra.mxu0 %v2041
  %2471 = vmatprep.subr.bf16.mxu0 %v2050
  %2472 = vmatpush1.bf16.msra.mxu0 %v2049
  %2473 = vmatprep.mubr.bf16.mxu0 %v860
  %2474 = vmatmul.mubr.bf16.gmra.mrb[0].mxu0 %v859
  %v2475 = vpop.f32.mrb[0].mxu0
  %v2476 = vadd.f32 %v1124, %v2475
  %v2477 = vpop.f32.mrb[0].mxu0
  %v2478 = vadd.f32 %v1128, %v2477
  %v2479 = vpop.f32.mrb[0].mxu0
  %v2480 = vadd.f32 %v1124, %v2479
  %v2481 = vpop.f32.mrb[0].mxu0
  %v2482 = vadd.f32 %v1128, %v2481
  %2483 = vdwg.mxu0
  %2484 = vmatprep.subr.bf16.mxu0 %v2058
  %2485 = vmatpush1.bf16.msra.mxu0 %v2057
  %2486 = vmatprep.subr.bf16.mxu0 %v2066
  %2487 = vmatpush1.bf16.msra.mxu0 %v2065
  %2488 = vmatprep.subr.bf16.mxu0 %v2074
  %2489 = vmatpush1.bf16.msra.mxu0 %v2073
  %2490 = vmatprep.subr.bf16.mxu0 %v2082
  %2491 = vmatpush1.bf16.msra.mxu0 %v2081
  %2492 = vmatprep.subr.bf16.mxu0 %v2090
  %2493 = vmatpush1.bf16.msra.mxu0 %v2089
  %2494 = vmatprep.subr.bf16.mxu0 %v2098
  %2495 = vmatpush1.bf16.msra.mxu0 %v2097
  %2496 = vmatprep.subr.bf16.mxu0 %v2106
  %2497 = vmatpush1.bf16.msra.mxu0 %v2105
  %2498 = vmatprep.subr.bf16.mxu0 %v2114
  %2499 = vmatpush1.bf16.msra.mxu0 %v2113
  %2500 = vmatprep.subr.bf16.mxu0 %v2122
  %2501 = vmatpush1.bf16.msra.mxu0 %v2121
  %2502 = vmatprep.subr.bf16.mxu0 %v2130
  %2503 = vmatpush1.bf16.msra.mxu0 %v2129
  %2504 = vmatprep.subr.bf16.mxu0 %v2138
  %2505 = vmatpush1.bf16.msra.mxu0 %v2137
  %2506 = vmatprep.subr.bf16.mxu0 %v2146
  %2507 = vmatpush1.bf16.msra.mxu0 %v2145
  %2508 = vmatprep.subr.bf16.mxu0 %v2154
  %2509 = vmatpush1.bf16.msra.mxu0 %v2153
  %2510 = vmatprep.subr.bf16.mxu0 %v2162
  %2511 = vmatpush1.bf16.msra.mxu0 %v2161
  %2512 = vmatprep.subr.bf16.mxu0 %v2170
  %2513 = vmatpush1.bf16.msra.mxu0 %v2169
  %2514 = vmatprep.subr.bf16.mxu0 %v2178
  %2515 = vmatpush1.bf16.msra.mxu0 %v2177
  %2516 = vmatprep.mubr.bf16.mxu0 %v862
  %2517 = vmatmul.mubr.bf16.gmra.mrb[0].mxu0 %v861
  %v2518 = vpop.f32.mrb[0].mxu0
  %v2519 = vadd.f32 %v2476, %v2518
  %v2520 = vpop.f32.mrb[0].mxu0
  %v2521 = vadd.f32 %v2478, %v2520
  %v2522 = vpop.f32.mrb[0].mxu0
  %v2523 = vadd.f32 %v2480, %v2522
  %v2524 = vpop.f32.mrb[0].mxu0
  %v2525 = vadd.f32 %v2482, %v2524
  %2526 = vdwg.mxu0
  %2527 = vmatprep.subr.bf16.mxu0 %v1932
  %2528 = vmatpush1.bf16.msra.mxu0 %v1931
  %2529 = vmatprep.subr.bf16.mxu0 %v1940
  %2530 = vmatpush1.bf16.msra.mxu0 %v1939
  %2531 = vmatprep.subr.bf16.mxu0 %v1948
  %2532 = vmatpush1.bf16.msra.mxu0 %v1947
  %2533 = vmatprep.subr.bf16.mxu0 %v1956
  %2534 = vmatpush1.bf16.msra.mxu0 %v1955
  %2535 = vmatprep.subr.bf16.mxu0 %v1964
  %2536 = vmatpush1.bf16.msra.mxu0 %v1963
  %2537 = vmatprep.subr.bf16.mxu0 %v1972
  %2538 = vmatpush1.bf16.msra.mxu0 %v1971
  %2539 = vmatprep.subr.bf16.mxu0 %v1980
  %2540 = vmatpush1.bf16.msra.mxu0 %v1979
  %2541 = vmatprep.subr.bf16.mxu0 %v1988
  %2542 = vmatpush1.bf16.msra.mxu0 %v1987
  %2543 = vmatprep.subr.bf16.mxu0 %v1996
  %2544 = vmatpush1.bf16.msra.mxu0 %v1995
  %2545 = vmatprep.subr.bf16.mxu0 %v2004
  %2546 = vmatpush1.bf16.msra.mxu0 %v2003
  %2547 = vmatprep.subr.bf16.mxu0 %v2012
  %2548 = vmatpush1.bf16.msra.mxu0 %v2011
  %2549 = vmatprep.subr.bf16.mxu0 %v2020
  %2550 = vmatpush1.bf16.msra.mxu0 %v2019
  %2551 = vmatprep.subr.bf16.mxu0 %v2028
  %2552 = vmatpush1.bf16.msra.mxu0 %v2027
  %2553 = vmatprep.subr.bf16.mxu0 %v2036
  %2554 = vmatpush1.bf16.msra.mxu0 %v2035
  %2555 = vmatprep.subr.bf16.mxu0 %v2044
  %2556 = vmatpush1.bf16.msra.mxu0 %v2043
  %2557 = vmatprep.subr.bf16.mxu0 %v2052
  %2558 = vmatpush1.bf16.msra.mxu0 %v2051
  %2559 = vmatprep.mubr.bf16.mxu0 %v860
  %2560 = vmatmul.mubr.bf16.gmra.mrb[0].mxu0 %v859
  %v2561 = vpop.f32.mrb[0].mxu0
  %v2562 = vadd.f32 %v1132, %v2561
  %v2563 = vpop.f32.mrb[0].mxu0
  %v2564 = vadd.f32 %v1136, %v2563
  %v2565 = vpop.f32.mrb[0].mxu0
  %v2566 = vadd.f32 %v1132, %v2565
  %v2567 = vpop.f32.mrb[0].mxu0
  %v2568 = vadd.f32 %v1136, %v2567
  %2569 = vdwg.mxu0
  %2570 = vmatprep.subr.bf16.mxu0 %v2060
  %2571 = vmatpush1.bf16.msra.mxu0 %v2059
  %2572 = vmatprep.subr.bf16.mxu0 %v2068
  %2573 = vmatpush1.bf16.msra.mxu0 %v2067
  %2574 = vmatprep.subr.bf16.mxu0 %v2076
  %2575 = vmatpush1.bf16.msra.mxu0 %v2075
  %2576 = vmatprep.subr.bf16.mxu0 %v2084
  %2577 = vmatpush1.bf16.msra.mxu0 %v2083
  %2578 = vmatprep.subr.bf16.mxu0 %v2092
  %2579 = vmatpush1.bf16.msra.mxu0 %v2091
  %2580 = vmatprep.subr.bf16.mxu0 %v2100
  %2581 = vmatpush1.bf16.msra.mxu0 %v2099
  %2582 = vmatprep.subr.bf16.mxu0 %v2108
  %2583 = vmatpush1.bf16.msra.mxu0 %v2107
  %2584 = vmatprep.subr.bf16.mxu0 %v2116
  %2585 = vmatpush1.bf16.msra.mxu0 %v2115
  %2586 = vmatprep.subr.bf16.mxu0 %v2124
  %2587 = vmatpush1.bf16.msra.mxu0 %v2123
  %2588 = vmatprep.subr.bf16.mxu0 %v2132
  %2589 = vmatpush1.bf16.msra.mxu0 %v2131
  %2590 = vmatprep.subr.bf16.mxu0 %v2140
  %2591 = vmatpush1.bf16.msra.mxu0 %v2139
  %2592 = vmatprep.subr.bf16.mxu0 %v2148
  %2593 = vmatpush1.bf16.msra.mxu0 %v2147
  %2594 = vmatprep.subr.bf16.mxu0 %v2156
  %2595 = vmatpush1.bf16.msra.mxu0 %v2155
  %2596 = vmatprep.subr.bf16.mxu0 %v2164
  %2597 = vmatpush1.bf16.msra.mxu0 %v2163
  %2598 = vmatprep.subr.bf16.mxu0 %v2172
  %2599 = vmatpush1.bf16.msra.mxu0 %v2171
  %2600 = vmatprep.subr.bf16.mxu0 %v2180
  %2601 = vmatpush1.bf16.msra.mxu0 %v2179
  %2602 = vmatprep.mubr.bf16.mxu0 %v862
  %2603 = vmatmul.mubr.bf16.gmra.mrb[0].mxu0 %v861
  %v2604 = vpop.f32.mrb[0].mxu0
  %v2605 = vadd.f32 %v2562, %v2604
  %v2606 = vpop.f32.mrb[0].mxu0
  %v2607 = vadd.f32 %v2564, %v2606
  %v2608 = vpop.f32.mrb[0].mxu0
  %v2609 = vadd.f32 %v2566, %v2608
  %v2610 = vpop.f32.mrb[0].mxu0
  %v2611 = vadd.f32 %v2568, %v2610
  %2612 = vdwg.mxu0
  %2613 = vmatprep.subr.bf16.mxu0 %v1934
  %2614 = vmatpush1.bf16.msra.mxu0 %v1933
  %2615 = vmatprep.subr.bf16.mxu0 %v1942
  %2616 = vmatpush1.bf16.msra.mxu0 %v1941
  %2617 = vmatprep.subr.bf16.mxu0 %v1950
  %2618 = vmatpush1.bf16.msra.mxu0 %v1949
  %2619 = vmatprep.subr.bf16.mxu0 %v1958
  %2620 = vmatpush1.bf16.msra.mxu0 %v1957
  %2621 = vmatprep.subr.bf16.mxu0 %v1966
  %2622 = vmatpush1.bf16.msra.mxu0 %v1965
  %2623 = vmatprep.subr.bf16.mxu0 %v1974
  %2624 = vmatpush1.bf16.msra.mxu0 %v1973
  %2625 = vmatprep.subr.bf16.mxu0 %v1982
  %2626 = vmatpush1.bf16.msra.mxu0 %v1981
  %2627 = vmatprep.subr.bf16.mxu0 %v1990
  %2628 = vmatpush1.bf16.msra.mxu0 %v1989
  %2629 = vmatprep.subr.bf16.mxu0 %v1998
  %2630 = vmatpush1.bf16.msra.mxu0 %v1997
  %2631 = vmatprep.subr.bf16.mxu0 %v2006
  %2632 = vmatpush1.bf16.msra.mxu0 %v2005
  %2633 = vmatprep.subr.bf16.mxu0 %v2014
  %2634 = vmatpush1.bf16.msra.mxu0 %v2013
  %2635 = vmatprep.subr.bf16.mxu0 %v2022
  %2636 = vmatpush1.bf16.msra.mxu0 %v2021
  %2637 = vmatprep.subr.bf16.mxu0 %v2030
  %2638 = vmatpush1.bf16.msra.mxu0 %v2029
  %2639 = vmatprep.subr.bf16.mxu0 %v2038
  %2640 = vmatpush1.bf16.msra.mxu0 %v2037
  %2641 = vmatprep.subr.bf16.mxu0 %v2046
  %2642 = vmatpush1.bf16.msra.mxu0 %v2045
  %2643 = vmatprep.subr.bf16.mxu0 %v2054
  %2644 = vmatpush1.bf16.msra.mxu0 %v2053
  %2645 = vmatprep.mubr.bf16.mxu0 %v860
  %2646 = vmatmul.mubr.bf16.gmra.mrb[0].mxu0 %v859
  %v2647 = vpop.f32.mrb[0].mxu0
  %v2648 = vadd.f32 %v1140, %v2647
  %v2649 = vpop.f32.mrb[0].mxu0
  %v2650 = vadd.f32 %v1144, %v2649
  %v2651 = vpop.f32.mrb[0].mxu0
  %v2652 = vadd.f32 %v1140, %v2651
  %v2653 = vpop.f32.mrb[0].mxu0
  %v2654 = vadd.f32 %v1144, %v2653
  %2655 = vdwg.mxu0
  %2656 = vmatprep.subr.bf16.mxu0 %v2062
  %2657 = vmatpush1.bf16.msra.mxu0 %v2061
  %2658 = vmatprep.subr.bf16.mxu0 %v2070
  %2659 = vmatpush1.bf16.msra.mxu0 %v2069
  %2660 = vmatprep.subr.bf16.mxu0 %v2078
  %2661 = vmatpush1.bf16.msra.mxu0 %v2077
  %2662 = vmatprep.subr.bf16.mxu0 %v2086
  %2663 = vmatpush1.bf16.msra.mxu0 %v2085
  %2664 = vmatprep.subr.bf16.mxu0 %v2094
  %2665 = vmatpush1.bf16.msra.mxu0 %v2093
  %2666 = vmatprep.subr.bf16.mxu0 %v2102
  %2667 = vmatpush1.bf16.msra.mxu0 %v2101
  %2668 = vmatprep.subr.bf16.mxu0 %v2110
  %2669 = vmatpush1.bf16.msra.mxu0 %v2109
  %2670 = vmatprep.subr.bf16.mxu0 %v2118
  %2671 = vmatpush1.bf16.msra.mxu0 %v2117
  %2672 = vmatprep.subr.bf16.mxu0 %v2126
  %2673 = vmatpush1.bf16.msra.mxu0 %v2125
  %2674 = vmatprep.subr.bf16.mxu0 %v2134
  %2675 = vmatpush1.bf16.msra.mxu0 %v2133
  %2676 = vmatprep.subr.bf16.mxu0 %v2142
  %2677 = vmatpush1.bf16.msra.mxu0 %v2141
  %2678 = vmatprep.subr.bf16.mxu0 %v2150
  %2679 = vmatpush1.bf16.msra.mxu0 %v2149
  %2680 = vmatprep.subr.bf16.mxu0 %v2158
  %2681 = vmatpush1.bf16.msra.mxu0 %v2157
  %2682 = vmatprep.subr.bf16.mxu0 %v2166
  %2683 = vmatpush1.bf16.msra.mxu0 %v2165
  %2684 = vmatprep.subr.bf16.mxu0 %v2174
  %2685 = vmatpush1.bf16.msra.mxu0 %v2173
  %2686 = vmatprep.subr.bf16.mxu0 %v2182
  %2687 = vmatpush1.bf16.msra.mxu0 %v2181
  %2688 = vmatprep.mubr.bf16.mxu0 %v862
  %2689 = vmatmul.mubr.bf16.gmra.mrb[0].mxu0 %v861
  %v2690 = vpop.f32.mrb[0].mxu0
  %v2691 = vadd.f32 %v2648, %v2690
  %v2692 = vpop.f32.mrb[0].mxu0
  %v2693 = vadd.f32 %v2650, %v2692
  %v2694 = vpop.f32.mrb[0].mxu0
  %v2695 = vadd.f32 %v2652, %v2694
  %v2696 = vpop.f32.mrb[0].mxu0
  %v2697 = vadd.f32 %v2654, %v2696
  %2698 = vdwg.mxu0
  %2699 = vmatprep.subr.bf16.mxu0 %v1936
  %2700 = vmatpush1.bf16.msra.mxu0 %v1935
  %2701 = vmatprep.subr.bf16.mxu0 %v1944
  %2702 = vmatpush1.bf16.msra.mxu0 %v1943
  %2703 = vmatprep.subr.bf16.mxu0 %v1952
  %2704 = vmatpush1.bf16.msra.mxu0 %v1951
  %2705 = vmatprep.subr.bf16.mxu0 %v1960
  %2706 = vmatpush1.bf16.msra.mxu0 %v1959
  %2707 = vmatprep.subr.bf16.mxu0 %v1968
  %2708 = vmatpush1.bf16.msra.mxu0 %v1967
  %2709 = vmatprep.subr.bf16.mxu0 %v1976
  %2710 = vmatpush1.bf16.msra.mxu0 %v1975
  %2711 = vmatprep.subr.bf16.mxu0 %v1984
  %2712 = vmatpush1.bf16.msra.mxu0 %v1983
  %2713 = vmatprep.subr.bf16.mxu0 %v1992
  %2714 = vmatpush1.bf16.msra.mxu0 %v1991
  %2715 = vmatprep.subr.bf16.mxu0 %v2000
  %2716 = vmatpush1.bf16.msra.mxu0 %v1999
  %2717 = vmatprep.subr.bf16.mxu0 %v2008
  %2718 = vmatpush1.bf16.msra.mxu0 %v2007
  %2719 = vmatprep.subr.bf16.mxu0 %v2016
  %2720 = vmatpush1.bf16.msra.mxu0 %v2015
  %2721 = vmatprep.subr.bf16.mxu0 %v2024
  %2722 = vmatpush1.bf16.msra.mxu0 %v2023
  %2723 = vmatprep.subr.bf16.mxu0 %v2032
  %2724 = vmatpush1.bf16.msra.mxu0 %v2031
  %2725 = vmatprep.subr.bf16.mxu0 %v2040
  %2726 = vmatpush1.bf16.msra.mxu0 %v2039
  %2727 = vmatprep.subr.bf16.mxu0 %v2048
  %2728 = vmatpush1.bf16.msra.mxu0 %v2047
  %2729 = vmatprep.subr.bf16.mxu0 %v2056
  %2730 = vmatpush1.bf16.msra.mxu0 %v2055
  %2731 = vmatprep.mubr.bf16.mxu0 %v860
  %2732 = vmatmul.mubr.bf16.gmra.mrb[0].mxu0 %v859
  %v2733 = vpop.f32.mrb[0].mxu0
  %v2734 = vadd.f32 %v1148, %v2733
  %v2735 = vpop.f32.mrb[0].mxu0
  %v2736 = vadd.f32 %v1152, %v2735
  %v2737 = vpop.f32.mrb[0].mxu0
  %v2738 = vadd.f32 %v1148, %v2737
  %v2739 = vpop.f32.mrb[0].mxu0
  %v2740 = vadd.f32 %v1152, %v2739
  %2741 = vdwg.mxu0
  %2742 = vmatprep.subr.bf16.mxu0 %v2064
  %2743 = vmatpush1.bf16.msra.mxu0 %v2063
  %2744 = vmatprep.subr.bf16.mxu0 %v2072
  %2745 = vmatpush1.bf16.msra.mxu0 %v2071
  %2746 = vmatprep.subr.bf16.mxu0 %v2080
  %2747 = vmatpush1.bf16.msra.mxu0 %v2079
  %2748 = vmatprep.subr.bf16.mxu0 %v2088
  %2749 = vmatpush1.bf16.msra.mxu0 %v2087
  %2750 = vmatprep.subr.bf16.mxu0 %v2096
  %2751 = vmatpush1.bf16.msra.mxu0 %v2095
  %2752 = vmatprep.subr.bf16.mxu0 %v2104
  %2753 = vmatpush1.bf16.msra.mxu0 %v2103
  %2754 = vmatprep.subr.bf16.mxu0 %v2112
  %2755 = vmatpush1.bf16.msra.mxu0 %v2111
  %2756 = vmatprep.subr.bf16.mxu0 %v2120
  %2757 = vmatpush1.bf16.msra.mxu0 %v2119
  %2758 = vmatprep.subr.bf16.mxu0 %v2128
  %2759 = vmatpush1.bf16.msra.mxu0 %v2127
  %2760 = vmatprep.subr.bf16.mxu0 %v2136
  %2761 = vmatpush1.bf16.msra.mxu0 %v2135
  %2762 = vmatprep.subr.bf16.mxu0 %v2144
  %2763 = vmatpush1.bf16.msra.mxu0 %v2143
  %2764 = vmatprep.subr.bf16.mxu0 %v2152
  %2765 = vmatpush1.bf16.msra.mxu0 %v2151
  %2766 = vmatprep.subr.bf16.mxu0 %v2160
  %2767 = vmatpush1.bf16.msra.mxu0 %v2159
  %2768 = vmatprep.subr.bf16.mxu0 %v2168
  %2769 = vmatpush1.bf16.msra.mxu0 %v2167
  %2770 = vmatprep.subr.bf16.mxu0 %v2176
  %2771 = vmatpush1.bf16.msra.mxu0 %v2175
  %2772 = vmatprep.subr.bf16.mxu0 %v2184
  %2773 = vmatpush1.bf16.msra.mxu0 %v2183
  %2774 = vmatprep.mubr.bf16.mxu0 %v862
  %2775 = vmatmul.mubr.bf16.gmra.mrb[0].mxu0 %v861
  %v2776 = vpop.f32.mrb[0].mxu0
  %v2777 = vadd.f32 %v2734, %v2776
  %v2778 = vpop.f32.mrb[0].mxu0
  %v2779 = vadd.f32 %v2736, %v2778
  %v2780 = vpop.f32.mrb[0].mxu0
  %v2781 = vadd.f32 %v2738, %v2780
  %v2782 = vpop.f32.mrb[0].mxu0
  %v2783 = vadd.f32 %v2740, %v2782
  %2784 = vdwg.mxu0
  %v2785 = vmax.f32 %v2519, 0.0
  %v2786 = vmax.f32 %v2521, 0.0
  %v2787 = vmax.f32 %v2605, 0.0
  %v2788 = vmax.f32 %v2607, 0.0
  %v2789 = vmax.f32 %v2691, 0.0
  %v2790 = vmax.f32 %v2693, 0.0
  %v2791 = vmax.f32 %v2777, 0.0
  %v2792 = vmax.f32 %v2779, 0.0
  %v2793 = vmax.f32 %v2523, 0.0
  %v2794 = vmax.f32 %v2525, 0.0
  %v2795 = vmax.f32 %v2609, 0.0
  %v2796 = vmax.f32 %v2611, 0.0
  %v2797 = vmax.f32 %v2695, 0.0
  %v2798 = vmax.f32 %v2697, 0.0
  %v2799 = vmax.f32 %v2781, 0.0
  %v2800 = vmax.f32 %v2783, 0.0
  %v2801 = vrot.slane %v2785, 4
  %v2802 = vmax.f32 %v2785, %v2801
  %v2803 = vrot.slane %v2802, 2
  %v2804 = vmax.f32 %v2802, %v2803
  %v2805 = vrot.slane %v2804, 1
  %v2806 = vmax.f32 %v2804, %v2805
  %v2807 = vrot.slane %v2786, 4
  %v2808 = vmax.f32 %v2786, %v2807
  %v2809 = vrot.slane %v2808, 2
  %v2810 = vmax.f32 %v2808, %v2809
  %v2811 = vrot.slane %v2810, 1
  %v2812 = vmax.f32 %v2810, %v2811
  %v2813 = vrot.slane %v2787, 4
  %v2814 = vmax.f32 %v2787, %v2813
  %v2815 = vrot.slane %v2814, 2
  %v2816 = vmax.f32 %v2814, %v2815
  %v2817 = vrot.slane %v2816, 1
  %v2818 = vmax.f32 %v2816, %v2817
  %v2819 = vrot.slane %v2788, 4
  %v2820 = vmax.f32 %v2788, %v2819
  %v2821 = vrot.slane %v2820, 2
  %v2822 = vmax.f32 %v2820, %v2821
  %v2823 = vrot.slane %v2822, 1
  %v2824 = vmax.f32 %v2822, %v2823
  %v2825 = vrot.slane %v2789, 4
  %v2826 = vmax.f32 %v2789, %v2825
  %v2827 = vrot.slane %v2826, 2
  %v2828 = vmax.f32 %v2826, %v2827
  %v2829 = vrot.slane %v2828, 1
  %v2830 = vmax.f32 %v2828, %v2829
  %v2831 = vrot.slane %v2790, 4
  %v2832 = vmax.f32 %v2790, %v2831
  %v2833 = vrot.slane %v2832, 2
  %v2834 = vmax.f32 %v2832, %v2833
  %v2835 = vrot.slane %v2834, 1
  %v2836 = vmax.f32 %v2834, %v2835
  %v2837 = vrot.slane %v2791, 4
  %v2838 = vmax.f32 %v2791, %v2837
  %v2839 = vrot.slane %v2838, 2
  %v2840 = vmax.f32 %v2838, %v2839
  %v2841 = vrot.slane %v2840, 1
  %v2842 = vmax.f32 %v2840, %v2841
  %v2843 = vrot.slane %v2792, 4
  %v2844 = vmax.f32 %v2792, %v2843
  %v2845 = vrot.slane %v2844, 2
  %v2846 = vmax.f32 %v2844, %v2845
  %v2847 = vrot.slane %v2846, 1
  %v2848 = vmax.f32 %v2846, %v2847
  %v2849 = vrot.slane %v2793, 4
  %v2850 = vmax.f32 %v2793, %v2849
  %v2851 = vrot.slane %v2850, 2
  %v2852 = vmax.f32 %v2850, %v2851
  %v2853 = vrot.slane %v2852, 1
  %v2854 = vmax.f32 %v2852, %v2853
  %v2855 = vrot.slane %v2794, 4
  %v2856 = vmax.f32 %v2794, %v2855
  %v2857 = vrot.slane %v2856, 2
  %v2858 = vmax.f32 %v2856, %v2857
  %v2859 = vrot.slane %v2858, 1
  %v2860 = vmax.f32 %v2858, %v2859
  %v2861 = vrot.slane %v2795, 4
  %v2862 = vmax.f32 %v2795, %v2861
  %v2863 = vrot.slane %v2862, 2
  %v2864 = vmax.f32 %v2862, %v2863
  %v2865 = vrot.slane %v2864, 1
  %v2866 = vmax.f32 %v2864, %v2865
  %v2867 = vrot.slane %v2796, 4
  %v2868 = vmax.f32 %v2796, %v2867
  %v2869 = vrot.slane %v2868, 2
  %v2870 = vmax.f32 %v2868, %v2869
  %v2871 = vrot.slane %v2870, 1
  %v2872 = vmax.f32 %v2870, %v2871
  %v2873 = vrot.slane %v2797, 4
  %v2874 = vmax.f32 %v2797, %v2873
  %v2875 = vrot.slane %v2874, 2
  %v2876 = vmax.f32 %v2874, %v2875
  %v2877 = vrot.slane %v2876, 1
  %v2878 = vmax.f32 %v2876, %v2877
  %v2879 = vrot.slane %v2798, 4
  %v2880 = vmax.f32 %v2798, %v2879
  %v2881 = vrot.slane %v2880, 2
  %v2882 = vmax.f32 %v2880, %v2881
  %v2883 = vrot.slane %v2882, 1
  %v2884 = vmax.f32 %v2882, %v2883
  %v2885 = vrot.slane %v2799, 4
  %v2886 = vmax.f32 %v2799, %v2885
  %v2887 = vrot.slane %v2886, 2
  %v2888 = vmax.f32 %v2886, %v2887
  %v2889 = vrot.slane %v2888, 1
  %v2890 = vmax.f32 %v2888, %v2889
  %v2891 = vrot.slane %v2800, 4
  %v2892 = vmax.f32 %v2800, %v2891
  %v2893 = vrot.slane %v2892, 2
  %v2894 = vmax.f32 %v2892, %v2893
  %v2895 = vrot.slane %v2894, 1
  %v2896 = vmax.f32 %v2894, %v2895
  %v2913 = vcombine.low %v2806, %v2812
  %v2914 = vcombine.low %v2818, %v2824
  %v2916 = vunpack.c.l.s4 1983009808
  %v2917 = vunpack.c.0.s8 %v2916
  %v2918 = vlaneseq
  %v2919 = vshrl.u32 %v2918, 7
  %v2920 = vsub.s32 %v2917, %v2919
  %v2921 = vrot.slane %v2913, %v2920
  %v2923 = vunpack.c.l.s4 1983009808
  %v2924 = vunpack.c.0.s8 %v2923
  %v2925 = vlaneseq
  %v2926 = vshrl.u32 %v2925, 7
  %v2927 = vsub.s32 %v2924, %v2926
  %v2928 = vrot.slane %v2914, %v2927
  %v2929 = vcombine.low %v2921, %v2928
  %v2930 = vcombine.low %v2830, %v2836
  %v2931 = vcombine.low %v2842, %v2848
  %v2933 = vunpack.c.l.s4 1983009808
  %v2934 = vunpack.c.0.s8 %v2933
  %v2935 = vlaneseq
  %v2936 = vshrl.u32 %v2935, 7
  %v2937 = vsub.s32 %v2934, %v2936
  %v2938 = vrot.slane %v2930, %v2937
  %v2940 = vunpack.c.l.s4 1983009808
  %v2941 = vunpack.c.0.s8 %v2940
  %v2942 = vlaneseq
  %v2943 = vshrl.u32 %v2942, 7
  %v2944 = vsub.s32 %v2941, %v2943
  %v2945 = vrot.slane %v2931, %v2944
  %v2946 = vcombine.low %v2938, %v2945
  %v2947 = vcombine.low %v2854, %v2860
  %v2948 = vcombine.low %v2866, %v2872
  %v2950 = vunpack.c.l.s4 1983009808
  %v2951 = vunpack.c.0.s8 %v2950
  %v2952 = vlaneseq
  %v2953 = vshrl.u32 %v2952, 7
  %v2954 = vsub.s32 %v2951, %v2953
  %v2955 = vrot.slane %v2947, %v2954
  %v2957 = vunpack.c.l.s4 1983009808
  %v2958 = vunpack.c.0.s8 %v2957
  %v2959 = vlaneseq
  %v2960 = vshrl.u32 %v2959, 7
  %v2961 = vsub.s32 %v2958, %v2960
  %v2962 = vrot.slane %v2948, %v2961
  %v2963 = vcombine.low %v2955, %v2962
  %v2964 = vcombine.low %v2878, %v2884
  %v2965 = vcombine.low %v2890, %v2896
  %v2967 = vunpack.c.l.s4 1983009808
  %v2968 = vunpack.c.0.s8 %v2967
  %v2969 = vlaneseq
  %v2970 = vshrl.u32 %v2969, 7
  %v2971 = vsub.s32 %v2968, %v2970
  %v2972 = vrot.slane %v2964, %v2971
  %v2974 = vunpack.c.l.s4 1983009808
  %v2975 = vunpack.c.0.s8 %v2974
  %v2976 = vlaneseq
  %v2977 = vshrl.u32 %v2976, 7
  %v2978 = vsub.s32 %v2975, %v2977
  %v2979 = vrot.slane %v2965, %v2978
  %v2980 = vcombine.low %v2972, %v2979
  %vm2981 = vcmask 1044484
  %v2982 = vsel %vm2981, %v2929, %v2929
  %vm2983 = vcmask 1046534
  %v2984 = vsel %vm2983, %v2929, %v2982
  %v2985 = vrot.slane %v2963, 7
  %vm2986 = vcmask 1041409
  %v2987 = vsel %vm2986, %v2985, %v2984
  %vm2988 = vcmask 1043459
  %v2989 = vsel %vm2988, %v2985, %v2987
  %vm2990 = vcmask 1045509
  %v2991 = vsel %vm2990, %v2985, %v2989
  %vm2992 = vcmask 1047559
  %v2993 = vsel %vm2992, %v2985, %v2991
  %v2994 = vsel %vm2981, %v2946, %v2946
  %v2995 = vsel %vm2983, %v2946, %v2994
  %v2996 = vrot.slane %v2980, 7
  %v2997 = vsel %vm2986, %v2996, %v2995
  %v2998 = vsel %vm2988, %v2996, %v2997
  %v2999 = vsel %vm2990, %v2996, %v2998
  %v3000 = vsel %vm2992, %v2996, %v2999
  %3003 = vst [vmem:[%s7] sm:$0xff] %v2993
  %3004 = vst [vmem:[%s7 + $0x8] sm:$0xff] %v3000
  // Predicated region
  $region30: #{pointnet_plus_forward.8} parent=0 // pred_check
    _
  $region31: #{pointnet_plus_forward.8} parent=0 // pred_check_branch
    %3006 = sbr.rel (0) target = $region33
  $region32: #{pointnet_plus_forward.8} parent=0 // pred_region
    _
  $region33: #{pointnet_plus_forward.8} parent=0 // pred_fallthru
    _
  // Predicated region
  $region34: #{pointnet_plus_forward.8} parent=0 // pred_check
    _
  $region35: #{pointnet_plus_forward.8} parent=0 // pred_check_branch
    %3008 = sbr.rel (0) target = $region37
  $region36: #{pointnet_plus_forward.8} parent=0 // pred_region
    _
  $region37: #{pointnet_plus_forward.8} parent=0 // pred_fallthru
    _

// kernel: pointnet_plus_forward.10
$region0: #{pointnet_plus_forward.10}
  #allocation0 [shape = 'u32[]', space=smem, size = 0x4, offset = 0x4, fixed_abs, tag = 'smem constant byte address 0x4 - core index']
  #allocation1 [shape = 'u32[144,128]{1,0:T(1,128)}', space=vmem, size = 0x12000, scoped, tag = 'internal scratch']
  %s0 = inlined_call_operand.vmem [shape: bf16[64,384], index: 0, kind: input, shape index: {}]
  %s1 = inlined_call_operand.vmem [shape: bf16[384,256], index: 1, kind: input, shape index: {}]
  %s2 = inlined_call_operand.vmem [shape: f32[1,256], index: 2, kind: input, shape index: {}]
  %s3 = inlined_call_operand.vmem [shape: bf16[256,128], index: 3, kind: input, shape index: {}]
  %s4 = inlined_call_operand.vmem [shape: f32[1,128], index: 4, kind: input, shape index: {}]
  %s5 = inlined_call_operand.vmem [shape: f32[64,128], index: 5, kind: output, shape index: {}]
  %s6 = sld [smem:[#allocation0]]
  $region53: #{pointnet_plus_forward.10} parent=0
    _
  %s8 = ssub.s32 1, %s6
  %s9 = scalar_select 0, %s8, %s6
  loop: start=0, step=1, limit=4
  $region2: #{pointnet_plus_forward.10} parent=0 // loop_pre_header
    _
  $region3: #{pointnet_plus_forward.10} parent=0 // loop_header
    %s11 = sphi 0, %s15
    %p12 = scmp.ge.s32.totalorder %s11, 4
    %s21 = sphi 0, %s23
    %s24 = sphi 0, %s21
    %s25 = sphi 0, %s24
    %s41 = sphi 0, %s25
    %s45 = sphi 0, %s45
    %s47 = sphi 0, %s45
    %s48 = sphi 0, %s47
    %s62 = sphi 0, %s48
    %s66 = sphi 0, %s66
    %s68 = sphi 0, %s66
    %s69 = sphi 0, %s68
    %s83 = sphi 0, %s69
    %s87 = sphi 0, %s87
    %s89 = sphi 0, %s87
    %s90 = sphi 0, %s89
    %s104 = sphi 0, %s90
    %s108 = sphi 0, %s108
    %s110 = sphi 0, %s108
    %s111 = sphi 0, %s110
    %s125 = sphi 0, %s111
    %s131 = sphi 0, %s133
    %s134 = sphi 0, %s131
    %s135 = sphi 0, %s134
    %s151 = sphi 0, %s135
  $region4: #{pointnet_plus_forward.10} parent=0 // loop_header_branch
    %14 = sbr.rel (%p12) target = $region8
  $region5: #{pointnet_plus_forward.10} parent=0 // loop_body
    %s16 = ssub.s32 %s11, 1
    %s17 = ssub.s32 %s11, 2
    %s18 = sadd.s32 %s11, 1
    %s19 = ssub.s32 %s11, %s18
    %p20 = scmp.eq.s32.totalorder %s19, 0
    %s22 = sadd.s32 %s21, 1
    %s23 = scalar_select %p20, %s21, %s22
    %p26 = pneg %p20
    %p27 = scmp.eq.s32.totalorder %s11, 1
    %p28 = por %p26, %p27
    %p29 = scmp.ne.s32.totalorder %s21, %s24
    %p30 = scmp.eq.s32.totalorder %s11, 0
    %p31 = por %p29, %p30
    %p32 = scmp.ne.s32.totalorder %s21, %s24
    %p33 = scmp.eq.s32.totalorder %s16, 1
    %p34 = por %p32, %p33
    %p35 = scmp.ne.s32.totalorder %s24, %s25
    %p36 = scmp.eq.s32.totalorder %s16, 0
    %p37 = por %p35, %p36
    %p38 = scmp.ne.s32.totalorder %s24, %s25
    %p39 = scmp.eq.s32.totalorder %s17, 1
    %p40 = por %p38, %p39
    %p42 = scmp.ne.s32.totalorder %s25, %s41
    %p43 = scmp.eq.s32.totalorder %s17, 0
    %p44 = por %p42, %p43
    %s46 = sadd.s32 %s45, 1
    %p49 = scmp.eq.s32.totalorder %s11, 1
    %p50 = scmp.ne.s32.totalorder %s45, %s47
    %p51 = scmp.eq.s32.totalorder %s11, 0
    %p52 = por %p50, %p51
    %p53 = scmp.ne.s32.totalorder %s45, %s47
    %p54 = scmp.eq.s32.totalorder %s16, 1
    %p55 = por %p53, %p54
    %p56 = scmp.ne.s32.totalorder %s47, %s48
    %p57 = scmp.eq.s32.totalorder %s16, 0
    %p58 = por %p56, %p57
    %p59 = scmp.ne.s32.totalorder %s47, %s48
    %p60 = scmp.eq.s32.totalorder %s17, 1
    %p61 = por %p59, %p60
    %p63 = scmp.ne.s32.totalorder %s48, %s62
    %p64 = scmp.eq.s32.totalorder %s17, 0
    %p65 = por %p63, %p64
    %s67 = sadd.s32 %s66, 1
    %p70 = scmp.eq.s32.totalorder %s11, 1
    %p71 = scmp.ne.s32.totalorder %s66, %s68
    %p72 = scmp.eq.s32.totalorder %s11, 0
    %p73 = por %p71, %p72
    %p74 = scmp.ne.s32.totalorder %s66, %s68
    %p75 = scmp.eq.s32.totalorder %s16, 1
    %p76 = por %p74, %p75
    %p77 = scmp.ne.s32.totalorder %s68, %s69
    %p78 = scmp.eq.s32.totalorder %s16, 0
    %p79 = por %p77, %p78
    %p80 = scmp.ne.s32.totalorder %s68, %s69
    %p81 = scmp.eq.s32.totalorder %s17, 1
    %p82 = por %p80, %p81
    %p84 = scmp.ne.s32.totalorder %s69, %s83
    %p85 = scmp.eq.s32.totalorder %s17, 0
    %p86 = por %p84, %p85
    %s88 = sadd.s32 %s87, 1
    %p91 = scmp.eq.s32.totalorder %s11, 1
    %p92 = scmp.ne.s32.totalorder %s87, %s89
    %p93 = scmp.eq.s32.totalorder %s11, 0
    %p94 = por %p92, %p93
    %p95 = scmp.ne.s32.totalorder %s87, %s89
    %p96 = scmp.eq.s32.totalorder %s16, 1
    %p97 = por %p95, %p96
    %p98 = scmp.ne.s32.totalorder %s89, %s90
    %p99 = scmp.eq.s32.totalorder %s16, 0
    %p100 = por %p98, %p99
    %p101 = scmp.ne.s32.totalorder %s89, %s90
    %p102 = scmp.eq.s32.totalorder %s17, 1
    %p103 = por %p101, %p102
    %p105 = scmp.ne.s32.totalorder %s90, %s104
    %p106 = scmp.eq.s32.totalorder %s17, 0
    %p107 = por %p105, %p106
    %s109 = sadd.s32 %s108, 1
    %p112 = scmp.eq.s32.totalorder %s11, 1
    %p113 = scmp.ne.s32.totalorder %s108, %s110
    %p114 = scmp.eq.s32.totalorder %s11, 0
    %p115 = por %p113, %p114
    %p116 = scmp.ne.s32.totalorder %s108, %s110
    %p117 = scmp.eq.s32.totalorder %s16, 1
    %p118 = por %p116, %p117
    %p119 = scmp.ne.s32.totalorder %s110, %s111
    %p120 = scmp.eq.s32.totalorder %s16, 0
    %p121 = por %p119, %p120
    %p122 = scmp.ne.s32.totalorder %s110, %s111
    %p123 = scmp.eq.s32.totalorder %s17, 1
    %p124 = por %p122, %p123
    %p126 = scmp.ne.s32.totalorder %s111, %s125
    %p127 = scmp.eq.s32.totalorder %s17, 0
    %p128 = por %p126, %p127
    %s129 = ssub.s32 %s11, %s18
    %p130 = scmp.eq.s32.totalorder %s129, 0
    %s132 = sadd.s32 %s131, 1
    %s133 = scalar_select %p130, %s131, %s132
    %p136 = pneg %p130
    %p137 = scmp.eq.s32.totalorder %s11, 1
    %p138 = por %p136, %p137
    %p139 = scmp.ne.s32.totalorder %s131, %s134
    %p140 = scmp.eq.s32.totalorder %s11, 0
    %p141 = por %p139, %p140
    %p142 = scmp.ne.s32.totalorder %s131, %s134
    %p143 = scmp.eq.s32.totalorder %s16, 1
    %p144 = por %p142, %p143
    %p145 = scmp.ne.s32.totalorder %s134, %s135
    %p146 = scmp.eq.s32.totalorder %s16, 0
    %p147 = por %p145, %p146
    %p148 = scmp.ne.s32.totalorder %s134, %s135
    %p149 = scmp.eq.s32.totalorder %s17, 1
    %p150 = por %p148, %p149
    %p152 = scmp.ne.s32.totalorder %s135, %s151
    %p153 = scmp.eq.s32.totalorder %s17, 0
    %p154 = por %p152, %p153
    %p155 = scmp.le.s32.totalorder 1, %s11
    %p156 = scmp.lt.s32.totalorder %s11, 3
    %p157 = pnand %p155, %p156
    %p158 = pneg %p157
    // Predicated region
    $region9: #{pointnet_plus_forward.10} parent=5 // pred_check
      _
    $region10: #{pointnet_plus_forward.10} parent=5 // pred_check_branch
      %160 = sbr.rel (%p157) target = $region12
    $region11: #{pointnet_plus_forward.10} parent=5 // pred_region
      %s161 = ssub.s32 %s11, 1
      // Predicated region
      $region13: #{pointnet_plus_forward.10} parent=11 // pred_check
        %p162 = pneg %p58
      $region14: #{pointnet_plus_forward.10} parent=11 // pred_check_branch
        %164 = sbr.rel (%p162) target = $region16
      $region15: #{pointnet_plus_forward.10} parent=11 // pred_region
        _
      $region16: #{pointnet_plus_forward.10} parent=11 // pred_fallthru
        _
      // Predicated region
      $region17: #{pointnet_plus_forward.10} parent=11 // pred_check
        %p165 = pneg %p79
      $region18: #{pointnet_plus_forward.10} parent=11 // pred_check_branch
        %167 = sbr.rel (%p165) target = $region20
      $region19: #{pointnet_plus_forward.10} parent=11 // pred_region
        _
      $region20: #{pointnet_plus_forward.10} parent=11 // pred_fallthru
        _
      // Predicated region
      $region21: #{pointnet_plus_forward.10} parent=11 // pred_check
        %p168 = pneg %p100
      $region22: #{pointnet_plus_forward.10} parent=11 // pred_check_branch
        %170 = sbr.rel (%p168) target = $region24
      $region23: #{pointnet_plus_forward.10} parent=11 // pred_region
        _
      $region24: #{pointnet_plus_forward.10} parent=11 // pred_fallthru
        _
      // Predicated region
      $region25: #{pointnet_plus_forward.10} parent=11 // pred_check
        %p171 = pneg %p121
      $region26: #{pointnet_plus_forward.10} parent=11 // pred_check_branch
        %173 = sbr.rel (%p171) target = $region28
      $region27: #{pointnet_plus_forward.10} parent=11 // pred_region
        _
      $region28: #{pointnet_plus_forward.10} parent=11 // pred_fallthru
        _
    $region12: #{pointnet_plus_forward.10} parent=5 // pred_fallthru
      _
    %p174 = scmp.lt.s32.totalorder %s11, 2
    // Predicated region
    $region29: #{pointnet_plus_forward.10} parent=5 // pred_check
      %p175 = pneg %p174
    $region30: #{pointnet_plus_forward.10} parent=5 // pred_check_branch
      %177 = sbr.rel (%p175) target = $region32
    $region31: #{pointnet_plus_forward.10} parent=5 // pred_region
      // Predicated region
      $region33: #{pointnet_plus_forward.10} parent=31 // pred_check
        %p178 = pneg %p31
      $region34: #{pointnet_plus_forward.10} parent=31 // pred_check_branch
        %180 = sbr.rel (%p178) target = $region36
      $region35: #{pointnet_plus_forward.10} parent=31 // pred_region
        %s181 = smul.u32 4, %s11
        %p182 = scmp.lt.s32.totalorder %s181, 7
        %s183 = scalar_select %p182, %s181, 7
        %s184 = smul.addr %s183, 3
        %s185 = smul.addr %s184, 4
        %s186 = scalar_lea.vmem %s0, %s185
        %s187 = smul.u32 4, %s11
      $region36: #{pointnet_plus_forward.10} parent=31 // pred_fallthru
        _
    $region32: #{pointnet_plus_forward.10} parent=5 // pred_fallthru
      _
    %p188 = scmp.le.s32.totalorder 1, %s11
    %p189 = scmp.lt.s32.totalorder %s11, 3
    %p190 = pnand %p188, %p189
    %p191 = pneg %p190
    // Predicated region
    $region37: #{pointnet_plus_forward.10} parent=5 // pred_check
      _
    $region38: #{pointnet_plus_forward.10} parent=5 // pred_check_branch
      %193 = sbr.rel (%p190) target = $region40
    $region39: #{pointnet_plus_forward.10} parent=5 // pred_region
      %s194 = ssub.s32 %s11, 1
      %s195 = smul.u32 4, %s16
      %p196 = scmp.lt.s32.totalorder %s195, 7
      %s197 = scalar_select %p196, %s195, 7
      %s198 = smul.addr %s197, 3
      %s199 = smul.addr %s198, 4
      %s200 = scalar_lea.vmem %s0, %s199
      %p201 = pneg %p37
      %p202 = pneg %p34
      %p203 = pneg %p58
      %p204 = pneg %p55
      %p205 = pneg %p79
      %p206 = pneg %p76
      %p207 = pneg %p100
      %p208 = pneg %p97
      %p209 = pneg %p121
      %p210 = pneg %p118
      %p211 = pneg %p147
      %p212 = pneg %p144
      %s213 = smul.u32 4, %s16
      %p214 = scmp.lt.s32.totalorder %s213, 7
      %s215 = scalar_select %p214, %s213, 7
      %s216 = smul.addr %s215, 8
      %s217 = scalar_lea.vmem %s5, %s216
      %s218 = smul.u32 4, %s16
      %p219 = scmp.lt.s32.totalorder %s218, 7
      %s220 = scalar_select %p219, %s218, 7
      %s221 = smul.addr %s220, 3
      %s222 = smul.addr %s221, 4
      %s223 = scalar_lea.vmem %s0, %s222
      %s224 = smul.u32 4, %s16
      %s225 = smul.u32 4, %s16
      %p226 = scmp.lt.s32.totalorder %s225, 7
      %s227 = scalar_select %p226, %s225, 7
      %s228 = smul.addr %s227, 8
      %s229 = scalar_lea.vmem %s5, %s228
      %s230 = smul.u32 4, %s16
      %v232 = vld [vmem:[%s223] sm:$0xff]
      %v233 = vld [vmem:[%s223 + $0x8] sm:$0xf]
      %v234 = vld [vmem:[%s223 + $0xc] sm:$0xff]
      %v235 = vld [vmem:[%s223 + $0x14] sm:$0xf]
      %v236 = vld [vmem:[%s223 + $0x18] sm:$0xff]
      %v237 = vld [vmem:[%s223 + $0x20] sm:$0xf]
      %v238 = vld [vmem:[%s223 + $0x24] sm:$0xff]
      %v239 = vld [vmem:[%s223 + $0x2c] sm:$0xf]
      %v240 = vld [vmem:[%s1] sm:$0xff]
      %v241 = vld [vmem:[%s1 + $0x8] sm:$0xff]
      %v242 = vld [vmem:[%s1 + $0x10] sm:$0xff]
      %v243 = vld [vmem:[%s1 + $0x18] sm:$0xff]
      %v244 = vld [vmem:[%s1 + $0x20] sm:$0xff]
      %v245 = vld [vmem:[%s1 + $0x28] sm:$0xff]
      %v246 = vld [vmem:[%s1 + $0x30] sm:$0xff]
      %v247 = vld [vmem:[%s1 + $0x38] sm:$0xff]
      %v248 = vld [vmem:[%s1 + $0x40] sm:$0xff]
      %v249 = vld [vmem:[%s1 + $0x48] sm:$0xff]
      %v250 = vld [vmem:[%s1 + $0x50] sm:$0xff]
      %v251 = vld [vmem:[%s1 + $0x58] sm:$0xff]
      %v252 = vld [vmem:[%s1 + $0x60] sm:$0xff]
      %v253 = vld [vmem:[%s1 + $0x68] sm:$0xff]
      %v254 = vld [vmem:[%s1 + $0x70] sm:$0xff]
      %v255 = vld [vmem:[%s1 + $0x78] sm:$0xff]
      %v256 = vld [vmem:[%s1 + $0x80] sm:$0xff]
      %v257 = vld [vmem:[%s1 + $0x88] sm:$0xff]
      %v258 = vld [vmem:[%s1 + $0x90] sm:$0xff]
      %v259 = vld [vmem:[%s1 + $0x98] sm:$0xff]
      %v260 = vld [vmem:[%s1 + $0xa0] sm:$0xff]
      %v261 = vld [vmem:[%s1 + $0xa8] sm:$0xff]
      %v262 = vld [vmem:[%s1 + $0xb0] sm:$0xff]
      %v263 = vld [vmem:[%s1 + $0xb8] sm:$0xff]
      %v264 = vld [vmem:[%s1 + $0xc0] sm:$0xff]
      %v265 = vld [vmem:[%s1 + $0xc8] sm:$0xff]
      %v266 = vld [vmem:[%s1 + $0xd0] sm:$0xff]
      %v267 = vld [vmem:[%s1 + $0xd8] sm:$0xff]
      %v268 = vld [vmem:[%s1 + $0xe0] sm:$0xff]
      %v269 = vld [vmem:[%s1 + $0xe8] sm:$0xff]
      %v270 = vld [vmem:[%s1 + $0xf0] sm:$0xff]
      %v271 = vld [vmem:[%s1 + $0xf8] sm:$0xff]
      %v272 = vld [vmem:[%s1 + $0x100] sm:$0xff]
      %v273 = vld [vmem:[%s1 + $0x108] sm:$0xff]
      %v274 = vld [vmem:[%s1 + $0x110] sm:$0xff]
      %v275 = vld [vmem:[%s1 + $0x118] sm:$0xff]
      %v276 = vld [vmem:[%s1 + $0x120] sm:$0xff]
      %v277 = vld [vmem:[%s1 + $0x128] sm:$0xff]
      %v278 = vld [vmem:[%s1 + $0x130] sm:$0xff]
      %v279 = vld [vmem:[%s1 + $0x138] sm:$0xff]
      %v280 = vld [vmem:[%s1 + $0x140] sm:$0xff]
      %v281 = vld [vmem:[%s1 + $0x148] sm:$0xff]
      %v282 = vld [vmem:[%s1 + $0x150] sm:$0xff]
      %v283 = vld [vmem:[%s1 + $0x158] sm:$0xff]
      %v284 = vld [vmem:[%s1 + $0x160] sm:$0xff]
      %v285 = vld [vmem:[%s1 + $0x168] sm:$0xff]
      %v286 = vld [vmem:[%s1 + $0x170] sm:$0xff]
      %v287 = vld [vmem:[%s1 + $0x178] sm:$0xff]
      %v288 = vld [vmem:[%s2] sm:$0x3]
      %v290 = vlaneseq
      %v291 = vshrl.u32 %v290, 7
      %v292 = vsub.s32 0, %v291
      %v293 = vrot.slane %v288, %v292
      %v294 = vlaneseq
      %v295 = vshrl.u32 %v294, 7
      %v296 = vsub.s32 1, %v295
      %v297 = vrot.slane %v288, %v296
      %v308 = vunpack.c.l.b16 %v232
      %v309 = vunpack.c.h.b16 %v232
      %v310 = vunpack.c.l.b16 %v233
      %v311 = vunpack.c.l.b16 %v234
      %v312 = vunpack.c.h.b16 %v234
      %v313 = vunpack.c.l.b16 %v235
      %v314 = vunpack.c.l.b16 %v236
      %v315 = vunpack.c.h.b16 %v236
      %v316 = vunpack.c.l.b16 %v237
      %v317 = vunpack.c.l.b16 %v238
      %v318 = vunpack.c.h.b16 %v238
      %v319 = vunpack.c.l.b16 %v239
      %v320 = vpack.c.b16 %v311, %v308
      %v321 = vpack.c.b16 %v312, %v309
      %v322 = vpack.c.b16 %v313, %v310
      %v323 = vpack.c.b16 %v317, %v314
      %v324 = vpack.c.b16 %v318, %v315
      %v325 = vpack.c.b16 %v319, %v316
      %v380 = vunpack.c.l.b16 %v240
      %v381 = vunpack.c.h.b16 %v240
      %v382 = vunpack.c.l.b16 %v241
      %v383 = vunpack.c.h.b16 %v241
      %v384 = vunpack.c.l.b16 %v242
      %v385 = vunpack.c.h.b16 %v242
      %v386 = vunpack.c.l.b16 %v243
      %v387 = vunpack.c.h.b16 %v243
      %v388 = vunpack.c.l.b16 %v244
      %v389 = vunpack.c.h.b16 %v244
      %v390 = vunpack.c.l.b16 %v245
      %v391 = vunpack.c.h.b16 %v245
      %v392 = vunpack.c.l.b16 %v246
      %v393 = vunpack.c.h.b16 %v246
      %v394 = vunpack.c.l.b16 %v247
      %v395 = vunpack.c.h.b16 %v247
      %v396 = vunpack.c.l.b16 %v248
      %v397 = vunpack.c.h.b16 %v248
      %v398 = vunpack.c.l.b16 %v249
      %v399 = vunpack.c.h.b16 %v249
      %v400 = vunpack.c.l.b16 %v250
      %v401 = vunpack.c.h.b16 %v250
      %v402 = vunpack.c.l.b16 %v251
      %v403 = vunpack.c.h.b16 %v251
      %v404 = vunpack.c.l.b16 %v252
      %v405 = vunpack.c.h.b16 %v252
      %v406 = vunpack.c.l.b16 %v253
      %v407 = vunpack.c.h.b16 %v253
      %v408 = vunpack.c.l.b16 %v254
      %v409 = vunpack.c.h.b16 %v254
      %v410 = vunpack.c.l.b16 %v255
      %v411 = vunpack.c.h.b16 %v255
      %v412 = vunpack.c.l.b16 %v256
      %v413 = vunpack.c.h.b16 %v256
      %v414 = vunpack.c.l.b16 %v257
      %v415 = vunpack.c.h.b16 %v257
      %v416 = vunpack.c.l.b16 %v258
      %v417 = vunpack.c.h.b16 %v258
      %v418 = vunpack.c.l.b16 %v259
      %v419 = vunpack.c.h.b16 %v259
      %v420 = vunpack.c.l.b16 %v260
      %v421 = vunpack.c.h.b16 %v260
      %v422 = vunpack.c.l.b16 %v261
      %v423 = vunpack.c.h.b16 %v261
      %v424 = vunpack.c.l.b16 %v262
      %v425 = vunpack.c.h.b16 %v262
      %v426 = vunpack.c.l.b16 %v263
      %v427 = vunpack.c.h.b16 %v263
      %v428 = vunpack.c.l.b16 %v264
      %v429 = vunpack.c.h.b16 %v264
      %v430 = vunpack.c.l.b16 %v265
      %v431 = vunpack.c.h.b16 %v265
      %v432 = vunpack.c.l.b16 %v266
      %v433 = vunpack.c.h.b16 %v266
      %v434 = vunpack.c.l.b16 %v267
      %v435 = vunpack.c.h.b16 %v267
      %v436 = vunpack.c.l.b16 %v268
      %v437 = vunpack.c.h.b16 %v268
      %v438 = vunpack.c.l.b16 %v269
      %v439 = vunpack.c.h.b16 %v269
      %v440 = vunpack.c.l.b16 %v270
      %v441 = vunpack.c.h.b16 %v270
      %v442 = vunpack.c.l.b16 %v271
      %v443 = vunpack.c.h.b16 %v271
      %v444 = vunpack.c.l.b16 %v272
      %v445 = vunpack.c.h.b16 %v272
      %v446 = vunpack.c.l.b16 %v273
      %v447 = vunpack.c.h.b16 %v273
      %v448 = vunpack.c.l.b16 %v274
      %v449 = vunpack.c.h.b16 %v274
      %v450 = vunpack.c.l.b16 %v275
      %v451 = vunpack.c.h.b16 %v275
      %v452 = vunpack.c.l.b16 %v276
      %v453 = vunpack.c.h.b16 %v276
      %v454 = vunpack.c.l.b16 %v277
      %v455 = vunpack.c.h.b16 %v277
      %v456 = vunpack.c.l.b16 %v278
      %v457 = vunpack.c.h.b16 %v278
      %v458 = vunpack.c.l.b16 %v279
      %v459 = vunpack.c.h.b16 %v279
      %v460 = vunpack.c.l.b16 %v280
      %v461 = vunpack.c.h.b16 %v280
      %v462 = vunpack.c.l.b16 %v281
      %v463 = vunpack.c.h.b16 %v281
      %v464 = vunpack.c.l.b16 %v282
      %v465 = vunpack.c.h.b16 %v282
      %v466 = vunpack.c.l.b16 %v283
      %v467 = vunpack.c.h.b16 %v283
      %v468 = vunpack.c.l.b16 %v284
      %v469 = vunpack.c.h.b16 %v284
      %v470 = vunpack.c.l.b16 %v285
      %v471 = vunpack.c.h.b16 %v285
      %v472 = vunpack.c.l.b16 %v286
      %v473 = vunpack.c.h.b16 %v286
      %v474 = vunpack.c.l.b16 %v287
      %v475 = vunpack.c.h.b16 %v287
      %v476 = vpack.c.b16 %v382, %v380
      %v477 = vpack.c.b16 %v383, %v381
      %v478 = vpack.c.b16 %v386, %v384
      %v479 = vpack.c.b16 %v387, %v385
      %v480 = vpack.c.b16 %v390, %v388
      %v481 = vpack.c.b16 %v391, %v389
      %v482 = vpack.c.b16 %v394, %v392
      %v483 = vpack.c.b16 %v395, %v393
      %v484 = vpack.c.b16 %v398, %v396
      %v485 = vpack.c.b16 %v399, %v397
      %v486 = vpack.c.b16 %v402, %v400
      %v487 = vpack.c.b16 %v403, %v401
      %v488 = vpack.c.b16 %v406, %v404
      %v489 = vpack.c.b16 %v407, %v405
      %v490 = vpack.c.b16 %v410, %v408
      %v491 = vpack.c.b16 %v411, %v409
      %v492 = vpack.c.b16 %v414, %v412
      %v493 = vpack.c.b16 %v415, %v413
      %v494 = vpack.c.b16 %v418, %v416
      %v495 = vpack.c.b16 %v419, %v417
      %v496 = vpack.c.b16 %v422, %v420
      %v497 = vpack.c.b16 %v423, %v421
      %v498 = vpack.c.b16 %v426, %v424
      %v499 = vpack.c.b16 %v427, %v425
      %v500 = vpack.c.b16 %v430, %v428
      %v501 = vpack.c.b16 %v431, %v429
      %v502 = vpack.c.b16 %v434, %v432
      %v503 = vpack.c.b16 %v435, %v433
      %v504 = vpack.c.b16 %v438, %v436
      %v505 = vpack.c.b16 %v439, %v437
      %v506 = vpack.c.b16 %v442, %v440
      %v507 = vpack.c.b16 %v443, %v441
      %v508 = vpack.c.b16 %v446, %v444
      %v509 = vpack.c.b16 %v447, %v445
      %v510 = vpack.c.b16 %v450, %v448
      %v511 = vpack.c.b16 %v451, %v449
      %v512 = vpack.c.b16 %v454, %v452
      %v513 = vpack.c.b16 %v455, %v453
      %v514 = vpack.c.b16 %v458, %v456
      %v515 = vpack.c.b16 %v459, %v457
      %v516 = vpack.c.b16 %v462, %v460
      %v517 = vpack.c.b16 %v463, %v461
      %v518 = vpack.c.b16 %v466, %v464
      %v519 = vpack.c.b16 %v467, %v465
      %v520 = vpack.c.b16 %v470, %v468
      %v521 = vpack.c.b16 %v471, %v469
      %v522 = vpack.c.b16 %v474, %v472
      %v523 = vpack.c.b16 %v475, %v473
      %572 = vmatprep.subr.bf16.mxu0 %v477
      %573 = vmatpush1.bf16.msra.mxu0 %v476
      %574 = vmatprep.subr.bf16.mxu0 %v479
      %575 = vmatpush1.bf16.msra.mxu0 %v478
      %576 = vmatprep.subr.bf16.mxu0 %v481
      %577 = vmatpush1.bf16.msra.mxu0 %v480
      %578 = vmatprep.subr.bf16.mxu0 %v483
      %579 = vmatpush1.bf16.msra.mxu0 %v482
      %580 = vmatprep.subr.bf16.mxu0 %v485
      %581 = vmatpush1.bf16.msra.mxu0 %v484
      %582 = vmatprep.subr.bf16.mxu0 %v487
      %583 = vmatpush1.bf16.msra.mxu0 %v486
      %584 = vmatprep.subr.bf16.mxu0 %v489
      %585 = vmatpush1.bf16.msra.mxu0 %v488
      %586 = vmatprep.subr.bf16.mxu0 %v491
      %587 = vmatpush1.bf16.msra.mxu0 %v490
      %588 = vmatprep.subr.bf16.mxu0 %v493
      %589 = vmatpush1.bf16.msra.mxu0 %v492
      %590 = vmatprep.subr.bf16.mxu0 %v495
      %591 = vmatpush1.bf16.msra.mxu0 %v494
      %592 = vmatprep.subr.bf16.mxu0 %v497
      %593 = vmatpush1.bf16.msra.mxu0 %v496
      %594 = vmatprep.subr.bf16.mxu0 %v499
      %595 = vmatpush1.bf16.msra.mxu0 %v498
      %596 = vmatprep.subr.bf16.mxu0 %v501
      %597 = vmatpush1.bf16.msra.mxu0 %v500
      %598 = vmatprep.subr.bf16.mxu0 %v503
      %599 = vmatpush1.bf16.msra.mxu0 %v502
      %600 = vmatprep.subr.bf16.mxu0 %v505
      %601 = vmatpush1.bf16.msra.mxu0 %v504
      %602 = vmatprep.subr.bf16.mxu0 %v507
      %603 = vmatpush1.bf16.msra.mxu0 %v506
      %604 = vmatprep.mubr.bf16.mxu0 %v321
      %605 = vmatmul.mubr.bf16.gmra.mrb[0].mxu0 %v320
      %v606 = vpop.f32.mrb[0].mxu0
      %v607 = vadd.f32 %v293, %v606
      %v608 = vpop.f32.mrb[0].mxu0
      %v609 = vadd.f32 %v297, %v608
      %v610 = vpop.f32.mrb[0].mxu0
      %v611 = vadd.f32 %v293, %v610
      %v612 = vpop.f32.mrb[0].mxu0
      %v613 = vadd.f32 %v297, %v612
      %614 = vmatprep.mubr.bf16.mxu0 %v324
      %615 = vmatmul.mubr.bf16.gmra.mrb[0].mxu0 %v323
      %v616 = vpop.f32.mrb[0].mxu0
      %v617 = vadd.f32 %v293, %v616
      %v618 = vpop.f32.mrb[0].mxu0
      %v619 = vadd.f32 %v297, %v618
      %v620 = vpop.f32.mrb[0].mxu0
      %v621 = vadd.f32 %v293, %v620
      %v622 = vpop.f32.mrb[0].mxu0
      %v623 = vadd.f32 %v297, %v622
      %624 = vdwg.mxu0
      %625 = vmatprep.subr.bf16.mxu0 %v509
      %626 = vmatpush1.bf16.msra.mxu0 %v508
      %627 = vmatprep.subr.bf16.mxu0 %v511
      %628 = vmatpush1.bf16.msra.mxu0 %v510
      %629 = vmatprep.subr.bf16.mxu0 %v513
      %630 = vmatpush1.bf16.msra.mxu0 %v512
      %631 = vmatprep.subr.bf16.mxu0 %v515
      %632 = vmatpush1.bf16.msra.mxu0 %v514
      %633 = vmatprep.subr.bf16.mxu0 %v517
      %634 = vmatpush1.bf16.msra.mxu0 %v516
      %635 = vmatprep.subr.bf16.mxu0 %v519
      %636 = vmatpush1.bf16.msra.mxu0 %v518
      %637 = vmatprep.subr.bf16.mxu0 %v521
      %638 = vmatpush1.bf16.msra.mxu0 %v520
      %639 = vmatprep.subr.bf16.mxu0 %v523
      %640 = vmatpush1.bf16.msra.mxu0 %v522
      %641 = vmatprep.subr.bf16.mxu0 0
      %642 = vmatpush1.bf16.msra.mxu0 0
      %643 = vmatprep.subr.bf16.mxu0 0
      %644 = vmatpush1.bf16.msra.mxu0 0
      %645 = vmatprep.subr.bf16.mxu0 0
      %646 = vmatpush1.bf16.msra.mxu0 0
      %647 = vmatprep.subr.bf16.mxu0 0
      %648 = vmatpush1.bf16.msra.mxu0 0
      %649 = vmatprep.subr.bf16.mxu0 0
      %650 = vmatpush1.bf16.msra.mxu0 0
      %651 = vmatprep.subr.bf16.mxu0 0
      %652 = vmatpush1.bf16.msra.mxu0 0
      %653 = vmatprep.subr.bf16.mxu0 0
      %654 = vmatpush1.bf16.msra.mxu0 0
      %655 = vmatprep.subr.bf16.mxu0 0
      %656 = vmatpush1.bf16.msra.mxu0 0
      %657 = vmatprep.mubr.bf16.mxu0 0
      %658 = vmatmul.mubr.bf16.gmra.mrb[0].mxu0 %v322
      %v659 = vpop.f32.mrb[0].mxu0
      %v660 = vadd.f32 %v607, %v659
      %v661 = vpop.f32.mrb[0].mxu0
      %v662 = vadd.f32 %v609, %v661
      %v663 = vpop.f32.mrb[0].mxu0
      %v664 = vadd.f32 %v611, %v663
      %v665 = vpop.f32.mrb[0].mxu0
      %v666 = vadd.f32 %v613, %v665
      %667 = vmatprep.mubr.bf16.mxu0 0
      %668 = vmatmul.mubr.bf16.gmra.mrb[0].mxu0 %v325
      %v669 = vpop.f32.mrb[0].mxu0
      %v670 = vadd.f32 %v617, %v669
      %v671 = vpop.f32.mrb[0].mxu0
      %v672 = vadd.f32 %v619, %v671
      %v673 = vpop.f32.mrb[0].mxu0
      %v674 = vadd.f32 %v621, %v673
      %v675 = vpop.f32.mrb[0].mxu0
      %v676 = vadd.f32 %v623, %v675
      %677 = vdwg.mxu0
      %v678 = vmax.f32 %v660, 0.0
      %v679 = vmax.f32 %v662, 0.0
      %v680 = vmax.f32 %v664, 0.0
      %v681 = vmax.f32 %v666, 0.0
      %v682 = vmax.f32 %v670, 0.0
      %v683 = vmax.f32 %v672, 0.0
      %v684 = vmax.f32 %v674, 0.0
      %v685 = vmax.f32 %v676, 0.0
      %v686 = vpack.c.bf16 %v680, %v678
      %v687 = vpack.c.bf16 %v681, %v679
      %v688 = vpack.c.bf16 %v684, %v682
      %v689 = vpack.c.bf16 %v685, %v683
      %v690 = vld [vmem:[%s3] sm:$0xf]
      %v691 = vld [vmem:[%s3 + $0x4] sm:$0xf]
      %v692 = vld [vmem:[%s3 + $0x8] sm:$0xf]
      %v693 = vld [vmem:[%s3 + $0xc] sm:$0xf]
      %v694 = vld [vmem:[%s3 + $0x10] sm:$0xf]
      %v695 = vld [vmem:[%s3 + $0x14] sm:$0xf]
      %v696 = vld [vmem:[%s3 + $0x18] sm:$0xf]
      %v697 = vld [vmem:[%s3 + $0x1c] sm:$0xf]
      %v698 = vld [vmem:[%s3 + $0x20] sm:$0xf]
      %v699 = vld [vmem:[%s3 + $0x24] sm:$0xf]
      %v700 = vld [vmem:[%s3 + $0x28] sm:$0xf]
      %v701 = vld [vmem:[%s3 + $0x2c] sm:$0xf]
      %v702 = vld [vmem:[%s3 + $0x30] sm:$0xf]
      %v703 = vld [vmem:[%s3 + $0x34] sm:$0xf]
      %v704 = vld [vmem:[%s3 + $0x38] sm:$0xf]
      %v705 = vld [vmem:[%s3 + $0x3c] sm:$0xf]
      %v706 = vld [vmem:[%s3 + $0x40] sm:$0xf]
      %v707 = vld [vmem:[%s3 + $0x44] sm:$0xf]
      %v708 = vld [vmem:[%s3 + $0x48] sm:$0xf]
      %v709 = vld [vmem:[%s3 + $0x4c] sm:$0xf]
      %v710 = vld [vmem:[%s3 + $0x50] sm:$0xf]
      %v711 = vld [vmem:[%s3 + $0x54] sm:$0xf]
      %v712 = vld [vmem:[%s3 + $0x58] sm:$0xf]
      %v713 = vld [vmem:[%s3 + $0x5c] sm:$0xf]
      %v714 = vld [vmem:[%s3 + $0x60] sm:$0xf]
      %v715 = vld [vmem:[%s3 + $0x64] sm:$0xf]
      %v716 = vld [vmem:[%s3 + $0x68] sm:$0xf]
      %v717 = vld [vmem:[%s3 + $0x6c] sm:$0xf]
      %v718 = vld [vmem:[%s3 + $0x70] sm:$0xf]
      %v719 = vld [vmem:[%s3 + $0x74] sm:$0xf]
      %v720 = vld [vmem:[%s3 + $0x78] sm:$0xf]
      %v721 = vld [vmem:[%s3 + $0x7c] sm:$0xf]
      %v722 = vld [vmem:[%s4] sm:$0x1]
      %v724 = vlaneseq
      %v725 = vshrl.u32 %v724, 7
      %v726 = vsub.s32 0, %v725
      %v727 = vrot.slane %v722, %v726
      %v761 = vunpack.c.l.b16 %v690
      %v762 = vunpack.c.l.b16 %v691
      %v763 = vunpack.c.l.b16 %v692
      %v764 = vunpack.c.l.b16 %v693
      %v765 = vunpack.c.l.b16 %v694
      %v766 = vunpack.c.l.b16 %v695
      %v767 = vunpack.c.l.b16 %v696
      %v768 = vunpack.c.l.b16 %v697
      %v769 = vunpack.c.l.b16 %v698
      %v770 = vunpack.c.l.b16 %v699
      %v771 = vunpack.c.l.b16 %v700
      %v772 = vunpack.c.l.b16 %v701
      %v773 = vunpack.c.l.b16 %v702
      %v774 = vunpack.c.l.b16 %v703
      %v775 = vunpack.c.l.b16 %v704
      %v776 = vunpack.c.l.b16 %v705
      %v777 = vunpack.c.l.b16 %v706
      %v778 = vunpack.c.l.b16 %v707
      %v779 = vunpack.c.l.b16 %v708
      %v780 = vunpack.c.l.b16 %v709
      %v781 = vunpack.c.l.b16 %v710
      %v782 = vunpack.c.l.b16 %v711
      %v783 = vunpack.c.l.b16 %v712
      %v784 = vunpack.c.l.b16 %v713
      %v785 = vunpack.c.l.b16 %v714
      %v786 = vunpack.c.l.b16 %v715
      %v787 = vunpack.c.l.b16 %v716
      %v788 = vunpack.c.l.b16 %v717
      %v789 = vunpack.c.l.b16 %v718
      %v790 = vunpack.c.l.b16 %v719
      %v791 = vunpack.c.l.b16 %v720
      %v792 = vunpack.c.l.b16 %v721
      %v793 = vpack.c.b16 %v762, %v761
      %v794 = vpack.c.b16 %v764, %v763
      %v795 = vpack.c.b16 %v766, %v765
      %v796 = vpack.c.b16 %v768, %v767
      %v797 = vpack.c.b16 %v770, %v769
      %v798 = vpack.c.b16 %v772, %v771
      %v799 = vpack.c.b16 %v774, %v773
      %v800 = vpack.c.b16 %v776, %v775
      %v801 = vpack.c.b16 %v778, %v777
      %v802 = vpack.c.b16 %v780, %v779
      %v803 = vpack.c.b16 %v782, %v781
      %v804 = vpack.c.b16 %v784, %v783
      %v805 = vpack.c.b16 %v786, %v785
      %v806 = vpack.c.b16 %v788, %v787
      %v807 = vpack.c.b16 %v790, %v789
      %v808 = vpack.c.b16 %v792, %v791
      %825 = vmatprep.subr.bf16.mxu0 0
      %826 = vmatpush1.bf16.msra.mxu0 %v793
      %827 = vmatprep.subr.bf16.mxu0 0
      %828 = vmatpush1.bf16.msra.mxu0 %v794
      %829 = vmatprep.subr.bf16.mxu0 0
      %830 = vmatpush1.bf16.msra.mxu0 %v795
      %831 = vmatprep.subr.bf16.mxu0 0
      %832 = vmatpush1.bf16.msra.mxu0 %v796
      %833 = vmatprep.subr.bf16.mxu0 0
      %834 = vmatpush1.bf16.msra.mxu0 %v797
      %835 = vmatprep.subr.bf16.mxu0 0
      %836 = vmatpush1.bf16.msra.mxu0 %v798
      %837 = vmatprep.subr.bf16.mxu0 0
      %838 = vmatpush1.bf16.msra.mxu0 %v799
      %839 = vmatprep.subr.bf16.mxu0 0
      %840 = vmatpush1.bf16.msra.mxu0 %v800
      %841 = vmatprep.subr.bf16.mxu0 0
      %842 = vmatpush1.bf16.msra.mxu0 %v801
      %843 = vmatprep.subr.bf16.mxu0 0
      %844 = vmatpush1.bf16.msra.mxu0 %v802
      %845 = vmatprep.subr.bf16.mxu0 0
      %846 = vmatpush1.bf16.msra.mxu0 %v803
      %847 = vmatprep.subr.bf16.mxu0 0
      %848 = vmatpush1.bf16.msra.mxu0 %v804
      %849 = vmatprep.subr.bf16.mxu0 0
      %850 = vmatpush1.bf16.msra.mxu0 %v805
      %851 = vmatprep.subr.bf16.mxu0 0
      %852 = vmatpush1.bf16.msra.mxu0 %v806
      %853 = vmatprep.subr.bf16.mxu0 0
      %854 = vmatpush1.bf16.msra.mxu0 %v807
      %855 = vmatprep.subr.bf16.mxu0 0
      %856 = vmatpush1.bf16.msra.mxu0 %v808
      %857 = vmatprep.mubr.bf16.mxu0 %v687
      %858 = vmatmul.mubr.bf16.gmra.mrb[0].mxu0 %v686
      %v859 = vpop.f32.mrb[0].mxu0
      %v860 = vadd.f32 %v727, %v859
      %v861 = vpop.f32.mrb[0].mxu0
      %v862 = vpop.f32.mrb[0].mxu0
      %v863 = vadd.f32 %v727, %v862
      %v864 = vpop.f32.mrb[0].mxu0
      %865 = vmatprep.mubr.bf16.mxu0 %v689
      %866 = vmatmul.mubr.bf16.gmra.mrb[0].mxu0 %v688
      %v867 = vpop.f32.mrb[0].mxu0
      %v868 = vadd.f32 %v727, %v867
      %v869 = vpop.f32.mrb[0].mxu0
      %v870 = vpop.f32.mrb[0].mxu0
      %v871 = vadd.f32 %v727, %v870
      %v872 = vpop.f32.mrb[0].mxu0
      %873 = vdwg.mxu0
      %v874 = vmax.f32 %v860, 0.0
      %v875 = vmax.f32 %v863, 0.0
      %v876 = vmax.f32 %v868, 0.0
      %v877 = vmax.f32 %v871, 0.0
      %878 = vst [vmem:[%s229] sm:$0xff] %v874
      %879 = vst [vmem:[%s229 + $0x8] sm:$0xff] %v875
      %880 = vst [vmem:[%s229 + $0x10] sm:$0xff] %v876
      %881 = vst [vmem:[%s229 + $0x18] sm:$0xff] %v877
      %s882 = smul.u32 4, %s16
      %p883 = scmp.lt.s32.totalorder %s882, 7
      %s884 = scalar_select %p883, %s882, 7
      %s885 = smul.addr %s884, 8
      %s886 = scalar_lea.vmem %s5, %s885
      // Predicated region
      $region41: #{pointnet_plus_forward.10} parent=39 // pred_check
        %p887 = pneg %p144
      $region42: #{pointnet_plus_forward.10} parent=39 // pred_check_branch
        %889 = sbr.rel (%p887) target = $region44
      $region43: #{pointnet_plus_forward.10} parent=39 // pred_region
        %s890 = smul.u32 4, %s16
      $region44: #{pointnet_plus_forward.10} parent=39 // pred_fallthru
        _
    $region40: #{pointnet_plus_forward.10} parent=5 // pred_fallthru
      _
    %p891 = scmp.le.s32.totalorder 2, %s11
    // Predicated region
    $region45: #{pointnet_plus_forward.10} parent=5 // pred_check
      %p892 = pneg %p891
    $region46: #{pointnet_plus_forward.10} parent=5 // pred_check_branch
      %894 = sbr.rel (%p892) target = $region48
    $region47: #{pointnet_plus_forward.10} parent=5 // pred_region
      %s895 = ssub.s32 %s11, 2
      // Predicated region
      $region49: #{pointnet_plus_forward.10} parent=47 // pred_check
        %p896 = pneg %p150
      $region50: #{pointnet_plus_forward.10} parent=47 // pred_check_branch
        %898 = sbr.rel (%p896) target = $region52
      $region51: #{pointnet_plus_forward.10} parent=47 // pred_region
        %s899 = smul.u32 4, %s17
        %p900 = scmp.lt.s32.totalorder %s899, 7
        %s901 = scalar_select %p900, %s899, 7
        %s902 = smul.addr %s901, 8
        %s903 = scalar_lea.vmem %s5, %s902
      $region52: #{pointnet_plus_forward.10} parent=47 // pred_fallthru
        _
    $region48: #{pointnet_plus_forward.10} parent=5 // pred_fallthru
      _
  $region6: #{pointnet_plus_forward.10} parent=0 // loop_footer
    %s15 = sadd.s32 1, %s11
  $region7: #{pointnet_plus_forward.10} parent=0 // loop_footer_branch
    %10 = sbr.rel target = $region3
  $region8: #{pointnet_plus_forward.10} parent=0 // loop_exit
    _

// kernel: pointnet_plus_forward.11
$region0: #{pointnet_plus_forward.11}
  #allocation0 [shape = 'u32[]', space=smem, size = 0x4, offset = 0x4, fixed_abs, tag = 'smem constant byte address 0x4 - core index']
  #allocation1 [shape = 'u32[144,128]{1,0:T(1,128)}', space=vmem, size = 0x12000, scoped, tag = 'internal scratch']
  %s0 = inlined_call_operand.vmem [shape: bf16[256,136], index: 0, kind: input, shape index: {}]
  %s1 = inlined_call_operand.vmem [shape: bf16[136,128], index: 1, kind: input, shape index: {}]
  %s2 = inlined_call_operand.vmem [shape: f32[1,128], index: 2, kind: input, shape index: {}]
  %s3 = inlined_call_operand.vmem [shape: bf16[128,128], index: 3, kind: input, shape index: {}]
  %s4 = inlined_call_operand.vmem [shape: f32[1,128], index: 4, kind: input, shape index: {}]
  %s5 = inlined_call_operand.vmem [shape: bf16[128,128], index: 5, kind: input, shape index: {}]
  %s6 = inlined_call_operand.vmem [shape: f32[1,128], index: 6, kind: input, shape index: {}]
  %s7 = inlined_call_operand.vmem [shape: bf16[128,128], index: 7, kind: input, shape index: {}]
  %s8 = inlined_call_operand.vmem [shape: f32[1,128], index: 8, kind: input, shape index: {}]
  %s9 = inlined_call_operand.vmem [shape: f32[256,128], index: 9, kind: output, shape index: {}]
  %s10 = sld [smem:[#allocation0]]
  $region69: #{pointnet_plus_forward.11} parent=0
    _
  %s12 = ssub.s32 1, %s10
  %s13 = scalar_select 0, %s12, %s10
  loop: start=0, step=1, limit=4
  $region2: #{pointnet_plus_forward.11} parent=0 // loop_pre_header
    _
  $region3: #{pointnet_plus_forward.11} parent=0 // loop_header
    %s15 = sphi 0, %s19
    %p16 = scmp.ge.s32.totalorder %s15, 4
    %s25 = sphi 0, %s27
    %s28 = sphi 0, %s25
    %s29 = sphi 0, %s28
    %s45 = sphi 0, %s29
    %s49 = sphi 0, %s49
    %s51 = sphi 0, %s49
    %s52 = sphi 0, %s51
    %s66 = sphi 0, %s52
    %s70 = sphi 0, %s70
    %s72 = sphi 0, %s70
    %s73 = sphi 0, %s72
    %s87 = sphi 0, %s73
    %s91 = sphi 0, %s91
    %s93 = sphi 0, %s91
    %s94 = sphi 0, %s93
    %s108 = sphi 0, %s94
    %s112 = sphi 0, %s112
    %s114 = sphi 0, %s112
    %s115 = sphi 0, %s114
    %s129 = sphi 0, %s115
    %s133 = sphi 0, %s133
    %s135 = sphi 0, %s133
    %s136 = sphi 0, %s135
    %s150 = sphi 0, %s136
    %s154 = sphi 0, %s154
    %s156 = sphi 0, %s154
    %s157 = sphi 0, %s156
    %s171 = sphi 0, %s157
    %s175 = sphi 0, %s175
    %s177 = sphi 0, %s175
    %s178 = sphi 0, %s177
    %s192 = sphi 0, %s178
    %s196 = sphi 0, %s196
    %s198 = sphi 0, %s196
    %s199 = sphi 0, %s198
    %s213 = sphi 0, %s199
    %s219 = sphi 0, %s221
    %s222 = sphi 0, %s219
    %s223 = sphi 0, %s222
    %s239 = sphi 0, %s223
  $region4: #{pointnet_plus_forward.11} parent=0 // loop_header_branch
    %18 = sbr.rel (%p16) target = $region8
  $region5: #{pointnet_plus_forward.11} parent=0 // loop_body
    %s20 = ssub.s32 %s15, 1
    %s21 = ssub.s32 %s15, 2
    %s22 = sadd.s32 %s15, 1
    %s23 = ssub.s32 %s15, %s22
    %p24 = scmp.eq.s32.totalorder %s23, 0
    %s26 = sadd.s32 %s25, 1
    %s27 = scalar_select %p24, %s25, %s26
    %p30 = pneg %p24
    %p31 = scmp.eq.s32.totalorder %s15, 1
    %p32 = por %p30, %p31
    %p33 = scmp.ne.s32.totalorder %s25, %s28
    %p34 = scmp.eq.s32.totalorder %s15, 0
    %p35 = por %p33, %p34
    %p36 = scmp.ne.s32.totalorder %s25, %s28
    %p37 = scmp.eq.s32.totalorder %s20, 1
    %p38 = por %p36, %p37
    %p39 = scmp.ne.s32.totalorder %s28, %s29
    %p40 = scmp.eq.s32.totalorder %s20, 0
    %p41 = por %p39, %p40
    %p42 = scmp.ne.s32.totalorder %s28, %s29
    %p43 = scmp.eq.s32.totalorder %s21, 1
    %p44 = por %p42, %p43
    %p46 = scmp.ne.s32.totalorder %s29, %s45
    %p47 = scmp.eq.s32.totalorder %s21, 0
    %p48 = por %p46, %p47
    %s50 = sadd.s32 %s49, 1
    %p53 = scmp.eq.s32.totalorder %s15, 1
    %p54 = scmp.ne.s32.totalorder %s49, %s51
    %p55 = scmp.eq.s32.totalorder %s15, 0
    %p56 = por %p54, %p55
    %p57 = scmp.ne.s32.totalorder %s49, %s51
    %p58 = scmp.eq.s32.totalorder %s20, 1
    %p59 = por %p57, %p58
    %p60 = scmp.ne.s32.totalorder %s51, %s52
    %p61 = scmp.eq.s32.totalorder %s20, 0
    %p62 = por %p60, %p61
    %p63 = scmp.ne.s32.totalorder %s51, %s52
    %p64 = scmp.eq.s32.totalorder %s21, 1
    %p65 = por %p63, %p64
    %p67 = scmp.ne.s32.totalorder %s52, %s66
    %p68 = scmp.eq.s32.totalorder %s21, 0
    %p69 = por %p67, %p68
    %s71 = sadd.s32 %s70, 1
    %p74 = scmp.eq.s32.totalorder %s15, 1
    %p75 = scmp.ne.s32.totalorder %s70, %s72
    %p76 = scmp.eq.s32.totalorder %s15, 0
    %p77 = por %p75, %p76
    %p78 = scmp.ne.s32.totalorder %s70, %s72
    %p79 = scmp.eq.s32.totalorder %s20, 1
    %p80 = por %p78, %p79
    %p81 = scmp.ne.s32.totalorder %s72, %s73
    %p82 = scmp.eq.s32.totalorder %s20, 0
    %p83 = por %p81, %p82
    %p84 = scmp.ne.s32.totalorder %s72, %s73
    %p85 = scmp.eq.s32.totalorder %s21, 1
    %p86 = por %p84, %p85
    %p88 = scmp.ne.s32.totalorder %s73, %s87
    %p89 = scmp.eq.s32.totalorder %s21, 0
    %p90 = por %p88, %p89
    %s92 = sadd.s32 %s91, 1
    %p95 = scmp.eq.s32.totalorder %s15, 1
    %p96 = scmp.ne.s32.totalorder %s91, %s93
    %p97 = scmp.eq.s32.totalorder %s15, 0
    %p98 = por %p96, %p97
    %p99 = scmp.ne.s32.totalorder %s91, %s93
    %p100 = scmp.eq.s32.totalorder %s20, 1
    %p101 = por %p99, %p100
    %p102 = scmp.ne.s32.totalorder %s93, %s94
    %p103 = scmp.eq.s32.totalorder %s20, 0
    %p104 = por %p102, %p103
    %p105 = scmp.ne.s32.totalorder %s93, %s94
    %p106 = scmp.eq.s32.totalorder %s21, 1
    %p107 = por %p105, %p106
    %p109 = scmp.ne.s32.totalorder %s94, %s108
    %p110 = scmp.eq.s32.totalorder %s21, 0
    %p111 = por %p109, %p110
    %s113 = sadd.s32 %s112, 1
    %p116 = scmp.eq.s32.totalorder %s15, 1
    %p117 = scmp.ne.s32.totalorder %s112, %s114
    %p118 = scmp.eq.s32.totalorder %s15, 0
    %p119 = por %p117, %p118
    %p120 = scmp.ne.s32.totalorder %s112, %s114
    %p121 = scmp.eq.s32.totalorder %s20, 1
    %p122 = por %p120, %p121
    %p123 = scmp.ne.s32.totalorder %s114, %s115
    %p124 = scmp.eq.s32.totalorder %s20, 0
    %p125 = por %p123, %p124
    %p126 = scmp.ne.s32.totalorder %s114, %s115
    %p127 = scmp.eq.s32.totalorder %s21, 1
    %p128 = por %p126, %p127
    %p130 = scmp.ne.s32.totalorder %s115, %s129
    %p131 = scmp.eq.s32.totalorder %s21, 0
    %p132 = por %p130, %p131
    %s134 = sadd.s32 %s133, 1
    %p137 = scmp.eq.s32.totalorder %s15, 1
    %p138 = scmp.ne.s32.totalorder %s133, %s135
    %p139 = scmp.eq.s32.totalorder %s15, 0
    %p140 = por %p138, %p139
    %p141 = scmp.ne.s32.totalorder %s133, %s135
    %p142 = scmp.eq.s32.totalorder %s20, 1
    %p143 = por %p141, %p142
    %p144 = scmp.ne.s32.totalorder %s135, %s136
    %p145 = scmp.eq.s32.totalorder %s20, 0
    %p146 = por %p144, %p145
    %p147 = scmp.ne.s32.totalorder %s135, %s136
    %p148 = scmp.eq.s32.totalorder %s21, 1
    %p149 = por %p147, %p148
    %p151 = scmp.ne.s32.totalorder %s136, %s150
    %p152 = scmp.eq.s32.totalorder %s21, 0
    %p153 = por %p151, %p152
    %s155 = sadd.s32 %s154, 1
    %p158 = scmp.eq.s32.totalorder %s15, 1
    %p159 = scmp.ne.s32.totalorder %s154, %s156
    %p160 = scmp.eq.s32.totalorder %s15, 0
    %p161 = por %p159, %p160
    %p162 = scmp.ne.s32.totalorder %s154, %s156
    %p163 = scmp.eq.s32.totalorder %s20, 1
    %p164 = por %p162, %p163
    %p165 = scmp.ne.s32.totalorder %s156, %s157
    %p166 = scmp.eq.s32.totalorder %s20, 0
    %p167 = por %p165, %p166
    %p168 = scmp.ne.s32.totalorder %s156, %s157
    %p169 = scmp.eq.s32.totalorder %s21, 1
    %p170 = por %p168, %p169
    %p172 = scmp.ne.s32.totalorder %s157, %s171
    %p173 = scmp.eq.s32.totalorder %s21, 0
    %p174 = por %p172, %p173
    %s176 = sadd.s32 %s175, 1
    %p179 = scmp.eq.s32.totalorder %s15, 1
    %p180 = scmp.ne.s32.totalorder %s175, %s177
    %p181 = scmp.eq.s32.totalorder %s15, 0
    %p182 = por %p180, %p181
    %p183 = scmp.ne.s32.totalorder %s175, %s177
    %p184 = scmp.eq.s32.totalorder %s20, 1
    %p185 = por %p183, %p184
    %p186 = scmp.ne.s32.totalorder %s177, %s178
    %p187 = scmp.eq.s32.totalorder %s20, 0
    %p188 = por %p186, %p187
    %p189 = scmp.ne.s32.totalorder %s177, %s178
    %p190 = scmp.eq.s32.totalorder %s21, 1
    %p191 = por %p189, %p190
    %p193 = scmp.ne.s32.totalorder %s178, %s192
    %p194 = scmp.eq.s32.totalorder %s21, 0
    %p195 = por %p193, %p194
    %s197 = sadd.s32 %s196, 1
    %p200 = scmp.eq.s32.totalorder %s15, 1
    %p201 = scmp.ne.s32.totalorder %s196, %s198
    %p202 = scmp.eq.s32.totalorder %s15, 0
    %p203 = por %p201, %p202
    %p204 = scmp.ne.s32.totalorder %s196, %s198
    %p205 = scmp.eq.s32.totalorder %s20, 1
    %p206 = por %p204, %p205
    %p207 = scmp.ne.s32.totalorder %s198, %s199
    %p208 = scmp.eq.s32.totalorder %s20, 0
    %p209 = por %p207, %p208
    %p210 = scmp.ne.s32.totalorder %s198, %s199
    %p211 = scmp.eq.s32.totalorder %s21, 1
    %p212 = por %p210, %p211
    %p214 = scmp.ne.s32.totalorder %s199, %s213
    %p215 = scmp.eq.s32.totalorder %s21, 0
    %p216 = por %p214, %p215
    %s217 = ssub.s32 %s15, %s22
    %p218 = scmp.eq.s32.totalorder %s217, 0
    %s220 = sadd.s32 %s219, 1
    %s221 = scalar_select %p218, %s219, %s220
    %p224 = pneg %p218
    %p225 = scmp.eq.s32.totalorder %s15, 1
    %p226 = por %p224, %p225
    %p227 = scmp.ne.s32.totalorder %s219, %s222
    %p228 = scmp.eq.s32.totalorder %s15, 0
    %p229 = por %p227, %p228
    %p230 = scmp.ne.s32.totalorder %s219, %s222
    %p231 = scmp.eq.s32.totalorder %s20, 1
    %p232 = por %p230, %p231
    %p233 = scmp.ne.s32.totalorder %s222, %s223
    %p234 = scmp.eq.s32.totalorder %s20, 0
    %p235 = por %p233, %p234
    %p236 = scmp.ne.s32.totalorder %s222, %s223
    %p237 = scmp.eq.s32.totalorder %s21, 1
    %p238 = por %p236, %p237
    %p240 = scmp.ne.s32.totalorder %s223, %s239
    %p241 = scmp.eq.s32.totalorder %s21, 0
    %p242 = por %p240, %p241
    %p243 = scmp.le.s32.totalorder 1, %s15
    %p244 = scmp.lt.s32.totalorder %s15, 3
    %p245 = pnand %p243, %p244
    %p246 = pneg %p245
    // Predicated region
    $region9: #{pointnet_plus_forward.11} parent=5 // pred_check
      _
    $region10: #{pointnet_plus_forward.11} parent=5 // pred_check_branch
      %248 = sbr.rel (%p245) target = $region12
    $region11: #{pointnet_plus_forward.11} parent=5 // pred_region
      %s249 = ssub.s32 %s15, 1
      // Predicated region
      $region13: #{pointnet_plus_forward.11} parent=11 // pred_check
        %p250 = pneg %p62
      $region14: #{pointnet_plus_forward.11} parent=11 // pred_check_branch
        %252 = sbr.rel (%p250) target = $region16
      $region15: #{pointnet_plus_forward.11} parent=11 // pred_region
        _
      $region16: #{pointnet_plus_forward.11} parent=11 // pred_fallthru
        _
      // Predicated region
      $region17: #{pointnet_plus_forward.11} parent=11 // pred_check
        %p253 = pneg %p83
      $region18: #{pointnet_plus_forward.11} parent=11 // pred_check_branch
        %255 = sbr.rel (%p253) target = $region20
      $region19: #{pointnet_plus_forward.11} parent=11 // pred_region
        _
      $region20: #{pointnet_plus_forward.11} parent=11 // pred_fallthru
        _
      // Predicated region
      $region21: #{pointnet_plus_forward.11} parent=11 // pred_check
        %p256 = pneg %p104
      $region22: #{pointnet_plus_forward.11} parent=11 // pred_check_branch
        %258 = sbr.rel (%p256) target = $region24
      $region23: #{pointnet_plus_forward.11} parent=11 // pred_region
        _
      $region24: #{pointnet_plus_forward.11} parent=11 // pred_fallthru
        _
      // Predicated region
      $region25: #{pointnet_plus_forward.11} parent=11 // pred_check
        %p259 = pneg %p125
      $region26: #{pointnet_plus_forward.11} parent=11 // pred_check_branch
        %261 = sbr.rel (%p259) target = $region28
      $region27: #{pointnet_plus_forward.11} parent=11 // pred_region
        _
      $region28: #{pointnet_plus_forward.11} parent=11 // pred_fallthru
        _
      // Predicated region
      $region29: #{pointnet_plus_forward.11} parent=11 // pred_check
        %p262 = pneg %p146
      $region30: #{pointnet_plus_forward.11} parent=11 // pred_check_branch
        %264 = sbr.rel (%p262) target = $region32
      $region31: #{pointnet_plus_forward.11} parent=11 // pred_region
        _
      $region32: #{pointnet_plus_forward.11} parent=11 // pred_fallthru
        _
      // Predicated region
      $region33: #{pointnet_plus_forward.11} parent=11 // pred_check
        %p265 = pneg %p167
      $region34: #{pointnet_plus_forward.11} parent=11 // pred_check_branch
        %267 = sbr.rel (%p265) target = $region36
      $region35: #{pointnet_plus_forward.11} parent=11 // pred_region
        _
      $region36: #{pointnet_plus_forward.11} parent=11 // pred_fallthru
        _
      // Predicated region
      $region37: #{pointnet_plus_forward.11} parent=11 // pred_check
        %p268 = pneg %p188
      $region38: #{pointnet_plus_forward.11} parent=11 // pred_check_branch
        %270 = sbr.rel (%p268) target = $region40
      $region39: #{pointnet_plus_forward.11} parent=11 // pred_region
        _
      $region40: #{pointnet_plus_forward.11} parent=11 // pred_fallthru
        _
      // Predicated region
      $region41: #{pointnet_plus_forward.11} parent=11 // pred_check
        %p271 = pneg %p209
      $region42: #{pointnet_plus_forward.11} parent=11 // pred_check_branch
        %273 = sbr.rel (%p271) target = $region44
      $region43: #{pointnet_plus_forward.11} parent=11 // pred_region
        _
      $region44: #{pointnet_plus_forward.11} parent=11 // pred_fallthru
        _
    $region12: #{pointnet_plus_forward.11} parent=5 // pred_fallthru
      _
    %p274 = scmp.lt.s32.totalorder %s15, 2
    // Predicated region
    $region45: #{pointnet_plus_forward.11} parent=5 // pred_check
      %p275 = pneg %p274
    $region46: #{pointnet_plus_forward.11} parent=5 // pred_check_branch
      %277 = sbr.rel (%p275) target = $region48
    $region47: #{pointnet_plus_forward.11} parent=5 // pred_region
      // Predicated region
      $region49: #{pointnet_plus_forward.11} parent=47 // pred_check
        %p278 = pneg %p35
      $region50: #{pointnet_plus_forward.11} parent=47 // pred_check_branch
        %280 = sbr.rel (%p278) target = $region52
      $region51: #{pointnet_plus_forward.11} parent=47 // pred_region
        %s281 = smul.u32 16, %s15
        %p282 = scmp.lt.s32.totalorder %s281, 31
        %s283 = scalar_select %p282, %s281, 31
        %s284 = smul.addr %s283, 2
        %s285 = smul.addr %s284, 4
        %s286 = scalar_lea.vmem %s0, %s285
        %s287 = smul.u32 16, %s15
      $region52: #{pointnet_plus_forward.11} parent=47 // pred_fallthru
        _
    $region48: #{pointnet_plus_forward.11} parent=5 // pred_fallthru
      _
    %p288 = scmp.le.s32.totalorder 1, %s15
    %p289 = scmp.lt.s32.totalorder %s15, 3
    %p290 = pnand %p288, %p289
    %p291 = pneg %p290
    // Predicated region
    $region53: #{pointnet_plus_forward.11} parent=5 // pred_check
      _
    $region54: #{pointnet_plus_forward.11} parent=5 // pred_check_branch
      %293 = sbr.rel (%p290) target = $region56
    $region55: #{pointnet_plus_forward.11} parent=5 // pred_region
      %s294 = ssub.s32 %s15, 1
      %s295 = smul.u32 16, %s20
      %p296 = scmp.lt.s32.totalorder %s295, 31
      %s297 = scalar_select %p296, %s295, 31
      %s298 = smul.addr %s297, 2
      %s299 = smul.addr %s298, 4
      %s300 = scalar_lea.vmem %s0, %s299
      %p301 = pneg %p41
      %p302 = pneg %p38
      %p303 = pneg %p62
      %p304 = pneg %p59
      %p305 = pneg %p83
      %p306 = pneg %p80
      %p307 = pneg %p104
      %p308 = pneg %p101
      %p309 = pneg %p125
      %p310 = pneg %p122
      %p311 = pneg %p146
      %p312 = pneg %p143
      %p313 = pneg %p167
      %p314 = pneg %p164
      %p315 = pneg %p188
      %p316 = pneg %p185
      %p317 = pneg %p209
      %p318 = pneg %p206
      %p319 = pneg %p235
      %p320 = pneg %p232
      %s321 = smul.u32 16, %s20
      %p322 = scmp.lt.s32.totalorder %s321, 31
      %s323 = scalar_select %p322, %s321, 31
      %s324 = smul.addr %s323, 8
      %s325 = scalar_lea.vmem %s9, %s324
      %s326 = smul.u32 16, %s20
      %p327 = scmp.lt.s32.totalorder %s326, 31
      %s328 = scalar_select %p327, %s326, 31
      %s329 = smul.addr %s328, 2
      %s330 = smul.addr %s329, 4
      %s331 = scalar_lea.vmem %s0, %s330
      %s332 = smul.u32 16, %s20
      %s333 = smul.u32 16, %s20
      %p334 = scmp.lt.s32.totalorder %s333, 31
      %s335 = scalar_select %p334, %s333, 31
      %s336 = smul.addr %s335, 8
      %s337 = scalar_lea.vmem %s9, %s336
      %s338 = smul.u32 16, %s20
      %v340 = vld [vmem:[%s331] sm:$0xff]
      %v341 = vld [vmem:[%s331 + $0x8] sm:$0xff]
      %v342 = vld [vmem:[%s331 + $0x10] sm:$0xff]
      %v343 = vld [vmem:[%s331 + $0x18] sm:$0xff]
      %v344 = vld [vmem:[%s331 + $0x20] sm:$0xff]
      %v345 = vld [vmem:[%s331 + $0x28] sm:$0xff]
      %v346 = vld [vmem:[%s331 + $0x30] sm:$0xff]
      %v347 = vld [vmem:[%s331 + $0x38] sm:$0xff]
      %v348 = vld [vmem:[%s331 + $0x40] sm:$0xff]
      %v349 = vld [vmem:[%s331 + $0x48] sm:$0xff]
      %v350 = vld [vmem:[%s331 + $0x50] sm:$0xff]
      %v351 = vld [vmem:[%s331 + $0x58] sm:$0xff]
      %v352 = vld [vmem:[%s331 + $0x60] sm:$0xff]
      %v353 = vld [vmem:[%s331 + $0x68] sm:$0xff]
      %v354 = vld [vmem:[%s331 + $0x70] sm:$0xff]
      %v355 = vld [vmem:[%s331 + $0x78] sm:$0xff]
      %v356 = vld [vmem:[%s1] sm:$0xf]
      %v357 = vld [vmem:[%s1 + $0x4] sm:$0xf]
      %v358 = vld [vmem:[%s1 + $0x8] sm:$0xf]
      %v359 = vld [vmem:[%s1 + $0xc] sm:$0xf]
      %v360 = vld [vmem:[%s1 + $0x10] sm:$0xf]
      %v361 = vld [vmem:[%s1 + $0x14] sm:$0xf]
      %v362 = vld [vmem:[%s1 + $0x18] sm:$0xf]
      %v363 = vld [vmem:[%s1 + $0x1c] sm:$0xf]
      %v364 = vld [vmem:[%s1 + $0x20] sm:$0xf]
      %v365 = vld [vmem:[%s1 + $0x24] sm:$0xf]
      %v366 = vld [vmem:[%s1 + $0x28] sm:$0xf]
      %v367 = vld [vmem:[%s1 + $0x2c] sm:$0xf]
      %v368 = vld [vmem:[%s1 + $0x30] sm:$0xf]
      %v369 = vld [vmem:[%s1 + $0x34] sm:$0xf]
      %v370 = vld [vmem:[%s1 + $0x38] sm:$0xf]
      %v371 = vld [vmem:[%s1 + $0x3c] sm:$0xf]
      %v372 = vld [vmem:[%s1 + $0x40] sm:$0xf]
      %v373 = vld [vmem:[%s2] sm:$0x1]
      %v375 = vlaneseq
      %v376 = vshrl.u32 %v375, 7
      %v377 = vsub.s32 0, %v376
      %v378 = vrot.slane %v373, %v377
      %v396 = vunpack.c.l.b16 %v340
      %v397 = vunpack.c.h.b16 %v340
      %v398 = vunpack.c.l.b16 %v341
      %v399 = vunpack.c.h.b16 %v341
      %v400 = vunpack.c.l.b16 %v342
      %v401 = vunpack.c.h.b16 %v342
      %v402 = vunpack.c.l.b16 %v343
      %v403 = vunpack.c.h.b16 %v343
      %v404 = vunpack.c.l.b16 %v344
      %v405 = vunpack.c.h.b16 %v344
      %v406 = vunpack.c.l.b16 %v345
      %v407 = vunpack.c.h.b16 %v345
      %v408 = vunpack.c.l.b16 %v346
      %v409 = vunpack.c.h.b16 %v346
      %v410 = vunpack.c.l.b16 %v347
      %v411 = vunpack.c.h.b16 %v347
      %v412 = vunpack.c.l.b16 %v348
      %v413 = vunpack.c.h.b16 %v348
      %v414 = vunpack.c.l.b16 %v349
      %v415 = vunpack.c.h.b16 %v349
      %v416 = vunpack.c.l.b16 %v350
      %v417 = vunpack.c.h.b16 %v350
      %v418 = vunpack.c.l.b16 %v351
      %v419 = vunpack.c.h.b16 %v351
      %v420 = vunpack.c.l.b16 %v352
      %v421 = vunpack.c.h.b16 %v352
      %v422 = vunpack.c.l.b16 %v353
      %v423 = vunpack.c.h.b16 %v353
      %v424 = vunpack.c.l.b16 %v354
      %v425 = vunpack.c.h.b16 %v354
      %v426 = vunpack.c.l.b16 %v355
      %v427 = vunpack.c.h.b16 %v355
      %v428 = vpack.c.b16 %v398, %v396
      %v429 = vpack.c.b16 %v399, %v397
      %v430 = vpack.c.b16 %v402, %v400
      %v431 = vpack.c.b16 %v403, %v401
      %v432 = vpack.c.b16 %v406, %v404
      %v433 = vpack.c.b16 %v407, %v405
      %v434 = vpack.c.b16 %v410, %v408
      %v435 = vpack.c.b16 %v411, %v409
      %v436 = vpack.c.b16 %v414, %v412
      %v437 = vpack.c.b16 %v415, %v413
      %v438 = vpack.c.b16 %v418, %v416
      %v439 = vpack.c.b16 %v419, %v417
      %v440 = vpack.c.b16 %v422, %v420
      %v441 = vpack.c.b16 %v423, %v421
      %v442 = vpack.c.b16 %v426, %v424
      %v443 = vpack.c.b16 %v427, %v425
      %v469 = vunpack.c.l.b16 %v356
      %v470 = vunpack.c.l.b16 %v357
      %v471 = vunpack.c.l.b16 %v358
      %v472 = vunpack.c.l.b16 %v359
      %v473 = vunpack.c.l.b16 %v360
      %v474 = vunpack.c.l.b16 %v361
      %v475 = vunpack.c.l.b16 %v362
      %v476 = vunpack.c.l.b16 %v363
      %v477 = vunpack.c.l.b16 %v364
      %v478 = vunpack.c.l.b16 %v365
      %v479 = vunpack.c.l.b16 %v366
      %v480 = vunpack.c.l.b16 %v367
      %v481 = vunpack.c.l.b16 %v368
      %v482 = vunpack.c.l.b16 %v369
      %v483 = vunpack.c.l.b16 %v370
      %v484 = vunpack.c.l.b16 %v371
      %v485 = vunpack.c.l.b16 %v372
      %v486 = vpack.c.b16 %v470, %v469
      %v487 = vpack.c.b16 %v472, %v471
      %v488 = vpack.c.b16 %v474, %v473
      %v489 = vpack.c.b16 %v476, %v475
      %v490 = vpack.c.b16 %v478, %v477
      %v491 = vpack.c.b16 %v480, %v479
      %v492 = vpack.c.b16 %v482, %v481
      %v493 = vpack.c.b16 %v484, %v483
      %v494 = vpack.c.b16 %v485, %v485
      %vm503 = vcmask 64512
      %v505 = vsel %vm503, %v429, 0
      %v508 = vsel %vm503, %v431, 0
      %v511 = vsel %vm503, %v433, 0
      %v514 = vsel %vm503, %v435, 0
      %v517 = vsel %vm503, %v437, 0
      %v520 = vsel %vm503, %v439, 0
      %v523 = vsel %vm503, %v441, 0
      %v526 = vsel %vm503, %v443, 0
      %vm528 = vcmask 1043456
      %v530 = vsel %vm528, %v494, 0
      %532 = vmatprep.subr.bf16.mxu0 0
      %533 = vmatpush1.bf16.msra.mxu0 %v486
      %534 = vmatprep.subr.bf16.mxu0 0
      %535 = vmatpush1.bf16.msra.mxu0 %v487
      %536 = vmatprep.subr.bf16.mxu0 0
      %537 = vmatpush1.bf16.msra.mxu0 %v488
      %538 = vmatprep.subr.bf16.mxu0 0
      %539 = vmatpush1.bf16.msra.mxu0 %v489
      %540 = vmatprep.subr.bf16.mxu0 0
      %541 = vmatpush1.bf16.msra.mxu0 %v490
      %542 = vmatprep.subr.bf16.mxu0 0
      %543 = vmatpush1.bf16.msra.mxu0 %v491
      %544 = vmatprep.subr.bf16.mxu0 0
      %545 = vmatpush1.bf16.msra.mxu0 %v492
      %546 = vmatprep.subr.bf16.mxu0 0
      %547 = vmatpush1.bf16.msra.mxu0 %v493
      %548 = vmatprep.subr.bf16.mxu0 0
      %549 = vmatpush1.bf16.msra.mxu0 %v530
      %550 = vmatprep.subr.bf16.mxu0 0
      %551 = vmatpush1.bf16.msra.mxu0 0
      %552 = vmatprep.subr.bf16.mxu0 0
      %553 = vmatpush1.bf16.msra.mxu0 0
      %554 = vmatprep.subr.bf16.mxu0 0
      %555 = vmatpush1.bf16.msra.mxu0 0
      %556 = vmatprep.subr.bf16.mxu0 0
      %557 = vmatpush1.bf16.msra.mxu0 0
      %558 = vmatprep.subr.bf16.mxu0 0
      %559 = vmatpush1.bf16.msra.mxu0 0
      %560 = vmatprep.subr.bf16.mxu0 0
      %561 = vmatpush1.bf16.msra.mxu0 0
      %562 = vmatprep.subr.bf16.mxu0 0
      %563 = vmatpush1.bf16.msra.mxu0 0
      %564 = vmatprep.mubr.bf16.mxu0 %v505
      %565 = vmatmul.mubr.bf16.gmra.mrb[0].mxu0 %v428
      %v566 = vpop.f32.mrb[0].mxu0
      %v567 = vadd.f32 %v378, %v566
      %v568 = vpop.f32.mrb[0].mxu0
      %v569 = vpop.f32.mrb[0].mxu0
      %v570 = vadd.f32 %v378, %v569
      %v571 = vpop.f32.mrb[0].mxu0
      %572 = vmatprep.mubr.bf16.mxu0 %v508
      %573 = vmatmul.mubr.bf16.gmra.mrb[0].mxu0 %v430
      %v574 = vpop.f32.mrb[0].mxu0
      %v575 = vadd.f32 %v378, %v574
      %v576 = vpop.f32.mrb[0].mxu0
      %v577 = vpop.f32.mrb[0].mxu0
      %v578 = vadd.f32 %v378, %v577
      %v579 = vpop.f32.mrb[0].mxu0
      %580 = vmatprep.mubr.bf16.mxu0 %v511
      %581 = vmatmul.mubr.bf16.gmra.mrb[0].mxu0 %v432
      %v582 = vpop.f32.mrb[0].mxu0
      %v583 = vadd.f32 %v378, %v582
      %v584 = vpop.f32.mrb[0].mxu0
      %v585 = vpop.f32.mrb[0].mxu0
      %v586 = vadd.f32 %v378, %v585
      %v587 = vpop.f32.mrb[0].mxu0
      %588 = vmatprep.mubr.bf16.mxu0 %v514
      %589 = vmatmul.mubr.bf16.gmra.mrb[0].mxu0 %v434
      %v590 = vpop.f32.mrb[0].mxu0
      %v591 = vadd.f32 %v378, %v590
      %v592 = vpop.f32.mrb[0].mxu0
      %v593 = vpop.f32.mrb[0].mxu0
      %v594 = vadd.f32 %v378, %v593
      %v595 = vpop.f32.mrb[0].mxu0
      %596 = vmatprep.mubr.bf16.mxu0 %v517
      %597 = vmatmul.mubr.bf16.gmra.mrb[0].mxu0 %v436
      %v598 = vpop.f32.mrb[0].mxu0
      %v599 = vadd.f32 %v378, %v598
      %v600 = vpop.f32.mrb[0].mxu0
      %v601 = vpop.f32.mrb[0].mxu0
      %v602 = vadd.f32 %v378, %v601
      %v603 = vpop.f32.mrb[0].mxu0
      %604 = vmatprep.mubr.bf16.mxu0 %v520
      %605 = vmatmul.mubr.bf16.gmra.mrb[0].mxu0 %v438
      %v606 = vpop.f32.mrb[0].mxu0
      %v607 = vadd.f32 %v378, %v606
      %v608 = vpop.f32.mrb[0].mxu0
      %v609 = vpop.f32.mrb[0].mxu0
      %v610 = vadd.f32 %v378, %v609
      %v611 = vpop.f32.mrb[0].mxu0
      %612 = vmatprep.mubr.bf16.mxu0 %v523
      %613 = vmatmul.mubr.bf16.gmra.mrb[0].mxu0 %v440
      %v614 = vpop.f32.mrb[0].mxu0
      %v615 = vadd.f32 %v378, %v614
      %v616 = vpop.f32.mrb[0].mxu0
      %v617 = vpop.f32.mrb[0].mxu0
      %v618 = vadd.f32 %v378, %v617
      %v619 = vpop.f32.mrb[0].mxu0
      %620 = vmatprep.mubr.bf16.mxu0 %v526
      %621 = vmatmul.mubr.bf16.gmra.mrb[0].mxu0 %v442
      %v622 = vpop.f32.mrb[0].mxu0
      %v623 = vadd.f32 %v378, %v622
      %v624 = vpop.f32.mrb[0].mxu0
      %v625 = vpop.f32.mrb[0].mxu0
      %v626 = vadd.f32 %v378, %v625
      %v627 = vpop.f32.mrb[0].mxu0
      %628 = vdwg.mxu0
      %v629 = vmax.f32 %v567, 0.0
      %v630 = vmax.f32 %v570, 0.0
      %v631 = vmax.f32 %v575, 0.0
      %v632 = vmax.f32 %v578, 0.0
      %v633 = vmax.f32 %v583, 0.0
      %v634 = vmax.f32 %v586, 0.0
      %v635 = vmax.f32 %v591, 0.0
      %v636 = vmax.f32 %v594, 0.0
      %v637 = vmax.f32 %v599, 0.0
      %v638 = vmax.f32 %v602, 0.0
      %v639 = vmax.f32 %v607, 0.0
      %v640 = vmax.f32 %v610, 0.0
      %v641 = vmax.f32 %v615, 0.0
      %v642 = vmax.f32 %v618, 0.0
      %v643 = vmax.f32 %v623, 0.0
      %v644 = vmax.f32 %v626, 0.0
      %v645 = vpack.c.bf16 %v630, %v629
      %v646 = vpack.c.bf16 %v632, %v631
      %v647 = vpack.c.bf16 %v634, %v633
      %v648 = vpack.c.bf16 %v636, %v635
      %v649 = vpack.c.bf16 %v638, %v637
      %v650 = vpack.c.bf16 %v640, %v639
      %v651 = vpack.c.bf16 %v642, %v641
      %v652 = vpack.c.bf16 %v644, %v643
      %v653 = vld [vmem:[%s3] sm:$0xf]
      %v654 = vld [vmem:[%s3 + $0x4] sm:$0xf]
      %v655 = vld [vmem:[%s3 + $0x8] sm:$0xf]
      %v656 = vld [vmem:[%s3 + $0xc] sm:$0xf]
      %v657 = vld [vmem:[%s3 + $0x10] sm:$0xf]
      %v658 = vld [vmem:[%s3 + $0x14] sm:$0xf]
      %v659 = vld [vmem:[%s3 + $0x18] sm:$0xf]
      %v660 = vld [vmem:[%s3 + $0x1c] sm:$0xf]
      %v661 = vld [vmem:[%s3 + $0x20] sm:$0xf]
      %v662 = vld [vmem:[%s3 + $0x24] sm:$0xf]
      %v663 = vld [vmem:[%s3 + $0x28] sm:$0xf]
      %v664 = vld [vmem:[%s3 + $0x2c] sm:$0xf]
      %v665 = vld [vmem:[%s3 + $0x30] sm:$0xf]
      %v666 = vld [vmem:[%s3 + $0x34] sm:$0xf]
      %v667 = vld [vmem:[%s3 + $0x38] sm:$0xf]
      %v668 = vld [vmem:[%s3 + $0x3c] sm:$0xf]
      %v669 = vld [vmem:[%s4] sm:$0x1]
      %v671 = vlaneseq
      %v672 = vshrl.u32 %v671, 7
      %v673 = vsub.s32 0, %v672
      %v674 = vrot.slane %v669, %v673
      %v692 = vunpack.c.l.b16 %v653
      %v693 = vunpack.c.l.b16 %v654
      %v694 = vunpack.c.l.b16 %v655
      %v695 = vunpack.c.l.b16 %v656
      %v696 = vunpack.c.l.b16 %v657
      %v697 = vunpack.c.l.b16 %v658
      %v698 = vunpack.c.l.b16 %v659
      %v699 = vunpack.c.l.b16 %v660
      %v700 = vunpack.c.l.b16 %v661
      %v701 = vunpack.c.l.b16 %v662
      %v702 = vunpack.c.l.b16 %v663
      %v703 = vunpack.c.l.b16 %v664
      %v704 = vunpack.c.l.b16 %v665
      %v705 = vunpack.c.l.b16 %v666
      %v706 = vunpack.c.l.b16 %v667
      %v707 = vunpack.c.l.b16 %v668
      %v708 = vpack.c.b16 %v693, %v692
      %v709 = vpack.c.b16 %v695, %v694
      %v710 = vpack.c.b16 %v697, %v696
      %v711 = vpack.c.b16 %v699, %v698
      %v712 = vpack.c.b16 %v701, %v700
      %v713 = vpack.c.b16 %v703, %v702
      %v714 = vpack.c.b16 %v705, %v704
      %v715 = vpack.c.b16 %v707, %v706
      %724 = vmatprep.subr.bf16.mxu0 0
      %725 = vmatpush1.bf16.msra.mxu0 %v708
      %726 = vmatprep.subr.bf16.mxu0 0
      %727 = vmatpush1.bf16.msra.mxu0 %v709
      %728 = vmatprep.subr.bf16.mxu0 0
      %729 = vmatpush1.bf16.msra.mxu0 %v710
      %730 = vmatprep.subr.bf16.mxu0 0
      %731 = vmatpush1.bf16.msra.mxu0 %v711
      %732 = vmatprep.subr.bf16.mxu0 0
      %733 = vmatpush1.bf16.msra.mxu0 %v712
      %734 = vmatprep.subr.bf16.mxu0 0
      %735 = vmatpush1.bf16.msra.mxu0 %v713
      %736 = vmatprep.subr.bf16.mxu0 0
      %737 = vmatpush1.bf16.msra.mxu0 %v714
      %738 = vmatprep.subr.bf16.mxu0 0
      %739 = vmatpush1.bf16.msra.mxu0 %v715
      %740 = vmatprep.subr.bf16.mxu0 0
      %741 = vmatpush1.bf16.msra.mxu0 0
      %742 = vmatprep.subr.bf16.mxu0 0
      %743 = vmatpush1.bf16.msra.mxu0 0
      %744 = vmatprep.subr.bf16.mxu0 0
      %745 = vmatpush1.bf16.msra.mxu0 0
      %746 = vmatprep.subr.bf16.mxu0 0
      %747 = vmatpush1.bf16.msra.mxu0 0
      %748 = vmatprep.subr.bf16.mxu0 0
      %749 = vmatpush1.bf16.msra.mxu0 0
      %750 = vmatprep.subr.bf16.mxu0 0
      %751 = vmatpush1.bf16.msra.mxu0 0
      %752 = vmatprep.subr.bf16.mxu0 0
      %753 = vmatpush1.bf16.msra.mxu0 0
      %754 = vmatprep.subr.bf16.mxu0 0
      %755 = vmatpush1.bf16.msra.mxu0 0
      %756 = vmatprep.mubr.bf16.mxu0 0
      %757 = vmatmul.mubr.bf16.gmra.mrb[0].mxu0 %v645
      %v758 = vpop.f32.mrb[0].mxu0
      %v759 = vadd.f32 %v674, %v758
      %v760 = vpop.f32.mrb[0].mxu0
      %v761 = vpop.f32.mrb[0].mxu0
      %v762 = vadd.f32 %v674, %v761
      %v763 = vpop.f32.mrb[0].mxu0
      %764 = vmatprep.mubr.bf16.mxu0 0
      %765 = vmatmul.mubr.bf16.gmra.mrb[0].mxu0 %v646
      %v766 = vpop.f32.mrb[0].mxu0
      %v767 = vadd.f32 %v674, %v766
      %v768 = vpop.f32.mrb[0].mxu0
      %v769 = vpop.f32.mrb[0].mxu0
      %v770 = vadd.f32 %v674, %v769
      %v771 = vpop.f32.mrb[0].mxu0
      %772 = vmatprep.mubr.bf16.mxu0 0
      %773 = vmatmul.mubr.bf16.gmra.mrb[0].mxu0 %v647
      %v774 = vpop.f32.mrb[0].mxu0
      %v775 = vadd.f32 %v674, %v774
      %v776 = vpop.f32.mrb[0].mxu0
      %v777 = vpop.f32.mrb[0].mxu0
      %v778 = vadd.f32 %v674, %v777
      %v779 = vpop.f32.mrb[0].mxu0
      %780 = vmatprep.mubr.bf16.mxu0 0
      %781 = vmatmul.mubr.bf16.gmra.mrb[0].mxu0 %v648
      %v782 = vpop.f32.mrb[0].mxu0
      %v783 = vadd.f32 %v674, %v782
      %v784 = vpop.f32.mrb[0].mxu0
      %v785 = vpop.f32.mrb[0].mxu0
      %v786 = vadd.f32 %v674, %v785
      %v787 = vpop.f32.mrb[0].mxu0
      %788 = vmatprep.mubr.bf16.mxu0 0
      %789 = vmatmul.mubr.bf16.gmra.mrb[0].mxu0 %v649
      %v790 = vpop.f32.mrb[0].mxu0
      %v791 = vadd.f32 %v674, %v790
      %v792 = vpop.f32.mrb[0].mxu0
      %v793 = vpop.f32.mrb[0].mxu0
      %v794 = vadd.f32 %v674, %v793
      %v795 = vpop.f32.mrb[0].mxu0
      %796 = vmatprep.mubr.bf16.mxu0 0
      %797 = vmatmul.mubr.bf16.gmra.mrb[0].mxu0 %v650
      %v798 = vpop.f32.mrb[0].mxu0
      %v799 = vadd.f32 %v674, %v798
      %v800 = vpop.f32.mrb[0].mxu0
      %v801 = vpop.f32.mrb[0].mxu0
      %v802 = vadd.f32 %v674, %v801
      %v803 = vpop.f32.mrb[0].mxu0
      %804 = vmatprep.mubr.bf16.mxu0 0
      %805 = vmatmul.mubr.bf16.gmra.mrb[0].mxu0 %v651
      %v806 = vpop.f32.mrb[0].mxu0
      %v807 = vadd.f32 %v674, %v806
      %v808 = vpop.f32.mrb[0].mxu0
      %v809 = vpop.f32.mrb[0].mxu0
      %v810 = vadd.f32 %v674, %v809
      %v811 = vpop.f32.mrb[0].mxu0
      %812 = vmatprep.mubr.bf16.mxu0 0
      %813 = vmatmul.mubr.bf16.gmra.mrb[0].mxu0 %v652
      %v814 = vpop.f32.mrb[0].mxu0
      %v815 = vadd.f32 %v674, %v814
      %v816 = vpop.f32.mrb[0].mxu0
      %v817 = vpop.f32.mrb[0].mxu0
      %v818 = vadd.f32 %v674, %v817
      %v819 = vpop.f32.mrb[0].mxu0
      %820 = vdwg.mxu0
      %v821 = vmax.f32 %v759, 0.0
      %v822 = vmax.f32 %v762, 0.0
      %v823 = vmax.f32 %v767, 0.0
      %v824 = vmax.f32 %v770, 0.0
      %v825 = vmax.f32 %v775, 0.0
      %v826 = vmax.f32 %v778, 0.0
      %v827 = vmax.f32 %v783, 0.0
      %v828 = vmax.f32 %v786, 0.0
      %v829 = vmax.f32 %v791, 0.0
      %v830 = vmax.f32 %v794, 0.0
      %v831 = vmax.f32 %v799, 0.0
      %v832 = vmax.f32 %v802, 0.0
      %v833 = vmax.f32 %v807, 0.0
      %v834 = vmax.f32 %v810, 0.0
      %v835 = vmax.f32 %v815, 0.0
      %v836 = vmax.f32 %v818, 0.0
      %v837 = vpack.c.bf16 %v822, %v821
      %v838 = vpack.c.bf16 %v824, %v823
      %v839 = vpack.c.bf16 %v826, %v825
      %v840 = vpack.c.bf16 %v828, %v827
      %v841 = vpack.c.bf16 %v830, %v829
      %v842 = vpack.c.bf16 %v832, %v831
      %v843 = vpack.c.bf16 %v834, %v833
      %v844 = vpack.c.bf16 %v836, %v835
      %v845 = vld [vmem:[%s5] sm:$0xf]
      %v846 = vld [vmem:[%s5 + $0x4] sm:$0xf]
      %v847 = vld [vmem:[%s5 + $0x8] sm:$0xf]
      %v848 = vld [vmem:[%s5 + $0xc] sm:$0xf]
      %v849 = vld [vmem:[%s5 + $0x10] sm:$0xf]
      %v850 = vld [vmem:[%s5 + $0x14] sm:$0xf]
      %v851 = vld [vmem:[%s5 + $0x18] sm:$0xf]
      %v852 = vld [vmem:[%s5 + $0x1c] sm:$0xf]
      %v853 = vld [vmem:[%s5 + $0x20] sm:$0xf]
      %v854 = vld [vmem:[%s5 + $0x24] sm:$0xf]
      %v855 = vld [vmem:[%s5 + $0x28] sm:$0xf]
      %v856 = vld [vmem:[%s5 + $0x2c] sm:$0xf]
      %v857 = vld [vmem:[%s5 + $0x30] sm:$0xf]
      %v858 = vld [vmem:[%s5 + $0x34] sm:$0xf]
      %v859 = vld [vmem:[%s5 + $0x38] sm:$0xf]
      %v860 = vld [vmem:[%s5 + $0x3c] sm:$0xf]
      %v861 = vld [vmem:[%s6] sm:$0x1]
      %v863 = vlaneseq
      %v864 = vshrl.u32 %v863, 7
      %v865 = vsub.s32 0, %v864
      %v866 = vrot.slane %v861, %v865
      %v884 = vunpack.c.l.b16 %v845
      %v885 = vunpack.c.l.b16 %v846
      %v886 = vunpack.c.l.b16 %v847
      %v887 = vunpack.c.l.b16 %v848
      %v888 = vunpack.c.l.b16 %v849
      %v889 = vunpack.c.l.b16 %v850
      %v890 = vunpack.c.l.b16 %v851
      %v891 = vunpack.c.l.b16 %v852
      %v892 = vunpack.c.l.b16 %v853
      %v893 = vunpack.c.l.b16 %v854
      %v894 = vunpack.c.l.b16 %v855
      %v895 = vunpack.c.l.b16 %v856
      %v896 = vunpack.c.l.b16 %v857
      %v897 = vunpack.c.l.b16 %v858
      %v898 = vunpack.c.l.b16 %v859
      %v899 = vunpack.c.l.b16 %v860
      %v900 = vpack.c.b16 %v885, %v884
      %v901 = vpack.c.b16 %v887, %v886
      %v902 = vpack.c.b16 %v889, %v888
      %v903 = vpack.c.b16 %v891, %v890
      %v904 = vpack.c.b16 %v893, %v892
      %v905 = vpack.c.b16 %v895, %v894
      %v906 = vpack.c.b16 %v897, %v896
      %v907 = vpack.c.b16 %v899, %v898
      %916 = vmatprep.subr.bf16.mxu0 0
      %917 = vmatpush1.bf16.msra.mxu0 %v900
      %918 = vmatprep.subr.bf16.mxu0 0
      %919 = vmatpush1.bf16.msra.mxu0 %v901
      %920 = vmatprep.subr.bf16.mxu0 0
      %921 = vmatpush1.bf16.msra.mxu0 %v902
      %922 = vmatprep.subr.bf16.mxu0 0
      %923 = vmatpush1.bf16.msra.mxu0 %v903
      %924 = vmatprep.subr.bf16.mxu0 0
      %925 = vmatpush1.bf16.msra.mxu0 %v904
      %926 = vmatprep.subr.bf16.mxu0 0
      %927 = vmatpush1.bf16.msra.mxu0 %v905
      %928 = vmatprep.subr.bf16.mxu0 0
      %929 = vmatpush1.bf16.msra.mxu0 %v906
      %930 = vmatprep.subr.bf16.mxu0 0
      %931 = vmatpush1.bf16.msra.mxu0 %v907
      %932 = vmatprep.subr.bf16.mxu0 0
      %933 = vmatpush1.bf16.msra.mxu0 0
      %934 = vmatprep.subr.bf16.mxu0 0
      %935 = vmatpush1.bf16.msra.mxu0 0
      %936 = vmatprep.subr.bf16.mxu0 0
      %937 = vmatpush1.bf16.msra.mxu0 0
      %938 = vmatprep.subr.bf16.mxu0 0
      %939 = vmatpush1.bf16.msra.mxu0 0
      %940 = vmatprep.subr.bf16.mxu0 0
      %941 = vmatpush1.bf16.msra.mxu0 0
      %942 = vmatprep.subr.bf16.mxu0 0
      %943 = vmatpush1.bf16.msra.mxu0 0
      %944 = vmatprep.subr.bf16.mxu0 0
      %945 = vmatpush1.bf16.msra.mxu0 0
      %946 = vmatprep.subr.bf16.mxu0 0
      %947 = vmatpush1.bf16.msra.mxu0 0
      %948 = vmatprep.mubr.bf16.mxu0 0
      %949 = vmatmul.mubr.bf16.gmra.mrb[0].mxu0 %v837
      %v950 = vpop.f32.mrb[0].mxu0
      %v951 = vadd.f32 %v866, %v950
      %v952 = vpop.f32.mrb[0].mxu0
      %v953 = vpop.f32.mrb[0].mxu0
      %v954 = vadd.f32 %v866, %v953
      %v955 = vpop.f32.mrb[0].mxu0
      %956 = vmatprep.mubr.bf16.mxu0 0
      %957 = vmatmul.mubr.bf16.gmra.mrb[0].mxu0 %v838
      %v958 = vpop.f32.mrb[0].mxu0
      %v959 = vadd.f32 %v866, %v958
      %v960 = vpop.f32.mrb[0].mxu0
      %v961 = vpop.f32.mrb[0].mxu0
      %v962 = vadd.f32 %v866, %v961
      %v963 = vpop.f32.mrb[0].mxu0
      %964 = vmatprep.mubr.bf16.mxu0 0
      %965 = vmatmul.mubr.bf16.gmra.mrb[0].mxu0 %v839
      %v966 = vpop.f32.mrb[0].mxu0
      %v967 = vadd.f32 %v866, %v966
      %v968 = vpop.f32.mrb[0].mxu0
      %v969 = vpop.f32.mrb[0].mxu0
      %v970 = vadd.f32 %v866, %v969
      %v971 = vpop.f32.mrb[0].mxu0
      %972 = vmatprep.mubr.bf16.mxu0 0
      %973 = vmatmul.mubr.bf16.gmra.mrb[0].mxu0 %v840
      %v974 = vpop.f32.mrb[0].mxu0
      %v975 = vadd.f32 %v866, %v974
      %v976 = vpop.f32.mrb[0].mxu0
      %v977 = vpop.f32.mrb[0].mxu0
      %v978 = vadd.f32 %v866, %v977
      %v979 = vpop.f32.mrb[0].mxu0
      %980 = vmatprep.mubr.bf16.mxu0 0
      %981 = vmatmul.mubr.bf16.gmra.mrb[0].mxu0 %v841
      %v982 = vpop.f32.mrb[0].mxu0
      %v983 = vadd.f32 %v866, %v982
      %v984 = vpop.f32.mrb[0].mxu0
      %v985 = vpop.f32.mrb[0].mxu0
      %v986 = vadd.f32 %v866, %v985
      %v987 = vpop.f32.mrb[0].mxu0
      %988 = vmatprep.mubr.bf16.mxu0 0
      %989 = vmatmul.mubr.bf16.gmra.mrb[0].mxu0 %v842
      %v990 = vpop.f32.mrb[0].mxu0
      %v991 = vadd.f32 %v866, %v990
      %v992 = vpop.f32.mrb[0].mxu0
      %v993 = vpop.f32.mrb[0].mxu0
      %v994 = vadd.f32 %v866, %v993
      %v995 = vpop.f32.mrb[0].mxu0
      %996 = vmatprep.mubr.bf16.mxu0 0
      %997 = vmatmul.mubr.bf16.gmra.mrb[0].mxu0 %v843
      %v998 = vpop.f32.mrb[0].mxu0
      %v999 = vadd.f32 %v866, %v998
      %v1000 = vpop.f32.mrb[0].mxu0
      %v1001 = vpop.f32.mrb[0].mxu0
      %v1002 = vadd.f32 %v866, %v1001
      %v1003 = vpop.f32.mrb[0].mxu0
      %1004 = vmatprep.mubr.bf16.mxu0 0
      %1005 = vmatmul.mubr.bf16.gmra.mrb[0].mxu0 %v844
      %v1006 = vpop.f32.mrb[0].mxu0
      %v1007 = vadd.f32 %v866, %v1006
      %v1008 = vpop.f32.mrb[0].mxu0
      %v1009 = vpop.f32.mrb[0].mxu0
      %v1010 = vadd.f32 %v866, %v1009
      %v1011 = vpop.f32.mrb[0].mxu0
      %1012 = vdwg.mxu0
      %v1013 = vmax.f32 %v951, 0.0
      %v1014 = vmax.f32 %v954, 0.0
      %v1015 = vmax.f32 %v959, 0.0
      %v1016 = vmax.f32 %v962, 0.0
      %v1017 = vmax.f32 %v967, 0.0
      %v1018 = vmax.f32 %v970, 0.0
      %v1019 = vmax.f32 %v975, 0.0
      %v1020 = vmax.f32 %v978, 0.0
      %v1021 = vmax.f32 %v983, 0.0
      %v1022 = vmax.f32 %v986, 0.0
      %v1023 = vmax.f32 %v991, 0.0
      %v1024 = vmax.f32 %v994, 0.0
      %v1025 = vmax.f32 %v999, 0.0
      %v1026 = vmax.f32 %v1002, 0.0
      %v1027 = vmax.f32 %v1007, 0.0
      %v1028 = vmax.f32 %v1010, 0.0
      %v1029 = vpack.c.bf16 %v1014, %v1013
      %v1030 = vpack.c.bf16 %v1016, %v1015
      %v1031 = vpack.c.bf16 %v1018, %v1017
      %v1032 = vpack.c.bf16 %v1020, %v1019
      %v1033 = vpack.c.bf16 %v1022, %v1021
      %v1034 = vpack.c.bf16 %v1024, %v1023
      %v1035 = vpack.c.bf16 %v1026, %v1025
      %v1036 = vpack.c.bf16 %v1028, %v1027
      %v1037 = vld [vmem:[%s7] sm:$0xf]
      %v1038 = vld [vmem:[%s7 + $0x4] sm:$0xf]
      %v1039 = vld [vmem:[%s7 + $0x8] sm:$0xf]
      %v1040 = vld [vmem:[%s7 + $0xc] sm:$0xf]
      %v1041 = vld [vmem:[%s7 + $0x10] sm:$0xf]
      %v1042 = vld [vmem:[%s7 + $0x14] sm:$0xf]
      %v1043 = vld [vmem:[%s7 + $0x18] sm:$0xf]
      %v1044 = vld [vmem:[%s7 + $0x1c] sm:$0xf]
      %v1045 = vld [vmem:[%s7 + $0x20] sm:$0xf]
      %v1046 = vld [vmem:[%s7 + $0x24] sm:$0xf]
      %v1047 = vld [vmem:[%s7 + $0x28] sm:$0xf]
      %v1048 = vld [vmem:[%s7 + $0x2c] sm:$0xf]
      %v1049 = vld [vmem:[%s7 + $0x30] sm:$0xf]
      %v1050 = vld [vmem:[%s7 + $0x34] sm:$0xf]
      %v1051 = vld [vmem:[%s7 + $0x38] sm:$0xf]
      %v1052 = vld [vmem:[%s7 + $0x3c] sm:$0xf]
      %v1053 = vld [vmem:[%s8] sm:$0x1]
      %v1055 = vlaneseq
      %v1056 = vshrl.u32 %v1055, 7
      %v1057 = vsub.s32 0, %v1056
      %v1058 = vrot.slane %v1053, %v1057
      %v1076 = vunpack.c.l.b16 %v1037
      %v1077 = vunpack.c.l.b16 %v1038
      %v1078 = vunpack.c.l.b16 %v1039
      %v1079 = vunpack.c.l.b16 %v1040
      %v1080 = vunpack.c.l.b16 %v1041
      %v1081 = vunpack.c.l.b16 %v1042
      %v1082 = vunpack.c.l.b16 %v1043
      %v1083 = vunpack.c.l.b16 %v1044
      %v1084 = vunpack.c.l.b16 %v1045
      %v1085 = vunpack.c.l.b16 %v1046
      %v1086 = vunpack.c.l.b16 %v1047
      %v1087 = vunpack.c.l.b16 %v1048
      %v1088 = vunpack.c.l.b16 %v1049
      %v1089 = vunpack.c.l.b16 %v1050
      %v1090 = vunpack.c.l.b16 %v1051
      %v1091 = vunpack.c.l.b16 %v1052
      %v1092 = vpack.c.b16 %v1077, %v1076
      %v1093 = vpack.c.b16 %v1079, %v1078
      %v1094 = vpack.c.b16 %v1081, %v1080
      %v1095 = vpack.c.b16 %v1083, %v1082
      %v1096 = vpack.c.b16 %v1085, %v1084
      %v1097 = vpack.c.b16 %v1087, %v1086
      %v1098 = vpack.c.b16 %v1089, %v1088
      %v1099 = vpack.c.b16 %v1091, %v1090
      %1108 = vmatprep.subr.bf16.mxu0 0
      %1109 = vmatpush1.bf16.msra.mxu0 %v1092
      %1110 = vmatprep.subr.bf16.mxu0 0
      %1111 = vmatpush1.bf16.msra.mxu0 %v1093
      %1112 = vmatprep.subr.bf16.mxu0 0
      %1113 = vmatpush1.bf16.msra.mxu0 %v1094
      %1114 = vmatprep.subr.bf16.mxu0 0
      %1115 = vmatpush1.bf16.msra.mxu0 %v1095
      %1116 = vmatprep.subr.bf16.mxu0 0
      %1117 = vmatpush1.bf16.msra.mxu0 %v1096
      %1118 = vmatprep.subr.bf16.mxu0 0
      %1119 = vmatpush1.bf16.msra.mxu0 %v1097
      %1120 = vmatprep.subr.bf16.mxu0 0
      %1121 = vmatpush1.bf16.msra.mxu0 %v1098
      %1122 = vmatprep.subr.bf16.mxu0 0
      %1123 = vmatpush1.bf16.msra.mxu0 %v1099
      %1124 = vmatprep.subr.bf16.mxu0 0
      %1125 = vmatpush1.bf16.msra.mxu0 0
      %1126 = vmatprep.subr.bf16.mxu0 0
      %1127 = vmatpush1.bf16.msra.mxu0 0
      %1128 = vmatprep.subr.bf16.mxu0 0
      %1129 = vmatpush1.bf16.msra.mxu0 0
      %1130 = vmatprep.subr.bf16.mxu0 0
      %1131 = vmatpush1.bf16.msra.mxu0 0
      %1132 = vmatprep.subr.bf16.mxu0 0
      %1133 = vmatpush1.bf16.msra.mxu0 0
      %1134 = vmatprep.subr.bf16.mxu0 0
      %1135 = vmatpush1.bf16.msra.mxu0 0
      %1136 = vmatprep.subr.bf16.mxu0 0
      %1137 = vmatpush1.bf16.msra.mxu0 0
      %1138 = vmatprep.subr.bf16.mxu0 0
      %1139 = vmatpush1.bf16.msra.mxu0 0
      %1140 = vmatprep.mubr.bf16.mxu0 0
      %1141 = vmatmul.mubr.bf16.gmra.mrb[0].mxu0 %v1029
      %v1142 = vpop.f32.mrb[0].mxu0
      %v1143 = vadd.f32 %v1058, %v1142
      %v1144 = vpop.f32.mrb[0].mxu0
      %v1145 = vpop.f32.mrb[0].mxu0
      %v1146 = vadd.f32 %v1058, %v1145
      %v1147 = vpop.f32.mrb[0].mxu0
      %1148 = vmatprep.mubr.bf16.mxu0 0
      %1149 = vmatmul.mubr.bf16.gmra.mrb[0].mxu0 %v1030
      %v1150 = vpop.f32.mrb[0].mxu0
      %v1151 = vadd.f32 %v1058, %v1150
      %v1152 = vpop.f32.mrb[0].mxu0
      %v1153 = vpop.f32.mrb[0].mxu0
      %v1154 = vadd.f32 %v1058, %v1153
      %v1155 = vpop.f32.mrb[0].mxu0
      %1156 = vmatprep.mubr.bf16.mxu0 0
      %1157 = vmatmul.mubr.bf16.gmra.mrb[0].mxu0 %v1031
      %v1158 = vpop.f32.mrb[0].mxu0
      %v1159 = vadd.f32 %v1058, %v1158
      %v1160 = vpop.f32.mrb[0].mxu0
      %v1161 = vpop.f32.mrb[0].mxu0
      %v1162 = vadd.f32 %v1058, %v1161
      %v1163 = vpop.f32.mrb[0].mxu0
      %1164 = vmatprep.mubr.bf16.mxu0 0
      %1165 = vmatmul.mubr.bf16.gmra.mrb[0].mxu0 %v1032
      %v1166 = vpop.f32.mrb[0].mxu0
      %v1167 = vadd.f32 %v1058, %v1166
      %v1168 = vpop.f32.mrb[0].mxu0
      %v1169 = vpop.f32.mrb[0].mxu0
      %v1170 = vadd.f32 %v1058, %v1169
      %v1171 = vpop.f32.mrb[0].mxu0
      %1172 = vmatprep.mubr.bf16.mxu0 0
      %1173 = vmatmul.mubr.bf16.gmra.mrb[0].mxu0 %v1033
      %v1174 = vpop.f32.mrb[0].mxu0
      %v1175 = vadd.f32 %v1058, %v1174
      %v1176 = vpop.f32.mrb[0].mxu0
      %v1177 = vpop.f32.mrb[0].mxu0
      %v1178 = vadd.f32 %v1058, %v1177
      %v1179 = vpop.f32.mrb[0].mxu0
      %1180 = vmatprep.mubr.bf16.mxu0 0
      %1181 = vmatmul.mubr.bf16.gmra.mrb[0].mxu0 %v1034
      %v1182 = vpop.f32.mrb[0].mxu0
      %v1183 = vadd.f32 %v1058, %v1182
      %v1184 = vpop.f32.mrb[0].mxu0
      %v1185 = vpop.f32.mrb[0].mxu0
      %v1186 = vadd.f32 %v1058, %v1185
      %v1187 = vpop.f32.mrb[0].mxu0
      %1188 = vmatprep.mubr.bf16.mxu0 0
      %1189 = vmatmul.mubr.bf16.gmra.mrb[0].mxu0 %v1035
      %v1190 = vpop.f32.mrb[0].mxu0
      %v1191 = vadd.f32 %v1058, %v1190
      %v1192 = vpop.f32.mrb[0].mxu0
      %v1193 = vpop.f32.mrb[0].mxu0
      %v1194 = vadd.f32 %v1058, %v1193
      %v1195 = vpop.f32.mrb[0].mxu0
      %1196 = vmatprep.mubr.bf16.mxu0 0
      %1197 = vmatmul.mubr.bf16.gmra.mrb[0].mxu0 %v1036
      %v1198 = vpop.f32.mrb[0].mxu0
      %v1199 = vadd.f32 %v1058, %v1198
      %v1200 = vpop.f32.mrb[0].mxu0
      %v1201 = vpop.f32.mrb[0].mxu0
      %v1202 = vadd.f32 %v1058, %v1201
      %v1203 = vpop.f32.mrb[0].mxu0
      %1204 = vdwg.mxu0
      %1205 = vst [vmem:[%s337] sm:$0xff] %v1143
      %1206 = vst [vmem:[%s337 + $0x8] sm:$0xff] %v1146
      %1207 = vst [vmem:[%s337 + $0x10] sm:$0xff] %v1151
      %1208 = vst [vmem:[%s337 + $0x18] sm:$0xff] %v1154
      %1209 = vst [vmem:[%s337 + $0x20] sm:$0xff] %v1159
      %1210 = vst [vmem:[%s337 + $0x28] sm:$0xff] %v1162
      %1211 = vst [vmem:[%s337 + $0x30] sm:$0xff] %v1167
      %1212 = vst [vmem:[%s337 + $0x38] sm:$0xff] %v1170
      %1213 = vst [vmem:[%s337 + $0x40] sm:$0xff] %v1175
      %1214 = vst [vmem:[%s337 + $0x48] sm:$0xff] %v1178
      %1215 = vst [vmem:[%s337 + $0x50] sm:$0xff] %v1183
      %1216 = vst [vmem:[%s337 + $0x58] sm:$0xff] %v1186
      %1217 = vst [vmem:[%s337 + $0x60] sm:$0xff] %v1191
      %1218 = vst [vmem:[%s337 + $0x68] sm:$0xff] %v1194
      %1219 = vst [vmem:[%s337 + $0x70] sm:$0xff] %v1199
      %1220 = vst [vmem:[%s337 + $0x78] sm:$0xff] %v1202
      %s1221 = smul.u32 16, %s20
      %p1222 = scmp.lt.s32.totalorder %s1221, 31
      %s1223 = scalar_select %p1222, %s1221, 31
      %s1224 = smul.addr %s1223, 8
      %s1225 = scalar_lea.vmem %s9, %s1224
      // Predicated region
      $region57: #{pointnet_plus_forward.11} parent=55 // pred_check
        %p1226 = pneg %p232
      $region58: #{pointnet_plus_forward.11} parent=55 // pred_check_branch
        %1228 = sbr.rel (%p1226) target = $region60
      $region59: #{pointnet_plus_forward.11} parent=55 // pred_region
        %s1229 = smul.u32 16, %s20
      $region60: #{pointnet_plus_forward.11} parent=55 // pred_fallthru
        _
    $region56: #{pointnet_plus_forward.11} parent=5 // pred_fallthru
      _
    %p1230 = scmp.le.s32.totalorder 2, %s15
    // Predicated region
    $region61: #{pointnet_plus_forward.11} parent=5 // pred_check
      %p1231 = pneg %p1230
    $region62: #{pointnet_plus_forward.11} parent=5 // pred_check_branch
      %1233 = sbr.rel (%p1231) target = $region64
    $region63: #{pointnet_plus_forward.11} parent=5 // pred_region
      %s1234 = ssub.s32 %s15, 2
      // Predicated region
      $region65: #{pointnet_plus_forward.11} parent=63 // pred_check
        %p1235 = pneg %p238
      $region66: #{pointnet_plus_forward.11} parent=63 // pred_check_branch
        %1237 = sbr.rel (%p1235) target = $region68
      $region67: #{pointnet_plus_forward.11} parent=63 // pred_region
        %s1238 = smul.u32 16, %s21
        %p1239 = scmp.lt.s32.totalorder %s1238, 31
        %s1240 = scalar_select %p1239, %s1238, 31
        %s1241 = smul.addr %s1240, 8
        %s1242 = scalar_lea.vmem %s9, %s1241
      $region68: #{pointnet_plus_forward.11} parent=63 // pred_fallthru
        _
    $region64: #{pointnet_plus_forward.11} parent=5 // pred_fallthru
      _
  $region6: #{pointnet_plus_forward.11} parent=0 // loop_footer
    %s19 = sadd.s32 1, %s15
  $region7: #{pointnet_plus_forward.11} parent=0 // loop_footer_branch
    %14 = sbr.rel target = $region3
  $region8: #{pointnet_plus_forward.11} parent=0 // loop_exit
    _

</llo_original>
